<compile_context>
chip_gen: v6e
topology: v6e:2x2x1
jax: 0.10.0
libtpu: 0.0.40
codegen_flags: <defaults>
</compile_context>

<pallas_src>
import numpy as np
import jax
import jax.numpy as jnp
from jax import lax
from jax.experimental import pallas as pl
from jax.experimental.pallas import tpu as pltpu

# ---------------------------------------------------------------------------
# Layout constants
# ---------------------------------------------------------------------------
CP = 128                    # lane width: every channel / feature dim padded to 128
BATCH = 8                   # images per grid step
KH = KW = 5

# conv1 (im2col) geometry: 28x28 outputs, rows stored de-interleaved:
#   row(y, x) = (y%2)*392 + (x%2)*196 + (y//2)*14 + (x//2)
IMG_ROWS = 28 * 28          # 784 im2col rows per image
QBLK = 14 * 14              # 196 rows per (y%2, x%2) parity block
C1_CHUNK = 112              # conv1 row chunk (7 chunks; multiple of 16 -> aligned bf16 loads)

# pool1 output / conv2 input: 14x14 map, flat row = y*14 + x (stride 14, no pad columns)
P1_STRIDE = 14
P1_ROWS = QBLK              # 196
M2 = 9 * P1_STRIDE + 9 + 1  # 136 dense conv2 rows (valid outputs have y,x <= 9)

# pool2 output / conv3 input: 5x5 map on an 8-row stride
P2_STRIDE = 8
P2_ROWS = 48                # >= (M3-1) + 4*8 + 4 + 1 = 44, rounded up
M3 = 8                      # dense conv3 rows; only row 0 is the real 1x1 output


# ---------------------------------------------------------------------------
# Fused kernel: one grid step == BATCH images
# ---------------------------------------------------------------------------
def _lenet_kernel(x_ref, w1_ref, w2_ref, w3_ref, wf1_ref, wf2_ref, b_ref, pm2_ref,
                  out_ref, a1_ref, p1_ref, p2_ref, a3_ref):
    f32, bf16 = jnp.float32, jnp.bfloat16
    b1, b2, b3 = b_ref[0:1, :], b_ref[1:2, :], b_ref[2:3, :]
    bfc1, bfc2 = b_ref[3:4, :], b_ref[4:5, :]

    def per_image(b, carry):
        base = pl.multiple_of(b * IMG_ROWS, 16)

        # conv1: im2col'd input -> one K=128 bf16 matmul per 112-row chunk
        # (f32 accumulator of a chunk = 14 vregs, stays in registers)
        for c in range(0, IMG_ROWS, C1_CHUNK):
            lhs = x_ref[pl.ds(base + c, C1_CHUNK), :]                 # (112,128) bf16
            acc = jnp.dot(lhs, w1_ref[...], preferred_element_type=f32)
            a1_ref[pl.ds(c, C1_CHUNK), :] = jnp.tanh(acc + b1)

        # pool1: rows are de-interleaved, so the 2x2 average is 4 contiguous adds (VPU only)
        p1_ref[...] = 0.25 * (a1_ref[pl.ds(0 * QBLK, QBLK), :]
                              + a1_ref[pl.ds(1 * QBLK, QBLK), :]
                              + a1_ref[pl.ds(2 * QBLK, QBLK), :]
                              + a1_ref[pl.ds(3 * QBLK, QBLK), :])

        # conv2: 25-tap shifted matmul; (136,128) f32 acc = 17 vregs in registers
        acc2 = jnp.zeros((M2, CP), f32)
        for i in range(KH):
            for j in range(KW):
                lhs = p1_ref[pl.ds(i * P1_STRIDE + j, M2), :].astype(bf16)
                acc2 = acc2 + jnp.dot(lhs, w2_ref[i * KW + j],
                                      preferred_element_type=f32)
        a2 = jnp.tanh(acc2 + b2)

        # pool2: tiny constant 0/0.25 selection matmul that also re-lays rows out for conv3
        p2_ref[...] = jnp.dot(pm2_ref[...], a2.astype(bf16), preferred_element_type=f32)

        # conv3: 25-tap shifted matmul; only dense row 0 is the true 1x1 output
        acc3 = jnp.zeros((M3, CP), f32)
        for i in range(KH):
            for j in range(KW):
                lhs = p2_ref[pl.ds(i * P2_STRIDE + j, M3), :].astype(bf16)
                acc3 = acc3 + jnp.dot(lhs, w3_ref[i * KW + j],
                                      preferred_element_type=f32)
        a3_ref[pl.ds(pl.multiple_of(b * M3, M3), M3), :] = jnp.tanh(acc3 + b3)
        return carry

    lax.fori_loop(0, BATCH, per_image, 0)

    # fc1 + fc2 once on the stacked batch (only rows b*8 carry real data)
    h = jnp.tanh(jnp.dot(a3_ref[...].astype(bf16), wf1_ref[...],
                         preferred_element_type=f32) + bfc1)
    out_ref[...] = jnp.dot(h.astype(bf16), wf2_ref[...],
                           preferred_element_type=f32) + bfc2


# ---------------------------------------------------------------------------
# One-time parameter preparation (all padding / transposes / bf16 casts live here)
# ---------------------------------------------------------------------------
def prepare_params(params):
    bf16 = jnp.bfloat16

    def conv_taps(w, cin, cout):   # (O,C,5,5) -> (25,128,128) bf16, tap t = i*5 + j
        t = jnp.transpose(w.astype(jnp.float32), (2, 3, 1, 0)).reshape(KH * KW, cin, cout)
        return jnp.zeros((KH * KW, CP, CP), jnp.float32).at[:, :cin, :cout].set(t).astype(bf16)

    def fc_mat(w):                 # (out,in) -> (128,128) bf16 holding w.T
        o, i = w.shape
        return (jnp.zeros((CP, CP), jnp.float32)
                .at[:i, :o].set(w.astype(jnp.float32).T).astype(bf16))

    # conv1 tap-packed: lane k = (i*5 + j)*3 + c  (matches the host-side im2col ordering)
    w1 = jnp.transpose(params["conv1_w"].astype(jnp.float32), (2, 3, 1, 0)).reshape(75, 6)
    w1p = jnp.zeros((CP, CP), jnp.float32).at[:75, :6].set(w1).astype(bf16)

    bias = jnp.zeros((8, CP), jnp.float32)
    for r, name in enumerate(["conv1_b", "conv2_b", "conv3_b", "fc1_b", "fc2_b"]):
        b = params[name].astype(jnp.float32)
        bias = bias.at[r, :b.shape[0]].set(b)

    # pool2 selection matrix: conv2 dense rows (stride 14) -> p2 rows (stride 8); 0.25 exact in bf16
    pm2 = np.zeros((P2_ROWS, M2), np.float32)
    for yo in range(5):
        for xo in range(5):
            p = yo * P2_STRIDE + xo
            for dy in (0, 1):
                for dx in (0, 1):
                    pm2[p, (2 * yo + dy) * P1_STRIDE + (2 * xo + dx)] = 0.25

    return {
        "w1": w1p,
        "w2": conv_taps(params["conv2_w"], 6, 16),
        "w3": conv_taps(params["conv3_w"], 16, 120),
        "wf1": fc_mat(params["fc1_w"]),
        "wf2": fc_mat(params["fc2_w"]),
        "bias": bias,
        "pm2": jnp.asarray(pm2).astype(bf16),
    }


# ---------------------------------------------------------------------------
# Host-side conv1 im2col (bf16, de-interleaved row order)
# ---------------------------------------------------------------------------
def _im2col_conv1(x):
    n = x.shape[0]
    xt = jnp.transpose(x.astype(jnp.float32), (0, 2, 3, 1))              # (N,32,32,3)
    pats = jnp.stack([xt[:, i:i + 28, j:j + 28, :]
                      for i in range(KH) for j in range(KW)], axis=3)     # (N,28,28,25,3)
    pats = pats.reshape(n, 14, 2, 14, 2, KH * KW, 3)                      # (N,yq,yr,xq,xr,tap,c)
    pats = jnp.transpose(pats, (0, 2, 4, 1, 3, 5, 6)).reshape(n, IMG_ROWS, 75)
    pats = jnp.pad(pats, ((0, 0), (0, 0), (0, CP - 75)))
    return pats.astype(jnp.bfloat16)                                      # (N,784,128)


# ---------------------------------------------------------------------------
# Forward pass
# ---------------------------------------------------------------------------
def lenet_forward(prep, x):
    n = x.shape[0]
    g = pl.cdiv(n, BATCH)
    n_pad = g * BATCH

    cols = _im2col_conv1(x)                                               # (n,784,128) bf16
    cols = jnp.pad(cols, ((0, n_pad - n), (0, 0), (0, 0)))
    cols = cols.reshape(n_pad * IMG_ROWS, CP)

    out = pl.pallas_call(
        _lenet_kernel,
        out_shape=jax.ShapeDtypeStruct((n_pad * M3, CP), jnp.float32),
        grid=(g,),
        in_specs=[
            pl.BlockSpec((BATCH * IMG_ROWS, CP), lambda i: (i, 0)),       # im2col input
            pl.BlockSpec((CP, CP), lambda i: (0, 0)),                     # conv1 packed taps
            pl.BlockSpec((KH * KW, CP, CP), lambda i: (0, 0, 0)),         # conv2 taps
            pl.BlockSpec((KH * KW, CP, CP), lambda i: (0, 0, 0)),         # conv3 taps
            pl.BlockSpec((CP, CP), lambda i: (0, 0)),                     # fc1 weight
            pl.BlockSpec((CP, CP), lambda i: (0, 0)),                     # fc2 weight
            pl.BlockSpec((8, CP), lambda i: (0, 0)),                      # packed biases (f32)
            pl.BlockSpec((P2_ROWS, M2), lambda i: (0, 0)),                # pool2 matrix
        ],
        out_specs=pl.BlockSpec((BATCH * M3, CP), lambda i: (i, 0)),
        scratch_shapes=[
            pltpu.VMEM((IMG_ROWS, CP), jnp.float32),                      # a1 (conv1 out)
            pltpu.VMEM((P1_ROWS, CP), jnp.float32),                       # p1 (pool1 out)
            pltpu.VMEM((P2_ROWS, CP), jnp.float32),                       # p2 (pool2 out)
            pltpu.VMEM((BATCH * M3, CP), jnp.float32),                    # stacked conv3 out
        ],
        compiler_params=pltpu.CompilerParams(
            dimension_semantics=("parallel",),
            vmem_limit_bytes=32 * 1024 * 1024),
    )(cols, prep["w1"], prep["w2"], prep["w3"], prep["wf1"], prep["wf2"],
      prep["bias"], prep["pm2"])

    return out.reshape(n_pad, M3, CP)[:n, 0, :7]


# ---------------------------------------------------------------------------
# Deterministic PyTorch-style (fan-in uniform) parameter init
# ---------------------------------------------------------------------------
def init_params(key):
    keys = jax.random.split(key, 10)

    def u(k, shape, fan_in):
        bound = 1.0 / float(fan_in) ** 0.5
        return jax.random.uniform(k, shape, jnp.float32, -bound, bound)

    return {
        "conv1_w": u(keys[0], (6, 3, 5, 5), 3 * 25),
        "conv1_b": u(keys[1], (6,), 3 * 25),
        "conv2_w": u(keys[2], (16, 6, 5, 5), 6 * 25),
        "conv2_b": u(keys[3], (16,), 6 * 25),
        "conv3_w": u(keys[4], (120, 16, 5, 5), 16 * 25),
        "conv3_b": u(keys[5], (120,), 16 * 25),
        "fc1_w": u(keys[6], (84, 120), 120),
        "fc1_b": u(keys[7], (84,), 120),
        "fc2_w": u(keys[8], (7, 84), 84),
        "fc2_b": u(keys[9], (7,), 84),
    }


if __name__ == "__main__":
    key = jax.random.PRNGKey(0)
    pkey, xkey = jax.random.split(key)
    params = init_params(pkey)
    prep = prepare_params(params)                       # one-time weight prep (bf16, padded)
    x = jax.random.normal(xkey, (2, 3, 32, 32), jnp.float32)

    fwd = jax.jit(lenet_forward)
    out = jax.block_until_ready(fwd(prep, x))

    assert out.shape == (2, 7) and out.dtype == jnp.float32
    assert bool(jnp.all(jnp.isfinite(out)))
    print("KERNEL_OK")
</pallas_src>

<mosaic_0001>
module attributes {stable_mosaic.version = 11 : i64} {
  func.func @_lenet_kernel(%arg0: i32, %arg1: memref<6272x128xbf16, #tpu.memory_space<vmem>>, %arg2: memref<128x128xbf16, #tpu.memory_space<vmem>>, %arg3: memref<25x128x128xbf16, #tpu.memory_space<vmem>>, %arg4: memref<25x128x128xbf16, #tpu.memory_space<vmem>>, %arg5: memref<128x128xbf16, #tpu.memory_space<vmem>>, %arg6: memref<128x128xbf16, #tpu.memory_space<vmem>>, %arg7: memref<8x128xf32, #tpu.memory_space<vmem>>, %arg8: memref<48x136xbf16, #tpu.memory_space<vmem>>, %arg9: memref<64x128xf32, #tpu.memory_space<vmem>>, %arg10: memref<784x128xf32, #tpu.memory_space<vmem>>, %arg11: memref<196x128xf32, #tpu.memory_space<vmem>>, %arg12: memref<48x128xf32, #tpu.memory_space<vmem>>, %arg13: memref<64x128xf32, #tpu.memory_space<vmem>>) attributes {dimension_semantics = [#tpu.dimension_semantics<parallel>], iteration_bounds = array<i64: 1>, scalar_prefetch = 0 : i64, scratch_operands = 4 : i64, tpu.core_type = #tpu.core_type<tc>, window_params = [{transform_indices = @transform_0, window_bounds = array<i64: 6272, 128>}, {pipeline_mode = #tpu.pipeline_mode<synchronous>, transform_indices = @transform_1, window_bounds = array<i64: 128, 128>}, {pipeline_mode = #tpu.pipeline_mode<synchronous>, transform_indices = @transform_2, window_bounds = array<i64: 25, 128, 128>}, {pipeline_mode = #tpu.pipeline_mode<synchronous>, transform_indices = @transform_3, window_bounds = array<i64: 25, 128, 128>}, {pipeline_mode = #tpu.pipeline_mode<synchronous>, transform_indices = @transform_4, window_bounds = array<i64: 128, 128>}, {pipeline_mode = #tpu.pipeline_mode<synchronous>, transform_indices = @transform_5, window_bounds = array<i64: 128, 128>}, {pipeline_mode = #tpu.pipeline_mode<synchronous>, transform_indices = @transform_6, window_bounds = array<i64: 8, 128>}, {pipeline_mode = #tpu.pipeline_mode<synchronous>, transform_indices = @transform_7, window_bounds = array<i64: 48, 136>}, {transform_indices = @transform_8, window_bounds = array<i64: 64, 128>}]} {
    %c0 = arith.constant 0 : index
    %c0_0 = arith.constant 0 : index
    %0 = vector.load %arg7[%c0, %c0_0] : memref<8x128xf32, #tpu.memory_space<vmem>>, vector<1x128xf32>
    %c1 = arith.constant 1 : index
    %c0_1 = arith.constant 0 : index
    %1 = vector.load %arg7[%c1, %c0_1] : memref<8x128xf32, #tpu.memory_space<vmem>>, vector<1x128xf32>
    %c2 = arith.constant 2 : index
    %c0_2 = arith.constant 0 : index
    %2 = vector.load %arg7[%c2, %c0_2] : memref<8x128xf32, #tpu.memory_space<vmem>>, vector<1x128xf32>
    %c3 = arith.constant 3 : index
    %c0_3 = arith.constant 0 : index
    %3 = vector.load %arg7[%c3, %c0_3] : memref<8x128xf32, #tpu.memory_space<vmem>>, vector<1x128xf32>
    %c4 = arith.constant 4 : index
    %c0_4 = arith.constant 0 : index
    %4 = vector.load %arg7[%c4, %c0_4] : memref<8x128xf32, #tpu.memory_space<vmem>>, vector<1x128xf32>
    %c0_i32 = arith.constant 0 : i32
    %c8_i32 = arith.constant 8 : i32
    %5 = arith.addi %c0_i32, %c8_i32 : i32
    %c1_i32 = arith.constant 1 : i32
    scf.for %arg14 = %c0_i32 to %5 step %c1_i32  : i32 {
      %c784_i32 = arith.constant 784 : i32
      %19 = arith.muli %arg14, %c784_i32 : i32
      %20 = tpu.assume_multiple %19, 16 : i32
      %c0_i32_15 = arith.constant 0 : i32
      %21 = arith.addi %20, %c0_i32_15 : i32
      %22 = arith.index_cast %21 : i32 to index
      %c0_16 = arith.constant 0 : index
      %23 = vector.load %arg1[%22, %c0_16] : memref<6272x128xbf16, #tpu.memory_space<vmem>>, vector<112x128xbf16>
      %c0_17 = arith.constant 0 : index
      %c0_18 = arith.constant 0 : index
      %24 = vector.load %arg2[%c0_17, %c0_18] : memref<128x128xbf16, #tpu.memory_space<vmem>>, vector<128x128xbf16>
      %cst_19 = arith.constant dense<0.000000e+00> : vector<112x128xf32>
      %25 = tpu.matmul %23, %24, %cst_19 {dimension_numbers = #tpu.dot_dimension_numbers<[1], [0], [0], [1], [0, 0, 1, 1], [], []>} : vector<112x128xbf16>, vector<128x128xbf16>, vector<112x128xf32> -> vector<112x128xf32>
      %26 = vector.broadcast %0 : vector<1x128xf32> to vector<112x128xf32>
      %27 = arith.addf %25, %26 : vector<112x128xf32>
      %28 = math.tanh %27 : vector<112x128xf32>
      %c0_20 = arith.constant 0 : index
      %c0_21 = arith.constant 0 : index
      %29 = vector.load %arg10[%c0_20, %c0_21] : memref<784x128xf32, #tpu.memory_space<vmem>>, vector<112x128xf32>
      tpu.vector_store %arg10[%c0_20, %c0_21], %28 {strides = array<i32>} : memref<784x128xf32, #tpu.memory_space<vmem>>, vector<112x128xf32>,
      %c112_i32 = arith.constant 112 : i32
      %30 = arith.addi %20, %c112_i32 : i32
      %31 = arith.index_cast %30 : i32 to index
      %c0_22 = arith.constant 0 : index
      %32 = vector.load %arg1[%31, %c0_22] : memref<6272x128xbf16, #tpu.memory_space<vmem>>, vector<112x128xbf16>
      %c0_23 = arith.constant 0 : index
      %c0_24 = arith.constant 0 : index
      %33 = vector.load %arg2[%c0_23, %c0_24] : memref<128x128xbf16, #tpu.memory_space<vmem>>, vector<128x128xbf16>
      %cst_25 = arith.constant dense<0.000000e+00> : vector<112x128xf32>
      %34 = tpu.matmul %32, %33, %cst_25 {dimension_numbers = #tpu.dot_dimension_numbers<[1], [0], [0], [1], [0, 0, 1, 1], [], []>} : vector<112x128xbf16>, vector<128x128xbf16>, vector<112x128xf32> -> vector<112x128xf32>
      %35 = vector.broadcast %0 : vector<1x128xf32> to vector<112x128xf32>
      %36 = arith.addf %34, %35 : vector<112x128xf32>
      %37 = math.tanh %36 : vector<112x128xf32>
      %c112 = arith.constant 112 : index
      %c0_26 = arith.constant 0 : index
      %38 = vector.load %arg10[%c112, %c0_26] : memref<784x128xf32, #tpu.memory_space<vmem>>, vector<112x128xf32>
      tpu.vector_store %arg10[%c112, %c0_26], %37 {strides = array<i32>} : memref<784x128xf32, #tpu.memory_space<vmem>>, vector<112x128xf32>,
      %c224_i32 = arith.constant 224 : i32
      %39 = arith.addi %20, %c224_i32 : i32
      %40 = arith.index_cast %39 : i32 to index
      %c0_27 = arith.constant 0 : index
      %41 = vector.load %arg1[%40, %c0_27] : memref<6272x128xbf16, #tpu.memory_space<vmem>>, vector<112x128xbf16>
      %c0_28 = arith.constant 0 : index
      %c0_29 = arith.constant 0 : index
      %42 = vector.load %arg2[%c0_28, %c0_29] : memref<128x128xbf16, #tpu.memory_space<vmem>>, vector<128x128xbf16>
      %cst_30 = arith.constant dense<0.000000e+00> : vector<112x128xf32>
      %43 = tpu.matmul %41, %42, %cst_30 {dimension_numbers = #tpu.dot_dimension_numbers<[1], [0], [0], [1], [0, 0, 1, 1], [], []>} : vector<112x128xbf16>, vector<128x128xbf16>, vector<112x128xf32> -> vector<112x128xf32>
      %44 = vector.broadcast %0 : vector<1x128xf32> to vector<112x128xf32>
      %45 = arith.addf %43, %44 : vector<112x128xf32>
      %46 = math.tanh %45 : vector<112x128xf32>
      %c224 = arith.constant 224 : index
      %c0_31 = arith.constant 0 : index
      %47 = vector.load %arg10[%c224, %c0_31] : memref<784x128xf32, #tpu.memory_space<vmem>>, vector<112x128xf32>
      tpu.vector_store %arg10[%c224, %c0_31], %46 {strides = array<i32>} : memref<784x128xf32, #tpu.memory_space<vmem>>, vector<112x128xf32>,
      %c336_i32 = arith.constant 336 : i32
      %48 = arith.addi %20, %c336_i32 : i32
      %49 = arith.index_cast %48 : i32 to index
      %c0_32 = arith.constant 0 : index
      %50 = vector.load %arg1[%49, %c0_32] : memref<6272x128xbf16, #tpu.memory_space<vmem>>, vector<112x128xbf16>
      %c0_33 = arith.constant 0 : index
      %c0_34 = arith.constant 0 : index
      %51 = vector.load %arg2[%c0_33, %c0_34] : memref<128x128xbf16, #tpu.memory_space<vmem>>, vector<128x128xbf16>
      %cst_35 = arith.constant dense<0.000000e+00> : vector<112x128xf32>
      %52 = tpu.matmul %50, %51, %cst_35 {dimension_numbers = #tpu.dot_dimension_numbers<[1], [0], [0], [1], [0, 0, 1, 1], [], []>} : vector<112x128xbf16>, vector<128x128xbf16>, vector<112x128xf32> -> vector<112x128xf32>
      %53 = vector.broadcast %0 : vector<1x128xf32> to vector<112x128xf32>
      %54 = arith.addf %52, %53 : vector<112x128xf32>
      %55 = math.tanh %54 : vector<112x128xf32>
      %c336 = arith.constant 336 : index
      %c0_36 = arith.constant 0 : index
      %56 = vector.load %arg10[%c336, %c0_36] : memref<784x128xf32, #tpu.memory_space<vmem>>, vector<112x128xf32>
      tpu.vector_store %arg10[%c336, %c0_36], %55 {strides = array<i32>} : memref<784x128xf32, #tpu.memory_space<vmem>>, vector<112x128xf32>,
      %c448_i32 = arith.constant 448 : i32
      %57 = arith.addi %20, %c448_i32 : i32
      %58 = arith.index_cast %57 : i32 to index
      %c0_37 = arith.constant 0 : index
      %59 = vector.load %arg1[%58, %c0_37] : memref<6272x128xbf16, #tpu.memory_space<vmem>>, vector<112x128xbf16>
      %c0_38 = arith.constant 0 : index
      %c0_39 = arith.constant 0 : index
      %60 = vector.load %arg2[%c0_38, %c0_39] : memref<128x128xbf16, #tpu.memory_space<vmem>>, vector<128x128xbf16>
      %cst_40 = arith.constant dense<0.000000e+00> : vector<112x128xf32>
      %61 = tpu.matmul %59, %60, %cst_40 {dimension_numbers = #tpu.dot_dimension_numbers<[1], [0], [0], [1], [0, 0, 1, 1], [], []>} : vector<112x128xbf16>, vector<128x128xbf16>, vector<112x128xf32> -> vector<112x128xf32>
      %62 = vector.broadcast %0 : vector<1x128xf32> to vector<112x128xf32>
      %63 = arith.addf %61, %62 : vector<112x128xf32>
      %64 = math.tanh %63 : vector<112x128xf32>
      %c448 = arith.constant 448 : index
      %c0_41 = arith.constant 0 : index
      %65 = vector.load %arg10[%c448, %c0_41] : memref<784x128xf32, #tpu.memory_space<vmem>>, vector<112x128xf32>
      tpu.vector_store %arg10[%c448, %c0_41], %64 {strides = array<i32>} : memref<784x128xf32, #tpu.memory_space<vmem>>, vector<112x128xf32>,
      %c560_i32 = arith.constant 560 : i32
      %66 = arith.addi %20, %c560_i32 : i32
      %67 = arith.index_cast %66 : i32 to index
      %c0_42 = arith.constant 0 : index
      %68 = vector.load %arg1[%67, %c0_42] : memref<6272x128xbf16, #tpu.memory_space<vmem>>, vector<112x128xbf16>
      %c0_43 = arith.constant 0 : index
      %c0_44 = arith.constant 0 : index
      %69 = vector.load %arg2[%c0_43, %c0_44] : memref<128x128xbf16, #tpu.memory_space<vmem>>, vector<128x128xbf16>
      %cst_45 = arith.constant dense<0.000000e+00> : vector<112x128xf32>
      %70 = tpu.matmul %68, %69, %cst_45 {dimension_numbers = #tpu.dot_dimension_numbers<[1], [0], [0], [1], [0, 0, 1, 1], [], []>} : vector<112x128xbf16>, vector<128x128xbf16>, vector<112x128xf32> -> vector<112x128xf32>
      %71 = vector.broadcast %0 : vector<1x128xf32> to vector<112x128xf32>
      %72 = arith.addf %70, %71 : vector<112x128xf32>
      %73 = math.tanh %72 : vector<112x128xf32>
      %c560 = arith.constant 560 : index
      %c0_46 = arith.constant 0 : index
      %74 = vector.load %arg10[%c560, %c0_46] : memref<784x128xf32, #tpu.memory_space<vmem>>, vector<112x128xf32>
      tpu.vector_store %arg10[%c560, %c0_46], %73 {strides = array<i32>} : memref<784x128xf32, #tpu.memory_space<vmem>>, vector<112x128xf32>,
      %c672_i32 = arith.constant 672 : i32
      %75 = arith.addi %20, %c672_i32 : i32
      %76 = arith.index_cast %75 : i32 to index
      %c0_47 = arith.constant 0 : index
      %77 = vector.load %arg1[%76, %c0_47] : memref<6272x128xbf16, #tpu.memory_space<vmem>>, vector<112x128xbf16>
      %c0_48 = arith.constant 0 : index
      %c0_49 = arith.constant 0 : index
      %78 = vector.load %arg2[%c0_48, %c0_49] : memref<128x128xbf16, #tpu.memory_space<vmem>>, vector<128x128xbf16>
      %cst_50 = arith.constant dense<0.000000e+00> : vector<112x128xf32>
      %79 = tpu.matmul %77, %78, %cst_50 {dimension_numbers = #tpu.dot_dimension_numbers<[1], [0], [0], [1], [0, 0, 1, 1], [], []>} : vector<112x128xbf16>, vector<128x128xbf16>, vector<112x128xf32> -> vector<112x128xf32>
      %80 = vector.broadcast %0 : vector<1x128xf32> to vector<112x128xf32>
      %81 = arith.addf %79, %80 : vector<112x128xf32>
      %82 = math.tanh %81 : vector<112x128xf32>
      %c672 = arith.constant 672 : index
      %c0_51 = arith.constant 0 : index
      %83 = vector.load %arg10[%c672, %c0_51] : memref<784x128xf32, #tpu.memory_space<vmem>>, vector<112x128xf32>
      tpu.vector_store %arg10[%c672, %c0_51], %82 {strides = array<i32>} : memref<784x128xf32, #tpu.memory_space<vmem>>, vector<112x128xf32>,
      %c0_52 = arith.constant 0 : index
      %c0_53 = arith.constant 0 : index
      %84 = vector.load %arg10[%c0_52, %c0_53] : memref<784x128xf32, #tpu.memory_space<vmem>>, vector<196x128xf32>
      %c196 = arith.constant 196 : index
      %c0_54 = arith.constant 0 : index
      %85 = vector.load %arg10[%c196, %c0_54] : memref<784x128xf32, #tpu.memory_space<vmem>>, vector<196x128xf32>
      %86 = arith.addf %84, %85 : vector<196x128xf32>
      %c392 = arith.constant 392 : index
      %c0_55 = arith.constant 0 : index
      %87 = vector.load %arg10[%c392, %c0_55] : memref<784x128xf32, #tpu.memory_space<vmem>>, vector<196x128xf32>
      %88 = arith.addf %86, %87 : vector<196x128xf32>
      %c588 = arith.constant 588 : index
      %c0_56 = arith.constant 0 : index
      %89 = vector.load %arg10[%c588, %c0_56] : memref<784x128xf32, #tpu.memory_space<vmem>>, vector<196x128xf32>
      %90 = arith.addf %88, %89 : vector<196x128xf32>
      %cst_57 = arith.constant 2.500000e-01 : f32
      %91 = vector.broadcast %cst_57 : f32 to vector<196x128xf32>
      %92 = arith.mulf %91, %90 : vector<196x128xf32>
      %c0_58 = arith.constant 0 : index
      %c0_59 = arith.constant 0 : index
      %93 = vector.load %arg11[%c0_58, %c0_59] : memref<196x128xf32, #tpu.memory_space<vmem>>, vector<196x128xf32>
      tpu.vector_store %arg11[%c0_58, %c0_59], %92 {strides = array<i32>} : memref<196x128xf32, #tpu.memory_space<vmem>>, vector<196x128xf32>,
      %cst_60 = arith.constant 0.000000e+00 : f32
      %94 = vector.broadcast %cst_60 : f32 to vector<136x128xf32>
      %c0_61 = arith.constant 0 : index
      %c0_62 = arith.constant 0 : index
      %95 = vector.load %arg11[%c0_61, %c0_62] : memref<196x128xf32, #tpu.memory_space<vmem>>, vector<136x128xf32>
      %96 = arith.truncf %95 : vector<136x128xf32> to vector<136x128xbf16>
      %c0_63 = arith.constant 0 : index
      %c0_64 = arith.constant 0 : index
      %c0_65 = arith.constant 0 : index
      %97 = vector.load %arg3[%c0_63, %c0_64, %c0_65] : memref<25x128x128xbf16, #tpu.memory_space<vmem>>, vector<1x128x128xbf16>
      %98 = vector.shape_cast %97 : vector<1x128x128xbf16> to vector<128x128xbf16>
      %cst_66 = arith.constant dense<0.000000e+00> : vector<136x128xf32>
      %99 = tpu.matmul %96, %98, %cst_66 {dimension_numbers = #tpu.dot_dimension_numbers<[1], [0], [0], [1], [0, 0, 1, 1], [], []>} : vector<136x128xbf16>, vector<128x128xbf16>, vector<136x128xf32> -> vector<136x128xf32>
      %100 = arith.addf %94, %99 : vector<136x128xf32>
      %c1_67 = arith.constant 1 : index
      %c0_68 = arith.constant 0 : index
      %101 = vector.load %arg11[%c1_67, %c0_68] : memref<196x128xf32, #tpu.memory_space<vmem>>, vector<136x128xf32>
      %102 = arith.truncf %101 : vector<136x128xf32> to vector<136x128xbf16>
      %c1_69 = arith.constant 1 : index
      %c0_70 = arith.constant 0 : index
      %c0_71 = arith.constant 0 : index
      %103 = vector.load %arg3[%c1_69, %c0_70, %c0_71] : memref<25x128x128xbf16, #tpu.memory_space<vmem>>, vector<1x128x128xbf16>
      %104 = vector.shape_cast %103 : vector<1x128x128xbf16> to vector<128x128xbf16>
      %cst_72 = arith.constant dense<0.000000e+00> : vector<136x128xf32>
      %105 = tpu.matmul %102, %104, %cst_72 {dimension_numbers = #tpu.dot_dimension_numbers<[1], [0], [0], [1], [0, 0, 1, 1], [], []>} : vector<136x128xbf16>, vector<128x128xbf16>, vector<136x128xf32> -> vector<136x128xf32>
      %106 = arith.addf %100, %105 : vector<136x128xf32>
      %c2_73 = arith.constant 2 : index
      %c0_74 = arith.constant 0 : index
      %107 = vector.load %arg11[%c2_73, %c0_74] : memref<196x128xf32, #tpu.memory_space<vmem>>, vector<136x128xf32>
      %108 = arith.truncf %107 : vector<136x128xf32> to vector<136x128xbf16>
      %c2_75 = arith.constant 2 : index
      %c0_76 = arith.constant 0 : index
      %c0_77 = arith.constant 0 : index
      %109 = vector.load %arg3[%c2_75, %c0_76, %c0_77] : memref<25x128x128xbf16, #tpu.memory_space<vmem>>, vector<1x128x128xbf16>
      %110 = vector.shape_cast %109 : vector<1x128x128xbf16> to vector<128x128xbf16>
      %cst_78 = arith.constant dense<0.000000e+00> : vector<136x128xf32>
      %111 = tpu.matmul %108, %110, %cst_78 {dimension_numbers = #tpu.dot_dimension_numbers<[1], [0], [0], [1], [0, 0, 1, 1], [], []>} : vector<136x128xbf16>, vector<128x128xbf16>, vector<136x128xf32> -> vector<136x128xf32>
      %112 = arith.addf %106, %111 : vector<136x128xf32>
      %c3_79 = arith.constant 3 : index
      %c0_80 = arith.constant 0 : index
      %113 = vector.load %arg11[%c3_79, %c0_80] : memref<196x128xf32, #tpu.memory_space<vmem>>, vector<136x128xf32>
      %114 = arith.truncf %113 : vector<136x128xf32> to vector<136x128xbf16>
      %c3_81 = arith.constant 3 : index
      %c0_82 = arith.constant 0 : index
      %c0_83 = arith.constant 0 : index
      %115 = vector.load %arg3[%c3_81, %c0_82, %c0_83] : memref<25x128x128xbf16, #tpu.memory_space<vmem>>, vector<1x128x128xbf16>
      %116 = vector.shape_cast %115 : vector<1x128x128xbf16> to vector<128x128xbf16>
      %cst_84 = arith.constant dense<0.000000e+00> : vector<136x128xf32>
      %117 = tpu.matmul %114, %116, %cst_84 {dimension_numbers = #tpu.dot_dimension_numbers<[1], [0], [0], [1], [0, 0, 1, 1], [], []>} : vector<136x128xbf16>, vector<128x128xbf16>, vector<136x128xf32> -> vector<136x128xf32>
      %118 = arith.addf %112, %117 : vector<136x128xf32>
      %c4_85 = arith.constant 4 : index
      %c0_86 = arith.constant 0 : index
      %119 = vector.load %arg11[%c4_85, %c0_86] : memref<196x128xf32, #tpu.memory_space<vmem>>, vector<136x128xf32>
      %120 = arith.truncf %119 : vector<136x128xf32> to vector<136x128xbf16>
      %c4_87 = arith.constant 4 : index
      %c0_88 = arith.constant 0 : index
      %c0_89 = arith.constant 0 : index
      %121 = vector.load %arg3[%c4_87, %c0_88, %c0_89] : memref<25x128x128xbf16, #tpu.memory_space<vmem>>, vector<1x128x128xbf16>
      %122 = vector.shape_cast %121 : vector<1x128x128xbf16> to vector<128x128xbf16>
      %cst_90 = arith.constant dense<0.000000e+00> : vector<136x128xf32>
      %123 = tpu.matmul %120, %122, %cst_90 {dimension_numbers = #tpu.dot_dimension_numbers<[1], [0], [0], [1], [0, 0, 1, 1], [], []>} : vector<136x128xbf16>, vector<128x128xbf16>, vector<136x128xf32> -> vector<136x128xf32>
      %124 = arith.addf %118, %123 : vector<136x128xf32>
      %c14 = arith.constant 14 : index
      %c0_91 = arith.constant 0 : index
      %125 = vector.load %arg11[%c14, %c0_91] : memref<196x128xf32, #tpu.memory_space<vmem>>, vector<136x128xf32>
      %126 = arith.truncf %125 : vector<136x128xf32> to vector<136x128xbf16>
      %c5 = arith.constant 5 : index
      %c0_92 = arith.constant 0 : index
      %c0_93 = arith.constant 0 : index
      %127 = vector.load %arg3[%c5, %c0_92, %c0_93] : memref<25x128x128xbf16, #tpu.memory_space<vmem>>, vector<1x128x128xbf16>
      %128 = vector.shape_cast %127 : vector<1x128x128xbf16> to vector<128x128xbf16>
      %cst_94 = arith.constant dense<0.000000e+00> : vector<136x128xf32>
      %129 = tpu.matmul %126, %128, %cst_94 {dimension_numbers = #tpu.dot_dimension_numbers<[1], [0], [0], [1], [0, 0, 1, 1], [], []>} : vector<136x128xbf16>, vector<128x128xbf16>, vector<136x128xf32> -> vector<136x128xf32>
      %130 = arith.addf %124, %129 : vector<136x128xf32>
      %c15 = arith.constant 15 : index
      %c0_95 = arith.constant 0 : index
      %131 = vector.load %arg11[%c15, %c0_95] : memref<196x128xf32, #tpu.memory_space<vmem>>, vector<136x128xf32>
      %132 = arith.truncf %131 : vector<136x128xf32> to vector<136x128xbf16>
      %c6 = arith.constant 6 : index
      %c0_96 = arith.constant 0 : index
      %c0_97 = arith.constant 0 : index
      %133 = vector.load %arg3[%c6, %c0_96, %c0_97] : memref<25x128x128xbf16, #tpu.memory_space<vmem>>, vector<1x128x128xbf16>
      %134 = vector.shape_cast %133 : vector<1x128x128xbf16> to vector<128x128xbf16>
      %cst_98 = arith.constant dense<0.000000e+00> : vector<136x128xf32>
      %135 = tpu.matmul %132, %134, %cst_98 {dimension_numbers = #tpu.dot_dimension_numbers<[1], [0], [0], [1], [0, 0, 1, 1], [], []>} : vector<136x128xbf16>, vector<128x128xbf16>, vector<136x128xf32> -> vector<136x128xf32>
      %136 = arith.addf %130, %135 : vector<136x128xf32>
      %c16 = arith.constant 16 : index
      %c0_99 = arith.constant 0 : index
      %137 = vector.load %arg11[%c16, %c0_99] : memref<196x128xf32, #tpu.memory_space<vmem>>, vector<136x128xf32>
      %138 = arith.truncf %137 : vector<136x128xf32> to vector<136x128xbf16>
      %c7 = arith.constant 7 : index
      %c0_100 = arith.constant 0 : index
      %c0_101 = arith.constant 0 : index
      %139 = vector.load %arg3[%c7, %c0_100, %c0_101] : memref<25x128x128xbf16, #tpu.memory_space<vmem>>, vector<1x128x128xbf16>
      %140 = vector.shape_cast %139 : vector<1x128x128xbf16> to vector<128x128xbf16>
      %cst_102 = arith.constant dense<0.000000e+00> : vector<136x128xf32>
      %141 = tpu.matmul %138, %140, %cst_102 {dimension_numbers = #tpu.dot_dimension_numbers<[1], [0], [0], [1], [0, 0, 1, 1], [], []>} : vector<136x128xbf16>, vector<128x128xbf16>, vector<136x128xf32> -> vector<136x128xf32>
      %142 = arith.addf %136, %141 : vector<136x128xf32>
      %c17 = arith.constant 17 : index
      %c0_103 = arith.constant 0 : index
      %143 = vector.load %arg11[%c17, %c0_103] : memref<196x128xf32, #tpu.memory_space<vmem>>, vector<136x128xf32>
      %144 = arith.truncf %143 : vector<136x128xf32> to vector<136x128xbf16>
      %c8 = arith.constant 8 : index
      %c0_104 = arith.constant 0 : index
      %c0_105 = arith.constant 0 : index
      %145 = vector.load %arg3[%c8, %c0_104, %c0_105] : memref<25x128x128xbf16, #tpu.memory_space<vmem>>, vector<1x128x128xbf16>
      %146 = vector.shape_cast %145 : vector<1x128x128xbf16> to vector<128x128xbf16>
      %cst_106 = arith.constant dense<0.000000e+00> : vector<136x128xf32>
      %147 = tpu.matmul %144, %146, %cst_106 {dimension_numbers = #tpu.dot_dimension_numbers<[1], [0], [0], [1], [0, 0, 1, 1], [], []>} : vector<136x128xbf16>, vector<128x128xbf16>, vector<136x128xf32> -> vector<136x128xf32>
      %148 = arith.addf %142, %147 : vector<136x128xf32>
      %c18 = arith.constant 18 : index
      %c0_107 = arith.constant 0 : index
      %149 = vector.load %arg11[%c18, %c0_107] : memref<196x128xf32, #tpu.memory_space<vmem>>, vector<136x128xf32>
      %150 = arith.truncf %149 : vector<136x128xf32> to vector<136x128xbf16>
      %c9 = arith.constant 9 : index
      %c0_108 = arith.constant 0 : index
      %c0_109 = arith.constant 0 : index
      %151 = vector.load %arg3[%c9, %c0_108, %c0_109] : memref<25x128x128xbf16, #tpu.memory_space<vmem>>, vector<1x128x128xbf16>
      %152 = vector.shape_cast %151 : vector<1x128x128xbf16> to vector<128x128xbf16>
      %cst_110 = arith.constant dense<0.000000e+00> : vector<136x128xf32>
      %153 = tpu.matmul %150, %152, %cst_110 {dimension_numbers = #tpu.dot_dimension_numbers<[1], [0], [0], [1], [0, 0, 1, 1], [], []>} : vector<136x128xbf16>, vector<128x128xbf16>, vector<136x128xf32> -> vector<136x128xf32>
      %154 = arith.addf %148, %153 : vector<136x128xf32>
      %c28 = arith.constant 28 : index
      %c0_111 = arith.constant 0 : index
      %155 = vector.load %arg11[%c28, %c0_111] : memref<196x128xf32, #tpu.memory_space<vmem>>, vector<136x128xf32>
      %156 = arith.truncf %155 : vector<136x128xf32> to vector<136x128xbf16>
      %c10 = arith.constant 10 : index
      %c0_112 = arith.constant 0 : index
      %c0_113 = arith.constant 0 : index
      %157 = vector.load %arg3[%c10, %c0_112, %c0_113] : memref<25x128x128xbf16, #tpu.memory_space<vmem>>, vector<1x128x128xbf16>
      %158 = vector.shape_cast %157 : vector<1x128x128xbf16> to vector<128x128xbf16>
      %cst_114 = arith.constant dense<0.000000e+00> : vector<136x128xf32>
      %159 = tpu.matmul %156, %158, %cst_114 {dimension_numbers = #tpu.dot_dimension_numbers<[1], [0], [0], [1], [0, 0, 1, 1], [], []>} : vector<136x128xbf16>, vector<128x128xbf16>, vector<136x128xf32> -> vector<136x128xf32>
      %160 = arith.addf %154, %159 : vector<136x128xf32>
      %c29 = arith.constant 29 : index
      %c0_115 = arith.constant 0 : index
      %161 = vector.load %arg11[%c29, %c0_115] : memref<196x128xf32, #tpu.memory_space<vmem>>, vector<136x128xf32>
      %162 = arith.truncf %161 : vector<136x128xf32> to vector<136x128xbf16>
      %c11 = arith.constant 11 : index
      %c0_116 = arith.constant 0 : index
      %c0_117 = arith.constant 0 : index
      %163 = vector.load %arg3[%c11, %c0_116, %c0_117] : memref<25x128x128xbf16, #tpu.memory_space<vmem>>, vector<1x128x128xbf16>
      %164 = vector.shape_cast %163 : vector<1x128x128xbf16> to vector<128x128xbf16>
      %cst_118 = arith.constant dense<0.000000e+00> : vector<136x128xf32>
      %165 = tpu.matmul %162, %164, %cst_118 {dimension_numbers = #tpu.dot_dimension_numbers<[1], [0], [0], [1], [0, 0, 1, 1], [], []>} : vector<136x128xbf16>, vector<128x128xbf16>, vector<136x128xf32> -> vector<136x128xf32>
      %166 = arith.addf %160, %165 : vector<136x128xf32>
      %c30 = arith.constant 30 : index
      %c0_119 = arith.constant 0 : index
      %167 = vector.load %arg11[%c30, %c0_119] : memref<196x128xf32, #tpu.memory_space<vmem>>, vector<136x128xf32>
      %168 = arith.truncf %167 : vector<136x128xf32> to vector<136x128xbf16>
      %c12 = arith.constant 12 : index
      %c0_120 = arith.constant 0 : index
      %c0_121 = arith.constant 0 : index
      %169 = vector.load %arg3[%c12, %c0_120, %c0_121] : memref<25x128x128xbf16, #tpu.memory_space<vmem>>, vector<1x128x128xbf16>
      %170 = vector.shape_cast %169 : vector<1x128x128xbf16> to vector<128x128xbf16>
      %cst_122 = arith.constant dense<0.000000e+00> : vector<136x128xf32>
      %171 = tpu.matmul %168, %170, %cst_122 {dimension_numbers = #tpu.dot_dimension_numbers<[1], [0], [0], [1], [0, 0, 1, 1], [], []>} : vector<136x128xbf16>, vector<128x128xbf16>, vector<136x128xf32> -> vector<136x128xf32>
      %172 = arith.addf %166, %171 : vector<136x128xf32>
      %c31 = arith.constant 31 : index
      %c0_123 = arith.constant 0 : index
      %173 = vector.load %arg11[%c31, %c0_123] : memref<196x128xf32, #tpu.memory_space<vmem>>, vector<136x128xf32>
      %174 = arith.truncf %173 : vector<136x128xf32> to vector<136x128xbf16>
      %c13 = arith.constant 13 : index
      %c0_124 = arith.constant 0 : index
      %c0_125 = arith.constant 0 : index
      %175 = vector.load %arg3[%c13, %c0_124, %c0_125] : memref<25x128x128xbf16, #tpu.memory_space<vmem>>, vector<1x128x128xbf16>
      %176 = vector.shape_cast %175 : vector<1x128x128xbf16> to vector<128x128xbf16>
      %cst_126 = arith.constant dense<0.000000e+00> : vector<136x128xf32>
      %177 = tpu.matmul %174, %176, %cst_126 {dimension_numbers = #tpu.dot_dimension_numbers<[1], [0], [0], [1], [0, 0, 1, 1], [], []>} : vector<136x128xbf16>, vector<128x128xbf16>, vector<136x128xf32> -> vector<136x128xf32>
      %178 = arith.addf %172, %177 : vector<136x128xf32>
      %c32 = arith.constant 32 : index
      %c0_127 = arith.constant 0 : index
      %179 = vector.load %arg11[%c32, %c0_127] : memref<196x128xf32, #tpu.memory_space<vmem>>, vector<136x128xf32>
      %180 = arith.truncf %179 : vector<136x128xf32> to vector<136x128xbf16>
      %c14_128 = arith.constant 14 : index
      %c0_129 = arith.constant 0 : index
      %c0_130 = arith.constant 0 : index
      %181 = vector.load %arg3[%c14_128, %c0_129, %c0_130] : memref<25x128x128xbf16, #tpu.memory_space<vmem>>, vector<1x128x128xbf16>
      %182 = vector.shape_cast %181 : vector<1x128x128xbf16> to vector<128x128xbf16>
      %cst_131 = arith.constant dense<0.000000e+00> : vector<136x128xf32>
      %183 = tpu.matmul %180, %182, %cst_131 {dimension_numbers = #tpu.dot_dimension_numbers<[1], [0], [0], [1], [0, 0, 1, 1], [], []>} : vector<136x128xbf16>, vector<128x128xbf16>, vector<136x128xf32> -> vector<136x128xf32>
      %184 = arith.addf %178, %183 : vector<136x128xf32>
      %c42 = arith.constant 42 : index
      %c0_132 = arith.constant 0 : index
      %185 = vector.load %arg11[%c42, %c0_132] : memref<196x128xf32, #tpu.memory_space<vmem>>, vector<136x128xf32>
      %186 = arith.truncf %185 : vector<136x128xf32> to vector<136x128xbf16>
      %c15_133 = arith.constant 15 : index
      %c0_134 = arith.constant 0 : index
      %c0_135 = arith.constant 0 : index
      %187 = vector.load %arg3[%c15_133, %c0_134, %c0_135] : memref<25x128x128xbf16, #tpu.memory_space<vmem>>, vector<1x128x128xbf16>
      %188 = vector.shape_cast %187 : vector<1x128x128xbf16> to vector<128x128xbf16>
      %cst_136 = arith.constant dense<0.000000e+00> : vector<136x128xf32>
      %189 = tpu.matmul %186, %188, %cst_136 {dimension_numbers = #tpu.dot_dimension_numbers<[1], [0], [0], [1], [0, 0, 1, 1], [], []>} : vector<136x128xbf16>, vector<128x128xbf16>, vector<136x128xf32> -> vector<136x128xf32>
      %190 = arith.addf %184, %189 : vector<136x128xf32>
      %c43 = arith.constant 43 : index
      %c0_137 = arith.constant 0 : index
      %191 = vector.load %arg11[%c43, %c0_137] : memref<196x128xf32, #tpu.memory_space<vmem>>, vector<136x128xf32>
      %192 = arith.truncf %191 : vector<136x128xf32> to vector<136x128xbf16>
      %c16_138 = arith.constant 16 : index
      %c0_139 = arith.constant 0 : index
      %c0_140 = arith.constant 0 : index
      %193 = vector.load %arg3[%c16_138, %c0_139, %c0_140] : memref<25x128x128xbf16, #tpu.memory_space<vmem>>, vector<1x128x128xbf16>
      %194 = vector.shape_cast %193 : vector<1x128x128xbf16> to vector<128x128xbf16>
      %cst_141 = arith.constant dense<0.000000e+00> : vector<136x128xf32>
      %195 = tpu.matmul %192, %194, %cst_141 {dimension_numbers = #tpu.dot_dimension_numbers<[1], [0], [0], [1], [0, 0, 1, 1], [], []>} : vector<136x128xbf16>, vector<128x128xbf16>, vector<136x128xf32> -> vector<136x128xf32>
      %196 = arith.addf %190, %195 : vector<136x128xf32>
      %c44 = arith.constant 44 : index
      %c0_142 = arith.constant 0 : index
      %197 = vector.load %arg11[%c44, %c0_142] : memref<196x128xf32, #tpu.memory_space<vmem>>, vector<136x128xf32>
      %198 = arith.truncf %197 : vector<136x128xf32> to vector<136x128xbf16>
      %c17_143 = arith.constant 17 : index
      %c0_144 = arith.constant 0 : index
      %c0_145 = arith.constant 0 : index
      %199 = vector.load %arg3[%c17_143, %c0_144, %c0_145] : memref<25x128x128xbf16, #tpu.memory_space<vmem>>, vector<1x128x128xbf16>
      %200 = vector.shape_cast %199 : vector<1x128x128xbf16> to vector<128x128xbf16>
      %cst_146 = arith.constant dense<0.000000e+00> : vector<136x128xf32>
      %201 = tpu.matmul %198, %200, %cst_146 {dimension_numbers = #tpu.dot_dimension_numbers<[1], [0], [0], [1], [0, 0, 1, 1], [], []>} : vector<136x128xbf16>, vector<128x128xbf16>, vector<136x128xf32> -> vector<136x128xf32>
      %202 = arith.addf %196, %201 : vector<136x128xf32>
      %c45 = arith.constant 45 : index
      %c0_147 = arith.constant 0 : index
      %203 = vector.load %arg11[%c45, %c0_147] : memref<196x128xf32, #tpu.memory_space<vmem>>, vector<136x128xf32>
      %204 = arith.truncf %203 : vector<136x128xf32> to vector<136x128xbf16>
      %c18_148 = arith.constant 18 : index
      %c0_149 = arith.constant 0 : index
      %c0_150 = arith.constant 0 : index
      %205 = vector.load %arg3[%c18_148, %c0_149, %c0_150] : memref<25x128x128xbf16, #tpu.memory_space<vmem>>, vector<1x128x128xbf16>
      %206 = vector.shape_cast %205 : vector<1x128x128xbf16> to vector<128x128xbf16>
      %cst_151 = arith.constant dense<0.000000e+00> : vector<136x128xf32>
      %207 = tpu.matmul %204, %206, %cst_151 {dimension_numbers = #tpu.dot_dimension_numbers<[1], [0], [0], [1], [0, 0, 1, 1], [], []>} : vector<136x128xbf16>, vector<128x128xbf16>, vector<136x128xf32> -> vector<136x128xf32>
      %208 = arith.addf %202, %207 : vector<136x128xf32>
      %c46 = arith.constant 46 : index
      %c0_152 = arith.constant 0 : index
      %209 = vector.load %arg11[%c46, %c0_152] : memref<196x128xf32, #tpu.memory_space<vmem>>, vector<136x128xf32>
      %210 = arith.truncf %209 : vector<136x128xf32> to vector<136x128xbf16>
      %c19 = arith.constant 19 : index
      %c0_153 = arith.constant 0 : index
      %c0_154 = arith.constant 0 : index
      %211 = vector.load %arg3[%c19, %c0_153, %c0_154] : memref<25x128x128xbf16, #tpu.memory_space<vmem>>, vector<1x128x128xbf16>
      %212 = vector.shape_cast %211 : vector<1x128x128xbf16> to vector<128x128xbf16>
      %cst_155 = arith.constant dense<0.000000e+00> : vector<136x128xf32>
      %213 = tpu.matmul %210, %212, %cst_155 {dimension_numbers = #tpu.dot_dimension_numbers<[1], [0], [0], [1], [0, 0, 1, 1], [], []>} : vector<136x128xbf16>, vector<128x128xbf16>, vector<136x128xf32> -> vector<136x128xf32>
      %214 = arith.addf %208, %213 : vector<136x128xf32>
      %c56 = arith.constant 56 : index
      %c0_156 = arith.constant 0 : index
      %215 = vector.load %arg11[%c56, %c0_156] : memref<196x128xf32, #tpu.memory_space<vmem>>, vector<136x128xf32>
      %216 = arith.truncf %215 : vector<136x128xf32> to vector<136x128xbf16>
      %c20 = arith.constant 20 : index
      %c0_157 = arith.constant 0 : index
      %c0_158 = arith.constant 0 : index
      %217 = vector.load %arg3[%c20, %c0_157, %c0_158] : memref<25x128x128xbf16, #tpu.memory_space<vmem>>, vector<1x128x128xbf16>
      %218 = vector.shape_cast %217 : vector<1x128x128xbf16> to vector<128x128xbf16>
      %cst_159 = arith.constant dense<0.000000e+00> : vector<136x128xf32>
      %219 = tpu.matmul %216, %218, %cst_159 {dimension_numbers = #tpu.dot_dimension_numbers<[1], [0], [0], [1], [0, 0, 1, 1], [], []>} : vector<136x128xbf16>, vector<128x128xbf16>, vector<136x128xf32> -> vector<136x128xf32>
      %220 = arith.addf %214, %219 : vector<136x128xf32>
      %c57 = arith.constant 57 : index
      %c0_160 = arith.constant 0 : index
      %221 = vector.load %arg11[%c57, %c0_160] : memref<196x128xf32, #tpu.memory_space<vmem>>, vector<136x128xf32>
      %222 = arith.truncf %221 : vector<136x128xf32> to vector<136x128xbf16>
      %c21 = arith.constant 21 : index
      %c0_161 = arith.constant 0 : index
      %c0_162 = arith.constant 0 : index
      %223 = vector.load %arg3[%c21, %c0_161, %c0_162] : memref<25x128x128xbf16, #tpu.memory_space<vmem>>, vector<1x128x128xbf16>
      %224 = vector.shape_cast %223 : vector<1x128x128xbf16> to vector<128x128xbf16>
      %cst_163 = arith.constant dense<0.000000e+00> : vector<136x128xf32>
      %225 = tpu.matmul %222, %224, %cst_163 {dimension_numbers = #tpu.dot_dimension_numbers<[1], [0], [0], [1], [0, 0, 1, 1], [], []>} : vector<136x128xbf16>, vector<128x128xbf16>, vector<136x128xf32> -> vector<136x128xf32>
      %226 = arith.addf %220, %225 : vector<136x128xf32>
      %c58 = arith.constant 58 : index
      %c0_164 = arith.constant 0 : index
      %227 = vector.load %arg11[%c58, %c0_164] : memref<196x128xf32, #tpu.memory_space<vmem>>, vector<136x128xf32>
      %228 = arith.truncf %227 : vector<136x128xf32> to vector<136x128xbf16>
      %c22 = arith.constant 22 : index
      %c0_165 = arith.constant 0 : index
      %c0_166 = arith.constant 0 : index
      %229 = vector.load %arg3[%c22, %c0_165, %c0_166] : memref<25x128x128xbf16, #tpu.memory_space<vmem>>, vector<1x128x128xbf16>
      %230 = vector.shape_cast %229 : vector<1x128x128xbf16> to vector<128x128xbf16>
      %cst_167 = arith.constant dense<0.000000e+00> : vector<136x128xf32>
      %231 = tpu.matmul %228, %230, %cst_167 {dimension_numbers = #tpu.dot_dimension_numbers<[1], [0], [0], [1], [0, 0, 1, 1], [], []>} : vector<136x128xbf16>, vector<128x128xbf16>, vector<136x128xf32> -> vector<136x128xf32>
      %232 = arith.addf %226, %231 : vector<136x128xf32>
      %c59 = arith.constant 59 : index
      %c0_168 = arith.constant 0 : index
      %233 = vector.load %arg11[%c59, %c0_168] : memref<196x128xf32, #tpu.memory_space<vmem>>, vector<136x128xf32>
      %234 = arith.truncf %233 : vector<136x128xf32> to vector<136x128xbf16>
      %c23 = arith.constant 23 : index
      %c0_169 = arith.constant 0 : index
      %c0_170 = arith.constant 0 : index
      %235 = vector.load %arg3[%c23, %c0_169, %c0_170] : memref<25x128x128xbf16, #tpu.memory_space<vmem>>, vector<1x128x128xbf16>
      %236 = vector.shape_cast %235 : vector<1x128x128xbf16> to vector<128x128xbf16>
      %cst_171 = arith.constant dense<0.000000e+00> : vector<136x128xf32>
      %237 = tpu.matmul %234, %236, %cst_171 {dimension_numbers = #tpu.dot_dimension_numbers<[1], [0], [0], [1], [0, 0, 1, 1], [], []>} : vector<136x128xbf16>, vector<128x128xbf16>, vector<136x128xf32> -> vector<136x128xf32>
      %238 = arith.addf %232, %237 : vector<136x128xf32>
      %c60 = arith.constant 60 : index
      %c0_172 = arith.constant 0 : index
      %239 = vector.load %arg11[%c60, %c0_172] : memref<196x128xf32, #tpu.memory_space<vmem>>, vector<136x128xf32>
      %240 = arith.truncf %239 : vector<136x128xf32> to vector<136x128xbf16>
      %c24 = arith.constant 24 : index
      %c0_173 = arith.constant 0 : index
      %c0_174 = arith.constant 0 : index
      %241 = vector.load %arg3[%c24, %c0_173, %c0_174] : memref<25x128x128xbf16, #tpu.memory_space<vmem>>, vector<1x128x128xbf16>
      %242 = vector.shape_cast %241 : vector<1x128x128xbf16> to vector<128x128xbf16>
      %cst_175 = arith.constant dense<0.000000e+00> : vector<136x128xf32>
      %243 = tpu.matmul %240, %242, %cst_175 {dimension_numbers = #tpu.dot_dimension_numbers<[1], [0], [0], [1], [0, 0, 1, 1], [], []>} : vector<136x128xbf16>, vector<128x128xbf16>, vector<136x128xf32> -> vector<136x128xf32>
      %244 = arith.addf %238, %243 : vector<136x128xf32>
      %245 = vector.broadcast %1 : vector<1x128xf32> to vector<136x128xf32>
      %246 = arith.addf %244, %245 : vector<136x128xf32>
      %247 = math.tanh %246 : vector<136x128xf32>
      %c0_176 = arith.constant 0 : index
      %c0_177 = arith.constant 0 : index
      %248 = vector.load %arg8[%c0_176, %c0_177] : memref<48x136xbf16, #tpu.memory_space<vmem>>, vector<48x136xbf16>
      %249 = arith.truncf %247 : vector<136x128xf32> to vector<136x128xbf16>
      %cst_178 = arith.constant dense<0.000000e+00> : vector<48x128xf32>
      %250 = tpu.matmul %248, %249, %cst_178 {dimension_numbers = #tpu.dot_dimension_numbers<[1], [0], [0], [1], [0, 0, 1, 1], [], []>} : vector<48x136xbf16>, vector<136x128xbf16>, vector<48x128xf32> -> vector<48x128xf32>
      %c0_179 = arith.constant 0 : index
      %c0_180 = arith.constant 0 : index
      %251 = vector.load %arg12[%c0_179, %c0_180] : memref<48x128xf32, #tpu.memory_space<vmem>>, vector<48x128xf32>
      tpu.vector_store %arg12[%c0_179, %c0_180], %250 {strides = array<i32>} : memref<48x128xf32, #tpu.memory_space<vmem>>, vector<48x128xf32>,
      %cst_181 = arith.constant 0.000000e+00 : f32
      %252 = vector.broadcast %cst_181 : f32 to vector<8x128xf32>
      %c0_182 = arith.constant 0 : index
      %c0_183 = arith.constant 0 : index
      %253 = vector.load %arg12[%c0_182, %c0_183] : memref<48x128xf32, #tpu.memory_space<vmem>>, vector<8x128xf32>
      %254 = arith.truncf %253 : vector<8x128xf32> to vector<8x128xbf16>
      %c0_184 = arith.constant 0 : index
      %c0_185 = arith.constant 0 : index
      %c0_186 = arith.constant 0 : index
      %255 = vector.load %arg4[%c0_184, %c0_185, %c0_186] : memref<25x128x128xbf16, #tpu.memory_space<vmem>>, vector<1x128x128xbf16>
      %256 = vector.shape_cast %255 : vector<1x128x128xbf16> to vector<128x128xbf16>
      %cst_187 = arith.constant dense<0.000000e+00> : vector<8x128xf32>
      %257 = tpu.matmul %254, %256, %cst_187 {dimension_numbers = #tpu.dot_dimension_numbers<[1], [0], [0], [1], [0, 0, 1, 1], [], []>} : vector<8x128xbf16>, vector<128x128xbf16>, vector<8x128xf32> -> vector<8x128xf32>
      %258 = arith.addf %252, %257 : vector<8x128xf32>
      %c1_188 = arith.constant 1 : index
      %c0_189 = arith.constant 0 : index
      %259 = vector.load %arg12[%c1_188, %c0_189] : memref<48x128xf32, #tpu.memory_space<vmem>>, vector<8x128xf32>
      %260 = arith.truncf %259 : vector<8x128xf32> to vector<8x128xbf16>
      %c1_190 = arith.constant 1 : index
      %c0_191 = arith.constant 0 : index
      %c0_192 = arith.constant 0 : index
      %261 = vector.load %arg4[%c1_190, %c0_191, %c0_192] : memref<25x128x128xbf16, #tpu.memory_space<vmem>>, vector<1x128x128xbf16>
      %262 = vector.shape_cast %261 : vector<1x128x128xbf16> to vector<128x128xbf16>
      %cst_193 = arith.constant dense<0.000000e+00> : vector<8x128xf32>
      %263 = tpu.matmul %260, %262, %cst_193 {dimension_numbers = #tpu.dot_dimension_numbers<[1], [0], [0], [1], [0, 0, 1, 1], [], []>} : vector<8x128xbf16>, vector<128x128xbf16>, vector<8x128xf32> -> vector<8x128xf32>
      %264 = arith.addf %258, %263 : vector<8x128xf32>
      %c2_194 = arith.constant 2 : index
      %c0_195 = arith.constant 0 : index
      %265 = vector.load %arg12[%c2_194, %c0_195] : memref<48x128xf32, #tpu.memory_space<vmem>>, vector<8x128xf32>
      %266 = arith.truncf %265 : vector<8x128xf32> to vector<8x128xbf16>
      %c2_196 = arith.constant 2 : index
      %c0_197 = arith.constant 0 : index
      %c0_198 = arith.constant 0 : index
      %267 = vector.load %arg4[%c2_196, %c0_197, %c0_198] : memref<25x128x128xbf16, #tpu.memory_space<vmem>>, vector<1x128x128xbf16>
      %268 = vector.shape_cast %267 : vector<1x128x128xbf16> to vector<128x128xbf16>
      %cst_199 = arith.constant dense<0.000000e+00> : vector<8x128xf32>
      %269 = tpu.matmul %266, %268, %cst_199 {dimension_numbers = #tpu.dot_dimension_numbers<[1], [0], [0], [1], [0, 0, 1, 1], [], []>} : vector<8x128xbf16>, vector<128x128xbf16>, vector<8x128xf32> -> vector<8x128xf32>
      %270 = arith.addf %264, %269 : vector<8x128xf32>
      %c3_200 = arith.constant 3 : index
      %c0_201 = arith.constant 0 : index
      %271 = vector.load %arg12[%c3_200, %c0_201] : memref<48x128xf32, #tpu.memory_space<vmem>>, vector<8x128xf32>
      %272 = arith.truncf %271 : vector<8x128xf32> to vector<8x128xbf16>
      %c3_202 = arith.constant 3 : index
      %c0_203 = arith.constant 0 : index
      %c0_204 = arith.constant 0 : index
      %273 = vector.load %arg4[%c3_202, %c0_203, %c0_204] : memref<25x128x128xbf16, #tpu.memory_space<vmem>>, vector<1x128x128xbf16>
      %274 = vector.shape_cast %273 : vector<1x128x128xbf16> to vector<128x128xbf16>
      %cst_205 = arith.constant dense<0.000000e+00> : vector<8x128xf32>
      %275 = tpu.matmul %272, %274, %cst_205 {dimension_numbers = #tpu.dot_dimension_numbers<[1], [0], [0], [1], [0, 0, 1, 1], [], []>} : vector<8x128xbf16>, vector<128x128xbf16>, vector<8x128xf32> -> vector<8x128xf32>
      %276 = arith.addf %270, %275 : vector<8x128xf32>
      %c4_206 = arith.constant 4 : index
      %c0_207 = arith.constant 0 : index
      %277 = vector.load %arg12[%c4_206, %c0_207] : memref<48x128xf32, #tpu.memory_space<vmem>>, vector<8x128xf32>
      %278 = arith.truncf %277 : vector<8x128xf32> to vector<8x128xbf16>
      %c4_208 = arith.constant 4 : index
      %c0_209 = arith.constant 0 : index
      %c0_210 = arith.constant 0 : index
      %279 = vector.load %arg4[%c4_208, %c0_209, %c0_210] : memref<25x128x128xbf16, #tpu.memory_space<vmem>>, vector<1x128x128xbf16>
      %280 = vector.shape_cast %279 : vector<1x128x128xbf16> to vector<128x128xbf16>
      %cst_211 = arith.constant dense<0.000000e+00> : vector<8x128xf32>
      %281 = tpu.matmul %278, %280, %cst_211 {dimension_numbers = #tpu.dot_dimension_numbers<[1], [0], [0], [1], [0, 0, 1, 1], [], []>} : vector<8x128xbf16>, vector<128x128xbf16>, vector<8x128xf32> -> vector<8x128xf32>
      %282 = arith.addf %276, %281 : vector<8x128xf32>
      %c8_212 = arith.constant 8 : index
      %c0_213 = arith.constant 0 : index
      %283 = vector.load %arg12[%c8_212, %c0_213] : memref<48x128xf32, #tpu.memory_space<vmem>>, vector<8x128xf32>
      %284 = arith.truncf %283 : vector<8x128xf32> to vector<8x128xbf16>
      %c5_214 = arith.constant 5 : index
      %c0_215 = arith.constant 0 : index
      %c0_216 = arith.constant 0 : index
      %285 = vector.load %arg4[%c5_214, %c0_215, %c0_216] : memref<25x128x128xbf16, #tpu.memory_space<vmem>>, vector<1x128x128xbf16>
      %286 = vector.shape_cast %285 : vector<1x128x128xbf16> to vector<128x128xbf16>
      %cst_217 = arith.constant dense<0.000000e+00> : vector<8x128xf32>
      %287 = tpu.matmul %284, %286, %cst_217 {dimension_numbers = #tpu.dot_dimension_numbers<[1], [0], [0], [1], [0, 0, 1, 1], [], []>} : vector<8x128xbf16>, vector<128x128xbf16>, vector<8x128xf32> -> vector<8x128xf32>
      %288 = arith.addf %282, %287 : vector<8x128xf32>
      %c9_218 = arith.constant 9 : index
      %c0_219 = arith.constant 0 : index
      %289 = vector.load %arg12[%c9_218, %c0_219] : memref<48x128xf32, #tpu.memory_space<vmem>>, vector<8x128xf32>
      %290 = arith.truncf %289 : vector<8x128xf32> to vector<8x128xbf16>
      %c6_220 = arith.constant 6 : index
      %c0_221 = arith.constant 0 : index
      %c0_222 = arith.constant 0 : index
      %291 = vector.load %arg4[%c6_220, %c0_221, %c0_222] : memref<25x128x128xbf16, #tpu.memory_space<vmem>>, vector<1x128x128xbf16>
      %292 = vector.shape_cast %291 : vector<1x128x128xbf16> to vector<128x128xbf16>
      %cst_223 = arith.constant dense<0.000000e+00> : vector<8x128xf32>
      %293 = tpu.matmul %290, %292, %cst_223 {dimension_numbers = #tpu.dot_dimension_numbers<[1], [0], [0], [1], [0, 0, 1, 1], [], []>} : vector<8x128xbf16>, vector<128x128xbf16>, vector<8x128xf32> -> vector<8x128xf32>
      %294 = arith.addf %288, %293 : vector<8x128xf32>
      %c10_224 = arith.constant 10 : index
      %c0_225 = arith.constant 0 : index
      %295 = vector.load %arg12[%c10_224, %c0_225] : memref<48x128xf32, #tpu.memory_space<vmem>>, vector<8x128xf32>
      %296 = arith.truncf %295 : vector<8x128xf32> to vector<8x128xbf16>
      %c7_226 = arith.constant 7 : index
      %c0_227 = arith.constant 0 : index
      %c0_228 = arith.constant 0 : index
      %297 = vector.load %arg4[%c7_226, %c0_227, %c0_228] : memref<25x128x128xbf16, #tpu.memory_space<vmem>>, vector<1x128x128xbf16>
      %298 = vector.shape_cast %297 : vector<1x128x128xbf16> to vector<128x128xbf16>
      %cst_229 = arith.constant dense<0.000000e+00> : vector<8x128xf32>
      %299 = tpu.matmul %296, %298, %cst_229 {dimension_numbers = #tpu.dot_dimension_numbers<[1], [0], [0], [1], [0, 0, 1, 1], [], []>} : vector<8x128xbf16>, vector<128x128xbf16>, vector<8x128xf32> -> vector<8x128xf32>
      %300 = arith.addf %294, %299 : vector<8x128xf32>
      %c11_230 = arith.constant 11 : index
      %c0_231 = arith.constant 0 : index
      %301 = vector.load %arg12[%c11_230, %c0_231] : memref<48x128xf32, #tpu.memory_space<vmem>>, vector<8x128xf32>
      %302 = arith.truncf %301 : vector<8x128xf32> to vector<8x128xbf16>
      %c8_232 = arith.constant 8 : index
      %c0_233 = arith.constant 0 : index
      %c0_234 = arith.constant 0 : index
      %303 = vector.load %arg4[%c8_232, %c0_233, %c0_234] : memref<25x128x128xbf16, #tpu.memory_space<vmem>>, vector<1x128x128xbf16>
      %304 = vector.shape_cast %303 : vector<1x128x128xbf16> to vector<128x128xbf16>
      %cst_235 = arith.constant dense<0.000000e+00> : vector<8x128xf32>
      %305 = tpu.matmul %302, %304, %cst_235 {dimension_numbers = #tpu.dot_dimension_numbers<[1], [0], [0], [1], [0, 0, 1, 1], [], []>} : vector<8x128xbf16>, vector<128x128xbf16>, vector<8x128xf32> -> vector<8x128xf32>
      %306 = arith.addf %300, %305 : vector<8x128xf32>
      %c12_236 = arith.constant 12 : index
      %c0_237 = arith.constant 0 : index
      %307 = vector.load %arg12[%c12_236, %c0_237] : memref<48x128xf32, #tpu.memory_space<vmem>>, vector<8x128xf32>
      %308 = arith.truncf %307 : vector<8x128xf32> to vector<8x128xbf16>
      %c9_238 = arith.constant 9 : index
      %c0_239 = arith.constant 0 : index
      %c0_240 = arith.constant 0 : index
      %309 = vector.load %arg4[%c9_238, %c0_239, %c0_240] : memref<25x128x128xbf16, #tpu.memory_space<vmem>>, vector<1x128x128xbf16>
      %310 = vector.shape_cast %309 : vector<1x128x128xbf16> to vector<128x128xbf16>
      %cst_241 = arith.constant dense<0.000000e+00> : vector<8x128xf32>
      %311 = tpu.matmul %308, %310, %cst_241 {dimension_numbers = #tpu.dot_dimension_numbers<[1], [0], [0], [1], [0, 0, 1, 1], [], []>} : vector<8x128xbf16>, vector<128x128xbf16>, vector<8x128xf32> -> vector<8x128xf32>
      %312 = arith.addf %306, %311 : vector<8x128xf32>
      %c16_242 = arith.constant 16 : index
      %c0_243 = arith.constant 0 : index
      %313 = vector.load %arg12[%c16_242, %c0_243] : memref<48x128xf32, #tpu.memory_space<vmem>>, vector<8x128xf32>
      %314 = arith.truncf %313 : vector<8x128xf32> to vector<8x128xbf16>
      %c10_244 = arith.constant 10 : index
      %c0_245 = arith.constant 0 : index
      %c0_246 = arith.constant 0 : index
      %315 = vector.load %arg4[%c10_244, %c0_245, %c0_246] : memref<25x128x128xbf16, #tpu.memory_space<vmem>>, vector<1x128x128xbf16>
      %316 = vector.shape_cast %315 : vector<1x128x128xbf16> to vector<128x128xbf16>
      %cst_247 = arith.constant dense<0.000000e+00> : vector<8x128xf32>
      %317 = tpu.matmul %314, %316, %cst_247 {dimension_numbers = #tpu.dot_dimension_numbers<[1], [0], [0], [1], [0, 0, 1, 1], [], []>} : vector<8x128xbf16>, vector<128x128xbf16>, vector<8x128xf32> -> vector<8x128xf32>
      %318 = arith.addf %312, %317 : vector<8x128xf32>
      %c17_248 = arith.constant 17 : index
      %c0_249 = arith.constant 0 : index
      %319 = vector.load %arg12[%c17_248, %c0_249] : memref<48x128xf32, #tpu.memory_space<vmem>>, vector<8x128xf32>
      %320 = arith.truncf %319 : vector<8x128xf32> to vector<8x128xbf16>
      %c11_250 = arith.constant 11 : index
      %c0_251 = arith.constant 0 : index
      %c0_252 = arith.constant 0 : index
      %321 = vector.load %arg4[%c11_250, %c0_251, %c0_252] : memref<25x128x128xbf16, #tpu.memory_space<vmem>>, vector<1x128x128xbf16>
      %322 = vector.shape_cast %321 : vector<1x128x128xbf16> to vector<128x128xbf16>
      %cst_253 = arith.constant dense<0.000000e+00> : vector<8x128xf32>
      %323 = tpu.matmul %320, %322, %cst_253 {dimension_numbers = #tpu.dot_dimension_numbers<[1], [0], [0], [1], [0, 0, 1, 1], [], []>} : vector<8x128xbf16>, vector<128x128xbf16>, vector<8x128xf32> -> vector<8x128xf32>
      %324 = arith.addf %318, %323 : vector<8x128xf32>
      %c18_254 = arith.constant 18 : index
      %c0_255 = arith.constant 0 : index
      %325 = vector.load %arg12[%c18_254, %c0_255] : memref<48x128xf32, #tpu.memory_space<vmem>>, vector<8x128xf32>
      %326 = arith.truncf %325 : vector<8x128xf32> to vector<8x128xbf16>
      %c12_256 = arith.constant 12 : index
      %c0_257 = arith.constant 0 : index
      %c0_258 = arith.constant 0 : index
      %327 = vector.load %arg4[%c12_256, %c0_257, %c0_258] : memref<25x128x128xbf16, #tpu.memory_space<vmem>>, vector<1x128x128xbf16>
      %328 = vector.shape_cast %327 : vector<1x128x128xbf16> to vector<128x128xbf16>
      %cst_259 = arith.constant dense<0.000000e+00> : vector<8x128xf32>
      %329 = tpu.matmul %326, %328, %cst_259 {dimension_numbers = #tpu.dot_dimension_numbers<[1], [0], [0], [1], [0, 0, 1, 1], [], []>} : vector<8x128xbf16>, vector<128x128xbf16>, vector<8x128xf32> -> vector<8x128xf32>
      %330 = arith.addf %324, %329 : vector<8x128xf32>
      %c19_260 = arith.constant 19 : index
      %c0_261 = arith.constant 0 : index
      %331 = vector.load %arg12[%c19_260, %c0_261] : memref<48x128xf32, #tpu.memory_space<vmem>>, vector<8x128xf32>
      %332 = arith.truncf %331 : vector<8x128xf32> to vector<8x128xbf16>
      %c13_262 = arith.constant 13 : index
      %c0_263 = arith.constant 0 : index
      %c0_264 = arith.constant 0 : index
      %333 = vector.load %arg4[%c13_262, %c0_263, %c0_264] : memref<25x128x128xbf16, #tpu.memory_space<vmem>>, vector<1x128x128xbf16>
      %334 = vector.shape_cast %333 : vector<1x128x128xbf16> to vector<128x128xbf16>
      %cst_265 = arith.constant dense<0.000000e+00> : vector<8x128xf32>
      %335 = tpu.matmul %332, %334, %cst_265 {dimension_numbers = #tpu.dot_dimension_numbers<[1], [0], [0], [1], [0, 0, 1, 1], [], []>} : vector<8x128xbf16>, vector<128x128xbf16>, vector<8x128xf32> -> vector<8x128xf32>
      %336 = arith.addf %330, %335 : vector<8x128xf32>
      %c20_266 = arith.constant 20 : index
      %c0_267 = arith.constant 0 : index
      %337 = vector.load %arg12[%c20_266, %c0_267] : memref<48x128xf32, #tpu.memory_space<vmem>>, vector<8x128xf32>
      %338 = arith.truncf %337 : vector<8x128xf32> to vector<8x128xbf16>
      %c14_268 = arith.constant 14 : index
      %c0_269 = arith.constant 0 : index
      %c0_270 = arith.constant 0 : index
      %339 = vector.load %arg4[%c14_268, %c0_269, %c0_270] : memref<25x128x128xbf16, #tpu.memory_space<vmem>>, vector<1x128x128xbf16>
      %340 = vector.shape_cast %339 : vector<1x128x128xbf16> to vector<128x128xbf16>
      %cst_271 = arith.constant dense<0.000000e+00> : vector<8x128xf32>
      %341 = tpu.matmul %338, %340, %cst_271 {dimension_numbers = #tpu.dot_dimension_numbers<[1], [0], [0], [1], [0, 0, 1, 1], [], []>} : vector<8x128xbf16>, vector<128x128xbf16>, vector<8x128xf32> -> vector<8x128xf32>
      %342 = arith.addf %336, %341 : vector<8x128xf32>
      %c24_272 = arith.constant 24 : index
      %c0_273 = arith.constant 0 : index
      %343 = vector.load %arg12[%c24_272, %c0_273] : memref<48x128xf32, #tpu.memory_space<vmem>>, vector<8x128xf32>
      %344 = arith.truncf %343 : vector<8x128xf32> to vector<8x128xbf16>
      %c15_274 = arith.constant 15 : index
      %c0_275 = arith.constant 0 : index
      %c0_276 = arith.constant 0 : index
      %345 = vector.load %arg4[%c15_274, %c0_275, %c0_276] : memref<25x128x128xbf16, #tpu.memory_space<vmem>>, vector<1x128x128xbf16>
      %346 = vector.shape_cast %345 : vector<1x128x128xbf16> to vector<128x128xbf16>
      %cst_277 = arith.constant dense<0.000000e+00> : vector<8x128xf32>
      %347 = tpu.matmul %344, %346, %cst_277 {dimension_numbers = #tpu.dot_dimension_numbers<[1], [0], [0], [1], [0, 0, 1, 1], [], []>} : vector<8x128xbf16>, vector<128x128xbf16>, vector<8x128xf32> -> vector<8x128xf32>
      %348 = arith.addf %342, %347 : vector<8x128xf32>
      %c25 = arith.constant 25 : index
      %c0_278 = arith.constant 0 : index
      %349 = vector.load %arg12[%c25, %c0_278] : memref<48x128xf32, #tpu.memory_space<vmem>>, vector<8x128xf32>
      %350 = arith.truncf %349 : vector<8x128xf32> to vector<8x128xbf16>
      %c16_279 = arith.constant 16 : index
      %c0_280 = arith.constant 0 : index
      %c0_281 = arith.constant 0 : index
      %351 = vector.load %arg4[%c16_279, %c0_280, %c0_281] : memref<25x128x128xbf16, #tpu.memory_space<vmem>>, vector<1x128x128xbf16>
      %352 = vector.shape_cast %351 : vector<1x128x128xbf16> to vector<128x128xbf16>
      %cst_282 = arith.constant dense<0.000000e+00> : vector<8x128xf32>
      %353 = tpu.matmul %350, %352, %cst_282 {dimension_numbers = #tpu.dot_dimension_numbers<[1], [0], [0], [1], [0, 0, 1, 1], [], []>} : vector<8x128xbf16>, vector<128x128xbf16>, vector<8x128xf32> -> vector<8x128xf32>
      %354 = arith.addf %348, %353 : vector<8x128xf32>
      %c26 = arith.constant 26 : index
      %c0_283 = arith.constant 0 : index
      %355 = vector.load %arg12[%c26, %c0_283] : memref<48x128xf32, #tpu.memory_space<vmem>>, vector<8x128xf32>
      %356 = arith.truncf %355 : vector<8x128xf32> to vector<8x128xbf16>
      %c17_284 = arith.constant 17 : index
      %c0_285 = arith.constant 0 : index
      %c0_286 = arith.constant 0 : index
      %357 = vector.load %arg4[%c17_284, %c0_285, %c0_286] : memref<25x128x128xbf16, #tpu.memory_space<vmem>>, vector<1x128x128xbf16>
      %358 = vector.shape_cast %357 : vector<1x128x128xbf16> to vector<128x128xbf16>
      %cst_287 = arith.constant dense<0.000000e+00> : vector<8x128xf32>
      %359 = tpu.matmul %356, %358, %cst_287 {dimension_numbers = #tpu.dot_dimension_numbers<[1], [0], [0], [1], [0, 0, 1, 1], [], []>} : vector<8x128xbf16>, vector<128x128xbf16>, vector<8x128xf32> -> vector<8x128xf32>
      %360 = arith.addf %354, %359 : vector<8x128xf32>
      %c27 = arith.constant 27 : index
      %c0_288 = arith.constant 0 : index
      %361 = vector.load %arg12[%c27, %c0_288] : memref<48x128xf32, #tpu.memory_space<vmem>>, vector<8x128xf32>
      %362 = arith.truncf %361 : vector<8x128xf32> to vector<8x128xbf16>
      %c18_289 = arith.constant 18 : index
      %c0_290 = arith.constant 0 : index
      %c0_291 = arith.constant 0 : index
      %363 = vector.load %arg4[%c18_289, %c0_290, %c0_291] : memref<25x128x128xbf16, #tpu.memory_space<vmem>>, vector<1x128x128xbf16>
      %364 = vector.shape_cast %363 : vector<1x128x128xbf16> to vector<128x128xbf16>
      %cst_292 = arith.constant dense<0.000000e+00> : vector<8x128xf32>
      %365 = tpu.matmul %362, %364, %cst_292 {dimension_numbers = #tpu.dot_dimension_numbers<[1], [0], [0], [1], [0, 0, 1, 1], [], []>} : vector<8x128xbf16>, vector<128x128xbf16>, vector<8x128xf32> -> vector<8x128xf32>
      %366 = arith.addf %360, %365 : vector<8x128xf32>
      %c28_293 = arith.constant 28 : index
      %c0_294 = arith.constant 0 : index
      %367 = vector.load %arg12[%c28_293, %c0_294] : memref<48x128xf32, #tpu.memory_space<vmem>>, vector<8x128xf32>
      %368 = arith.truncf %367 : vector<8x128xf32> to vector<8x128xbf16>
      %c19_295 = arith.constant 19 : index
      %c0_296 = arith.constant 0 : index
      %c0_297 = arith.constant 0 : index
      %369 = vector.load %arg4[%c19_295, %c0_296, %c0_297] : memref<25x128x128xbf16, #tpu.memory_space<vmem>>, vector<1x128x128xbf16>
      %370 = vector.shape_cast %369 : vector<1x128x128xbf16> to vector<128x128xbf16>
      %cst_298 = arith.constant dense<0.000000e+00> : vector<8x128xf32>
      %371 = tpu.matmul %368, %370, %cst_298 {dimension_numbers = #tpu.dot_dimension_numbers<[1], [0], [0], [1], [0, 0, 1, 1], [], []>} : vector<8x128xbf16>, vector<128x128xbf16>, vector<8x128xf32> -> vector<8x128xf32>
      %372 = arith.addf %366, %371 : vector<8x128xf32>
      %c32_299 = arith.constant 32 : index
      %c0_300 = arith.constant 0 : index
      %373 = vector.load %arg12[%c32_299, %c0_300] : memref<48x128xf32, #tpu.memory_space<vmem>>, vector<8x128xf32>
      %374 = arith.truncf %373 : vector<8x128xf32> to vector<8x128xbf16>
      %c20_301 = arith.constant 20 : index
      %c0_302 = arith.constant 0 : index
      %c0_303 = arith.constant 0 : index
      %375 = vector.load %arg4[%c20_301, %c0_302, %c0_303] : memref<25x128x128xbf16, #tpu.memory_space<vmem>>, vector<1x128x128xbf16>
      %376 = vector.shape_cast %375 : vector<1x128x128xbf16> to vector<128x128xbf16>
      %cst_304 = arith.constant dense<0.000000e+00> : vector<8x128xf32>
      %377 = tpu.matmul %374, %376, %cst_304 {dimension_numbers = #tpu.dot_dimension_numbers<[1], [0], [0], [1], [0, 0, 1, 1], [], []>} : vector<8x128xbf16>, vector<128x128xbf16>, vector<8x128xf32> -> vector<8x128xf32>
      %378 = arith.addf %372, %377 : vector<8x128xf32>
      %c33 = arith.constant 33 : index
      %c0_305 = arith.constant 0 : index
      %379 = vector.load %arg12[%c33, %c0_305] : memref<48x128xf32, #tpu.memory_space<vmem>>, vector<8x128xf32>
      %380 = arith.truncf %379 : vector<8x128xf32> to vector<8x128xbf16>
      %c21_306 = arith.constant 21 : index
      %c0_307 = arith.constant 0 : index
      %c0_308 = arith.constant 0 : index
      %381 = vector.load %arg4[%c21_306, %c0_307, %c0_308] : memref<25x128x128xbf16, #tpu.memory_space<vmem>>, vector<1x128x128xbf16>
      %382 = vector.shape_cast %381 : vector<1x128x128xbf16> to vector<128x128xbf16>
      %cst_309 = arith.constant dense<0.000000e+00> : vector<8x128xf32>
      %383 = tpu.matmul %380, %382, %cst_309 {dimension_numbers = #tpu.dot_dimension_numbers<[1], [0], [0], [1], [0, 0, 1, 1], [], []>} : vector<8x128xbf16>, vector<128x128xbf16>, vector<8x128xf32> -> vector<8x128xf32>
      %384 = arith.addf %378, %383 : vector<8x128xf32>
      %c34 = arith.constant 34 : index
      %c0_310 = arith.constant 0 : index
      %385 = vector.load %arg12[%c34, %c0_310] : memref<48x128xf32, #tpu.memory_space<vmem>>, vector<8x128xf32>
      %386 = arith.truncf %385 : vector<8x128xf32> to vector<8x128xbf16>
      %c22_311 = arith.constant 22 : index
      %c0_312 = arith.constant 0 : index
      %c0_313 = arith.constant 0 : index
      %387 = vector.load %arg4[%c22_311, %c0_312, %c0_313] : memref<25x128x128xbf16, #tpu.memory_space<vmem>>, vector<1x128x128xbf16>
      %388 = vector.shape_cast %387 : vector<1x128x128xbf16> to vector<128x128xbf16>
      %cst_314 = arith.constant dense<0.000000e+00> : vector<8x128xf32>
      %389 = tpu.matmul %386, %388, %cst_314 {dimension_numbers = #tpu.dot_dimension_numbers<[1], [0], [0], [1], [0, 0, 1, 1], [], []>} : vector<8x128xbf16>, vector<128x128xbf16>, vector<8x128xf32> -> vector<8x128xf32>
      %390 = arith.addf %384, %389 : vector<8x128xf32>
      %c35 = arith.constant 35 : index
      %c0_315 = arith.constant 0 : index
      %391 = vector.load %arg12[%c35, %c0_315] : memref<48x128xf32, #tpu.memory_space<vmem>>, vector<8x128xf32>
      %392 = arith.truncf %391 : vector<8x128xf32> to vector<8x128xbf16>
      %c23_316 = arith.constant 23 : index
      %c0_317 = arith.constant 0 : index
      %c0_318 = arith.constant 0 : index
      %393 = vector.load %arg4[%c23_316, %c0_317, %c0_318] : memref<25x128x128xbf16, #tpu.memory_space<vmem>>, vector<1x128x128xbf16>
      %394 = vector.shape_cast %393 : vector<1x128x128xbf16> to vector<128x128xbf16>
      %cst_319 = arith.constant dense<0.000000e+00> : vector<8x128xf32>
      %395 = tpu.matmul %392, %394, %cst_319 {dimension_numbers = #tpu.dot_dimension_numbers<[1], [0], [0], [1], [0, 0, 1, 1], [], []>} : vector<8x128xbf16>, vector<128x128xbf16>, vector<8x128xf32> -> vector<8x128xf32>
      %396 = arith.addf %390, %395 : vector<8x128xf32>
      %c36 = arith.constant 36 : index
      %c0_320 = arith.constant 0 : index
      %397 = vector.load %arg12[%c36, %c0_320] : memref<48x128xf32, #tpu.memory_space<vmem>>, vector<8x128xf32>
      %398 = arith.truncf %397 : vector<8x128xf32> to vector<8x128xbf16>
      %c24_321 = arith.constant 24 : index
      %c0_322 = arith.constant 0 : index
      %c0_323 = arith.constant 0 : index
      %399 = vector.load %arg4[%c24_321, %c0_322, %c0_323] : memref<25x128x128xbf16, #tpu.memory_space<vmem>>, vector<1x128x128xbf16>
      %400 = vector.shape_cast %399 : vector<1x128x128xbf16> to vector<128x128xbf16>
      %cst_324 = arith.constant dense<0.000000e+00> : vector<8x128xf32>
      %401 = tpu.matmul %398, %400, %cst_324 {dimension_numbers = #tpu.dot_dimension_numbers<[1], [0], [0], [1], [0, 0, 1, 1], [], []>} : vector<8x128xbf16>, vector<128x128xbf16>, vector<8x128xf32> -> vector<8x128xf32>
      %402 = arith.addf %396, %401 : vector<8x128xf32>
      %403 = vector.broadcast %2 : vector<1x128xf32> to vector<8x128xf32>
      %404 = arith.addf %402, %403 : vector<8x128xf32>
      %405 = math.tanh %404 : vector<8x128xf32>
      %c8_i32_325 = arith.constant 8 : i32
      %406 = arith.muli %arg14, %c8_i32_325 : i32
      %407 = tpu.assume_multiple %406, 8 : i32
      %408 = arith.index_cast %407 : i32 to index
      %c0_326 = arith.constant 0 : index
      %409 = vector.load %arg13[%408, %c0_326] : memref<64x128xf32, #tpu.memory_space<vmem>>, vector<8x128xf32>
      tpu.vector_store %arg13[%408, %c0_326], %405 {strides = array<i32>} : memref<64x128xf32, #tpu.memory_space<vmem>>, vector<8x128xf32>,
    }
    %c8_i32_5 = arith.constant 8 : i32
    %c0_6 = arith.constant 0 : index
    %c0_7 = arith.constant 0 : index
    %6 = vector.load %arg13[%c0_6, %c0_7] : memref<64x128xf32, #tpu.memory_space<vmem>>, vector<64x128xf32>
    %7 = arith.truncf %6 : vector<64x128xf32> to vector<64x128xbf16>
    %c0_8 = arith.constant 0 : index
    %c0_9 = arith.constant 0 : index
    %8 = vector.load %arg5[%c0_8, %c0_9] : memref<128x128xbf16, #tpu.memory_space<vmem>>, vector<128x128xbf16>
    %cst = arith.constant dense<0.000000e+00> : vector<64x128xf32>
    %9 = tpu.matmul %7, %8, %cst {dimension_numbers = #tpu.dot_dimension_numbers<[1], [0], [0], [1], [0, 0, 1, 1], [], []>} : vector<64x128xbf16>, vector<128x128xbf16>, vector<64x128xf32> -> vector<64x128xf32>
    %10 = vector.broadcast %3 : vector<1x128xf32> to vector<64x128xf32>
    %11 = arith.addf %9, %10 : vector<64x128xf32>
    %12 = math.tanh %11 : vector<64x128xf32>
    %13 = arith.truncf %12 : vector<64x128xf32> to vector<64x128xbf16>
    %c0_10 = arith.constant 0 : index
    %c0_11 = arith.constant 0 : index
    %14 = vector.load %arg6[%c0_10, %c0_11] : memref<128x128xbf16, #tpu.memory_space<vmem>>, vector<128x128xbf16>
    %cst_12 = arith.constant dense<0.000000e+00> : vector<64x128xf32>
    %15 = tpu.matmul %13, %14, %cst_12 {dimension_numbers = #tpu.dot_dimension_numbers<[1], [0], [0], [1], [0, 0, 1, 1], [], []>} : vector<64x128xbf16>, vector<128x128xbf16>, vector<64x128xf32> -> vector<64x128xf32>
    %16 = vector.broadcast %4 : vector<1x128xf32> to vector<64x128xf32>
    %17 = arith.addf %15, %16 : vector<64x128xf32>
    %c0_13 = arith.constant 0 : index
    %c0_14 = arith.constant 0 : index
    %18 = vector.load %arg9[%c0_13, %c0_14] : memref<64x128xf32, #tpu.memory_space<vmem>>, vector<64x128xf32>
    tpu.vector_store %arg9[%c0_13, %c0_14], %17 {strides = array<i32>} : memref<64x128xf32, #tpu.memory_space<vmem>>, vector<64x128xf32>,
    return
  }
  func.func @transform_0(%arg0: i32) -> (i32, i32) {
    %c0_i32 = arith.constant 0 : i32
    %c0_i32_0 = arith.constant 0 : i32
    return %arg0, %c0_i32 : i32, i32
  }
  func.func @transform_1(%arg0: i32) -> (i32, i32) {
    %c0_i32 = arith.constant 0 : i32
    %c0_i32_0 = arith.constant 0 : i32
    %c0_i32_1 = arith.constant 0 : i32
    return %c0_i32, %c0_i32_0 : i32, i32
  }
  func.func @transform_2(%arg0: i32) -> (i32, i32, i32) {
    %c0_i32 = arith.constant 0 : i32
    %c0_i32_0 = arith.constant 0 : i32
    %c0_i32_1 = arith.constant 0 : i32
    %c0_i32_2 = arith.constant 0 : i32
    return %c0_i32, %c0_i32_0, %c0_i32_1 : i32, i32, i32
  }
  func.func @transform_3(%arg0: i32) -> (i32, i32, i32) {
    %c0_i32 = arith.constant 0 : i32
    %c0_i32_0 = arith.constant 0 : i32
    %c0_i32_1 = arith.constant 0 : i32
    %c0_i32_2 = arith.constant 0 : i32
    return %c0_i32, %c0_i32_0, %c0_i32_1 : i32, i32, i32
  }
  func.func @transform_4(%arg0: i32) -> (i32, i32) {
    %c0_i32 = arith.constant 0 : i32
    %c0_i32_0 = arith.constant 0 : i32
    %c0_i32_1 = arith.constant 0 : i32
    return %c0_i32, %c0_i32_0 : i32, i32
  }
  func.func @transform_5(%arg0: i32) -> (i32, i32) {
    %c0_i32 = arith.constant 0 : i32
    %c0_i32_0 = arith.constant 0 : i32
    %c0_i32_1 = arith.constant 0 : i32
    return %c0_i32, %c0_i32_0 : i32, i32
  }
  func.func @transform_6(%arg0: i32) -> (i32, i32) {
    %c0_i32 = arith.constant 0 : i32
    %c0_i32_0 = arith.constant 0 : i32
    %c0_i32_1 = arith.constant 0 : i32
    return %c0_i32, %c0_i32_0 : i32, i32
  }
  func.func @transform_7(%arg0: i32) -> (i32, i32) {
    %c0_i32 = arith.constant 0 : i32
    %c0_i32_0 = arith.constant 0 : i32
    %c0_i32_1 = arith.constant 0 : i32
    return %c0_i32, %c0_i32_0 : i32, i32
  }
  func.func @transform_8(%arg0: i32) -> (i32, i32) {
    %c0_i32 = arith.constant 0 : i32
    %c0_i32_0 = arith.constant 0 : i32
    return %arg0, %c0_i32 : i32, i32
  }
}

</mosaic_0001>

<llo_original>
// kernel: lenet_forward.1
$region0: #{lenet_forward.1}
  #allocation0 [shape = 'u32[]', space=smem, size = 0x4, offset = 0x4, fixed_abs, tag = 'smem constant byte address 0x4 - core index']
  #allocation1 [shape = 'u32[144,128]{1,0:T(1,128)}', space=vmem, size = 0x12000, scoped, tag = 'internal scratch']
  #allocation2 [shape = 'f32[784,128]{1,0:T(8,128)}', space=vmem, size = 0x62000, scoped, tag = 'scratch operand']
  #allocation3 [shape = 'f32[196,128]{1,0:T(8,128)}', space=vmem, size = 0x19000, scoped, tag = 'scratch operand']
  #allocation4 [shape = 'f32[48,128]{1,0:T(8,128)}', space=vmem, size = 0x6000, scoped, tag = 'scratch operand']
  #allocation5 [shape = 'f32[64,128]{1,0:T(8,128)}', space=vmem, size = 0x8000, scoped, tag = 'scratch operand']
  %s0 = inlined_call_operand.vmem [shape: bf16[6272,128], index: 0, kind: input, shape index: {}]
  %s1 = inlined_call_operand.vmem [shape: bf16[128,128], index: 1, kind: input, shape index: {}]
  %s2 = inlined_call_operand.vmem [shape: bf16[25,128,128], index: 2, kind: input, shape index: {}]
  %s3 = inlined_call_operand.vmem [shape: bf16[25,128,128], index: 3, kind: input, shape index: {}]
  %s4 = inlined_call_operand.vmem [shape: bf16[128,128], index: 4, kind: input, shape index: {}]
  %s5 = inlined_call_operand.vmem [shape: bf16[128,128], index: 5, kind: input, shape index: {}]
  %s6 = inlined_call_operand.vmem [shape: f32[8,128], index: 6, kind: input, shape index: {}]
  %s7 = inlined_call_operand.vmem [shape: bf16[48,136], index: 7, kind: input, shape index: {}]
  %s8 = inlined_call_operand.vmem [shape: f32[64,128], index: 8, kind: output, shape index: {}]
  %s9 = sld [smem:[#allocation0]]
  $region49: #{lenet_forward.1} parent=0
    _
  %s11 = ssub.s32 1, %s9
  %s12 = scalar_select 0, %s11, %s9
  // Predicated region
  $region2: #{lenet_forward.1} parent=0 // pred_check
    _
  $region3: #{lenet_forward.1} parent=0 // pred_check_branch
    %14 = sbr.rel (0) target = $region5
  $region4: #{lenet_forward.1} parent=0 // pred_region
    _
  $region5: #{lenet_forward.1} parent=0 // pred_fallthru
    _
  // Predicated region
  $region6: #{lenet_forward.1} parent=0 // pred_check
    _
  $region7: #{lenet_forward.1} parent=0 // pred_check_branch
    %16 = sbr.rel (0) target = $region9
  $region8: #{lenet_forward.1} parent=0 // pred_region
    _
  $region9: #{lenet_forward.1} parent=0 // pred_fallthru
    _
  // Predicated region
  $region10: #{lenet_forward.1} parent=0 // pred_check
    _
  $region11: #{lenet_forward.1} parent=0 // pred_check_branch
    %18 = sbr.rel (0) target = $region13
  $region12: #{lenet_forward.1} parent=0 // pred_region
    _
  $region13: #{lenet_forward.1} parent=0 // pred_fallthru
    _
  // Predicated region
  $region14: #{lenet_forward.1} parent=0 // pred_check
    _
  $region15: #{lenet_forward.1} parent=0 // pred_check_branch
    %20 = sbr.rel (0) target = $region17
  $region16: #{lenet_forward.1} parent=0 // pred_region
    _
  $region17: #{lenet_forward.1} parent=0 // pred_fallthru
    _
  // Predicated region
  $region18: #{lenet_forward.1} parent=0 // pred_check
    _
  $region19: #{lenet_forward.1} parent=0 // pred_check_branch
    %22 = sbr.rel (0) target = $region21
  $region20: #{lenet_forward.1} parent=0 // pred_region
    _
  $region21: #{lenet_forward.1} parent=0 // pred_fallthru
    _
  // Predicated region
  $region22: #{lenet_forward.1} parent=0 // pred_check
    _
  $region23: #{lenet_forward.1} parent=0 // pred_check_branch
    %24 = sbr.rel (0) target = $region25
  $region24: #{lenet_forward.1} parent=0 // pred_region
    _
  $region25: #{lenet_forward.1} parent=0 // pred_fallthru
    _
  // Predicated region
  $region26: #{lenet_forward.1} parent=0 // pred_check
    _
  $region27: #{lenet_forward.1} parent=0 // pred_check_branch
    %26 = sbr.rel (0) target = $region29
  $region28: #{lenet_forward.1} parent=0 // pred_region
    _
  $region29: #{lenet_forward.1} parent=0 // pred_fallthru
    _
  // Predicated region
  $region30: #{lenet_forward.1} parent=0 // pred_check
    _
  $region31: #{lenet_forward.1} parent=0 // pred_check_branch
    %28 = sbr.rel (0) target = $region33
  $region32: #{lenet_forward.1} parent=0 // pred_region
    _
  $region33: #{lenet_forward.1} parent=0 // pred_fallthru
    _
  %v30 = vld [vmem:[%s6] sm:$0x1]
  %v31 = vld [vmem:[%s6 + $0x1] sm:$0x1]
  %v32 = vld [vmem:[%s6 + $0x2] sm:$0x1]
  %v33 = vld [vmem:[%s6 + $0x3] sm:$0x1]
  %v34 = vld [vmem:[%s6 + $0x4] sm:$0x1]
  loop: start=0, step=1, limit=8
  $region34: #{lenet_forward.1} parent=0 // loop_pre_header
    _
  $region35: #{lenet_forward.1} parent=0 // loop_header
    %s36 = sphi 0, %s40
    %p37 = scmp.ge.s32.totalorder %s36, 8
  $region36: #{lenet_forward.1} parent=0 // loop_header_branch
    %39 = sbr.rel (%p37) target = $region40
  $region37: #{lenet_forward.1} parent=0 // loop_body
    %s41 = smul.u32 %s36, 784
    %s42 = sshra.s32 %s41, 3
    %s43 = sand.u32 %s41, 7
    %s44 = smul.addr %s42, 4
    %s45 = scalar_lea.vmem %s0, %s44
    %v46 = vld [vmem:[%s45] sm:$0xf]
    %v47 = vld [vmem:[%s45 + $0x4] sm:$0xf]
    %v48 = vld [vmem:[%s45 + $0x8] sm:$0xf]
    %v49 = vld [vmem:[%s45 + $0xc] sm:$0xf]
    %v50 = vld [vmem:[%s45 + $0x10] sm:$0xf]
    %v51 = vld [vmem:[%s45 + $0x14] sm:$0xf]
    %v52 = vld [vmem:[%s45 + $0x18] sm:$0xf]
    %v53 = vld [vmem:[%s45 + $0x1c] sm:$0xf]
    %v54 = vld [vmem:[%s45 + $0x20] sm:$0xf]
    %v55 = vld [vmem:[%s45 + $0x24] sm:$0xf]
    %v56 = vld [vmem:[%s45 + $0x28] sm:$0xf]
    %v57 = vld [vmem:[%s45 + $0x2c] sm:$0xf]
    %v58 = vld [vmem:[%s45 + $0x30] sm:$0xf]
    %v59 = vld [vmem:[%s45 + $0x34] sm:$0xf]
    %v60 = vld [vmem:[%s1] sm:$0xf]
    %v61 = vld [vmem:[%s1 + $0x4] sm:$0xf]
    %v62 = vld [vmem:[%s1 + $0x8] sm:$0xf]
    %v63 = vld [vmem:[%s1 + $0xc] sm:$0xf]
    %v64 = vld [vmem:[%s1 + $0x10] sm:$0xf]
    %v65 = vld [vmem:[%s1 + $0x14] sm:$0xf]
    %v66 = vld [vmem:[%s1 + $0x18] sm:$0xf]
    %v67 = vld [vmem:[%s1 + $0x1c] sm:$0xf]
    %v68 = vld [vmem:[%s1 + $0x20] sm:$0xf]
    %v69 = vld [vmem:[%s1 + $0x24] sm:$0xf]
    %v70 = vld [vmem:[%s1 + $0x28] sm:$0xf]
    %v71 = vld [vmem:[%s1 + $0x2c] sm:$0xf]
    %v72 = vld [vmem:[%s1 + $0x30] sm:$0xf]
    %v73 = vld [vmem:[%s1 + $0x34] sm:$0xf]
    %v74 = vld [vmem:[%s1 + $0x38] sm:$0xf]
    %v75 = vld [vmem:[%s1 + $0x3c] sm:$0xf]
    %v76 = vlaneseq
    %v77 = vshrl.u32 %v76, 7
    %v78 = vsub.s32 0, %v77
    %v79 = vrot.slane %v30, %v78
    %v94 = vunpack.c.l.b16 %v46
    %v95 = vunpack.c.l.b16 %v47
    %v96 = vunpack.c.l.b16 %v48
    %v97 = vunpack.c.l.b16 %v49
    %v98 = vunpack.c.l.b16 %v50
    %v99 = vunpack.c.l.b16 %v51
    %v100 = vunpack.c.l.b16 %v52
    %v101 = vunpack.c.l.b16 %v53
    %v102 = vunpack.c.l.b16 %v54
    %v103 = vunpack.c.l.b16 %v55
    %v104 = vunpack.c.l.b16 %v56
    %v105 = vunpack.c.l.b16 %v57
    %v106 = vunpack.c.l.b16 %v58
    %v107 = vunpack.c.l.b16 %v59
    %v108 = vpack.c.b16 %v95, %v94
    %v109 = vpack.c.b16 %v97, %v96
    %v110 = vpack.c.b16 %v99, %v98
    %v111 = vpack.c.b16 %v101, %v100
    %v112 = vpack.c.b16 %v103, %v102
    %v113 = vpack.c.b16 %v105, %v104
    %v114 = vpack.c.b16 %v107, %v106
    %v138 = vunpack.c.l.b16 %v60
    %v139 = vunpack.c.l.b16 %v61
    %v140 = vunpack.c.l.b16 %v62
    %v141 = vunpack.c.l.b16 %v63
    %v142 = vunpack.c.l.b16 %v64
    %v143 = vunpack.c.l.b16 %v65
    %v144 = vunpack.c.l.b16 %v66
    %v145 = vunpack.c.l.b16 %v67
    %v146 = vunpack.c.l.b16 %v68
    %v147 = vunpack.c.l.b16 %v69
    %v148 = vunpack.c.l.b16 %v70
    %v149 = vunpack.c.l.b16 %v71
    %v150 = vunpack.c.l.b16 %v72
    %v151 = vunpack.c.l.b16 %v73
    %v152 = vunpack.c.l.b16 %v74
    %v153 = vunpack.c.l.b16 %v75
    %v154 = vpack.c.b16 %v139, %v138
    %v155 = vpack.c.b16 %v141, %v140
    %v156 = vpack.c.b16 %v143, %v142
    %v157 = vpack.c.b16 %v145, %v144
    %v158 = vpack.c.b16 %v147, %v146
    %v159 = vpack.c.b16 %v149, %v148
    %v160 = vpack.c.b16 %v151, %v150
    %v161 = vpack.c.b16 %v153, %v152
    %170 = vmatprep.subr.bf16.mxu0 0
    %171 = vmatpush1.bf16.msra.mxu0 %v161
    %172 = vmatprep.subr.bf16.mxu0 0
    %173 = vmatpush1.bf16.msra.mxu0 %v160
    %174 = vmatprep.subr.bf16.mxu0 0
    %175 = vmatpush1.bf16.msra.mxu0 %v159
    %176 = vmatprep.subr.bf16.mxu0 0
    %177 = vmatpush1.bf16.msra.mxu0 %v158
    %178 = vmatprep.subr.bf16.mxu0 0
    %179 = vmatpush1.bf16.msra.mxu0 %v157
    %180 = vmatprep.subr.bf16.mxu0 0
    %181 = vmatpush1.bf16.msra.mxu0 %v156
    %182 = vmatprep.subr.bf16.mxu0 0
    %183 = vmatpush1.bf16.msra.mxu0 %v155
    %184 = vmatprep.subr.bf16.mxu0 0
    %185 = vmatpush1.bf16.msra.mxu0 %v154
    %186 = vmatprep.subr.bf16.mxu0 0
    %187 = vmatpush2.bf16.msra.mxu0 0
    %188 = vmatprep.subr.bf16.mxu0 0
    %189 = vmatpush2.bf16.msra.mxu0 0
    %190 = vmatprep.subr.bf16.mxu0 0
    %191 = vmatpush2.bf16.msra.mxu0 0
    %192 = vmatprep.subr.bf16.mxu0 0
    %193 = vmatpush2.bf16.msra.mxu0 0
    %194 = vmatprep.subr.bf16.mxu0 0
    %195 = vmatpush2.bf16.msra.mxu0 0
    %196 = vmatprep.subr.bf16.mxu0 0
    %197 = vmatpush2.bf16.msra.mxu0 0
    %198 = vmatprep.subr.bf16.mxu0 0
    %199 = vmatpush2.bf16.msra.mxu0 0
    %200 = vmatprep.subr.bf16.mxu0 0
    %201 = vmatpush2.bf16.msra.mxu0 0
    %202 = vmatprep.mubr.bf16.mxu0 0
    %203 = vmatmul.mubr.bf16.gmra.mxu0 %v108
    %v204 = vpop.f32.mrf.mxu0
    %v205 = vadd.f32 %v79, %v204
    %v206 = vpop.f32.mrf.mxu0
    %v207 = vpop.f32.mrf.mxu0
    %v208 = vadd.f32 %v79, %v207
    %v209 = vpop.f32.mrf.mxu0
    %210 = vmatprep.mubr.bf16.mxu0 0
    %211 = vmatmul.mubr.bf16.gmra.mxu0 %v109
    %v212 = vpop.f32.mrf.mxu0
    %v213 = vadd.f32 %v79, %v212
    %v214 = vpop.f32.mrf.mxu0
    %v215 = vpop.f32.mrf.mxu0
    %v216 = vadd.f32 %v79, %v215
    %v217 = vpop.f32.mrf.mxu0
    %218 = vmatprep.mubr.bf16.mxu0 0
    %219 = vmatmul.mubr.bf16.gmra.mxu0 %v110
    %v220 = vpop.f32.mrf.mxu0
    %v221 = vadd.f32 %v79, %v220
    %v222 = vpop.f32.mrf.mxu0
    %v223 = vpop.f32.mrf.mxu0
    %v224 = vadd.f32 %v79, %v223
    %v225 = vpop.f32.mrf.mxu0
    %226 = vmatprep.mubr.bf16.mxu0 0
    %227 = vmatmul.mubr.bf16.gmra.mxu0 %v111
    %v228 = vpop.f32.mrf.mxu0
    %v229 = vadd.f32 %v79, %v228
    %v230 = vpop.f32.mrf.mxu0
    %v231 = vpop.f32.mrf.mxu0
    %v232 = vadd.f32 %v79, %v231
    %v233 = vpop.f32.mrf.mxu0
    %234 = vmatprep.mubr.bf16.mxu0 0
    %235 = vmatmul.mubr.bf16.gmra.mxu0 %v112
    %v236 = vpop.f32.mrf.mxu0
    %v237 = vadd.f32 %v79, %v236
    %v238 = vpop.f32.mrf.mxu0
    %v239 = vpop.f32.mrf.mxu0
    %v240 = vadd.f32 %v79, %v239
    %v241 = vpop.f32.mrf.mxu0
    %242 = vmatprep.mubr.bf16.mxu0 0
    %243 = vmatmul.mubr.bf16.gmra.mxu0 %v113
    %v244 = vpop.f32.mrf.mxu0
    %v245 = vadd.f32 %v79, %v244
    %v246 = vpop.f32.mrf.mxu0
    %v247 = vpop.f32.mrf.mxu0
    %v248 = vadd.f32 %v79, %v247
    %v249 = vpop.f32.mrf.mxu0
    %250 = vmatprep.mubr.bf16.mxu0 0
    %251 = vmatmul.mubr.bf16.gmra.mxu0 %v114
    %v252 = vpop.f32.mrf.mxu0
    %v253 = vadd.f32 %v79, %v252
    %v254 = vpop.f32.mrf.mxu0
    %v255 = vpop.f32.mrf.mxu0
    %v256 = vadd.f32 %v79, %v255
    %v257 = vpop.f32.mrf.mxu0
    %258 = vdwg.mxu0
    %v259 = vtanh.pop %v205
    %v260 = vtanh.pop %v208
    %v261 = vtanh.pop %v213
    %v262 = vtanh.pop %v216
    %v263 = vtanh.pop %v221
    %v264 = vtanh.pop %v224
    %v265 = vtanh.pop %v229
    %v266 = vtanh.pop %v232
    %v267 = vtanh.pop %v237
    %v268 = vtanh.pop %v240
    %v269 = vtanh.pop %v245
    %v270 = vtanh.pop %v248
    %v271 = vtanh.pop %v253
    %v272 = vtanh.pop %v256
    %273 = vst [vmem:[#allocation2] sm:$0xff] %v259
    %274 = vst [vmem:[#allocation2 + $0x8] sm:$0xff] %v260
    %275 = vst [vmem:[#allocation2 + $0x10] sm:$0xff] %v261
    %276 = vst [vmem:[#allocation2 + $0x18] sm:$0xff] %v262
    %277 = vst [vmem:[#allocation2 + $0x20] sm:$0xff] %v263
    %278 = vst [vmem:[#allocation2 + $0x28] sm:$0xff] %v264
    %279 = vst [vmem:[#allocation2 + $0x30] sm:$0xff] %v265
    %280 = vst [vmem:[#allocation2 + $0x38] sm:$0xff] %v266
    %281 = vst [vmem:[#allocation2 + $0x40] sm:$0xff] %v267
    %282 = vst [vmem:[#allocation2 + $0x48] sm:$0xff] %v268
    %283 = vst [vmem:[#allocation2 + $0x50] sm:$0xff] %v269
    %284 = vst [vmem:[#allocation2 + $0x58] sm:$0xff] %v270
    %285 = vst [vmem:[#allocation2 + $0x60] sm:$0xff] %v271
    %286 = vst [vmem:[#allocation2 + $0x68] sm:$0xff] %v272
    %s287 = sadd.s32 %s41, 112
    %s288 = sshra.s32 %s287, 3
    %s289 = sand.u32 %s287, 7
    %s290 = smul.addr %s288, 4
    %s291 = scalar_lea.vmem %s0, %s290
    %v292 = vld [vmem:[%s291] sm:$0xf]
    %v293 = vld [vmem:[%s291 + $0x4] sm:$0xf]
    %v294 = vld [vmem:[%s291 + $0x8] sm:$0xf]
    %v295 = vld [vmem:[%s291 + $0xc] sm:$0xf]
    %v296 = vld [vmem:[%s291 + $0x10] sm:$0xf]
    %v297 = vld [vmem:[%s291 + $0x14] sm:$0xf]
    %v298 = vld [vmem:[%s291 + $0x18] sm:$0xf]
    %v299 = vld [vmem:[%s291 + $0x1c] sm:$0xf]
    %v300 = vld [vmem:[%s291 + $0x20] sm:$0xf]
    %v301 = vld [vmem:[%s291 + $0x24] sm:$0xf]
    %v302 = vld [vmem:[%s291 + $0x28] sm:$0xf]
    %v303 = vld [vmem:[%s291 + $0x2c] sm:$0xf]
    %v304 = vld [vmem:[%s291 + $0x30] sm:$0xf]
    %v305 = vld [vmem:[%s291 + $0x34] sm:$0xf]
    %v306 = vld [vmem:[%s1] sm:$0xf]
    %v307 = vld [vmem:[%s1 + $0x4] sm:$0xf]
    %v308 = vld [vmem:[%s1 + $0x8] sm:$0xf]
    %v309 = vld [vmem:[%s1 + $0xc] sm:$0xf]
    %v310 = vld [vmem:[%s1 + $0x10] sm:$0xf]
    %v311 = vld [vmem:[%s1 + $0x14] sm:$0xf]
    %v312 = vld [vmem:[%s1 + $0x18] sm:$0xf]
    %v313 = vld [vmem:[%s1 + $0x1c] sm:$0xf]
    %v314 = vld [vmem:[%s1 + $0x20] sm:$0xf]
    %v315 = vld [vmem:[%s1 + $0x24] sm:$0xf]
    %v316 = vld [vmem:[%s1 + $0x28] sm:$0xf]
    %v317 = vld [vmem:[%s1 + $0x2c] sm:$0xf]
    %v318 = vld [vmem:[%s1 + $0x30] sm:$0xf]
    %v319 = vld [vmem:[%s1 + $0x34] sm:$0xf]
    %v320 = vld [vmem:[%s1 + $0x38] sm:$0xf]
    %v321 = vld [vmem:[%s1 + $0x3c] sm:$0xf]
    %v336 = vunpack.c.l.b16 %v292
    %v337 = vunpack.c.l.b16 %v293
    %v338 = vunpack.c.l.b16 %v294
    %v339 = vunpack.c.l.b16 %v295
    %v340 = vunpack.c.l.b16 %v296
    %v341 = vunpack.c.l.b16 %v297
    %v342 = vunpack.c.l.b16 %v298
    %v343 = vunpack.c.l.b16 %v299
    %v344 = vunpack.c.l.b16 %v300
    %v345 = vunpack.c.l.b16 %v301
    %v346 = vunpack.c.l.b16 %v302
    %v347 = vunpack.c.l.b16 %v303
    %v348 = vunpack.c.l.b16 %v304
    %v349 = vunpack.c.l.b16 %v305
    %v350 = vpack.c.b16 %v337, %v336
    %v351 = vpack.c.b16 %v339, %v338
    %v352 = vpack.c.b16 %v341, %v340
    %v353 = vpack.c.b16 %v343, %v342
    %v354 = vpack.c.b16 %v345, %v344
    %v355 = vpack.c.b16 %v347, %v346
    %v356 = vpack.c.b16 %v349, %v348
    %v380 = vunpack.c.l.b16 %v306
    %v381 = vunpack.c.l.b16 %v307
    %v382 = vunpack.c.l.b16 %v308
    %v383 = vunpack.c.l.b16 %v309
    %v384 = vunpack.c.l.b16 %v310
    %v385 = vunpack.c.l.b16 %v311
    %v386 = vunpack.c.l.b16 %v312
    %v387 = vunpack.c.l.b16 %v313
    %v388 = vunpack.c.l.b16 %v314
    %v389 = vunpack.c.l.b16 %v315
    %v390 = vunpack.c.l.b16 %v316
    %v391 = vunpack.c.l.b16 %v317
    %v392 = vunpack.c.l.b16 %v318
    %v393 = vunpack.c.l.b16 %v319
    %v394 = vunpack.c.l.b16 %v320
    %v395 = vunpack.c.l.b16 %v321
    %v396 = vpack.c.b16 %v381, %v380
    %v397 = vpack.c.b16 %v383, %v382
    %v398 = vpack.c.b16 %v385, %v384
    %v399 = vpack.c.b16 %v387, %v386
    %v400 = vpack.c.b16 %v389, %v388
    %v401 = vpack.c.b16 %v391, %v390
    %v402 = vpack.c.b16 %v393, %v392
    %v403 = vpack.c.b16 %v395, %v394
    %412 = vmatprep.subr.bf16.mxu0 0
    %413 = vmatpush1.bf16.msra.mxu0 %v403
    %414 = vmatprep.subr.bf16.mxu0 0
    %415 = vmatpush1.bf16.msra.mxu0 %v402
    %416 = vmatprep.subr.bf16.mxu0 0
    %417 = vmatpush1.bf16.msra.mxu0 %v401
    %418 = vmatprep.subr.bf16.mxu0 0
    %419 = vmatpush1.bf16.msra.mxu0 %v400
    %420 = vmatprep.subr.bf16.mxu0 0
    %421 = vmatpush1.bf16.msra.mxu0 %v399
    %422 = vmatprep.subr.bf16.mxu0 0
    %423 = vmatpush1.bf16.msra.mxu0 %v398
    %424 = vmatprep.subr.bf16.mxu0 0
    %425 = vmatpush1.bf16.msra.mxu0 %v397
    %426 = vmatprep.subr.bf16.mxu0 0
    %427 = vmatpush1.bf16.msra.mxu0 %v396
    %428 = vmatprep.subr.bf16.mxu0 0
    %429 = vmatpush2.bf16.msra.mxu0 0
    %430 = vmatprep.subr.bf16.mxu0 0
    %431 = vmatpush2.bf16.msra.mxu0 0
    %432 = vmatprep.subr.bf16.mxu0 0
    %433 = vmatpush2.bf16.msra.mxu0 0
    %434 = vmatprep.subr.bf16.mxu0 0
    %435 = vmatpush2.bf16.msra.mxu0 0
    %436 = vmatprep.subr.bf16.mxu0 0
    %437 = vmatpush2.bf16.msra.mxu0 0
    %438 = vmatprep.subr.bf16.mxu0 0
    %439 = vmatpush2.bf16.msra.mxu0 0
    %440 = vmatprep.subr.bf16.mxu0 0
    %441 = vmatpush2.bf16.msra.mxu0 0
    %442 = vmatprep.subr.bf16.mxu0 0
    %443 = vmatpush2.bf16.msra.mxu0 0
    %444 = vmatprep.mubr.bf16.mxu0 0
    %445 = vmatmul.mubr.bf16.gmra.mxu0 %v350
    %v446 = vpop.f32.mrf.mxu0
    %v447 = vadd.f32 %v79, %v446
    %v448 = vpop.f32.mrf.mxu0
    %v449 = vpop.f32.mrf.mxu0
    %v450 = vadd.f32 %v79, %v449
    %v451 = vpop.f32.mrf.mxu0
    %452 = vmatprep.mubr.bf16.mxu0 0
    %453 = vmatmul.mubr.bf16.gmra.mxu0 %v351
    %v454 = vpop.f32.mrf.mxu0
    %v455 = vadd.f32 %v79, %v454
    %v456 = vpop.f32.mrf.mxu0
    %v457 = vpop.f32.mrf.mxu0
    %v458 = vadd.f32 %v79, %v457
    %v459 = vpop.f32.mrf.mxu0
    %460 = vmatprep.mubr.bf16.mxu0 0
    %461 = vmatmul.mubr.bf16.gmra.mxu0 %v352
    %v462 = vpop.f32.mrf.mxu0
    %v463 = vadd.f32 %v79, %v462
    %v464 = vpop.f32.mrf.mxu0
    %v465 = vpop.f32.mrf.mxu0
    %v466 = vadd.f32 %v79, %v465
    %v467 = vpop.f32.mrf.mxu0
    %468 = vmatprep.mubr.bf16.mxu0 0
    %469 = vmatmul.mubr.bf16.gmra.mxu0 %v353
    %v470 = vpop.f32.mrf.mxu0
    %v471 = vadd.f32 %v79, %v470
    %v472 = vpop.f32.mrf.mxu0
    %v473 = vpop.f32.mrf.mxu0
    %v474 = vadd.f32 %v79, %v473
    %v475 = vpop.f32.mrf.mxu0
    %476 = vmatprep.mubr.bf16.mxu0 0
    %477 = vmatmul.mubr.bf16.gmra.mxu0 %v354
    %v478 = vpop.f32.mrf.mxu0
    %v479 = vadd.f32 %v79, %v478
    %v480 = vpop.f32.mrf.mxu0
    %v481 = vpop.f32.mrf.mxu0
    %v482 = vadd.f32 %v79, %v481
    %v483 = vpop.f32.mrf.mxu0
    %484 = vmatprep.mubr.bf16.mxu0 0
    %485 = vmatmul.mubr.bf16.gmra.mxu0 %v355
    %v486 = vpop.f32.mrf.mxu0
    %v487 = vadd.f32 %v79, %v486
    %v488 = vpop.f32.mrf.mxu0
    %v489 = vpop.f32.mrf.mxu0
    %v490 = vadd.f32 %v79, %v489
    %v491 = vpop.f32.mrf.mxu0
    %492 = vmatprep.mubr.bf16.mxu0 0
    %493 = vmatmul.mubr.bf16.gmra.mxu0 %v356
    %v494 = vpop.f32.mrf.mxu0
    %v495 = vadd.f32 %v79, %v494
    %v496 = vpop.f32.mrf.mxu0
    %v497 = vpop.f32.mrf.mxu0
    %v498 = vadd.f32 %v79, %v497
    %v499 = vpop.f32.mrf.mxu0
    %500 = vdwg.mxu0
    %v501 = vtanh.pop %v447
    %v502 = vtanh.pop %v450
    %v503 = vtanh.pop %v455
    %v504 = vtanh.pop %v458
    %v505 = vtanh.pop %v463
    %v506 = vtanh.pop %v466
    %v507 = vtanh.pop %v471
    %v508 = vtanh.pop %v474
    %v509 = vtanh.pop %v479
    %v510 = vtanh.pop %v482
    %v511 = vtanh.pop %v487
    %v512 = vtanh.pop %v490
    %v513 = vtanh.pop %v495
    %v514 = vtanh.pop %v498
    %515 = vst [vmem:[#allocation2 + $0x70] sm:$0xff] %v501
    %516 = vst [vmem:[#allocation2 + $0x78] sm:$0xff] %v502
    %517 = vst [vmem:[#allocation2 + $0x80] sm:$0xff] %v503
    %518 = vst [vmem:[#allocation2 + $0x88] sm:$0xff] %v504
    %519 = vst [vmem:[#allocation2 + $0x90] sm:$0xff] %v505
    %520 = vst [vmem:[#allocation2 + $0x98] sm:$0xff] %v506
    %521 = vst [vmem:[#allocation2 + $0xa0] sm:$0xff] %v507
    %522 = vst [vmem:[#allocation2 + $0xa8] sm:$0xff] %v508
    %523 = vst [vmem:[#allocation2 + $0xb0] sm:$0xff] %v509
    %524 = vst [vmem:[#allocation2 + $0xb8] sm:$0xff] %v510
    %525 = vst [vmem:[#allocation2 + $0xc0] sm:$0xff] %v511
    %526 = vst [vmem:[#allocation2 + $0xc8] sm:$0xff] %v512
    %527 = vst [vmem:[#allocation2 + $0xd0] sm:$0xff] %v513
    %528 = vst [vmem:[#allocation2 + $0xd8] sm:$0xff] %v514
    %s529 = sadd.s32 %s41, 224
    %s530 = sshra.s32 %s529, 3
    %s531 = sand.u32 %s529, 7
    %s532 = smul.addr %s530, 4
    %s533 = scalar_lea.vmem %s0, %s532
    %v534 = vld [vmem:[%s533] sm:$0xf]
    %v535 = vld [vmem:[%s533 + $0x4] sm:$0xf]
    %v536 = vld [vmem:[%s533 + $0x8] sm:$0xf]
    %v537 = vld [vmem:[%s533 + $0xc] sm:$0xf]
    %v538 = vld [vmem:[%s533 + $0x10] sm:$0xf]
    %v539 = vld [vmem:[%s533 + $0x14] sm:$0xf]
    %v540 = vld [vmem:[%s533 + $0x18] sm:$0xf]
    %v541 = vld [vmem:[%s533 + $0x1c] sm:$0xf]
    %v542 = vld [vmem:[%s533 + $0x20] sm:$0xf]
    %v543 = vld [vmem:[%s533 + $0x24] sm:$0xf]
    %v544 = vld [vmem:[%s533 + $0x28] sm:$0xf]
    %v545 = vld [vmem:[%s533 + $0x2c] sm:$0xf]
    %v546 = vld [vmem:[%s533 + $0x30] sm:$0xf]
    %v547 = vld [vmem:[%s533 + $0x34] sm:$0xf]
    %v548 = vld [vmem:[%s1] sm:$0xf]
    %v549 = vld [vmem:[%s1 + $0x4] sm:$0xf]
    %v550 = vld [vmem:[%s1 + $0x8] sm:$0xf]
    %v551 = vld [vmem:[%s1 + $0xc] sm:$0xf]
    %v552 = vld [vmem:[%s1 + $0x10] sm:$0xf]
    %v553 = vld [vmem:[%s1 + $0x14] sm:$0xf]
    %v554 = vld [vmem:[%s1 + $0x18] sm:$0xf]
    %v555 = vld [vmem:[%s1 + $0x1c] sm:$0xf]
    %v556 = vld [vmem:[%s1 + $0x20] sm:$0xf]
    %v557 = vld [vmem:[%s1 + $0x24] sm:$0xf]
    %v558 = vld [vmem:[%s1 + $0x28] sm:$0xf]
    %v559 = vld [vmem:[%s1 + $0x2c] sm:$0xf]
    %v560 = vld [vmem:[%s1 + $0x30] sm:$0xf]
    %v561 = vld [vmem:[%s1 + $0x34] sm:$0xf]
    %v562 = vld [vmem:[%s1 + $0x38] sm:$0xf]
    %v563 = vld [vmem:[%s1 + $0x3c] sm:$0xf]
    %v578 = vunpack.c.l.b16 %v534
    %v579 = vunpack.c.l.b16 %v535
    %v580 = vunpack.c.l.b16 %v536
    %v581 = vunpack.c.l.b16 %v537
    %v582 = vunpack.c.l.b16 %v538
    %v583 = vunpack.c.l.b16 %v539
    %v584 = vunpack.c.l.b16 %v540
    %v585 = vunpack.c.l.b16 %v541
    %v586 = vunpack.c.l.b16 %v542
    %v587 = vunpack.c.l.b16 %v543
    %v588 = vunpack.c.l.b16 %v544
    %v589 = vunpack.c.l.b16 %v545
    %v590 = vunpack.c.l.b16 %v546
    %v591 = vunpack.c.l.b16 %v547
    %v592 = vpack.c.b16 %v579, %v578
    %v593 = vpack.c.b16 %v581, %v580
    %v594 = vpack.c.b16 %v583, %v582
    %v595 = vpack.c.b16 %v585, %v584
    %v596 = vpack.c.b16 %v587, %v586
    %v597 = vpack.c.b16 %v589, %v588
    %v598 = vpack.c.b16 %v591, %v590
    %v622 = vunpack.c.l.b16 %v548
    %v623 = vunpack.c.l.b16 %v549
    %v624 = vunpack.c.l.b16 %v550
    %v625 = vunpack.c.l.b16 %v551
    %v626 = vunpack.c.l.b16 %v552
    %v627 = vunpack.c.l.b16 %v553
    %v628 = vunpack.c.l.b16 %v554
    %v629 = vunpack.c.l.b16 %v555
    %v630 = vunpack.c.l.b16 %v556
    %v631 = vunpack.c.l.b16 %v557
    %v632 = vunpack.c.l.b16 %v558
    %v633 = vunpack.c.l.b16 %v559
    %v634 = vunpack.c.l.b16 %v560
    %v635 = vunpack.c.l.b16 %v561
    %v636 = vunpack.c.l.b16 %v562
    %v637 = vunpack.c.l.b16 %v563
    %v638 = vpack.c.b16 %v623, %v622
    %v639 = vpack.c.b16 %v625, %v624
    %v640 = vpack.c.b16 %v627, %v626
    %v641 = vpack.c.b16 %v629, %v628
    %v642 = vpack.c.b16 %v631, %v630
    %v643 = vpack.c.b16 %v633, %v632
    %v644 = vpack.c.b16 %v635, %v634
    %v645 = vpack.c.b16 %v637, %v636
    %654 = vmatprep.subr.bf16.mxu0 0
    %655 = vmatpush1.bf16.msra.mxu0 %v645
    %656 = vmatprep.subr.bf16.mxu0 0
    %657 = vmatpush1.bf16.msra.mxu0 %v644
    %658 = vmatprep.subr.bf16.mxu0 0
    %659 = vmatpush1.bf16.msra.mxu0 %v643
    %660 = vmatprep.subr.bf16.mxu0 0
    %661 = vmatpush1.bf16.msra.mxu0 %v642
    %662 = vmatprep.subr.bf16.mxu0 0
    %663 = vmatpush1.bf16.msra.mxu0 %v641
    %664 = vmatprep.subr.bf16.mxu0 0
    %665 = vmatpush1.bf16.msra.mxu0 %v640
    %666 = vmatprep.subr.bf16.mxu0 0
    %667 = vmatpush1.bf16.msra.mxu0 %v639
    %668 = vmatprep.subr.bf16.mxu0 0
    %669 = vmatpush1.bf16.msra.mxu0 %v638
    %670 = vmatprep.subr.bf16.mxu0 0
    %671 = vmatpush2.bf16.msra.mxu0 0
    %672 = vmatprep.subr.bf16.mxu0 0
    %673 = vmatpush2.bf16.msra.mxu0 0
    %674 = vmatprep.subr.bf16.mxu0 0
    %675 = vmatpush2.bf16.msra.mxu0 0
    %676 = vmatprep.subr.bf16.mxu0 0
    %677 = vmatpush2.bf16.msra.mxu0 0
    %678 = vmatprep.subr.bf16.mxu0 0
    %679 = vmatpush2.bf16.msra.mxu0 0
    %680 = vmatprep.subr.bf16.mxu0 0
    %681 = vmatpush2.bf16.msra.mxu0 0
    %682 = vmatprep.subr.bf16.mxu0 0
    %683 = vmatpush2.bf16.msra.mxu0 0
    %684 = vmatprep.subr.bf16.mxu0 0
    %685 = vmatpush2.bf16.msra.mxu0 0
    %686 = vmatprep.mubr.bf16.mxu0 0
    %687 = vmatmul.mubr.bf16.gmra.mxu0 %v592
    %v688 = vpop.f32.mrf.mxu0
    %v689 = vadd.f32 %v79, %v688
    %v690 = vpop.f32.mrf.mxu0
    %v691 = vpop.f32.mrf.mxu0
    %v692 = vadd.f32 %v79, %v691
    %v693 = vpop.f32.mrf.mxu0
    %694 = vmatprep.mubr.bf16.mxu0 0
    %695 = vmatmul.mubr.bf16.gmra.mxu0 %v593
    %v696 = vpop.f32.mrf.mxu0
    %v697 = vadd.f32 %v79, %v696
    %v698 = vpop.f32.mrf.mxu0
    %v699 = vpop.f32.mrf.mxu0
    %v700 = vadd.f32 %v79, %v699
    %v701 = vpop.f32.mrf.mxu0
    %702 = vmatprep.mubr.bf16.mxu0 0
    %703 = vmatmul.mubr.bf16.gmra.mxu0 %v594
    %v704 = vpop.f32.mrf.mxu0
    %v705 = vadd.f32 %v79, %v704
    %v706 = vpop.f32.mrf.mxu0
    %v707 = vpop.f32.mrf.mxu0
    %v708 = vadd.f32 %v79, %v707
    %v709 = vpop.f32.mrf.mxu0
    %710 = vmatprep.mubr.bf16.mxu0 0
    %711 = vmatmul.mubr.bf16.gmra.mxu0 %v595
    %v712 = vpop.f32.mrf.mxu0
    %v713 = vadd.f32 %v79, %v712
    %v714 = vpop.f32.mrf.mxu0
    %v715 = vpop.f32.mrf.mxu0
    %v716 = vadd.f32 %v79, %v715
    %v717 = vpop.f32.mrf.mxu0
    %718 = vmatprep.mubr.bf16.mxu0 0
    %719 = vmatmul.mubr.bf16.gmra.mxu0 %v596
    %v720 = vpop.f32.mrf.mxu0
    %v721 = vadd.f32 %v79, %v720
    %v722 = vpop.f32.mrf.mxu0
    %v723 = vpop.f32.mrf.mxu0
    %v724 = vadd.f32 %v79, %v723
    %v725 = vpop.f32.mrf.mxu0
    %726 = vmatprep.mubr.bf16.mxu0 0
    %727 = vmatmul.mubr.bf16.gmra.mxu0 %v597
    %v728 = vpop.f32.mrf.mxu0
    %v729 = vadd.f32 %v79, %v728
    %v730 = vpop.f32.mrf.mxu0
    %v731 = vpop.f32.mrf.mxu0
    %v732 = vadd.f32 %v79, %v731
    %v733 = vpop.f32.mrf.mxu0
    %734 = vmatprep.mubr.bf16.mxu0 0
    %735 = vmatmul.mubr.bf16.gmra.mxu0 %v598
    %v736 = vpop.f32.mrf.mxu0
    %v737 = vadd.f32 %v79, %v736
    %v738 = vpop.f32.mrf.mxu0
    %v739 = vpop.f32.mrf.mxu0
    %v740 = vadd.f32 %v79, %v739
    %v741 = vpop.f32.mrf.mxu0
    %742 = vdwg.mxu0
    %v743 = vtanh.pop %v689
    %v744 = vtanh.pop %v692
    %v745 = vtanh.pop %v697
    %v746 = vtanh.pop %v700
    %v747 = vtanh.pop %v705
    %v748 = vtanh.pop %v708
    %v749 = vtanh.pop %v713
    %v750 = vtanh.pop %v716
    %v751 = vtanh.pop %v721
    %v752 = vtanh.pop %v724
    %v753 = vtanh.pop %v729
    %v754 = vtanh.pop %v732
    %v755 = vtanh.pop %v737
    %v756 = vtanh.pop %v740
    %757 = vst [vmem:[#allocation2 + $0xe0] sm:$0xff] %v743
    %758 = vst [vmem:[#allocation2 + $0xe8] sm:$0xff] %v744
    %759 = vst [vmem:[#allocation2 + $0xf0] sm:$0xff] %v745
    %760 = vst [vmem:[#allocation2 + $0xf8] sm:$0xff] %v746
    %761 = vst [vmem:[#allocation2 + $0x100] sm:$0xff] %v747
    %762 = vst [vmem:[#allocation2 + $0x108] sm:$0xff] %v748
    %763 = vst [vmem:[#allocation2 + $0x110] sm:$0xff] %v749
    %764 = vst [vmem:[#allocation2 + $0x118] sm:$0xff] %v750
    %765 = vst [vmem:[#allocation2 + $0x120] sm:$0xff] %v751
    %766 = vst [vmem:[#allocation2 + $0x128] sm:$0xff] %v752
    %767 = vst [vmem:[#allocation2 + $0x130] sm:$0xff] %v753
    %768 = vst [vmem:[#allocation2 + $0x138] sm:$0xff] %v754
    %769 = vst [vmem:[#allocation2 + $0x140] sm:$0xff] %v755
    %770 = vst [vmem:[#allocation2 + $0x148] sm:$0xff] %v756
    %s771 = sadd.s32 %s41, 336
    %s772 = sshra.s32 %s771, 3
    %s773 = sand.u32 %s771, 7
    %s774 = smul.addr %s772, 4
    %s775 = scalar_lea.vmem %s0, %s774
    %v776 = vld [vmem:[%s775] sm:$0xf]
    %v777 = vld [vmem:[%s775 + $0x4] sm:$0xf]
    %v778 = vld [vmem:[%s775 + $0x8] sm:$0xf]
    %v779 = vld [vmem:[%s775 + $0xc] sm:$0xf]
    %v780 = vld [vmem:[%s775 + $0x10] sm:$0xf]
    %v781 = vld [vmem:[%s775 + $0x14] sm:$0xf]
    %v782 = vld [vmem:[%s775 + $0x18] sm:$0xf]
    %v783 = vld [vmem:[%s775 + $0x1c] sm:$0xf]
    %v784 = vld [vmem:[%s775 + $0x20] sm:$0xf]
    %v785 = vld [vmem:[%s775 + $0x24] sm:$0xf]
    %v786 = vld [vmem:[%s775 + $0x28] sm:$0xf]
    %v787 = vld [vmem:[%s775 + $0x2c] sm:$0xf]
    %v788 = vld [vmem:[%s775 + $0x30] sm:$0xf]
    %v789 = vld [vmem:[%s775 + $0x34] sm:$0xf]
    %v790 = vld [vmem:[%s1] sm:$0xf]
    %v791 = vld [vmem:[%s1 + $0x4] sm:$0xf]
    %v792 = vld [vmem:[%s1 + $0x8] sm:$0xf]
    %v793 = vld [vmem:[%s1 + $0xc] sm:$0xf]
    %v794 = vld [vmem:[%s1 + $0x10] sm:$0xf]
    %v795 = vld [vmem:[%s1 + $0x14] sm:$0xf]
    %v796 = vld [vmem:[%s1 + $0x18] sm:$0xf]
    %v797 = vld [vmem:[%s1 + $0x1c] sm:$0xf]
    %v798 = vld [vmem:[%s1 + $0x20] sm:$0xf]
    %v799 = vld [vmem:[%s1 + $0x24] sm:$0xf]
    %v800 = vld [vmem:[%s1 + $0x28] sm:$0xf]
    %v801 = vld [vmem:[%s1 + $0x2c] sm:$0xf]
    %v802 = vld [vmem:[%s1 + $0x30] sm:$0xf]
    %v803 = vld [vmem:[%s1 + $0x34] sm:$0xf]
    %v804 = vld [vmem:[%s1 + $0x38] sm:$0xf]
    %v805 = vld [vmem:[%s1 + $0x3c] sm:$0xf]
    %v820 = vunpack.c.l.b16 %v776
    %v821 = vunpack.c.l.b16 %v777
    %v822 = vunpack.c.l.b16 %v778
    %v823 = vunpack.c.l.b16 %v779
    %v824 = vunpack.c.l.b16 %v780
    %v825 = vunpack.c.l.b16 %v781
    %v826 = vunpack.c.l.b16 %v782
    %v827 = vunpack.c.l.b16 %v783
    %v828 = vunpack.c.l.b16 %v784
    %v829 = vunpack.c.l.b16 %v785
    %v830 = vunpack.c.l.b16 %v786
    %v831 = vunpack.c.l.b16 %v787
    %v832 = vunpack.c.l.b16 %v788
    %v833 = vunpack.c.l.b16 %v789
    %v834 = vpack.c.b16 %v821, %v820
    %v835 = vpack.c.b16 %v823, %v822
    %v836 = vpack.c.b16 %v825, %v824
    %v837 = vpack.c.b16 %v827, %v826
    %v838 = vpack.c.b16 %v829, %v828
    %v839 = vpack.c.b16 %v831, %v830
    %v840 = vpack.c.b16 %v833, %v832
    %v864 = vunpack.c.l.b16 %v790
    %v865 = vunpack.c.l.b16 %v791
    %v866 = vunpack.c.l.b16 %v792
    %v867 = vunpack.c.l.b16 %v793
    %v868 = vunpack.c.l.b16 %v794
    %v869 = vunpack.c.l.b16 %v795
    %v870 = vunpack.c.l.b16 %v796
    %v871 = vunpack.c.l.b16 %v797
    %v872 = vunpack.c.l.b16 %v798
    %v873 = vunpack.c.l.b16 %v799
    %v874 = vunpack.c.l.b16 %v800
    %v875 = vunpack.c.l.b16 %v801
    %v876 = vunpack.c.l.b16 %v802
    %v877 = vunpack.c.l.b16 %v803
    %v878 = vunpack.c.l.b16 %v804
    %v879 = vunpack.c.l.b16 %v805
    %v880 = vpack.c.b16 %v865, %v864
    %v881 = vpack.c.b16 %v867, %v866
    %v882 = vpack.c.b16 %v869, %v868
    %v883 = vpack.c.b16 %v871, %v870
    %v884 = vpack.c.b16 %v873, %v872
    %v885 = vpack.c.b16 %v875, %v874
    %v886 = vpack.c.b16 %v877, %v876
    %v887 = vpack.c.b16 %v879, %v878
    %896 = vmatprep.subr.bf16.mxu0 0
    %897 = vmatpush1.bf16.msra.mxu0 %v887
    %898 = vmatprep.subr.bf16.mxu0 0
    %899 = vmatpush1.bf16.msra.mxu0 %v886
    %900 = vmatprep.subr.bf16.mxu0 0
    %901 = vmatpush1.bf16.msra.mxu0 %v885
    %902 = vmatprep.subr.bf16.mxu0 0
    %903 = vmatpush1.bf16.msra.mxu0 %v884
    %904 = vmatprep.subr.bf16.mxu0 0
    %905 = vmatpush1.bf16.msra.mxu0 %v883
    %906 = vmatprep.subr.bf16.mxu0 0
    %907 = vmatpush1.bf16.msra.mxu0 %v882
    %908 = vmatprep.subr.bf16.mxu0 0
    %909 = vmatpush1.bf16.msra.mxu0 %v881
    %910 = vmatprep.subr.bf16.mxu0 0
    %911 = vmatpush1.bf16.msra.mxu0 %v880
    %912 = vmatprep.subr.bf16.mxu0 0
    %913 = vmatpush2.bf16.msra.mxu0 0
    %914 = vmatprep.subr.bf16.mxu0 0
    %915 = vmatpush2.bf16.msra.mxu0 0
    %916 = vmatprep.subr.bf16.mxu0 0
    %917 = vmatpush2.bf16.msra.mxu0 0
    %918 = vmatprep.subr.bf16.mxu0 0
    %919 = vmatpush2.bf16.msra.mxu0 0
    %920 = vmatprep.subr.bf16.mxu0 0
    %921 = vmatpush2.bf16.msra.mxu0 0
    %922 = vmatprep.subr.bf16.mxu0 0
    %923 = vmatpush2.bf16.msra.mxu0 0
    %924 = vmatprep.subr.bf16.mxu0 0
    %925 = vmatpush2.bf16.msra.mxu0 0
    %926 = vmatprep.subr.bf16.mxu0 0
    %927 = vmatpush2.bf16.msra.mxu0 0
    %928 = vmatprep.mubr.bf16.mxu0 0
    %929 = vmatmul.mubr.bf16.gmra.mxu0 %v834
    %v930 = vpop.f32.mrf.mxu0
    %v931 = vadd.f32 %v79, %v930
    %v932 = vpop.f32.mrf.mxu0
    %v933 = vpop.f32.mrf.mxu0
    %v934 = vadd.f32 %v79, %v933
    %v935 = vpop.f32.mrf.mxu0
    %936 = vmatprep.mubr.bf16.mxu0 0
    %937 = vmatmul.mubr.bf16.gmra.mxu0 %v835
    %v938 = vpop.f32.mrf.mxu0
    %v939 = vadd.f32 %v79, %v938
    %v940 = vpop.f32.mrf.mxu0
    %v941 = vpop.f32.mrf.mxu0
    %v942 = vadd.f32 %v79, %v941
    %v943 = vpop.f32.mrf.mxu0
    %944 = vmatprep.mubr.bf16.mxu0 0
    %945 = vmatmul.mubr.bf16.gmra.mxu0 %v836
    %v946 = vpop.f32.mrf.mxu0
    %v947 = vadd.f32 %v79, %v946
    %v948 = vpop.f32.mrf.mxu0
    %v949 = vpop.f32.mrf.mxu0
    %v950 = vadd.f32 %v79, %v949
    %v951 = vpop.f32.mrf.mxu0
    %952 = vmatprep.mubr.bf16.mxu0 0
    %953 = vmatmul.mubr.bf16.gmra.mxu0 %v837
    %v954 = vpop.f32.mrf.mxu0
    %v955 = vadd.f32 %v79, %v954
    %v956 = vpop.f32.mrf.mxu0
    %v957 = vpop.f32.mrf.mxu0
    %v958 = vadd.f32 %v79, %v957
    %v959 = vpop.f32.mrf.mxu0
    %960 = vmatprep.mubr.bf16.mxu0 0
    %961 = vmatmul.mubr.bf16.gmra.mxu0 %v838
    %v962 = vpop.f32.mrf.mxu0
    %v963 = vadd.f32 %v79, %v962
    %v964 = vpop.f32.mrf.mxu0
    %v965 = vpop.f32.mrf.mxu0
    %v966 = vadd.f32 %v79, %v965
    %v967 = vpop.f32.mrf.mxu0
    %968 = vmatprep.mubr.bf16.mxu0 0
    %969 = vmatmul.mubr.bf16.gmra.mxu0 %v839
    %v970 = vpop.f32.mrf.mxu0
    %v971 = vadd.f32 %v79, %v970
    %v972 = vpop.f32.mrf.mxu0
    %v973 = vpop.f32.mrf.mxu0
    %v974 = vadd.f32 %v79, %v973
    %v975 = vpop.f32.mrf.mxu0
    %976 = vmatprep.mubr.bf16.mxu0 0
    %977 = vmatmul.mubr.bf16.gmra.mxu0 %v840
    %v978 = vpop.f32.mrf.mxu0
    %v979 = vadd.f32 %v79, %v978
    %v980 = vpop.f32.mrf.mxu0
    %v981 = vpop.f32.mrf.mxu0
    %v982 = vadd.f32 %v79, %v981
    %v983 = vpop.f32.mrf.mxu0
    %984 = vdwg.mxu0
    %v985 = vtanh.pop %v931
    %v986 = vtanh.pop %v934
    %v987 = vtanh.pop %v939
    %v988 = vtanh.pop %v942
    %v989 = vtanh.pop %v947
    %v990 = vtanh.pop %v950
    %v991 = vtanh.pop %v955
    %v992 = vtanh.pop %v958
    %v993 = vtanh.pop %v963
    %v994 = vtanh.pop %v966
    %v995 = vtanh.pop %v971
    %v996 = vtanh.pop %v974
    %v997 = vtanh.pop %v979
    %v998 = vtanh.pop %v982
    %999 = vst [vmem:[#allocation2 + $0x150] sm:$0xff] %v985
    %1000 = vst [vmem:[#allocation2 + $0x158] sm:$0xff] %v986
    %1001 = vst [vmem:[#allocation2 + $0x160] sm:$0xff] %v987
    %1002 = vst [vmem:[#allocation2 + $0x168] sm:$0xff] %v988
    %1003 = vst [vmem:[#allocation2 + $0x170] sm:$0xff] %v989
    %1004 = vst [vmem:[#allocation2 + $0x178] sm:$0xff] %v990
    %1005 = vst [vmem:[#allocation2 + $0x180] sm:$0xff] %v991
    %1006 = vst [vmem:[#allocation2 + $0x188] sm:$0xff] %v992
    %1007 = vst [vmem:[#allocation2 + $0x190] sm:$0xff] %v993
    %1008 = vst [vmem:[#allocation2 + $0x198] sm:$0xff] %v994
    %1009 = vst [vmem:[#allocation2 + $0x1a0] sm:$0xff] %v995
    %1010 = vst [vmem:[#allocation2 + $0x1a8] sm:$0xff] %v996
    %1011 = vst [vmem:[#allocation2 + $0x1b0] sm:$0xff] %v997
    %1012 = vst [vmem:[#allocation2 + $0x1b8] sm:$0xff] %v998
    %s1013 = sadd.s32 %s41, 448
    %s1014 = sshra.s32 %s1013, 3
    %s1015 = sand.u32 %s1013, 7
    %s1016 = smul.addr %s1014, 4
    %s1017 = scalar_lea.vmem %s0, %s1016
    %v1018 = vld [vmem:[%s1017] sm:$0xf]
    %v1019 = vld [vmem:[%s1017 + $0x4] sm:$0xf]
    %v1020 = vld [vmem:[%s1017 + $0x8] sm:$0xf]
    %v1021 = vld [vmem:[%s1017 + $0xc] sm:$0xf]
    %v1022 = vld [vmem:[%s1017 + $0x10] sm:$0xf]
    %v1023 = vld [vmem:[%s1017 + $0x14] sm:$0xf]
    %v1024 = vld [vmem:[%s1017 + $0x18] sm:$0xf]
    %v1025 = vld [vmem:[%s1017 + $0x1c] sm:$0xf]
    %v1026 = vld [vmem:[%s1017 + $0x20] sm:$0xf]
    %v1027 = vld [vmem:[%s1017 + $0x24] sm:$0xf]
    %v1028 = vld [vmem:[%s1017 + $0x28] sm:$0xf]
    %v1029 = vld [vmem:[%s1017 + $0x2c] sm:$0xf]
    %v1030 = vld [vmem:[%s1017 + $0x30] sm:$0xf]
    %v1031 = vld [vmem:[%s1017 + $0x34] sm:$0xf]
    %v1032 = vld [vmem:[%s1] sm:$0xf]
    %v1033 = vld [vmem:[%s1 + $0x4] sm:$0xf]
    %v1034 = vld [vmem:[%s1 + $0x8] sm:$0xf]
    %v1035 = vld [vmem:[%s1 + $0xc] sm:$0xf]
    %v1036 = vld [vmem:[%s1 + $0x10] sm:$0xf]
    %v1037 = vld [vmem:[%s1 + $0x14] sm:$0xf]
    %v1038 = vld [vmem:[%s1 + $0x18] sm:$0xf]
    %v1039 = vld [vmem:[%s1 + $0x1c] sm:$0xf]
    %v1040 = vld [vmem:[%s1 + $0x20] sm:$0xf]
    %v1041 = vld [vmem:[%s1 + $0x24] sm:$0xf]
    %v1042 = vld [vmem:[%s1 + $0x28] sm:$0xf]
    %v1043 = vld [vmem:[%s1 + $0x2c] sm:$0xf]
    %v1044 = vld [vmem:[%s1 + $0x30] sm:$0xf]
    %v1045 = vld [vmem:[%s1 + $0x34] sm:$0xf]
    %v1046 = vld [vmem:[%s1 + $0x38] sm:$0xf]
    %v1047 = vld [vmem:[%s1 + $0x3c] sm:$0xf]
    %v1062 = vunpack.c.l.b16 %v1018
    %v1063 = vunpack.c.l.b16 %v1019
    %v1064 = vunpack.c.l.b16 %v1020
    %v1065 = vunpack.c.l.b16 %v1021
    %v1066 = vunpack.c.l.b16 %v1022
    %v1067 = vunpack.c.l.b16 %v1023
    %v1068 = vunpack.c.l.b16 %v1024
    %v1069 = vunpack.c.l.b16 %v1025
    %v1070 = vunpack.c.l.b16 %v1026
    %v1071 = vunpack.c.l.b16 %v1027
    %v1072 = vunpack.c.l.b16 %v1028
    %v1073 = vunpack.c.l.b16 %v1029
    %v1074 = vunpack.c.l.b16 %v1030
    %v1075 = vunpack.c.l.b16 %v1031
    %v1076 = vpack.c.b16 %v1063, %v1062
    %v1077 = vpack.c.b16 %v1065, %v1064
    %v1078 = vpack.c.b16 %v1067, %v1066
    %v1079 = vpack.c.b16 %v1069, %v1068
    %v1080 = vpack.c.b16 %v1071, %v1070
    %v1081 = vpack.c.b16 %v1073, %v1072
    %v1082 = vpack.c.b16 %v1075, %v1074
    %v1106 = vunpack.c.l.b16 %v1032
    %v1107 = vunpack.c.l.b16 %v1033
    %v1108 = vunpack.c.l.b16 %v1034
    %v1109 = vunpack.c.l.b16 %v1035
    %v1110 = vunpack.c.l.b16 %v1036
    %v1111 = vunpack.c.l.b16 %v1037
    %v1112 = vunpack.c.l.b16 %v1038
    %v1113 = vunpack.c.l.b16 %v1039
    %v1114 = vunpack.c.l.b16 %v1040
    %v1115 = vunpack.c.l.b16 %v1041
    %v1116 = vunpack.c.l.b16 %v1042
    %v1117 = vunpack.c.l.b16 %v1043
    %v1118 = vunpack.c.l.b16 %v1044
    %v1119 = vunpack.c.l.b16 %v1045
    %v1120 = vunpack.c.l.b16 %v1046
    %v1121 = vunpack.c.l.b16 %v1047
    %v1122 = vpack.c.b16 %v1107, %v1106
    %v1123 = vpack.c.b16 %v1109, %v1108
    %v1124 = vpack.c.b16 %v1111, %v1110
    %v1125 = vpack.c.b16 %v1113, %v1112
    %v1126 = vpack.c.b16 %v1115, %v1114
    %v1127 = vpack.c.b16 %v1117, %v1116
    %v1128 = vpack.c.b16 %v1119, %v1118
    %v1129 = vpack.c.b16 %v1121, %v1120
    %1138 = vmatprep.subr.bf16.mxu0 0
    %1139 = vmatpush1.bf16.msra.mxu0 %v1129
    %1140 = vmatprep.subr.bf16.mxu0 0
    %1141 = vmatpush1.bf16.msra.mxu0 %v1128
    %1142 = vmatprep.subr.bf16.mxu0 0
    %1143 = vmatpush1.bf16.msra.mxu0 %v1127
    %1144 = vmatprep.subr.bf16.mxu0 0
    %1145 = vmatpush1.bf16.msra.mxu0 %v1126
    %1146 = vmatprep.subr.bf16.mxu0 0
    %1147 = vmatpush1.bf16.msra.mxu0 %v1125
    %1148 = vmatprep.subr.bf16.mxu0 0
    %1149 = vmatpush1.bf16.msra.mxu0 %v1124
    %1150 = vmatprep.subr.bf16.mxu0 0
    %1151 = vmatpush1.bf16.msra.mxu0 %v1123
    %1152 = vmatprep.subr.bf16.mxu0 0
    %1153 = vmatpush1.bf16.msra.mxu0 %v1122
    %1154 = vmatprep.subr.bf16.mxu0 0
    %1155 = vmatpush2.bf16.msra.mxu0 0
    %1156 = vmatprep.subr.bf16.mxu0 0
    %1157 = vmatpush2.bf16.msra.mxu0 0
    %1158 = vmatprep.subr.bf16.mxu0 0
    %1159 = vmatpush2.bf16.msra.mxu0 0
    %1160 = vmatprep.subr.bf16.mxu0 0
    %1161 = vmatpush2.bf16.msra.mxu0 0
    %1162 = vmatprep.subr.bf16.mxu0 0
    %1163 = vmatpush2.bf16.msra.mxu0 0
    %1164 = vmatprep.subr.bf16.mxu0 0
    %1165 = vmatpush2.bf16.msra.mxu0 0
    %1166 = vmatprep.subr.bf16.mxu0 0
    %1167 = vmatpush2.bf16.msra.mxu0 0
    %1168 = vmatprep.subr.bf16.mxu0 0
    %1169 = vmatpush2.bf16.msra.mxu0 0
    %1170 = vmatprep.mubr.bf16.mxu0 0
    %1171 = vmatmul.mubr.bf16.gmra.mxu0 %v1076
    %v1172 = vpop.f32.mrf.mxu0
    %v1173 = vadd.f32 %v79, %v1172
    %v1174 = vpop.f32.mrf.mxu0
    %v1175 = vpop.f32.mrf.mxu0
    %v1176 = vadd.f32 %v79, %v1175
    %v1177 = vpop.f32.mrf.mxu0
    %1178 = vmatprep.mubr.bf16.mxu0 0
    %1179 = vmatmul.mubr.bf16.gmra.mxu0 %v1077
    %v1180 = vpop.f32.mrf.mxu0
    %v1181 = vadd.f32 %v79, %v1180
    %v1182 = vpop.f32.mrf.mxu0
    %v1183 = vpop.f32.mrf.mxu0
    %v1184 = vadd.f32 %v79, %v1183
    %v1185 = vpop.f32.mrf.mxu0
    %1186 = vmatprep.mubr.bf16.mxu0 0
    %1187 = vmatmul.mubr.bf16.gmra.mxu0 %v1078
    %v1188 = vpop.f32.mrf.mxu0
    %v1189 = vadd.f32 %v79, %v1188
    %v1190 = vpop.f32.mrf.mxu0
    %v1191 = vpop.f32.mrf.mxu0
    %v1192 = vadd.f32 %v79, %v1191
    %v1193 = vpop.f32.mrf.mxu0
    %1194 = vmatprep.mubr.bf16.mxu0 0
    %1195 = vmatmul.mubr.bf16.gmra.mxu0 %v1079
    %v1196 = vpop.f32.mrf.mxu0
    %v1197 = vadd.f32 %v79, %v1196
    %v1198 = vpop.f32.mrf.mxu0
    %v1199 = vpop.f32.mrf.mxu0
    %v1200 = vadd.f32 %v79, %v1199
    %v1201 = vpop.f32.mrf.mxu0
    %1202 = vmatprep.mubr.bf16.mxu0 0
    %1203 = vmatmul.mubr.bf16.gmra.mxu0 %v1080
    %v1204 = vpop.f32.mrf.mxu0
    %v1205 = vadd.f32 %v79, %v1204
    %v1206 = vpop.f32.mrf.mxu0
    %v1207 = vpop.f32.mrf.mxu0
    %v1208 = vadd.f32 %v79, %v1207
    %v1209 = vpop.f32.mrf.mxu0
    %1210 = vmatprep.mubr.bf16.mxu0 0
    %1211 = vmatmul.mubr.bf16.gmra.mxu0 %v1081
    %v1212 = vpop.f32.mrf.mxu0
    %v1213 = vadd.f32 %v79, %v1212
    %v1214 = vpop.f32.mrf.mxu0
    %v1215 = vpop.f32.mrf.mxu0
    %v1216 = vadd.f32 %v79, %v1215
    %v1217 = vpop.f32.mrf.mxu0
    %1218 = vmatprep.mubr.bf16.mxu0 0
    %1219 = vmatmul.mubr.bf16.gmra.mxu0 %v1082
    %v1220 = vpop.f32.mrf.mxu0
    %v1221 = vadd.f32 %v79, %v1220
    %v1222 = vpop.f32.mrf.mxu0
    %v1223 = vpop.f32.mrf.mxu0
    %v1224 = vadd.f32 %v79, %v1223
    %v1225 = vpop.f32.mrf.mxu0
    %1226 = vdwg.mxu0
    %v1227 = vtanh.pop %v1173
    %v1228 = vtanh.pop %v1176
    %v1229 = vtanh.pop %v1181
    %v1230 = vtanh.pop %v1184
    %v1231 = vtanh.pop %v1189
    %v1232 = vtanh.pop %v1192
    %v1233 = vtanh.pop %v1197
    %v1234 = vtanh.pop %v1200
    %v1235 = vtanh.pop %v1205
    %v1236 = vtanh.pop %v1208
    %v1237 = vtanh.pop %v1213
    %v1238 = vtanh.pop %v1216
    %v1239 = vtanh.pop %v1221
    %v1240 = vtanh.pop %v1224
    %1241 = vst [vmem:[#allocation2 + $0x1c0] sm:$0xff] %v1227
    %1242 = vst [vmem:[#allocation2 + $0x1c8] sm:$0xff] %v1228
    %1243 = vst [vmem:[#allocation2 + $0x1d0] sm:$0xff] %v1229
    %1244 = vst [vmem:[#allocation2 + $0x1d8] sm:$0xff] %v1230
    %1245 = vst [vmem:[#allocation2 + $0x1e0] sm:$0xff] %v1231
    %1246 = vst [vmem:[#allocation2 + $0x1e8] sm:$0xff] %v1232
    %1247 = vst [vmem:[#allocation2 + $0x1f0] sm:$0xff] %v1233
    %1248 = vst [vmem:[#allocation2 + $0x1f8] sm:$0xff] %v1234
    %1249 = vst [vmem:[#allocation2 + $0x200] sm:$0xff] %v1235
    %1250 = vst [vmem:[#allocation2 + $0x208] sm:$0xff] %v1236
    %1251 = vst [vmem:[#allocation2 + $0x210] sm:$0xff] %v1237
    %1252 = vst [vmem:[#allocation2 + $0x218] sm:$0xff] %v1238
    %1253 = vst [vmem:[#allocation2 + $0x220] sm:$0xff] %v1239
    %1254 = vst [vmem:[#allocation2 + $0x228] sm:$0xff] %v1240
    %s1255 = sadd.s32 %s41, 560
    %s1256 = sshra.s32 %s1255, 3
    %s1257 = sand.u32 %s1255, 7
    %s1258 = smul.addr %s1256, 4
    %s1259 = scalar_lea.vmem %s0, %s1258
    %v1260 = vld [vmem:[%s1259] sm:$0xf]
    %v1261 = vld [vmem:[%s1259 + $0x4] sm:$0xf]
    %v1262 = vld [vmem:[%s1259 + $0x8] sm:$0xf]
    %v1263 = vld [vmem:[%s1259 + $0xc] sm:$0xf]
    %v1264 = vld [vmem:[%s1259 + $0x10] sm:$0xf]
    %v1265 = vld [vmem:[%s1259 + $0x14] sm:$0xf]
    %v1266 = vld [vmem:[%s1259 + $0x18] sm:$0xf]
    %v1267 = vld [vmem:[%s1259 + $0x1c] sm:$0xf]
    %v1268 = vld [vmem:[%s1259 + $0x20] sm:$0xf]
    %v1269 = vld [vmem:[%s1259 + $0x24] sm:$0xf]
    %v1270 = vld [vmem:[%s1259 + $0x28] sm:$0xf]
    %v1271 = vld [vmem:[%s1259 + $0x2c] sm:$0xf]
    %v1272 = vld [vmem:[%s1259 + $0x30] sm:$0xf]
    %v1273 = vld [vmem:[%s1259 + $0x34] sm:$0xf]
    %v1274 = vld [vmem:[%s1] sm:$0xf]
    %v1275 = vld [vmem:[%s1 + $0x4] sm:$0xf]
    %v1276 = vld [vmem:[%s1 + $0x8] sm:$0xf]
    %v1277 = vld [vmem:[%s1 + $0xc] sm:$0xf]
    %v1278 = vld [vmem:[%s1 + $0x10] sm:$0xf]
    %v1279 = vld [vmem:[%s1 + $0x14] sm:$0xf]
    %v1280 = vld [vmem:[%s1 + $0x18] sm:$0xf]
    %v1281 = vld [vmem:[%s1 + $0x1c] sm:$0xf]
    %v1282 = vld [vmem:[%s1 + $0x20] sm:$0xf]
    %v1283 = vld [vmem:[%s1 + $0x24] sm:$0xf]
    %v1284 = vld [vmem:[%s1 + $0x28] sm:$0xf]
    %v1285 = vld [vmem:[%s1 + $0x2c] sm:$0xf]
    %v1286 = vld [vmem:[%s1 + $0x30] sm:$0xf]
    %v1287 = vld [vmem:[%s1 + $0x34] sm:$0xf]
    %v1288 = vld [vmem:[%s1 + $0x38] sm:$0xf]
    %v1289 = vld [vmem:[%s1 + $0x3c] sm:$0xf]
    %v1304 = vunpack.c.l.b16 %v1260
    %v1305 = vunpack.c.l.b16 %v1261
    %v1306 = vunpack.c.l.b16 %v1262
    %v1307 = vunpack.c.l.b16 %v1263
    %v1308 = vunpack.c.l.b16 %v1264
    %v1309 = vunpack.c.l.b16 %v1265
    %v1310 = vunpack.c.l.b16 %v1266
    %v1311 = vunpack.c.l.b16 %v1267
    %v1312 = vunpack.c.l.b16 %v1268
    %v1313 = vunpack.c.l.b16 %v1269
    %v1314 = vunpack.c.l.b16 %v1270
    %v1315 = vunpack.c.l.b16 %v1271
    %v1316 = vunpack.c.l.b16 %v1272
    %v1317 = vunpack.c.l.b16 %v1273
    %v1318 = vpack.c.b16 %v1305, %v1304
    %v1319 = vpack.c.b16 %v1307, %v1306
    %v1320 = vpack.c.b16 %v1309, %v1308
    %v1321 = vpack.c.b16 %v1311, %v1310
    %v1322 = vpack.c.b16 %v1313, %v1312
    %v1323 = vpack.c.b16 %v1315, %v1314
    %v1324 = vpack.c.b16 %v1317, %v1316
    %v1348 = vunpack.c.l.b16 %v1274
    %v1349 = vunpack.c.l.b16 %v1275
    %v1350 = vunpack.c.l.b16 %v1276
    %v1351 = vunpack.c.l.b16 %v1277
    %v1352 = vunpack.c.l.b16 %v1278
    %v1353 = vunpack.c.l.b16 %v1279
    %v1354 = vunpack.c.l.b16 %v1280
    %v1355 = vunpack.c.l.b16 %v1281
    %v1356 = vunpack.c.l.b16 %v1282
    %v1357 = vunpack.c.l.b16 %v1283
    %v1358 = vunpack.c.l.b16 %v1284
    %v1359 = vunpack.c.l.b16 %v1285
    %v1360 = vunpack.c.l.b16 %v1286
    %v1361 = vunpack.c.l.b16 %v1287
    %v1362 = vunpack.c.l.b16 %v1288
    %v1363 = vunpack.c.l.b16 %v1289
    %v1364 = vpack.c.b16 %v1349, %v1348
    %v1365 = vpack.c.b16 %v1351, %v1350
    %v1366 = vpack.c.b16 %v1353, %v1352
    %v1367 = vpack.c.b16 %v1355, %v1354
    %v1368 = vpack.c.b16 %v1357, %v1356
    %v1369 = vpack.c.b16 %v1359, %v1358
    %v1370 = vpack.c.b16 %v1361, %v1360
    %v1371 = vpack.c.b16 %v1363, %v1362
    %1380 = vmatprep.subr.bf16.mxu0 0
    %1381 = vmatpush1.bf16.msra.mxu0 %v1371
    %1382 = vmatprep.subr.bf16.mxu0 0
    %1383 = vmatpush1.bf16.msra.mxu0 %v1370
    %1384 = vmatprep.subr.bf16.mxu0 0
    %1385 = vmatpush1.bf16.msra.mxu0 %v1369
    %1386 = vmatprep.subr.bf16.mxu0 0
    %1387 = vmatpush1.bf16.msra.mxu0 %v1368
    %1388 = vmatprep.subr.bf16.mxu0 0
    %1389 = vmatpush1.bf16.msra.mxu0 %v1367
    %1390 = vmatprep.subr.bf16.mxu0 0
    %1391 = vmatpush1.bf16.msra.mxu0 %v1366
    %1392 = vmatprep.subr.bf16.mxu0 0
    %1393 = vmatpush1.bf16.msra.mxu0 %v1365
    %1394 = vmatprep.subr.bf16.mxu0 0
    %1395 = vmatpush1.bf16.msra.mxu0 %v1364
    %1396 = vmatprep.subr.bf16.mxu0 0
    %1397 = vmatpush2.bf16.msra.mxu0 0
    %1398 = vmatprep.subr.bf16.mxu0 0
    %1399 = vmatpush2.bf16.msra.mxu0 0
    %1400 = vmatprep.subr.bf16.mxu0 0
    %1401 = vmatpush2.bf16.msra.mxu0 0
    %1402 = vmatprep.subr.bf16.mxu0 0
    %1403 = vmatpush2.bf16.msra.mxu0 0
    %1404 = vmatprep.subr.bf16.mxu0 0
    %1405 = vmatpush2.bf16.msra.mxu0 0
    %1406 = vmatprep.subr.bf16.mxu0 0
    %1407 = vmatpush2.bf16.msra.mxu0 0
    %1408 = vmatprep.subr.bf16.mxu0 0
    %1409 = vmatpush2.bf16.msra.mxu0 0
    %1410 = vmatprep.subr.bf16.mxu0 0
    %1411 = vmatpush2.bf16.msra.mxu0 0
    %1412 = vmatprep.mubr.bf16.mxu0 0
    %1413 = vmatmul.mubr.bf16.gmra.mxu0 %v1318
    %v1414 = vpop.f32.mrf.mxu0
    %v1415 = vadd.f32 %v79, %v1414
    %v1416 = vpop.f32.mrf.mxu0
    %v1417 = vpop.f32.mrf.mxu0
    %v1418 = vadd.f32 %v79, %v1417
    %v1419 = vpop.f32.mrf.mxu0
    %1420 = vmatprep.mubr.bf16.mxu0 0
    %1421 = vmatmul.mubr.bf16.gmra.mxu0 %v1319
    %v1422 = vpop.f32.mrf.mxu0
    %v1423 = vadd.f32 %v79, %v1422
    %v1424 = vpop.f32.mrf.mxu0
    %v1425 = vpop.f32.mrf.mxu0
    %v1426 = vadd.f32 %v79, %v1425
    %v1427 = vpop.f32.mrf.mxu0
    %1428 = vmatprep.mubr.bf16.mxu0 0
    %1429 = vmatmul.mubr.bf16.gmra.mxu0 %v1320
    %v1430 = vpop.f32.mrf.mxu0
    %v1431 = vadd.f32 %v79, %v1430
    %v1432 = vpop.f32.mrf.mxu0
    %v1433 = vpop.f32.mrf.mxu0
    %v1434 = vadd.f32 %v79, %v1433
    %v1435 = vpop.f32.mrf.mxu0
    %1436 = vmatprep.mubr.bf16.mxu0 0
    %1437 = vmatmul.mubr.bf16.gmra.mxu0 %v1321
    %v1438 = vpop.f32.mrf.mxu0
    %v1439 = vadd.f32 %v79, %v1438
    %v1440 = vpop.f32.mrf.mxu0
    %v1441 = vpop.f32.mrf.mxu0
    %v1442 = vadd.f32 %v79, %v1441
    %v1443 = vpop.f32.mrf.mxu0
    %1444 = vmatprep.mubr.bf16.mxu0 0
    %1445 = vmatmul.mubr.bf16.gmra.mxu0 %v1322
    %v1446 = vpop.f32.mrf.mxu0
    %v1447 = vadd.f32 %v79, %v1446
    %v1448 = vpop.f32.mrf.mxu0
    %v1449 = vpop.f32.mrf.mxu0
    %v1450 = vadd.f32 %v79, %v1449
    %v1451 = vpop.f32.mrf.mxu0
    %1452 = vmatprep.mubr.bf16.mxu0 0
    %1453 = vmatmul.mubr.bf16.gmra.mxu0 %v1323
    %v1454 = vpop.f32.mrf.mxu0
    %v1455 = vadd.f32 %v79, %v1454
    %v1456 = vpop.f32.mrf.mxu0
    %v1457 = vpop.f32.mrf.mxu0
    %v1458 = vadd.f32 %v79, %v1457
    %v1459 = vpop.f32.mrf.mxu0
    %1460 = vmatprep.mubr.bf16.mxu0 0
    %1461 = vmatmul.mubr.bf16.gmra.mxu0 %v1324
    %v1462 = vpop.f32.mrf.mxu0
    %v1463 = vadd.f32 %v79, %v1462
    %v1464 = vpop.f32.mrf.mxu0
    %v1465 = vpop.f32.mrf.mxu0
    %v1466 = vadd.f32 %v79, %v1465
    %v1467 = vpop.f32.mrf.mxu0
    %1468 = vdwg.mxu0
    %v1469 = vtanh.pop %v1415
    %v1470 = vtanh.pop %v1418
    %v1471 = vtanh.pop %v1423
    %v1472 = vtanh.pop %v1426
    %v1473 = vtanh.pop %v1431
    %v1474 = vtanh.pop %v1434
    %v1475 = vtanh.pop %v1439
    %v1476 = vtanh.pop %v1442
    %v1477 = vtanh.pop %v1447
    %v1478 = vtanh.pop %v1450
    %v1479 = vtanh.pop %v1455
    %v1480 = vtanh.pop %v1458
    %v1481 = vtanh.pop %v1463
    %v1482 = vtanh.pop %v1466
    %1483 = vst [vmem:[#allocation2 + $0x230] sm:$0xff] %v1469
    %1484 = vst [vmem:[#allocation2 + $0x238] sm:$0xff] %v1470
    %1485 = vst [vmem:[#allocation2 + $0x240] sm:$0xff] %v1471
    %1486 = vst [vmem:[#allocation2 + $0x248] sm:$0xff] %v1472
    %1487 = vst [vmem:[#allocation2 + $0x250] sm:$0xff] %v1473
    %1488 = vst [vmem:[#allocation2 + $0x258] sm:$0xff] %v1474
    %1489 = vst [vmem:[#allocation2 + $0x260] sm:$0xff] %v1475
    %1490 = vst [vmem:[#allocation2 + $0x268] sm:$0xff] %v1476
    %1491 = vst [vmem:[#allocation2 + $0x270] sm:$0xff] %v1477
    %1492 = vst [vmem:[#allocation2 + $0x278] sm:$0xff] %v1478
    %1493 = vst [vmem:[#allocation2 + $0x280] sm:$0xff] %v1479
    %1494 = vst [vmem:[#allocation2 + $0x288] sm:$0xff] %v1480
    %1495 = vst [vmem:[#allocation2 + $0x290] sm:$0xff] %v1481
    %1496 = vst [vmem:[#allocation2 + $0x298] sm:$0xff] %v1482
    %s1497 = sadd.s32 %s41, 672
    %s1498 = sshra.s32 %s1497, 3
    %s1499 = sand.u32 %s1497, 7
    %s1500 = smul.addr %s1498, 4
    %s1501 = scalar_lea.vmem %s0, %s1500
    %v1502 = vld [vmem:[%s1501] sm:$0xf]
    %v1503 = vld [vmem:[%s1501 + $0x4] sm:$0xf]
    %v1504 = vld [vmem:[%s1501 + $0x8] sm:$0xf]
    %v1505 = vld [vmem:[%s1501 + $0xc] sm:$0xf]
    %v1506 = vld [vmem:[%s1501 + $0x10] sm:$0xf]
    %v1507 = vld [vmem:[%s1501 + $0x14] sm:$0xf]
    %v1508 = vld [vmem:[%s1501 + $0x18] sm:$0xf]
    %v1509 = vld [vmem:[%s1501 + $0x1c] sm:$0xf]
    %v1510 = vld [vmem:[%s1501 + $0x20] sm:$0xf]
    %v1511 = vld [vmem:[%s1501 + $0x24] sm:$0xf]
    %v1512 = vld [vmem:[%s1501 + $0x28] sm:$0xf]
    %v1513 = vld [vmem:[%s1501 + $0x2c] sm:$0xf]
    %v1514 = vld [vmem:[%s1501 + $0x30] sm:$0xf]
    %v1515 = vld [vmem:[%s1501 + $0x34] sm:$0xf]
    %v1516 = vld [vmem:[%s1] sm:$0xf]
    %v1517 = vld [vmem:[%s1 + $0x4] sm:$0xf]
    %v1518 = vld [vmem:[%s1 + $0x8] sm:$0xf]
    %v1519 = vld [vmem:[%s1 + $0xc] sm:$0xf]
    %v1520 = vld [vmem:[%s1 + $0x10] sm:$0xf]
    %v1521 = vld [vmem:[%s1 + $0x14] sm:$0xf]
    %v1522 = vld [vmem:[%s1 + $0x18] sm:$0xf]
    %v1523 = vld [vmem:[%s1 + $0x1c] sm:$0xf]
    %v1524 = vld [vmem:[%s1 + $0x20] sm:$0xf]
    %v1525 = vld [vmem:[%s1 + $0x24] sm:$0xf]
    %v1526 = vld [vmem:[%s1 + $0x28] sm:$0xf]
    %v1527 = vld [vmem:[%s1 + $0x2c] sm:$0xf]
    %v1528 = vld [vmem:[%s1 + $0x30] sm:$0xf]
    %v1529 = vld [vmem:[%s1 + $0x34] sm:$0xf]
    %v1530 = vld [vmem:[%s1 + $0x38] sm:$0xf]
    %v1531 = vld [vmem:[%s1 + $0x3c] sm:$0xf]
    %v1546 = vunpack.c.l.b16 %v1502
    %v1547 = vunpack.c.l.b16 %v1503
    %v1548 = vunpack.c.l.b16 %v1504
    %v1549 = vunpack.c.l.b16 %v1505
    %v1550 = vunpack.c.l.b16 %v1506
    %v1551 = vunpack.c.l.b16 %v1507
    %v1552 = vunpack.c.l.b16 %v1508
    %v1553 = vunpack.c.l.b16 %v1509
    %v1554 = vunpack.c.l.b16 %v1510
    %v1555 = vunpack.c.l.b16 %v1511
    %v1556 = vunpack.c.l.b16 %v1512
    %v1557 = vunpack.c.l.b16 %v1513
    %v1558 = vunpack.c.l.b16 %v1514
    %v1559 = vunpack.c.l.b16 %v1515
    %v1560 = vpack.c.b16 %v1547, %v1546
    %v1561 = vpack.c.b16 %v1549, %v1548
    %v1562 = vpack.c.b16 %v1551, %v1550
    %v1563 = vpack.c.b16 %v1553, %v1552
    %v1564 = vpack.c.b16 %v1555, %v1554
    %v1565 = vpack.c.b16 %v1557, %v1556
    %v1566 = vpack.c.b16 %v1559, %v1558
    %v1590 = vunpack.c.l.b16 %v1516
    %v1591 = vunpack.c.l.b16 %v1517
    %v1592 = vunpack.c.l.b16 %v1518
    %v1593 = vunpack.c.l.b16 %v1519
    %v1594 = vunpack.c.l.b16 %v1520
    %v1595 = vunpack.c.l.b16 %v1521
    %v1596 = vunpack.c.l.b16 %v1522
    %v1597 = vunpack.c.l.b16 %v1523
    %v1598 = vunpack.c.l.b16 %v1524
    %v1599 = vunpack.c.l.b16 %v1525
    %v1600 = vunpack.c.l.b16 %v1526
    %v1601 = vunpack.c.l.b16 %v1527
    %v1602 = vunpack.c.l.b16 %v1528
    %v1603 = vunpack.c.l.b16 %v1529
    %v1604 = vunpack.c.l.b16 %v1530
    %v1605 = vunpack.c.l.b16 %v1531
    %v1606 = vpack.c.b16 %v1591, %v1590
    %v1607 = vpack.c.b16 %v1593, %v1592
    %v1608 = vpack.c.b16 %v1595, %v1594
    %v1609 = vpack.c.b16 %v1597, %v1596
    %v1610 = vpack.c.b16 %v1599, %v1598
    %v1611 = vpack.c.b16 %v1601, %v1600
    %v1612 = vpack.c.b16 %v1603, %v1602
    %v1613 = vpack.c.b16 %v1605, %v1604
    %1622 = vmatprep.subr.bf16.mxu0 0
    %1623 = vmatpush1.bf16.msra.mxu0 %v1613
    %1624 = vmatprep.subr.bf16.mxu0 0
    %1625 = vmatpush1.bf16.msra.mxu0 %v1612
    %1626 = vmatprep.subr.bf16.mxu0 0
    %1627 = vmatpush1.bf16.msra.mxu0 %v1611
    %1628 = vmatprep.subr.bf16.mxu0 0
    %1629 = vmatpush1.bf16.msra.mxu0 %v1610
    %1630 = vmatprep.subr.bf16.mxu0 0
    %1631 = vmatpush1.bf16.msra.mxu0 %v1609
    %1632 = vmatprep.subr.bf16.mxu0 0
    %1633 = vmatpush1.bf16.msra.mxu0 %v1608
    %1634 = vmatprep.subr.bf16.mxu0 0
    %1635 = vmatpush1.bf16.msra.mxu0 %v1607
    %1636 = vmatprep.subr.bf16.mxu0 0
    %1637 = vmatpush1.bf16.msra.mxu0 %v1606
    %1638 = vmatprep.subr.bf16.mxu0 0
    %1639 = vmatpush2.bf16.msra.mxu0 0
    %1640 = vmatprep.subr.bf16.mxu0 0
    %1641 = vmatpush2.bf16.msra.mxu0 0
    %1642 = vmatprep.subr.bf16.mxu0 0
    %1643 = vmatpush2.bf16.msra.mxu0 0
    %1644 = vmatprep.subr.bf16.mxu0 0
    %1645 = vmatpush2.bf16.msra.mxu0 0
    %1646 = vmatprep.subr.bf16.mxu0 0
    %1647 = vmatpush2.bf16.msra.mxu0 0
    %1648 = vmatprep.subr.bf16.mxu0 0
    %1649 = vmatpush2.bf16.msra.mxu0 0
    %1650 = vmatprep.subr.bf16.mxu0 0
    %1651 = vmatpush2.bf16.msra.mxu0 0
    %1652 = vmatprep.subr.bf16.mxu0 0
    %1653 = vmatpush2.bf16.msra.mxu0 0
    %1654 = vmatprep.mubr.bf16.mxu0 0
    %1655 = vmatmul.mubr.bf16.gmra.mxu0 %v1560
    %v1656 = vpop.f32.mrf.mxu0
    %v1657 = vadd.f32 %v79, %v1656
    %v1658 = vpop.f32.mrf.mxu0
    %v1659 = vpop.f32.mrf.mxu0
    %v1660 = vadd.f32 %v79, %v1659
    %v1661 = vpop.f32.mrf.mxu0
    %1662 = vmatprep.mubr.bf16.mxu0 0
    %1663 = vmatmul.mubr.bf16.gmra.mxu0 %v1561
    %v1664 = vpop.f32.mrf.mxu0
    %v1665 = vadd.f32 %v79, %v1664
    %v1666 = vpop.f32.mrf.mxu0
    %v1667 = vpop.f32.mrf.mxu0
    %v1668 = vadd.f32 %v79, %v1667
    %v1669 = vpop.f32.mrf.mxu0
    %1670 = vmatprep.mubr.bf16.mxu0 0
    %1671 = vmatmul.mubr.bf16.gmra.mxu0 %v1562
    %v1672 = vpop.f32.mrf.mxu0
    %v1673 = vadd.f32 %v79, %v1672
    %v1674 = vpop.f32.mrf.mxu0
    %v1675 = vpop.f32.mrf.mxu0
    %v1676 = vadd.f32 %v79, %v1675
    %v1677 = vpop.f32.mrf.mxu0
    %1678 = vmatprep.mubr.bf16.mxu0 0
    %1679 = vmatmul.mubr.bf16.gmra.mxu0 %v1563
    %v1680 = vpop.f32.mrf.mxu0
    %v1681 = vadd.f32 %v79, %v1680
    %v1682 = vpop.f32.mrf.mxu0
    %v1683 = vpop.f32.mrf.mxu0
    %v1684 = vadd.f32 %v79, %v1683
    %v1685 = vpop.f32.mrf.mxu0
    %1686 = vmatprep.mubr.bf16.mxu0 0
    %1687 = vmatmul.mubr.bf16.gmra.mxu0 %v1564
    %v1688 = vpop.f32.mrf.mxu0
    %v1689 = vadd.f32 %v79, %v1688
    %v1690 = vpop.f32.mrf.mxu0
    %v1691 = vpop.f32.mrf.mxu0
    %v1692 = vadd.f32 %v79, %v1691
    %v1693 = vpop.f32.mrf.mxu0
    %1694 = vmatprep.mubr.bf16.mxu0 0
    %1695 = vmatmul.mubr.bf16.gmra.mxu0 %v1565
    %v1696 = vpop.f32.mrf.mxu0
    %v1697 = vadd.f32 %v79, %v1696
    %v1698 = vpop.f32.mrf.mxu0
    %v1699 = vpop.f32.mrf.mxu0
    %v1700 = vadd.f32 %v79, %v1699
    %v1701 = vpop.f32.mrf.mxu0
    %1702 = vmatprep.mubr.bf16.mxu0 0
    %1703 = vmatmul.mubr.bf16.gmra.mxu0 %v1566
    %v1704 = vpop.f32.mrf.mxu0
    %v1705 = vadd.f32 %v79, %v1704
    %v1706 = vpop.f32.mrf.mxu0
    %v1707 = vpop.f32.mrf.mxu0
    %v1708 = vadd.f32 %v79, %v1707
    %v1709 = vpop.f32.mrf.mxu0
    %1710 = vdwg.mxu0
    %v1711 = vtanh.pop %v1657
    %v1712 = vtanh.pop %v1660
    %v1713 = vtanh.pop %v1665
    %v1714 = vtanh.pop %v1668
    %v1715 = vtanh.pop %v1673
    %v1716 = vtanh.pop %v1676
    %v1717 = vtanh.pop %v1681
    %v1718 = vtanh.pop %v1684
    %v1719 = vtanh.pop %v1689
    %v1720 = vtanh.pop %v1692
    %v1721 = vtanh.pop %v1697
    %v1722 = vtanh.pop %v1700
    %v1723 = vtanh.pop %v1705
    %v1724 = vtanh.pop %v1708
    %1725 = vst [vmem:[#allocation2 + $0x2a0] sm:$0xff] %v1711
    %1726 = vst [vmem:[#allocation2 + $0x2a8] sm:$0xff] %v1712
    %1727 = vst [vmem:[#allocation2 + $0x2b0] sm:$0xff] %v1713
    %1728 = vst [vmem:[#allocation2 + $0x2b8] sm:$0xff] %v1714
    %1729 = vst [vmem:[#allocation2 + $0x2c0] sm:$0xff] %v1715
    %1730 = vst [vmem:[#allocation2 + $0x2c8] sm:$0xff] %v1716
    %1731 = vst [vmem:[#allocation2 + $0x2d0] sm:$0xff] %v1717
    %1732 = vst [vmem:[#allocation2 + $0x2d8] sm:$0xff] %v1718
    %1733 = vst [vmem:[#allocation2 + $0x2e0] sm:$0xff] %v1719
    %1734 = vst [vmem:[#allocation2 + $0x2e8] sm:$0xff] %v1720
    %1735 = vst [vmem:[#allocation2 + $0x2f0] sm:$0xff] %v1721
    %1736 = vst [vmem:[#allocation2 + $0x2f8] sm:$0xff] %v1722
    %1737 = vst [vmem:[#allocation2 + $0x300] sm:$0xff] %v1723
    %1738 = vst [vmem:[#allocation2 + $0x308] sm:$0xff] %v1724
    %v1739 = vld [vmem:[#allocation2] sm:$0xff]
    %v1740 = vld [vmem:[#allocation2 + $0x8] sm:$0xff]
    %v1741 = vld [vmem:[#allocation2 + $0x10] sm:$0xff]
    %v1742 = vld [vmem:[#allocation2 + $0x18] sm:$0xff]
    %v1743 = vld [vmem:[#allocation2 + $0x20] sm:$0xff]
    %v1744 = vld [vmem:[#allocation2 + $0x28] sm:$0xff]
    %v1745 = vld [vmem:[#allocation2 + $0x30] sm:$0xff]
    %v1746 = vld [vmem:[#allocation2 + $0x38] sm:$0xff]
    %v1747 = vld [vmem:[#allocation2 + $0x40] sm:$0xff]
    %v1748 = vld [vmem:[#allocation2 + $0x48] sm:$0xff]
    %v1749 = vld [vmem:[#allocation2 + $0x50] sm:$0xff]
    %v1750 = vld [vmem:[#allocation2 + $0x58] sm:$0xff]
    %v1751 = vld [vmem:[#allocation2 + $0x60] sm:$0xff]
    %v1752 = vld [vmem:[#allocation2 + $0x68] sm:$0xff]
    %v1753 = vld [vmem:[#allocation2 + $0x70] sm:$0xff]
    %v1754 = vld [vmem:[#allocation2 + $0x78] sm:$0xff]
    %v1755 = vld [vmem:[#allocation2 + $0x80] sm:$0xff]
    %v1756 = vld [vmem:[#allocation2 + $0x88] sm:$0xff]
    %v1757 = vld [vmem:[#allocation2 + $0x90] sm:$0xff]
    %v1758 = vld [vmem:[#allocation2 + $0x98] sm:$0xff]
    %v1759 = vld [vmem:[#allocation2 + $0xa0] sm:$0xff]
    %v1760 = vld [vmem:[#allocation2 + $0xa8] sm:$0xff]
    %v1761 = vld [vmem:[#allocation2 + $0xb0] sm:$0xff]
    %v1762 = vld [vmem:[#allocation2 + $0xb8] sm:$0xff]
    %v1763 = vld [vmem:[#allocation2 + $0xc0] sm:$0xf]
    %v1764 = vld [vmem:[#allocation2 + $0xc4] sm:$0xff]
    %v1765 = vld [vmem:[#allocation2 + $0xcc] sm:$0xff]
    %v1766 = vld [vmem:[#allocation2 + $0xd4] sm:$0xff]
    %v1767 = vld [vmem:[#allocation2 + $0xdc] sm:$0xff]
    %v1768 = vld [vmem:[#allocation2 + $0xe4] sm:$0xff]
    %v1769 = vld [vmem:[#allocation2 + $0xec] sm:$0xff]
    %v1770 = vld [vmem:[#allocation2 + $0xf4] sm:$0xff]
    %v1771 = vld [vmem:[#allocation2 + $0xfc] sm:$0xff]
    %v1772 = vld [vmem:[#allocation2 + $0x104] sm:$0xff]
    %v1773 = vld [vmem:[#allocation2 + $0x10c] sm:$0xff]
    %v1774 = vld [vmem:[#allocation2 + $0x114] sm:$0xff]
    %v1775 = vld [vmem:[#allocation2 + $0x11c] sm:$0xff]
    %v1776 = vld [vmem:[#allocation2 + $0x124] sm:$0xff]
    %v1777 = vld [vmem:[#allocation2 + $0x12c] sm:$0xff]
    %v1778 = vld [vmem:[#allocation2 + $0x134] sm:$0xff]
    %v1779 = vld [vmem:[#allocation2 + $0x13c] sm:$0xff]
    %v1780 = vld [vmem:[#allocation2 + $0x144] sm:$0xff]
    %v1781 = vld [vmem:[#allocation2 + $0x14c] sm:$0xff]
    %v1782 = vld [vmem:[#allocation2 + $0x154] sm:$0xff]
    %v1783 = vld [vmem:[#allocation2 + $0x15c] sm:$0xff]
    %v1784 = vld [vmem:[#allocation2 + $0x164] sm:$0xff]
    %v1785 = vld [vmem:[#allocation2 + $0x16c] sm:$0xff]
    %v1786 = vld [vmem:[#allocation2 + $0x174] sm:$0xff]
    %v1787 = vld [vmem:[#allocation2 + $0x17c] sm:$0xff]
    %v1788 = vld [vmem:[#allocation2 + $0x184] sm:$0xf]
    %v1789 = vadd.f32 %v1739, %v1764
    %v1790 = vadd.f32 %v1740, %v1765
    %v1791 = vadd.f32 %v1741, %v1766
    %v1792 = vadd.f32 %v1742, %v1767
    %v1793 = vadd.f32 %v1743, %v1768
    %v1794 = vadd.f32 %v1744, %v1769
    %v1795 = vadd.f32 %v1745, %v1770
    %v1796 = vadd.f32 %v1746, %v1771
    %v1797 = vadd.f32 %v1747, %v1772
    %v1798 = vadd.f32 %v1748, %v1773
    %v1799 = vadd.f32 %v1749, %v1774
    %v1800 = vadd.f32 %v1750, %v1775
    %v1801 = vadd.f32 %v1751, %v1776
    %v1802 = vadd.f32 %v1752, %v1777
    %v1803 = vadd.f32 %v1753, %v1778
    %v1804 = vadd.f32 %v1754, %v1779
    %v1805 = vadd.f32 %v1755, %v1780
    %v1806 = vadd.f32 %v1756, %v1781
    %v1807 = vadd.f32 %v1757, %v1782
    %v1808 = vadd.f32 %v1758, %v1783
    %v1809 = vadd.f32 %v1759, %v1784
    %v1810 = vadd.f32 %v1760, %v1785
    %v1811 = vadd.f32 %v1761, %v1786
    %v1812 = vadd.f32 %v1762, %v1787
    %v1813 = vadd.f32 %v1763, %v1788
    %v1814 = vld [vmem:[#allocation2 + $0x188] sm:$0xff]
    %v1815 = vld [vmem:[#allocation2 + $0x190] sm:$0xff]
    %v1816 = vld [vmem:[#allocation2 + $0x198] sm:$0xff]
    %v1817 = vld [vmem:[#allocation2 + $0x1a0] sm:$0xff]
    %v1818 = vld [vmem:[#allocation2 + $0x1a8] sm:$0xff]
    %v1819 = vld [vmem:[#allocation2 + $0x1b0] sm:$0xff]
    %v1820 = vld [vmem:[#allocation2 + $0x1b8] sm:$0xff]
    %v1821 = vld [vmem:[#allocation2 + $0x1c0] sm:$0xff]
    %v1822 = vld [vmem:[#allocation2 + $0x1c8] sm:$0xff]
    %v1823 = vld [vmem:[#allocation2 + $0x1d0] sm:$0xff]
    %v1824 = vld [vmem:[#allocation2 + $0x1d8] sm:$0xff]
    %v1825 = vld [vmem:[#allocation2 + $0x1e0] sm:$0xff]
    %v1826 = vld [vmem:[#allocation2 + $0x1e8] sm:$0xff]
    %v1827 = vld [vmem:[#allocation2 + $0x1f0] sm:$0xff]
    %v1828 = vld [vmem:[#allocation2 + $0x1f8] sm:$0xff]
    %v1829 = vld [vmem:[#allocation2 + $0x200] sm:$0xff]
    %v1830 = vld [vmem:[#allocation2 + $0x208] sm:$0xff]
    %v1831 = vld [vmem:[#allocation2 + $0x210] sm:$0xff]
    %v1832 = vld [vmem:[#allocation2 + $0x218] sm:$0xff]
    %v1833 = vld [vmem:[#allocation2 + $0x220] sm:$0xff]
    %v1834 = vld [vmem:[#allocation2 + $0x228] sm:$0xff]
    %v1835 = vld [vmem:[#allocation2 + $0x230] sm:$0xff]
    %v1836 = vld [vmem:[#allocation2 + $0x238] sm:$0xff]
    %v1837 = vld [vmem:[#allocation2 + $0x240] sm:$0xff]
    %v1838 = vld [vmem:[#allocation2 + $0x248] sm:$0xf]
    %v1839 = vadd.f32 %v1789, %v1814
    %v1840 = vadd.f32 %v1790, %v1815
    %v1841 = vadd.f32 %v1791, %v1816
    %v1842 = vadd.f32 %v1792, %v1817
    %v1843 = vadd.f32 %v1793, %v1818
    %v1844 = vadd.f32 %v1794, %v1819
    %v1845 = vadd.f32 %v1795, %v1820
    %v1846 = vadd.f32 %v1796, %v1821
    %v1847 = vadd.f32 %v1797, %v1822
    %v1848 = vadd.f32 %v1798, %v1823
    %v1849 = vadd.f32 %v1799, %v1824
    %v1850 = vadd.f32 %v1800, %v1825
    %v1851 = vadd.f32 %v1801, %v1826
    %v1852 = vadd.f32 %v1802, %v1827
    %v1853 = vadd.f32 %v1803, %v1828
    %v1854 = vadd.f32 %v1804, %v1829
    %v1855 = vadd.f32 %v1805, %v1830
    %v1856 = vadd.f32 %v1806, %v1831
    %v1857 = vadd.f32 %v1807, %v1832
    %v1858 = vadd.f32 %v1808, %v1833
    %v1859 = vadd.f32 %v1809, %v1834
    %v1860 = vadd.f32 %v1810, %v1835
    %v1861 = vadd.f32 %v1811, %v1836
    %v1862 = vadd.f32 %v1812, %v1837
    %v1863 = vadd.f32 %v1813, %v1838
    %v1864 = vld [vmem:[#allocation2 + $0x24c] sm:$0xff]
    %v1865 = vld [vmem:[#allocation2 + $0x254] sm:$0xff]
    %v1866 = vld [vmem:[#allocation2 + $0x25c] sm:$0xff]
    %v1867 = vld [vmem:[#allocation2 + $0x264] sm:$0xff]
    %v1868 = vld [vmem:[#allocation2 + $0x26c] sm:$0xff]
    %v1869 = vld [vmem:[#allocation2 + $0x274] sm:$0xff]
    %v1870 = vld [vmem:[#allocation2 + $0x27c] sm:$0xff]
    %v1871 = vld [vmem:[#allocation2 + $0x284] sm:$0xff]
    %v1872 = vld [vmem:[#allocation2 + $0x28c] sm:$0xff]
    %v1873 = vld [vmem:[#allocation2 + $0x294] sm:$0xff]
    %v1874 = vld [vmem:[#allocation2 + $0x29c] sm:$0xff]
    %v1875 = vld [vmem:[#allocation2 + $0x2a4] sm:$0xff]
    %v1876 = vld [vmem:[#allocation2 + $0x2ac] sm:$0xff]
    %v1877 = vld [vmem:[#allocation2 + $0x2b4] sm:$0xff]
    %v1878 = vld [vmem:[#allocation2 + $0x2bc] sm:$0xff]
    %v1879 = vld [vmem:[#allocation2 + $0x2c4] sm:$0xff]
    %v1880 = vld [vmem:[#allocation2 + $0x2cc] sm:$0xff]
    %v1881 = vld [vmem:[#allocation2 + $0x2d4] sm:$0xff]
    %v1882 = vld [vmem:[#allocation2 + $0x2dc] sm:$0xff]
    %v1883 = vld [vmem:[#allocation2 + $0x2e4] sm:$0xff]
    %v1884 = vld [vmem:[#allocation2 + $0x2ec] sm:$0xff]
    %v1885 = vld [vmem:[#allocation2 + $0x2f4] sm:$0xff]
    %v1886 = vld [vmem:[#allocation2 + $0x2fc] sm:$0xff]
    %v1887 = vld [vmem:[#allocation2 + $0x304] sm:$0xff]
    %v1888 = vld [vmem:[#allocation2 + $0x30c] sm:$0xf]
    %v1889 = vadd.f32 %v1839, %v1864
    %v1890 = vadd.f32 %v1840, %v1865
    %v1891 = vadd.f32 %v1841, %v1866
    %v1892 = vadd.f32 %v1842, %v1867
    %v1893 = vadd.f32 %v1843, %v1868
    %v1894 = vadd.f32 %v1844, %v1869
    %v1895 = vadd.f32 %v1845, %v1870
    %v1896 = vadd.f32 %v1846, %v1871
    %v1897 = vadd.f32 %v1847, %v1872
    %v1898 = vadd.f32 %v1848, %v1873
    %v1899 = vadd.f32 %v1849, %v1874
    %v1900 = vadd.f32 %v1850, %v1875
    %v1901 = vadd.f32 %v1851, %v1876
    %v1902 = vadd.f32 %v1852, %v1877
    %v1903 = vadd.f32 %v1853, %v1878
    %v1904 = vadd.f32 %v1854, %v1879
    %v1905 = vadd.f32 %v1855, %v1880
    %v1906 = vadd.f32 %v1856, %v1881
    %v1907 = vadd.f32 %v1857, %v1882
    %v1908 = vadd.f32 %v1858, %v1883
    %v1909 = vadd.f32 %v1859, %v1884
    %v1910 = vadd.f32 %v1860, %v1885
    %v1911 = vadd.f32 %v1861, %v1886
    %v1912 = vadd.f32 %v1862, %v1887
    %v1913 = vadd.f32 %v1863, %v1888
    %v1914 = vmul.f32 %v1889, 0.25
    %v1915 = vmul.f32 %v1890, 0.25
    %v1916 = vmul.f32 %v1891, 0.25
    %v1917 = vmul.f32 %v1892, 0.25
    %v1918 = vmul.f32 %v1893, 0.25
    %v1919 = vmul.f32 %v1894, 0.25
    %v1920 = vmul.f32 %v1895, 0.25
    %v1921 = vmul.f32 %v1896, 0.25
    %v1922 = vmul.f32 %v1897, 0.25
    %v1923 = vmul.f32 %v1898, 0.25
    %v1924 = vmul.f32 %v1899, 0.25
    %v1925 = vmul.f32 %v1900, 0.25
    %v1926 = vmul.f32 %v1901, 0.25
    %v1927 = vmul.f32 %v1902, 0.25
    %v1928 = vmul.f32 %v1903, 0.25
    %v1929 = vmul.f32 %v1904, 0.25
    %v1930 = vmul.f32 %v1905, 0.25
    %v1931 = vmul.f32 %v1906, 0.25
    %v1932 = vmul.f32 %v1907, 0.25
    %v1933 = vmul.f32 %v1908, 0.25
    %v1934 = vmul.f32 %v1909, 0.25
    %v1935 = vmul.f32 %v1910, 0.25
    %v1936 = vmul.f32 %v1911, 0.25
    %v1937 = vmul.f32 %v1912, 0.25
    %v1938 = vmul.f32 %v1913, 0.25
    %1939 = vst [vmem:[#allocation3] sm:$0xff] %v1914
    %1940 = vst [vmem:[#allocation3 + $0x8] sm:$0xff] %v1915
    %1941 = vst [vmem:[#allocation3 + $0x10] sm:$0xff] %v1916
    %1942 = vst [vmem:[#allocation3 + $0x18] sm:$0xff] %v1917
    %1943 = vst [vmem:[#allocation3 + $0x20] sm:$0xff] %v1918
    %1944 = vst [vmem:[#allocation3 + $0x28] sm:$0xff] %v1919
    %1945 = vst [vmem:[#allocation3 + $0x30] sm:$0xff] %v1920
    %1946 = vst [vmem:[#allocation3 + $0x38] sm:$0xff] %v1921
    %1947 = vst [vmem:[#allocation3 + $0x40] sm:$0xff] %v1922
    %1948 = vst [vmem:[#allocation3 + $0x48] sm:$0xff] %v1923
    %1949 = vst [vmem:[#allocation3 + $0x50] sm:$0xff] %v1924
    %1950 = vst [vmem:[#allocation3 + $0x58] sm:$0xff] %v1925
    %1951 = vst [vmem:[#allocation3 + $0x60] sm:$0xff] %v1926
    %1952 = vst [vmem:[#allocation3 + $0x68] sm:$0xff] %v1927
    %1953 = vst [vmem:[#allocation3 + $0x70] sm:$0xff] %v1928
    %1954 = vst [vmem:[#allocation3 + $0x78] sm:$0xff] %v1929
    %1955 = vst [vmem:[#allocation3 + $0x80] sm:$0xff] %v1930
    %1956 = vst [vmem:[#allocation3 + $0x88] sm:$0xff] %v1931
    %1957 = vst [vmem:[#allocation3 + $0x90] sm:$0xff] %v1932
    %1958 = vst [vmem:[#allocation3 + $0x98] sm:$0xff] %v1933
    %1959 = vst [vmem:[#allocation3 + $0xa0] sm:$0xff] %v1934
    %1960 = vst [vmem:[#allocation3 + $0xa8] sm:$0xff] %v1935
    %1961 = vst [vmem:[#allocation3 + $0xb0] sm:$0xff] %v1936
    %1962 = vst [vmem:[#allocation3 + $0xb8] sm:$0xff] %v1937
    %1963 = vst [vmem:[#allocation3 + $0xc0] sm:$0xf] %v1938
    %v1964 = vld [vmem:[#allocation3] sm:$0xff]
    %v1965 = vld [vmem:[#allocation3 + $0x8] sm:$0xff]
    %v1966 = vld [vmem:[#allocation3 + $0x10] sm:$0xff]
    %v1967 = vld [vmem:[#allocation3 + $0x18] sm:$0xff]
    %v1968 = vld [vmem:[#allocation3 + $0x20] sm:$0xff]
    %v1969 = vld [vmem:[#allocation3 + $0x28] sm:$0xff]
    %v1970 = vld [vmem:[#allocation3 + $0x30] sm:$0xff]
    %v1971 = vld [vmem:[#allocation3 + $0x38] sm:$0xff]
    %v1972 = vld [vmem:[#allocation3 + $0x40] sm:$0xff]
    %v1973 = vld [vmem:[#allocation3 + $0x48] sm:$0xff]
    %v1974 = vld [vmem:[#allocation3 + $0x50] sm:$0xff]
    %v1975 = vld [vmem:[#allocation3 + $0x58] sm:$0xff]
    %v1976 = vld [vmem:[#allocation3 + $0x60] sm:$0xff]
    %v1977 = vld [vmem:[#allocation3 + $0x68] sm:$0xff]
    %v1978 = vld [vmem:[#allocation3 + $0x70] sm:$0xff]
    %v1979 = vld [vmem:[#allocation3 + $0x78] sm:$0xff]
    %v1980 = vld [vmem:[#allocation3 + $0x80] sm:$0xff]
    %v1981 = vpack.c.bf16 %v1965, %v1964
    %v1982 = vpack.c.bf16 %v1967, %v1966
    %v1983 = vpack.c.bf16 %v1969, %v1968
    %v1984 = vpack.c.bf16 %v1971, %v1970
    %v1985 = vpack.c.bf16 %v1973, %v1972
    %v1986 = vpack.c.bf16 %v1975, %v1974
    %v1987 = vpack.c.bf16 %v1977, %v1976
    %v1988 = vpack.c.bf16 %v1979, %v1978
    %v1989 = vpack.c.bf16 %v1980, %v1980
    %v1990 = vld [vmem:[%s2] sm:$0xf]
    %v1991 = vld [vmem:[%s2 + $0x4] sm:$0xf]
    %v1992 = vld [vmem:[%s2 + $0x8] sm:$0xf]
    %v1993 = vld [vmem:[%s2 + $0xc] sm:$0xf]
    %v1994 = vld [vmem:[%s2 + $0x10] sm:$0xf]
    %v1995 = vld [vmem:[%s2 + $0x14] sm:$0xf]
    %v1996 = vld [vmem:[%s2 + $0x18] sm:$0xf]
    %v1997 = vld [vmem:[%s2 + $0x1c] sm:$0xf]
    %v1998 = vld [vmem:[%s2 + $0x20] sm:$0xf]
    %v1999 = vld [vmem:[%s2 + $0x24] sm:$0xf]
    %v2000 = vld [vmem:[%s2 + $0x28] sm:$0xf]
    %v2001 = vld [vmem:[%s2 + $0x2c] sm:$0xf]
    %v2002 = vld [vmem:[%s2 + $0x30] sm:$0xf]
    %v2003 = vld [vmem:[%s2 + $0x34] sm:$0xf]
    %v2004 = vld [vmem:[%s2 + $0x38] sm:$0xf]
    %v2005 = vld [vmem:[%s2 + $0x3c] sm:$0xf]
    %v2006 = vld [vmem:[#allocation3 + $0x1] sm:$0xff]
    %v2007 = vld [vmem:[#allocation3 + $0x9] sm:$0xff]
    %v2008 = vld [vmem:[#allocation3 + $0x11] sm:$0xff]
    %v2009 = vld [vmem:[#allocation3 + $0x19] sm:$0xff]
    %v2010 = vld [vmem:[#allocation3 + $0x21] sm:$0xff]
    %v2011 = vld [vmem:[#allocation3 + $0x29] sm:$0xff]
    %v2012 = vld [vmem:[#allocation3 + $0x31] sm:$0xff]
    %v2013 = vld [vmem:[#allocation3 + $0x39] sm:$0xff]
    %v2014 = vld [vmem:[#allocation3 + $0x41] sm:$0xff]
    %v2015 = vld [vmem:[#allocation3 + $0x49] sm:$0xff]
    %v2016 = vld [vmem:[#allocation3 + $0x51] sm:$0xff]
    %v2017 = vld [vmem:[#allocation3 + $0x59] sm:$0xff]
    %v2018 = vld [vmem:[#allocation3 + $0x61] sm:$0xff]
    %v2019 = vld [vmem:[#allocation3 + $0x69] sm:$0xff]
    %v2020 = vld [vmem:[#allocation3 + $0x71] sm:$0xff]
    %v2021 = vld [vmem:[#allocation3 + $0x79] sm:$0xff]
    %v2022 = vld [vmem:[#allocation3 + $0x81] sm:$0xff]
    %v2023 = vpack.c.bf16 %v2007, %v2006
    %v2024 = vpack.c.bf16 %v2009, %v2008
    %v2025 = vpack.c.bf16 %v2011, %v2010
    %v2026 = vpack.c.bf16 %v2013, %v2012
    %v2027 = vpack.c.bf16 %v2015, %v2014
    %v2028 = vpack.c.bf16 %v2017, %v2016
    %v2029 = vpack.c.bf16 %v2019, %v2018
    %v2030 = vpack.c.bf16 %v2021, %v2020
    %v2031 = vpack.c.bf16 %v2022, %v2022
    %s2032 = scalar_lea.vmem %s2, 64
    %v2033 = vld [vmem:[%s2032] sm:$0xf]
    %v2034 = vld [vmem:[%s2032 + $0x4] sm:$0xf]
    %v2035 = vld [vmem:[%s2032 + $0x8] sm:$0xf]
    %v2036 = vld [vmem:[%s2032 + $0xc] sm:$0xf]
    %v2037 = vld [vmem:[%s2032 + $0x10] sm:$0xf]
    %v2038 = vld [vmem:[%s2032 + $0x14] sm:$0xf]
    %v2039 = vld [vmem:[%s2032 + $0x18] sm:$0xf]
    %v2040 = vld [vmem:[%s2032 + $0x1c] sm:$0xf]
    %v2041 = vld [vmem:[%s2032 + $0x20] sm:$0xf]
    %v2042 = vld [vmem:[%s2032 + $0x24] sm:$0xf]
    %v2043 = vld [vmem:[%s2032 + $0x28] sm:$0xf]
    %v2044 = vld [vmem:[%s2032 + $0x2c] sm:$0xf]
    %v2045 = vld [vmem:[%s2032 + $0x30] sm:$0xf]
    %v2046 = vld [vmem:[%s2032 + $0x34] sm:$0xf]
    %v2047 = vld [vmem:[%s2032 + $0x38] sm:$0xf]
    %v2048 = vld [vmem:[%s2032 + $0x3c] sm:$0xf]
    %v2065 = vunpack.c.l.b16 %v2033
    %v2066 = vunpack.c.l.b16 %v2034
    %v2067 = vunpack.c.l.b16 %v2035
    %v2068 = vunpack.c.l.b16 %v2036
    %v2069 = vunpack.c.l.b16 %v2037
    %v2070 = vunpack.c.l.b16 %v2038
    %v2071 = vunpack.c.l.b16 %v2039
    %v2072 = vunpack.c.l.b16 %v2040
    %v2073 = vunpack.c.l.b16 %v2041
    %v2074 = vunpack.c.l.b16 %v2042
    %v2075 = vunpack.c.l.b16 %v2043
    %v2076 = vunpack.c.l.b16 %v2044
    %v2077 = vunpack.c.l.b16 %v2045
    %v2078 = vunpack.c.l.b16 %v2046
    %v2079 = vunpack.c.l.b16 %v2047
    %v2080 = vunpack.c.l.b16 %v2048
    %v2081 = vpack.c.b16 %v2066, %v2065
    %v2082 = vpack.c.b16 %v2068, %v2067
    %v2083 = vpack.c.b16 %v2070, %v2069
    %v2084 = vpack.c.b16 %v2072, %v2071
    %v2085 = vpack.c.b16 %v2074, %v2073
    %v2086 = vpack.c.b16 %v2076, %v2075
    %v2087 = vpack.c.b16 %v2078, %v2077
    %v2088 = vpack.c.b16 %v2080, %v2079
    %2097 = vmatprep.subr.bf16.mxu0 0
    %2098 = vmatpush1.bf16.msra.mxu0 %v2088
    %2099 = vmatprep.subr.bf16.mxu0 0
    %2100 = vmatpush1.bf16.msra.mxu0 %v2087
    %2101 = vmatprep.subr.bf16.mxu0 0
    %2102 = vmatpush1.bf16.msra.mxu0 %v2086
    %2103 = vmatprep.subr.bf16.mxu0 0
    %2104 = vmatpush1.bf16.msra.mxu0 %v2085
    %2105 = vmatprep.subr.bf16.mxu0 0
    %2106 = vmatpush1.bf16.msra.mxu0 %v2084
    %2107 = vmatprep.subr.bf16.mxu0 0
    %2108 = vmatpush1.bf16.msra.mxu0 %v2083
    %2109 = vmatprep.subr.bf16.mxu0 0
    %2110 = vmatpush1.bf16.msra.mxu0 %v2082
    %2111 = vmatprep.subr.bf16.mxu0 0
    %2112 = vmatpush1.bf16.msra.mxu0 %v2081
    %2113 = vmatprep.subr.bf16.mxu0 0
    %2114 = vmatpush2.bf16.msra.mxu0 0
    %2115 = vmatprep.subr.bf16.mxu0 0
    %2116 = vmatpush2.bf16.msra.mxu0 0
    %2117 = vmatprep.subr.bf16.mxu0 0
    %2118 = vmatpush2.bf16.msra.mxu0 0
    %2119 = vmatprep.subr.bf16.mxu0 0
    %2120 = vmatpush2.bf16.msra.mxu0 0
    %2121 = vmatprep.subr.bf16.mxu0 0
    %2122 = vmatpush2.bf16.msra.mxu0 0
    %2123 = vmatprep.subr.bf16.mxu0 0
    %2124 = vmatpush2.bf16.msra.mxu0 0
    %2125 = vmatprep.subr.bf16.mxu0 0
    %2126 = vmatpush2.bf16.msra.mxu0 0
    %2127 = vmatprep.subr.bf16.mxu0 0
    %2128 = vmatpush2.bf16.msra.mxu0 0
    %2129 = vmatprep.mubr.bf16.mxu0 0
    %2130 = vmatmul.mubr.bf16.gmra.mxu0 %v2023
    %v2131 = vpop.f32.mrf.mxu0
    %v2132 = vadd.f32 0.0, %v2131
    %v2133 = vpop.f32.mrf.mxu0
    %v2134 = vpop.f32.mrf.mxu0
    %v2135 = vadd.f32 0.0, %v2134
    %v2136 = vpop.f32.mrf.mxu0
    %2137 = vmatprep.mubr.bf16.mxu0 0
    %2138 = vmatmul.mubr.bf16.gmra.mxu0 %v2024
    %v2139 = vpop.f32.mrf.mxu0
    %v2140 = vadd.f32 0.0, %v2139
    %v2141 = vpop.f32.mrf.mxu0
    %v2142 = vpop.f32.mrf.mxu0
    %v2143 = vadd.f32 0.0, %v2142
    %v2144 = vpop.f32.mrf.mxu0
    %2145 = vmatprep.mubr.bf16.mxu0 0
    %2146 = vmatmul.mubr.bf16.gmra.mxu0 %v2025
    %v2147 = vpop.f32.mrf.mxu0
    %v2148 = vadd.f32 0.0, %v2147
    %v2149 = vpop.f32.mrf.mxu0
    %v2150 = vpop.f32.mrf.mxu0
    %v2151 = vadd.f32 0.0, %v2150
    %v2152 = vpop.f32.mrf.mxu0
    %2153 = vmatprep.mubr.bf16.mxu0 0
    %2154 = vmatmul.mubr.bf16.gmra.mxu0 %v2026
    %v2155 = vpop.f32.mrf.mxu0
    %v2156 = vadd.f32 0.0, %v2155
    %v2157 = vpop.f32.mrf.mxu0
    %v2158 = vpop.f32.mrf.mxu0
    %v2159 = vadd.f32 0.0, %v2158
    %v2160 = vpop.f32.mrf.mxu0
    %2161 = vmatprep.mubr.bf16.mxu0 0
    %2162 = vmatmul.mubr.bf16.gmra.mxu0 %v2027
    %v2163 = vpop.f32.mrf.mxu0
    %v2164 = vadd.f32 0.0, %v2163
    %v2165 = vpop.f32.mrf.mxu0
    %v2166 = vpop.f32.mrf.mxu0
    %v2167 = vadd.f32 0.0, %v2166
    %v2168 = vpop.f32.mrf.mxu0
    %2169 = vmatprep.mubr.bf16.mxu0 0
    %2170 = vmatmul.mubr.bf16.gmra.mxu0 %v2028
    %v2171 = vpop.f32.mrf.mxu0
    %v2172 = vadd.f32 0.0, %v2171
    %v2173 = vpop.f32.mrf.mxu0
    %v2174 = vpop.f32.mrf.mxu0
    %v2175 = vadd.f32 0.0, %v2174
    %v2176 = vpop.f32.mrf.mxu0
    %2177 = vmatprep.mubr.bf16.mxu0 0
    %2178 = vmatmul.mubr.bf16.gmra.mxu0 %v2029
    %v2179 = vpop.f32.mrf.mxu0
    %v2180 = vadd.f32 0.0, %v2179
    %v2181 = vpop.f32.mrf.mxu0
    %v2182 = vpop.f32.mrf.mxu0
    %v2183 = vadd.f32 0.0, %v2182
    %v2184 = vpop.f32.mrf.mxu0
    %2185 = vmatprep.mubr.bf16.mxu0 0
    %2186 = vmatmul.mubr.bf16.gmra.mxu0 %v2030
    %v2187 = vpop.f32.mrf.mxu0
    %v2188 = vadd.f32 0.0, %v2187
    %v2189 = vpop.f32.mrf.mxu0
    %v2190 = vpop.f32.mrf.mxu0
    %v2191 = vadd.f32 0.0, %v2190
    %v2192 = vpop.f32.mrf.mxu0
    %2193 = vmatprep.mubr.bf16.mxu0 0
    %2194 = vmatmul.mubr.bf16.gmra.mxu0 %v2031
    %v2195 = vpop.f32.mrf.mxu0
    %v2196 = vadd.f32 0.0, %v2195
    %v2197 = vpop.f32.mrf.mxu0
    %v2198 = vpop.f32.mrf.mxu0
    %v2199 = vpop.f32.mrf.mxu0
    %2200 = vdwg.mxu0
    %v2217 = vunpack.c.l.b16 %v1990
    %v2218 = vunpack.c.l.b16 %v1991
    %v2219 = vunpack.c.l.b16 %v1992
    %v2220 = vunpack.c.l.b16 %v1993
    %v2221 = vunpack.c.l.b16 %v1994
    %v2222 = vunpack.c.l.b16 %v1995
    %v2223 = vunpack.c.l.b16 %v1996
    %v2224 = vunpack.c.l.b16 %v1997
    %v2225 = vunpack.c.l.b16 %v1998
    %v2226 = vunpack.c.l.b16 %v1999
    %v2227 = vunpack.c.l.b16 %v2000
    %v2228 = vunpack.c.l.b16 %v2001
    %v2229 = vunpack.c.l.b16 %v2002
    %v2230 = vunpack.c.l.b16 %v2003
    %v2231 = vunpack.c.l.b16 %v2004
    %v2232 = vunpack.c.l.b16 %v2005
    %v2233 = vpack.c.b16 %v2218, %v2217
    %v2234 = vpack.c.b16 %v2220, %v2219
    %v2235 = vpack.c.b16 %v2222, %v2221
    %v2236 = vpack.c.b16 %v2224, %v2223
    %v2237 = vpack.c.b16 %v2226, %v2225
    %v2238 = vpack.c.b16 %v2228, %v2227
    %v2239 = vpack.c.b16 %v2230, %v2229
    %v2240 = vpack.c.b16 %v2232, %v2231
    %2249 = vmatprep.subr.bf16.mxu0 0
    %2250 = vmatpush1.bf16.msra.mxu0 %v2240
    %2251 = vmatprep.subr.bf16.mxu0 0
    %2252 = vmatpush1.bf16.msra.mxu0 %v2239
    %2253 = vmatprep.subr.bf16.mxu0 0
    %2254 = vmatpush1.bf16.msra.mxu0 %v2238
    %2255 = vmatprep.subr.bf16.mxu0 0
    %2256 = vmatpush1.bf16.msra.mxu0 %v2237
    %2257 = vmatprep.subr.bf16.mxu0 0
    %2258 = vmatpush1.bf16.msra.mxu0 %v2236
    %2259 = vmatprep.subr.bf16.mxu0 0
    %2260 = vmatpush1.bf16.msra.mxu0 %v2235
    %2261 = vmatprep.subr.bf16.mxu0 0
    %2262 = vmatpush1.bf16.msra.mxu0 %v2234
    %2263 = vmatprep.subr.bf16.mxu0 0
    %2264 = vmatpush1.bf16.msra.mxu0 %v2233
    %2265 = vmatprep.subr.bf16.mxu0 0
    %2266 = vmatpush2.bf16.msra.mxu0 0
    %2267 = vmatprep.subr.bf16.mxu0 0
    %2268 = vmatpush2.bf16.msra.mxu0 0
    %2269 = vmatprep.subr.bf16.mxu0 0
    %2270 = vmatpush2.bf16.msra.mxu0 0
    %2271 = vmatprep.subr.bf16.mxu0 0
    %2272 = vmatpush2.bf16.msra.mxu0 0
    %2273 = vmatprep.subr.bf16.mxu0 0
    %2274 = vmatpush2.bf16.msra.mxu0 0
    %2275 = vmatprep.subr.bf16.mxu0 0
    %2276 = vmatpush2.bf16.msra.mxu0 0
    %2277 = vmatprep.subr.bf16.mxu0 0
    %2278 = vmatpush2.bf16.msra.mxu0 0
    %2279 = vmatprep.subr.bf16.mxu0 0
    %2280 = vmatpush2.bf16.msra.mxu0 0
    %2281 = vmatprep.mubr.bf16.mxu0 0
    %2282 = vmatmul.mubr.bf16.gmra.mxu0 %v1981
    %v2283 = vpop.f32.mrf.mxu0
    %v2284 = vadd.f32 %v2132, %v2283
    %v2285 = vpop.f32.mrf.mxu0
    %v2286 = vpop.f32.mrf.mxu0
    %v2287 = vadd.f32 %v2135, %v2286
    %v2288 = vpop.f32.mrf.mxu0
    %2289 = vmatprep.mubr.bf16.mxu0 0
    %2290 = vmatmul.mubr.bf16.gmra.mxu0 %v1982
    %v2291 = vpop.f32.mrf.mxu0
    %v2292 = vadd.f32 %v2140, %v2291
    %v2293 = vpop.f32.mrf.mxu0
    %v2294 = vpop.f32.mrf.mxu0
    %v2295 = vadd.f32 %v2143, %v2294
    %v2296 = vpop.f32.mrf.mxu0
    %2297 = vmatprep.mubr.bf16.mxu0 0
    %2298 = vmatmul.mubr.bf16.gmra.mxu0 %v1983
    %v2299 = vpop.f32.mrf.mxu0
    %v2300 = vadd.f32 %v2148, %v2299
    %v2301 = vpop.f32.mrf.mxu0
    %v2302 = vpop.f32.mrf.mxu0
    %v2303 = vadd.f32 %v2151, %v2302
    %v2304 = vpop.f32.mrf.mxu0
    %2305 = vmatprep.mubr.bf16.mxu0 0
    %2306 = vmatmul.mubr.bf16.gmra.mxu0 %v1984
    %v2307 = vpop.f32.mrf.mxu0
    %v2308 = vadd.f32 %v2156, %v2307
    %v2309 = vpop.f32.mrf.mxu0
    %v2310 = vpop.f32.mrf.mxu0
    %v2311 = vadd.f32 %v2159, %v2310
    %v2312 = vpop.f32.mrf.mxu0
    %2313 = vmatprep.mubr.bf16.mxu0 0
    %2314 = vmatmul.mubr.bf16.gmra.mxu0 %v1985
    %v2315 = vpop.f32.mrf.mxu0
    %v2316 = vadd.f32 %v2164, %v2315
    %v2317 = vpop.f32.mrf.mxu0
    %v2318 = vpop.f32.mrf.mxu0
    %v2319 = vadd.f32 %v2167, %v2318
    %v2320 = vpop.f32.mrf.mxu0
    %2321 = vmatprep.mubr.bf16.mxu0 0
    %2322 = vmatmul.mubr.bf16.gmra.mxu0 %v1986
    %v2323 = vpop.f32.mrf.mxu0
    %v2324 = vadd.f32 %v2172, %v2323
    %v2325 = vpop.f32.mrf.mxu0
    %v2326 = vpop.f32.mrf.mxu0
    %v2327 = vadd.f32 %v2175, %v2326
    %v2328 = vpop.f32.mrf.mxu0
    %2329 = vmatprep.mubr.bf16.mxu0 0
    %2330 = vmatmul.mubr.bf16.gmra.mxu0 %v1987
    %v2331 = vpop.f32.mrf.mxu0
    %v2332 = vadd.f32 %v2180, %v2331
    %v2333 = vpop.f32.mrf.mxu0
    %v2334 = vpop.f32.mrf.mxu0
    %v2335 = vadd.f32 %v2183, %v2334
    %v2336 = vpop.f32.mrf.mxu0
    %2337 = vmatprep.mubr.bf16.mxu0 0
    %2338 = vmatmul.mubr.bf16.gmra.mxu0 %v1988
    %v2339 = vpop.f32.mrf.mxu0
    %v2340 = vadd.f32 %v2188, %v2339
    %v2341 = vpop.f32.mrf.mxu0
    %v2342 = vpop.f32.mrf.mxu0
    %v2343 = vadd.f32 %v2191, %v2342
    %v2344 = vpop.f32.mrf.mxu0
    %2345 = vmatprep.mubr.bf16.mxu0 0
    %2346 = vmatmul.mubr.bf16.gmra.mxu0 %v1989
    %v2347 = vpop.f32.mrf.mxu0
    %v2348 = vadd.f32 %v2196, %v2347
    %v2349 = vpop.f32.mrf.mxu0
    %v2350 = vpop.f32.mrf.mxu0
    %v2351 = vpop.f32.mrf.mxu0
    %2352 = vdwg.mxu0
    %v2353 = vld [vmem:[#allocation3 + $0x2] sm:$0xff]
    %v2354 = vld [vmem:[#allocation3 + $0xa] sm:$0xff]
    %v2355 = vld [vmem:[#allocation3 + $0x12] sm:$0xff]
    %v2356 = vld [vmem:[#allocation3 + $0x1a] sm:$0xff]
    %v2357 = vld [vmem:[#allocation3 + $0x22] sm:$0xff]
    %v2358 = vld [vmem:[#allocation3 + $0x2a] sm:$0xff]
    %v2359 = vld [vmem:[#allocation3 + $0x32] sm:$0xff]
    %v2360 = vld [vmem:[#allocation3 + $0x3a] sm:$0xff]
    %v2361 = vld [vmem:[#allocation3 + $0x42] sm:$0xff]
    %v2362 = vld [vmem:[#allocation3 + $0x4a] sm:$0xff]
    %v2363 = vld [vmem:[#allocation3 + $0x52] sm:$0xff]
    %v2364 = vld [vmem:[#allocation3 + $0x5a] sm:$0xff]
    %v2365 = vld [vmem:[#allocation3 + $0x62] sm:$0xff]
    %v2366 = vld [vmem:[#allocation3 + $0x6a] sm:$0xff]
    %v2367 = vld [vmem:[#allocation3 + $0x72] sm:$0xff]
    %v2368 = vld [vmem:[#allocation3 + $0x7a] sm:$0xff]
    %v2369 = vld [vmem:[#allocation3 + $0x82] sm:$0xff]
    %v2370 = vpack.c.bf16 %v2354, %v2353
    %v2371 = vpack.c.bf16 %v2356, %v2355
    %v2372 = vpack.c.bf16 %v2358, %v2357
    %v2373 = vpack.c.bf16 %v2360, %v2359
    %v2374 = vpack.c.bf16 %v2362, %v2361
    %v2375 = vpack.c.bf16 %v2364, %v2363
    %v2376 = vpack.c.bf16 %v2366, %v2365
    %v2377 = vpack.c.bf16 %v2368, %v2367
    %v2378 = vpack.c.bf16 %v2369, %v2369
    %s2379 = scalar_lea.vmem %s2, 128
    %v2380 = vld [vmem:[%s2379] sm:$0xf]
    %v2381 = vld [vmem:[%s2379 + $0x4] sm:$0xf]
    %v2382 = vld [vmem:[%s2379 + $0x8] sm:$0xf]
    %v2383 = vld [vmem:[%s2379 + $0xc] sm:$0xf]
    %v2384 = vld [vmem:[%s2379 + $0x10] sm:$0xf]
    %v2385 = vld [vmem:[%s2379 + $0x14] sm:$0xf]
    %v2386 = vld [vmem:[%s2379 + $0x18] sm:$0xf]
    %v2387 = vld [vmem:[%s2379 + $0x1c] sm:$0xf]
    %v2388 = vld [vmem:[%s2379 + $0x20] sm:$0xf]
    %v2389 = vld [vmem:[%s2379 + $0x24] sm:$0xf]
    %v2390 = vld [vmem:[%s2379 + $0x28] sm:$0xf]
    %v2391 = vld [vmem:[%s2379 + $0x2c] sm:$0xf]
    %v2392 = vld [vmem:[%s2379 + $0x30] sm:$0xf]
    %v2393 = vld [vmem:[%s2379 + $0x34] sm:$0xf]
    %v2394 = vld [vmem:[%s2379 + $0x38] sm:$0xf]
    %v2395 = vld [vmem:[%s2379 + $0x3c] sm:$0xf]
    %v2412 = vunpack.c.l.b16 %v2380
    %v2413 = vunpack.c.l.b16 %v2381
    %v2414 = vunpack.c.l.b16 %v2382
    %v2415 = vunpack.c.l.b16 %v2383
    %v2416 = vunpack.c.l.b16 %v2384
    %v2417 = vunpack.c.l.b16 %v2385
    %v2418 = vunpack.c.l.b16 %v2386
    %v2419 = vunpack.c.l.b16 %v2387
    %v2420 = vunpack.c.l.b16 %v2388
    %v2421 = vunpack.c.l.b16 %v2389
    %v2422 = vunpack.c.l.b16 %v2390
    %v2423 = vunpack.c.l.b16 %v2391
    %v2424 = vunpack.c.l.b16 %v2392
    %v2425 = vunpack.c.l.b16 %v2393
    %v2426 = vunpack.c.l.b16 %v2394
    %v2427 = vunpack.c.l.b16 %v2395
    %v2428 = vpack.c.b16 %v2413, %v2412
    %v2429 = vpack.c.b16 %v2415, %v2414
    %v2430 = vpack.c.b16 %v2417, %v2416
    %v2431 = vpack.c.b16 %v2419, %v2418
    %v2432 = vpack.c.b16 %v2421, %v2420
    %v2433 = vpack.c.b16 %v2423, %v2422
    %v2434 = vpack.c.b16 %v2425, %v2424
    %v2435 = vpack.c.b16 %v2427, %v2426
    %2444 = vmatprep.subr.bf16.mxu0 0
    %2445 = vmatpush1.bf16.msra.mxu0 %v2435
    %2446 = vmatprep.subr.bf16.mxu0 0
    %2447 = vmatpush1.bf16.msra.mxu0 %v2434
    %2448 = vmatprep.subr.bf16.mxu0 0
    %2449 = vmatpush1.bf16.msra.mxu0 %v2433
    %2450 = vmatprep.subr.bf16.mxu0 0
    %2451 = vmatpush1.bf16.msra.mxu0 %v2432
    %2452 = vmatprep.subr.bf16.mxu0 0
    %2453 = vmatpush1.bf16.msra.mxu0 %v2431
    %2454 = vmatprep.subr.bf16.mxu0 0
    %2455 = vmatpush1.bf16.msra.mxu0 %v2430
    %2456 = vmatprep.subr.bf16.mxu0 0
    %2457 = vmatpush1.bf16.msra.mxu0 %v2429
    %2458 = vmatprep.subr.bf16.mxu0 0
    %2459 = vmatpush1.bf16.msra.mxu0 %v2428
    %2460 = vmatprep.subr.bf16.mxu0 0
    %2461 = vmatpush2.bf16.msra.mxu0 0
    %2462 = vmatprep.subr.bf16.mxu0 0
    %2463 = vmatpush2.bf16.msra.mxu0 0
    %2464 = vmatprep.subr.bf16.mxu0 0
    %2465 = vmatpush2.bf16.msra.mxu0 0
    %2466 = vmatprep.subr.bf16.mxu0 0
    %2467 = vmatpush2.bf16.msra.mxu0 0
    %2468 = vmatprep.subr.bf16.mxu0 0
    %2469 = vmatpush2.bf16.msra.mxu0 0
    %2470 = vmatprep.subr.bf16.mxu0 0
    %2471 = vmatpush2.bf16.msra.mxu0 0
    %2472 = vmatprep.subr.bf16.mxu0 0
    %2473 = vmatpush2.bf16.msra.mxu0 0
    %2474 = vmatprep.subr.bf16.mxu0 0
    %2475 = vmatpush2.bf16.msra.mxu0 0
    %2476 = vmatprep.mubr.bf16.mxu0 0
    %2477 = vmatmul.mubr.bf16.gmra.mxu0 %v2370
    %v2478 = vpop.f32.mrf.mxu0
    %v2479 = vadd.f32 0.0, %v2478
    %v2480 = vpop.f32.mrf.mxu0
    %v2481 = vpop.f32.mrf.mxu0
    %v2482 = vadd.f32 0.0, %v2481
    %v2483 = vpop.f32.mrf.mxu0
    %2484 = vmatprep.mubr.bf16.mxu0 0
    %2485 = vmatmul.mubr.bf16.gmra.mxu0 %v2371
    %v2486 = vpop.f32.mrf.mxu0
    %v2487 = vadd.f32 0.0, %v2486
    %v2488 = vpop.f32.mrf.mxu0
    %v2489 = vpop.f32.mrf.mxu0
    %v2490 = vadd.f32 0.0, %v2489
    %v2491 = vpop.f32.mrf.mxu0
    %2492 = vmatprep.mubr.bf16.mxu0 0
    %2493 = vmatmul.mubr.bf16.gmra.mxu0 %v2372
    %v2494 = vpop.f32.mrf.mxu0
    %v2495 = vadd.f32 0.0, %v2494
    %v2496 = vpop.f32.mrf.mxu0
    %v2497 = vpop.f32.mrf.mxu0
    %v2498 = vadd.f32 0.0, %v2497
    %v2499 = vpop.f32.mrf.mxu0
    %2500 = vmatprep.mubr.bf16.mxu0 0
    %2501 = vmatmul.mubr.bf16.gmra.mxu0 %v2373
    %v2502 = vpop.f32.mrf.mxu0
    %v2503 = vadd.f32 0.0, %v2502
    %v2504 = vpop.f32.mrf.mxu0
    %v2505 = vpop.f32.mrf.mxu0
    %v2506 = vadd.f32 0.0, %v2505
    %v2507 = vpop.f32.mrf.mxu0
    %2508 = vmatprep.mubr.bf16.mxu0 0
    %2509 = vmatmul.mubr.bf16.gmra.mxu0 %v2374
    %v2510 = vpop.f32.mrf.mxu0
    %v2511 = vadd.f32 0.0, %v2510
    %v2512 = vpop.f32.mrf.mxu0
    %v2513 = vpop.f32.mrf.mxu0
    %v2514 = vadd.f32 0.0, %v2513
    %v2515 = vpop.f32.mrf.mxu0
    %2516 = vmatprep.mubr.bf16.mxu0 0
    %2517 = vmatmul.mubr.bf16.gmra.mxu0 %v2375
    %v2518 = vpop.f32.mrf.mxu0
    %v2519 = vadd.f32 0.0, %v2518
    %v2520 = vpop.f32.mrf.mxu0
    %v2521 = vpop.f32.mrf.mxu0
    %v2522 = vadd.f32 0.0, %v2521
    %v2523 = vpop.f32.mrf.mxu0
    %2524 = vmatprep.mubr.bf16.mxu0 0
    %2525 = vmatmul.mubr.bf16.gmra.mxu0 %v2376
    %v2526 = vpop.f32.mrf.mxu0
    %v2527 = vadd.f32 0.0, %v2526
    %v2528 = vpop.f32.mrf.mxu0
    %v2529 = vpop.f32.mrf.mxu0
    %v2530 = vadd.f32 0.0, %v2529
    %v2531 = vpop.f32.mrf.mxu0
    %2532 = vmatprep.mubr.bf16.mxu0 0
    %2533 = vmatmul.mubr.bf16.gmra.mxu0 %v2377
    %v2534 = vpop.f32.mrf.mxu0
    %v2535 = vadd.f32 0.0, %v2534
    %v2536 = vpop.f32.mrf.mxu0
    %v2537 = vpop.f32.mrf.mxu0
    %v2538 = vadd.f32 0.0, %v2537
    %v2539 = vpop.f32.mrf.mxu0
    %2540 = vmatprep.mubr.bf16.mxu0 0
    %2541 = vmatmul.mubr.bf16.gmra.mxu0 %v2378
    %v2542 = vpop.f32.mrf.mxu0
    %v2543 = vadd.f32 0.0, %v2542
    %v2544 = vpop.f32.mrf.mxu0
    %v2545 = vpop.f32.mrf.mxu0
    %v2546 = vpop.f32.mrf.mxu0
    %2547 = vdwg.mxu0
    %v2548 = vadd.f32 %v2284, %v2479
    %v2549 = vadd.f32 %v2287, %v2482
    %v2550 = vadd.f32 %v2292, %v2487
    %v2551 = vadd.f32 %v2295, %v2490
    %v2552 = vadd.f32 %v2300, %v2495
    %v2553 = vadd.f32 %v2303, %v2498
    %v2554 = vadd.f32 %v2308, %v2503
    %v2555 = vadd.f32 %v2311, %v2506
    %v2556 = vadd.f32 %v2316, %v2511
    %v2557 = vadd.f32 %v2319, %v2514
    %v2558 = vadd.f32 %v2324, %v2519
    %v2559 = vadd.f32 %v2327, %v2522
    %v2560 = vadd.f32 %v2332, %v2527
    %v2561 = vadd.f32 %v2335, %v2530
    %v2562 = vadd.f32 %v2340, %v2535
    %v2563 = vadd.f32 %v2343, %v2538
    %v2564 = vadd.f32 %v2348, %v2543
    %v2565 = vld [vmem:[#allocation3 + $0x3] sm:$0xff]
    %v2566 = vld [vmem:[#allocation3 + $0xb] sm:$0xff]
    %v2567 = vld [vmem:[#allocation3 + $0x13] sm:$0xff]
    %v2568 = vld [vmem:[#allocation3 + $0x1b] sm:$0xff]
    %v2569 = vld [vmem:[#allocation3 + $0x23] sm:$0xff]
    %v2570 = vld [vmem:[#allocation3 + $0x2b] sm:$0xff]
    %v2571 = vld [vmem:[#allocation3 + $0x33] sm:$0xff]
    %v2572 = vld [vmem:[#allocation3 + $0x3b] sm:$0xff]
    %v2573 = vld [vmem:[#allocation3 + $0x43] sm:$0xff]
    %v2574 = vld [vmem:[#allocation3 + $0x4b] sm:$0xff]
    %v2575 = vld [vmem:[#allocation3 + $0x53] sm:$0xff]
    %v2576 = vld [vmem:[#allocation3 + $0x5b] sm:$0xff]
    %v2577 = vld [vmem:[#allocation3 + $0x63] sm:$0xff]
    %v2578 = vld [vmem:[#allocation3 + $0x6b] sm:$0xff]
    %v2579 = vld [vmem:[#allocation3 + $0x73] sm:$0xff]
    %v2580 = vld [vmem:[#allocation3 + $0x7b] sm:$0xff]
    %v2581 = vld [vmem:[#allocation3 + $0x83] sm:$0xff]
    %v2582 = vpack.c.bf16 %v2566, %v2565
    %v2583 = vpack.c.bf16 %v2568, %v2567
    %v2584 = vpack.c.bf16 %v2570, %v2569
    %v2585 = vpack.c.bf16 %v2572, %v2571
    %v2586 = vpack.c.bf16 %v2574, %v2573
    %v2587 = vpack.c.bf16 %v2576, %v2575
    %v2588 = vpack.c.bf16 %v2578, %v2577
    %v2589 = vpack.c.bf16 %v2580, %v2579
    %v2590 = vpack.c.bf16 %v2581, %v2581
    %s2591 = scalar_lea.vmem %s2, 192
    %v2592 = vld [vmem:[%s2591] sm:$0xf]
    %v2593 = vld [vmem:[%s2591 + $0x4] sm:$0xf]
    %v2594 = vld [vmem:[%s2591 + $0x8] sm:$0xf]
    %v2595 = vld [vmem:[%s2591 + $0xc] sm:$0xf]
    %v2596 = vld [vmem:[%s2591 + $0x10] sm:$0xf]
    %v2597 = vld [vmem:[%s2591 + $0x14] sm:$0xf]
    %v2598 = vld [vmem:[%s2591 + $0x18] sm:$0xf]
    %v2599 = vld [vmem:[%s2591 + $0x1c] sm:$0xf]
    %v2600 = vld [vmem:[%s2591 + $0x20] sm:$0xf]
    %v2601 = vld [vmem:[%s2591 + $0x24] sm:$0xf]
    %v2602 = vld [vmem:[%s2591 + $0x28] sm:$0xf]
    %v2603 = vld [vmem:[%s2591 + $0x2c] sm:$0xf]
    %v2604 = vld [vmem:[%s2591 + $0x30] sm:$0xf]
    %v2605 = vld [vmem:[%s2591 + $0x34] sm:$0xf]
    %v2606 = vld [vmem:[%s2591 + $0x38] sm:$0xf]
    %v2607 = vld [vmem:[%s2591 + $0x3c] sm:$0xf]
    %v2624 = vunpack.c.l.b16 %v2592
    %v2625 = vunpack.c.l.b16 %v2593
    %v2626 = vunpack.c.l.b16 %v2594
    %v2627 = vunpack.c.l.b16 %v2595
    %v2628 = vunpack.c.l.b16 %v2596
    %v2629 = vunpack.c.l.b16 %v2597
    %v2630 = vunpack.c.l.b16 %v2598
    %v2631 = vunpack.c.l.b16 %v2599
    %v2632 = vunpack.c.l.b16 %v2600
    %v2633 = vunpack.c.l.b16 %v2601
    %v2634 = vunpack.c.l.b16 %v2602
    %v2635 = vunpack.c.l.b16 %v2603
    %v2636 = vunpack.c.l.b16 %v2604
    %v2637 = vunpack.c.l.b16 %v2605
    %v2638 = vunpack.c.l.b16 %v2606
    %v2639 = vunpack.c.l.b16 %v2607
    %v2640 = vpack.c.b16 %v2625, %v2624
    %v2641 = vpack.c.b16 %v2627, %v2626
    %v2642 = vpack.c.b16 %v2629, %v2628
    %v2643 = vpack.c.b16 %v2631, %v2630
    %v2644 = vpack.c.b16 %v2633, %v2632
    %v2645 = vpack.c.b16 %v2635, %v2634
    %v2646 = vpack.c.b16 %v2637, %v2636
    %v2647 = vpack.c.b16 %v2639, %v2638
    %2656 = vmatprep.subr.bf16.mxu0 0
    %2657 = vmatpush1.bf16.msra.mxu0 %v2647
    %2658 = vmatprep.subr.bf16.mxu0 0
    %2659 = vmatpush1.bf16.msra.mxu0 %v2646
    %2660 = vmatprep.subr.bf16.mxu0 0
    %2661 = vmatpush1.bf16.msra.mxu0 %v2645
    %2662 = vmatprep.subr.bf16.mxu0 0
    %2663 = vmatpush1.bf16.msra.mxu0 %v2644
    %2664 = vmatprep.subr.bf16.mxu0 0
    %2665 = vmatpush1.bf16.msra.mxu0 %v2643
    %2666 = vmatprep.subr.bf16.mxu0 0
    %2667 = vmatpush1.bf16.msra.mxu0 %v2642
    %2668 = vmatprep.subr.bf16.mxu0 0
    %2669 = vmatpush1.bf16.msra.mxu0 %v2641
    %2670 = vmatprep.subr.bf16.mxu0 0
    %2671 = vmatpush1.bf16.msra.mxu0 %v2640
    %2672 = vmatprep.subr.bf16.mxu0 0
    %2673 = vmatpush2.bf16.msra.mxu0 0
    %2674 = vmatprep.subr.bf16.mxu0 0
    %2675 = vmatpush2.bf16.msra.mxu0 0
    %2676 = vmatprep.subr.bf16.mxu0 0
    %2677 = vmatpush2.bf16.msra.mxu0 0
    %2678 = vmatprep.subr.bf16.mxu0 0
    %2679 = vmatpush2.bf16.msra.mxu0 0
    %2680 = vmatprep.subr.bf16.mxu0 0
    %2681 = vmatpush2.bf16.msra.mxu0 0
    %2682 = vmatprep.subr.bf16.mxu0 0
    %2683 = vmatpush2.bf16.msra.mxu0 0
    %2684 = vmatprep.subr.bf16.mxu0 0
    %2685 = vmatpush2.bf16.msra.mxu0 0
    %2686 = vmatprep.subr.bf16.mxu0 0
    %2687 = vmatpush2.bf16.msra.mxu0 0
    %2688 = vmatprep.mubr.bf16.mxu0 0
    %2689 = vmatmul.mubr.bf16.gmra.mxu0 %v2582
    %v2690 = vpop.f32.mrf.mxu0
    %v2691 = vadd.f32 0.0, %v2690
    %v2692 = vpop.f32.mrf.mxu0
    %v2693 = vpop.f32.mrf.mxu0
    %v2694 = vadd.f32 0.0, %v2693
    %v2695 = vpop.f32.mrf.mxu0
    %2696 = vmatprep.mubr.bf16.mxu0 0
    %2697 = vmatmul.mubr.bf16.gmra.mxu0 %v2583
    %v2698 = vpop.f32.mrf.mxu0
    %v2699 = vadd.f32 0.0, %v2698
    %v2700 = vpop.f32.mrf.mxu0
    %v2701 = vpop.f32.mrf.mxu0
    %v2702 = vadd.f32 0.0, %v2701
    %v2703 = vpop.f32.mrf.mxu0
    %2704 = vmatprep.mubr.bf16.mxu0 0
    %2705 = vmatmul.mubr.bf16.gmra.mxu0 %v2584
    %v2706 = vpop.f32.mrf.mxu0
    %v2707 = vadd.f32 0.0, %v2706
    %v2708 = vpop.f32.mrf.mxu0
    %v2709 = vpop.f32.mrf.mxu0
    %v2710 = vadd.f32 0.0, %v2709
    %v2711 = vpop.f32.mrf.mxu0
    %2712 = vmatprep.mubr.bf16.mxu0 0
    %2713 = vmatmul.mubr.bf16.gmra.mxu0 %v2585
    %v2714 = vpop.f32.mrf.mxu0
    %v2715 = vadd.f32 0.0, %v2714
    %v2716 = vpop.f32.mrf.mxu0
    %v2717 = vpop.f32.mrf.mxu0
    %v2718 = vadd.f32 0.0, %v2717
    %v2719 = vpop.f32.mrf.mxu0
    %2720 = vmatprep.mubr.bf16.mxu0 0
    %2721 = vmatmul.mubr.bf16.gmra.mxu0 %v2586
    %v2722 = vpop.f32.mrf.mxu0
    %v2723 = vadd.f32 0.0, %v2722
    %v2724 = vpop.f32.mrf.mxu0
    %v2725 = vpop.f32.mrf.mxu0
    %v2726 = vadd.f32 0.0, %v2725
    %v2727 = vpop.f32.mrf.mxu0
    %2728 = vmatprep.mubr.bf16.mxu0 0
    %2729 = vmatmul.mubr.bf16.gmra.mxu0 %v2587
    %v2730 = vpop.f32.mrf.mxu0
    %v2731 = vadd.f32 0.0, %v2730
    %v2732 = vpop.f32.mrf.mxu0
    %v2733 = vpop.f32.mrf.mxu0
    %v2734 = vadd.f32 0.0, %v2733
    %v2735 = vpop.f32.mrf.mxu0
    %2736 = vmatprep.mubr.bf16.mxu0 0
    %2737 = vmatmul.mubr.bf16.gmra.mxu0 %v2588
    %v2738 = vpop.f32.mrf.mxu0
    %v2739 = vadd.f32 0.0, %v2738
    %v2740 = vpop.f32.mrf.mxu0
    %v2741 = vpop.f32.mrf.mxu0
    %v2742 = vadd.f32 0.0, %v2741
    %v2743 = vpop.f32.mrf.mxu0
    %2744 = vmatprep.mubr.bf16.mxu0 0
    %2745 = vmatmul.mubr.bf16.gmra.mxu0 %v2589
    %v2746 = vpop.f32.mrf.mxu0
    %v2747 = vadd.f32 0.0, %v2746
    %v2748 = vpop.f32.mrf.mxu0
    %v2749 = vpop.f32.mrf.mxu0
    %v2750 = vadd.f32 0.0, %v2749
    %v2751 = vpop.f32.mrf.mxu0
    %2752 = vmatprep.mubr.bf16.mxu0 0
    %2753 = vmatmul.mubr.bf16.gmra.mxu0 %v2590
    %v2754 = vpop.f32.mrf.mxu0
    %v2755 = vadd.f32 0.0, %v2754
    %v2756 = vpop.f32.mrf.mxu0
    %v2757 = vpop.f32.mrf.mxu0
    %v2758 = vpop.f32.mrf.mxu0
    %2759 = vdwg.mxu0
    %v2760 = vadd.f32 %v2548, %v2691
    %v2761 = vadd.f32 %v2549, %v2694
    %v2762 = vadd.f32 %v2550, %v2699
    %v2763 = vadd.f32 %v2551, %v2702
    %v2764 = vadd.f32 %v2552, %v2707
    %v2765 = vadd.f32 %v2553, %v2710
    %v2766 = vadd.f32 %v2554, %v2715
    %v2767 = vadd.f32 %v2555, %v2718
    %v2768 = vadd.f32 %v2556, %v2723
    %v2769 = vadd.f32 %v2557, %v2726
    %v2770 = vadd.f32 %v2558, %v2731
    %v2771 = vadd.f32 %v2559, %v2734
    %v2772 = vadd.f32 %v2560, %v2739
    %v2773 = vadd.f32 %v2561, %v2742
    %v2774 = vadd.f32 %v2562, %v2747
    %v2775 = vadd.f32 %v2563, %v2750
    %v2776 = vadd.f32 %v2564, %v2755
    %v2777 = vld [vmem:[#allocation3 + $0x4] sm:$0xff]
    %v2778 = vld [vmem:[#allocation3 + $0xc] sm:$0xff]
    %v2779 = vld [vmem:[#allocation3 + $0x14] sm:$0xff]
    %v2780 = vld [vmem:[#allocation3 + $0x1c] sm:$0xff]
    %v2781 = vld [vmem:[#allocation3 + $0x24] sm:$0xff]
    %v2782 = vld [vmem:[#allocation3 + $0x2c] sm:$0xff]
    %v2783 = vld [vmem:[#allocation3 + $0x34] sm:$0xff]
    %v2784 = vld [vmem:[#allocation3 + $0x3c] sm:$0xff]
    %v2785 = vld [vmem:[#allocation3 + $0x44] sm:$0xff]
    %v2786 = vld [vmem:[#allocation3 + $0x4c] sm:$0xff]
    %v2787 = vld [vmem:[#allocation3 + $0x54] sm:$0xff]
    %v2788 = vld [vmem:[#allocation3 + $0x5c] sm:$0xff]
    %v2789 = vld [vmem:[#allocation3 + $0x64] sm:$0xff]
    %v2790 = vld [vmem:[#allocation3 + $0x6c] sm:$0xff]
    %v2791 = vld [vmem:[#allocation3 + $0x74] sm:$0xff]
    %v2792 = vld [vmem:[#allocation3 + $0x7c] sm:$0xff]
    %v2793 = vld [vmem:[#allocation3 + $0x84] sm:$0xff]
    %v2794 = vpack.c.bf16 %v2778, %v2777
    %v2795 = vpack.c.bf16 %v2780, %v2779
    %v2796 = vpack.c.bf16 %v2782, %v2781
    %v2797 = vpack.c.bf16 %v2784, %v2783
    %v2798 = vpack.c.bf16 %v2786, %v2785
    %v2799 = vpack.c.bf16 %v2788, %v2787
    %v2800 = vpack.c.bf16 %v2790, %v2789
    %v2801 = vpack.c.bf16 %v2792, %v2791
    %v2802 = vpack.c.bf16 %v2793, %v2793
    %s2803 = scalar_lea.vmem %s2, 256
    %v2804 = vld [vmem:[%s2803] sm:$0xf]
    %v2805 = vld [vmem:[%s2803 + $0x4] sm:$0xf]
    %v2806 = vld [vmem:[%s2803 + $0x8] sm:$0xf]
    %v2807 = vld [vmem:[%s2803 + $0xc] sm:$0xf]
    %v2808 = vld [vmem:[%s2803 + $0x10] sm:$0xf]
    %v2809 = vld [vmem:[%s2803 + $0x14] sm:$0xf]
    %v2810 = vld [vmem:[%s2803 + $0x18] sm:$0xf]
    %v2811 = vld [vmem:[%s2803 + $0x1c] sm:$0xf]
    %v2812 = vld [vmem:[%s2803 + $0x20] sm:$0xf]
    %v2813 = vld [vmem:[%s2803 + $0x24] sm:$0xf]
    %v2814 = vld [vmem:[%s2803 + $0x28] sm:$0xf]
    %v2815 = vld [vmem:[%s2803 + $0x2c] sm:$0xf]
    %v2816 = vld [vmem:[%s2803 + $0x30] sm:$0xf]
    %v2817 = vld [vmem:[%s2803 + $0x34] sm:$0xf]
    %v2818 = vld [vmem:[%s2803 + $0x38] sm:$0xf]
    %v2819 = vld [vmem:[%s2803 + $0x3c] sm:$0xf]
    %v2836 = vunpack.c.l.b16 %v2804
    %v2837 = vunpack.c.l.b16 %v2805
    %v2838 = vunpack.c.l.b16 %v2806
    %v2839 = vunpack.c.l.b16 %v2807
    %v2840 = vunpack.c.l.b16 %v2808
    %v2841 = vunpack.c.l.b16 %v2809
    %v2842 = vunpack.c.l.b16 %v2810
    %v2843 = vunpack.c.l.b16 %v2811
    %v2844 = vunpack.c.l.b16 %v2812
    %v2845 = vunpack.c.l.b16 %v2813
    %v2846 = vunpack.c.l.b16 %v2814
    %v2847 = vunpack.c.l.b16 %v2815
    %v2848 = vunpack.c.l.b16 %v2816
    %v2849 = vunpack.c.l.b16 %v2817
    %v2850 = vunpack.c.l.b16 %v2818
    %v2851 = vunpack.c.l.b16 %v2819
    %v2852 = vpack.c.b16 %v2837, %v2836
    %v2853 = vpack.c.b16 %v2839, %v2838
    %v2854 = vpack.c.b16 %v2841, %v2840
    %v2855 = vpack.c.b16 %v2843, %v2842
    %v2856 = vpack.c.b16 %v2845, %v2844
    %v2857 = vpack.c.b16 %v2847, %v2846
    %v2858 = vpack.c.b16 %v2849, %v2848
    %v2859 = vpack.c.b16 %v2851, %v2850
    %2868 = vmatprep.subr.bf16.mxu0 0
    %2869 = vmatpush1.bf16.msra.mxu0 %v2859
    %2870 = vmatprep.subr.bf16.mxu0 0
    %2871 = vmatpush1.bf16.msra.mxu0 %v2858
    %2872 = vmatprep.subr.bf16.mxu0 0
    %2873 = vmatpush1.bf16.msra.mxu0 %v2857
    %2874 = vmatprep.subr.bf16.mxu0 0
    %2875 = vmatpush1.bf16.msra.mxu0 %v2856
    %2876 = vmatprep.subr.bf16.mxu0 0
    %2877 = vmatpush1.bf16.msra.mxu0 %v2855
    %2878 = vmatprep.subr.bf16.mxu0 0
    %2879 = vmatpush1.bf16.msra.mxu0 %v2854
    %2880 = vmatprep.subr.bf16.mxu0 0
    %2881 = vmatpush1.bf16.msra.mxu0 %v2853
    %2882 = vmatprep.subr.bf16.mxu0 0
    %2883 = vmatpush1.bf16.msra.mxu0 %v2852
    %2884 = vmatprep.subr.bf16.mxu0 0
    %2885 = vmatpush2.bf16.msra.mxu0 0
    %2886 = vmatprep.subr.bf16.mxu0 0
    %2887 = vmatpush2.bf16.msra.mxu0 0
    %2888 = vmatprep.subr.bf16.mxu0 0
    %2889 = vmatpush2.bf16.msra.mxu0 0
    %2890 = vmatprep.subr.bf16.mxu0 0
    %2891 = vmatpush2.bf16.msra.mxu0 0
    %2892 = vmatprep.subr.bf16.mxu0 0
    %2893 = vmatpush2.bf16.msra.mxu0 0
    %2894 = vmatprep.subr.bf16.mxu0 0
    %2895 = vmatpush2.bf16.msra.mxu0 0
    %2896 = vmatprep.subr.bf16.mxu0 0
    %2897 = vmatpush2.bf16.msra.mxu0 0
    %2898 = vmatprep.subr.bf16.mxu0 0
    %2899 = vmatpush2.bf16.msra.mxu0 0
    %2900 = vmatprep.mubr.bf16.mxu0 0
    %2901 = vmatmul.mubr.bf16.gmra.mxu0 %v2794
    %v2902 = vpop.f32.mrf.mxu0
    %v2903 = vadd.f32 0.0, %v2902
    %v2904 = vpop.f32.mrf.mxu0
    %v2905 = vpop.f32.mrf.mxu0
    %v2906 = vadd.f32 0.0, %v2905
    %v2907 = vpop.f32.mrf.mxu0
    %2908 = vmatprep.mubr.bf16.mxu0 0
    %2909 = vmatmul.mubr.bf16.gmra.mxu0 %v2795
    %v2910 = vpop.f32.mrf.mxu0
    %v2911 = vadd.f32 0.0, %v2910
    %v2912 = vpop.f32.mrf.mxu0
    %v2913 = vpop.f32.mrf.mxu0
    %v2914 = vadd.f32 0.0, %v2913
    %v2915 = vpop.f32.mrf.mxu0
    %2916 = vmatprep.mubr.bf16.mxu0 0
    %2917 = vmatmul.mubr.bf16.gmra.mxu0 %v2796
    %v2918 = vpop.f32.mrf.mxu0
    %v2919 = vadd.f32 0.0, %v2918
    %v2920 = vpop.f32.mrf.mxu0
    %v2921 = vpop.f32.mrf.mxu0
    %v2922 = vadd.f32 0.0, %v2921
    %v2923 = vpop.f32.mrf.mxu0
    %2924 = vmatprep.mubr.bf16.mxu0 0
    %2925 = vmatmul.mubr.bf16.gmra.mxu0 %v2797
    %v2926 = vpop.f32.mrf.mxu0
    %v2927 = vadd.f32 0.0, %v2926
    %v2928 = vpop.f32.mrf.mxu0
    %v2929 = vpop.f32.mrf.mxu0
    %v2930 = vadd.f32 0.0, %v2929
    %v2931 = vpop.f32.mrf.mxu0
    %2932 = vmatprep.mubr.bf16.mxu0 0
    %2933 = vmatmul.mubr.bf16.gmra.mxu0 %v2798
    %v2934 = vpop.f32.mrf.mxu0
    %v2935 = vadd.f32 0.0, %v2934
    %v2936 = vpop.f32.mrf.mxu0
    %v2937 = vpop.f32.mrf.mxu0
    %v2938 = vadd.f32 0.0, %v2937
    %v2939 = vpop.f32.mrf.mxu0
    %2940 = vmatprep.mubr.bf16.mxu0 0
    %2941 = vmatmul.mubr.bf16.gmra.mxu0 %v2799
    %v2942 = vpop.f32.mrf.mxu0
    %v2943 = vadd.f32 0.0, %v2942
    %v2944 = vpop.f32.mrf.mxu0
    %v2945 = vpop.f32.mrf.mxu0
    %v2946 = vadd.f32 0.0, %v2945
    %v2947 = vpop.f32.mrf.mxu0
    %2948 = vmatprep.mubr.bf16.mxu0 0
    %2949 = vmatmul.mubr.bf16.gmra.mxu0 %v2800
    %v2950 = vpop.f32.mrf.mxu0
    %v2951 = vadd.f32 0.0, %v2950
    %v2952 = vpop.f32.mrf.mxu0
    %v2953 = vpop.f32.mrf.mxu0
    %v2954 = vadd.f32 0.0, %v2953
    %v2955 = vpop.f32.mrf.mxu0
    %2956 = vmatprep.mubr.bf16.mxu0 0
    %2957 = vmatmul.mubr.bf16.gmra.mxu0 %v2801
    %v2958 = vpop.f32.mrf.mxu0
    %v2959 = vadd.f32 0.0, %v2958
    %v2960 = vpop.f32.mrf.mxu0
    %v2961 = vpop.f32.mrf.mxu0
    %v2962 = vadd.f32 0.0, %v2961
    %v2963 = vpop.f32.mrf.mxu0
    %2964 = vmatprep.mubr.bf16.mxu0 0
    %2965 = vmatmul.mubr.bf16.gmra.mxu0 %v2802
    %v2966 = vpop.f32.mrf.mxu0
    %v2967 = vadd.f32 0.0, %v2966
    %v2968 = vpop.f32.mrf.mxu0
    %v2969 = vpop.f32.mrf.mxu0
    %v2970 = vpop.f32.mrf.mxu0
    %2971 = vdwg.mxu0
    %v2972 = vadd.f32 %v2760, %v2903
    %v2973 = vadd.f32 %v2761, %v2906
    %v2974 = vadd.f32 %v2762, %v2911
    %v2975 = vadd.f32 %v2763, %v2914
    %v2976 = vadd.f32 %v2764, %v2919
    %v2977 = vadd.f32 %v2765, %v2922
    %v2978 = vadd.f32 %v2766, %v2927
    %v2979 = vadd.f32 %v2767, %v2930
    %v2980 = vadd.f32 %v2768, %v2935
    %v2981 = vadd.f32 %v2769, %v2938
    %v2982 = vadd.f32 %v2770, %v2943
    %v2983 = vadd.f32 %v2771, %v2946
    %v2984 = vadd.f32 %v2772, %v2951
    %v2985 = vadd.f32 %v2773, %v2954
    %v2986 = vadd.f32 %v2774, %v2959
    %v2987 = vadd.f32 %v2775, %v2962
    %v2988 = vadd.f32 %v2776, %v2967
    %v2989 = vld [vmem:[#allocation3 + $0xe] sm:$0xff]
    %v2990 = vld [vmem:[#allocation3 + $0x16] sm:$0xff]
    %v2991 = vld [vmem:[#allocation3 + $0x1e] sm:$0xff]
    %v2992 = vld [vmem:[#allocation3 + $0x26] sm:$0xff]
    %v2993 = vld [vmem:[#allocation3 + $0x2e] sm:$0xff]
    %v2994 = vld [vmem:[#allocation3 + $0x36] sm:$0xff]
    %v2995 = vld [vmem:[#allocation3 + $0x3e] sm:$0xff]
    %v2996 = vld [vmem:[#allocation3 + $0x46] sm:$0xff]
    %v2997 = vld [vmem:[#allocation3 + $0x4e] sm:$0xff]
    %v2998 = vld [vmem:[#allocation3 + $0x56] sm:$0xff]
    %v2999 = vld [vmem:[#allocation3 + $0x5e] sm:$0xff]
    %v3000 = vld [vmem:[#allocation3 + $0x66] sm:$0xff]
    %v3001 = vld [vmem:[#allocation3 + $0x6e] sm:$0xff]
    %v3002 = vld [vmem:[#allocation3 + $0x76] sm:$0xff]
    %v3003 = vld [vmem:[#allocation3 + $0x7e] sm:$0xff]
    %v3004 = vld [vmem:[#allocation3 + $0x86] sm:$0xff]
    %v3005 = vld [vmem:[#allocation3 + $0x8e] sm:$0xff]
    %v3006 = vpack.c.bf16 %v2990, %v2989
    %v3007 = vpack.c.bf16 %v2992, %v2991
    %v3008 = vpack.c.bf16 %v2994, %v2993
    %v3009 = vpack.c.bf16 %v2996, %v2995
    %v3010 = vpack.c.bf16 %v2998, %v2997
    %v3011 = vpack.c.bf16 %v3000, %v2999
    %v3012 = vpack.c.bf16 %v3002, %v3001
    %v3013 = vpack.c.bf16 %v3004, %v3003
    %v3014 = vpack.c.bf16 %v3005, %v3005
    %s3015 = scalar_lea.vmem %s2, 320
    %v3016 = vld [vmem:[%s3015] sm:$0xf]
    %v3017 = vld [vmem:[%s3015 + $0x4] sm:$0xf]
    %v3018 = vld [vmem:[%s3015 + $0x8] sm:$0xf]
    %v3019 = vld [vmem:[%s3015 + $0xc] sm:$0xf]
    %v3020 = vld [vmem:[%s3015 + $0x10] sm:$0xf]
    %v3021 = vld [vmem:[%s3015 + $0x14] sm:$0xf]
    %v3022 = vld [vmem:[%s3015 + $0x18] sm:$0xf]
    %v3023 = vld [vmem:[%s3015 + $0x1c] sm:$0xf]
    %v3024 = vld [vmem:[%s3015 + $0x20] sm:$0xf]
    %v3025 = vld [vmem:[%s3015 + $0x24] sm:$0xf]
    %v3026 = vld [vmem:[%s3015 + $0x28] sm:$0xf]
    %v3027 = vld [vmem:[%s3015 + $0x2c] sm:$0xf]
    %v3028 = vld [vmem:[%s3015 + $0x30] sm:$0xf]
    %v3029 = vld [vmem:[%s3015 + $0x34] sm:$0xf]
    %v3030 = vld [vmem:[%s3015 + $0x38] sm:$0xf]
    %v3031 = vld [vmem:[%s3015 + $0x3c] sm:$0xf]
    %v3048 = vunpack.c.l.b16 %v3016
    %v3049 = vunpack.c.l.b16 %v3017
    %v3050 = vunpack.c.l.b16 %v3018
    %v3051 = vunpack.c.l.b16 %v3019
    %v3052 = vunpack.c.l.b16 %v3020
    %v3053 = vunpack.c.l.b16 %v3021
    %v3054 = vunpack.c.l.b16 %v3022
    %v3055 = vunpack.c.l.b16 %v3023
    %v3056 = vunpack.c.l.b16 %v3024
    %v3057 = vunpack.c.l.b16 %v3025
    %v3058 = vunpack.c.l.b16 %v3026
    %v3059 = vunpack.c.l.b16 %v3027
    %v3060 = vunpack.c.l.b16 %v3028
    %v3061 = vunpack.c.l.b16 %v3029
    %v3062 = vunpack.c.l.b16 %v3030
    %v3063 = vunpack.c.l.b16 %v3031
    %v3064 = vpack.c.b16 %v3049, %v3048
    %v3065 = vpack.c.b16 %v3051, %v3050
    %v3066 = vpack.c.b16 %v3053, %v3052
    %v3067 = vpack.c.b16 %v3055, %v3054
    %v3068 = vpack.c.b16 %v3057, %v3056
    %v3069 = vpack.c.b16 %v3059, %v3058
    %v3070 = vpack.c.b16 %v3061, %v3060
    %v3071 = vpack.c.b16 %v3063, %v3062
    %3080 = vmatprep.subr.bf16.mxu0 0
    %3081 = vmatpush1.bf16.msra.mxu0 %v3071
    %3082 = vmatprep.subr.bf16.mxu0 0
    %3083 = vmatpush1.bf16.msra.mxu0 %v3070
    %3084 = vmatprep.subr.bf16.mxu0 0
    %3085 = vmatpush1.bf16.msra.mxu0 %v3069
    %3086 = vmatprep.subr.bf16.mxu0 0
    %3087 = vmatpush1.bf16.msra.mxu0 %v3068
    %3088 = vmatprep.subr.bf16.mxu0 0
    %3089 = vmatpush1.bf16.msra.mxu0 %v3067
    %3090 = vmatprep.subr.bf16.mxu0 0
    %3091 = vmatpush1.bf16.msra.mxu0 %v3066
    %3092 = vmatprep.subr.bf16.mxu0 0
    %3093 = vmatpush1.bf16.msra.mxu0 %v3065
    %3094 = vmatprep.subr.bf16.mxu0 0
    %3095 = vmatpush1.bf16.msra.mxu0 %v3064
    %3096 = vmatprep.subr.bf16.mxu0 0
    %3097 = vmatpush2.bf16.msra.mxu0 0
    %3098 = vmatprep.subr.bf16.mxu0 0
    %3099 = vmatpush2.bf16.msra.mxu0 0
    %3100 = vmatprep.subr.bf16.mxu0 0
    %3101 = vmatpush2.bf16.msra.mxu0 0
    %3102 = vmatprep.subr.bf16.mxu0 0
    %3103 = vmatpush2.bf16.msra.mxu0 0
    %3104 = vmatprep.subr.bf16.mxu0 0
    %3105 = vmatpush2.bf16.msra.mxu0 0
    %3106 = vmatprep.subr.bf16.mxu0 0
    %3107 = vmatpush2.bf16.msra.mxu0 0
    %3108 = vmatprep.subr.bf16.mxu0 0
    %3109 = vmatpush2.bf16.msra.mxu0 0
    %3110 = vmatprep.subr.bf16.mxu0 0
    %3111 = vmatpush2.bf16.msra.mxu0 0
    %3112 = vmatprep.mubr.bf16.mxu0 0
    %3113 = vmatmul.mubr.bf16.gmra.mxu0 %v3006
    %v3114 = vpop.f32.mrf.mxu0
    %v3115 = vadd.f32 0.0, %v3114
    %v3116 = vpop.f32.mrf.mxu0
    %v3117 = vpop.f32.mrf.mxu0
    %v3118 = vadd.f32 0.0, %v3117
    %v3119 = vpop.f32.mrf.mxu0
    %3120 = vmatprep.mubr.bf16.mxu0 0
    %3121 = vmatmul.mubr.bf16.gmra.mxu0 %v3007
    %v3122 = vpop.f32.mrf.mxu0
    %v3123 = vadd.f32 0.0, %v3122
    %v3124 = vpop.f32.mrf.mxu0
    %v3125 = vpop.f32.mrf.mxu0
    %v3126 = vadd.f32 0.0, %v3125
    %v3127 = vpop.f32.mrf.mxu0
    %3128 = vmatprep.mubr.bf16.mxu0 0
    %3129 = vmatmul.mubr.bf16.gmra.mxu0 %v3008
    %v3130 = vpop.f32.mrf.mxu0
    %v3131 = vadd.f32 0.0, %v3130
    %v3132 = vpop.f32.mrf.mxu0
    %v3133 = vpop.f32.mrf.mxu0
    %v3134 = vadd.f32 0.0, %v3133
    %v3135 = vpop.f32.mrf.mxu0
    %3136 = vmatprep.mubr.bf16.mxu0 0
    %3137 = vmatmul.mubr.bf16.gmra.mxu0 %v3009
    %v3138 = vpop.f32.mrf.mxu0
    %v3139 = vadd.f32 0.0, %v3138
    %v3140 = vpop.f32.mrf.mxu0
    %v3141 = vpop.f32.mrf.mxu0
    %v3142 = vadd.f32 0.0, %v3141
    %v3143 = vpop.f32.mrf.mxu0
    %3144 = vmatprep.mubr.bf16.mxu0 0
    %3145 = vmatmul.mubr.bf16.gmra.mxu0 %v3010
    %v3146 = vpop.f32.mrf.mxu0
    %v3147 = vadd.f32 0.0, %v3146
    %v3148 = vpop.f32.mrf.mxu0
    %v3149 = vpop.f32.mrf.mxu0
    %v3150 = vadd.f32 0.0, %v3149
    %v3151 = vpop.f32.mrf.mxu0
    %3152 = vmatprep.mubr.bf16.mxu0 0
    %3153 = vmatmul.mubr.bf16.gmra.mxu0 %v3011
    %v3154 = vpop.f32.mrf.mxu0
    %v3155 = vadd.f32 0.0, %v3154
    %v3156 = vpop.f32.mrf.mxu0
    %v3157 = vpop.f32.mrf.mxu0
    %v3158 = vadd.f32 0.0, %v3157
    %v3159 = vpop.f32.mrf.mxu0
    %3160 = vmatprep.mubr.bf16.mxu0 0
    %3161 = vmatmul.mubr.bf16.gmra.mxu0 %v3012
    %v3162 = vpop.f32.mrf.mxu0
    %v3163 = vadd.f32 0.0, %v3162
    %v3164 = vpop.f32.mrf.mxu0
    %v3165 = vpop.f32.mrf.mxu0
    %v3166 = vadd.f32 0.0, %v3165
    %v3167 = vpop.f32.mrf.mxu0
    %3168 = vmatprep.mubr.bf16.mxu0 0
    %3169 = vmatmul.mubr.bf16.gmra.mxu0 %v3013
    %v3170 = vpop.f32.mrf.mxu0
    %v3171 = vadd.f32 0.0, %v3170
    %v3172 = vpop.f32.mrf.mxu0
    %v3173 = vpop.f32.mrf.mxu0
    %v3174 = vadd.f32 0.0, %v3173
    %v3175 = vpop.f32.mrf.mxu0
    %3176 = vmatprep.mubr.bf16.mxu0 0
    %3177 = vmatmul.mubr.bf16.gmra.mxu0 %v3014
    %v3178 = vpop.f32.mrf.mxu0
    %v3179 = vadd.f32 0.0, %v3178
    %v3180 = vpop.f32.mrf.mxu0
    %v3181 = vpop.f32.mrf.mxu0
    %v3182 = vpop.f32.mrf.mxu0
    %3183 = vdwg.mxu0
    %v3184 = vadd.f32 %v2972, %v3115
    %v3185 = vadd.f32 %v2973, %v3118
    %v3186 = vadd.f32 %v2974, %v3123
    %v3187 = vadd.f32 %v2975, %v3126
    %v3188 = vadd.f32 %v2976, %v3131
    %v3189 = vadd.f32 %v2977, %v3134
    %v3190 = vadd.f32 %v2978, %v3139
    %v3191 = vadd.f32 %v2979, %v3142
    %v3192 = vadd.f32 %v2980, %v3147
    %v3193 = vadd.f32 %v2981, %v3150
    %v3194 = vadd.f32 %v2982, %v3155
    %v3195 = vadd.f32 %v2983, %v3158
    %v3196 = vadd.f32 %v2984, %v3163
    %v3197 = vadd.f32 %v2985, %v3166
    %v3198 = vadd.f32 %v2986, %v3171
    %v3199 = vadd.f32 %v2987, %v3174
    %v3200 = vadd.f32 %v2988, %v3179
    %v3201 = vld [vmem:[#allocation3 + $0xf] sm:$0xff]
    %v3202 = vld [vmem:[#allocation3 + $0x17] sm:$0xff]
    %v3203 = vld [vmem:[#allocation3 + $0x1f] sm:$0xff]
    %v3204 = vld [vmem:[#allocation3 + $0x27] sm:$0xff]
    %v3205 = vld [vmem:[#allocation3 + $0x2f] sm:$0xff]
    %v3206 = vld [vmem:[#allocation3 + $0x37] sm:$0xff]
    %v3207 = vld [vmem:[#allocation3 + $0x3f] sm:$0xff]
    %v3208 = vld [vmem:[#allocation3 + $0x47] sm:$0xff]
    %v3209 = vld [vmem:[#allocation3 + $0x4f] sm:$0xff]
    %v3210 = vld [vmem:[#allocation3 + $0x57] sm:$0xff]
    %v3211 = vld [vmem:[#allocation3 + $0x5f] sm:$0xff]
    %v3212 = vld [vmem:[#allocation3 + $0x67] sm:$0xff]
    %v3213 = vld [vmem:[#allocation3 + $0x6f] sm:$0xff]
    %v3214 = vld [vmem:[#allocation3 + $0x77] sm:$0xff]
    %v3215 = vld [vmem:[#allocation3 + $0x7f] sm:$0xff]
    %v3216 = vld [vmem:[#allocation3 + $0x87] sm:$0xff]
    %v3217 = vld [vmem:[#allocation3 + $0x8f] sm:$0xff]
    %v3218 = vpack.c.bf16 %v3202, %v3201
    %v3219 = vpack.c.bf16 %v3204, %v3203
    %v3220 = vpack.c.bf16 %v3206, %v3205
    %v3221 = vpack.c.bf16 %v3208, %v3207
    %v3222 = vpack.c.bf16 %v3210, %v3209
    %v3223 = vpack.c.bf16 %v3212, %v3211
    %v3224 = vpack.c.bf16 %v3214, %v3213
    %v3225 = vpack.c.bf16 %v3216, %v3215
    %v3226 = vpack.c.bf16 %v3217, %v3217
    %s3227 = scalar_lea.vmem %s2, 384
    %v3228 = vld [vmem:[%s3227] sm:$0xf]
    %v3229 = vld [vmem:[%s3227 + $0x4] sm:$0xf]
    %v3230 = vld [vmem:[%s3227 + $0x8] sm:$0xf]
    %v3231 = vld [vmem:[%s3227 + $0xc] sm:$0xf]
    %v3232 = vld [vmem:[%s3227 + $0x10] sm:$0xf]
    %v3233 = vld [vmem:[%s3227 + $0x14] sm:$0xf]
    %v3234 = vld [vmem:[%s3227 + $0x18] sm:$0xf]
    %v3235 = vld [vmem:[%s3227 + $0x1c] sm:$0xf]
    %v3236 = vld [vmem:[%s3227 + $0x20] sm:$0xf]
    %v3237 = vld [vmem:[%s3227 + $0x24] sm:$0xf]
    %v3238 = vld [vmem:[%s3227 + $0x28] sm:$0xf]
    %v3239 = vld [vmem:[%s3227 + $0x2c] sm:$0xf]
    %v3240 = vld [vmem:[%s3227 + $0x30] sm:$0xf]
    %v3241 = vld [vmem:[%s3227 + $0x34] sm:$0xf]
    %v3242 = vld [vmem:[%s3227 + $0x38] sm:$0xf]
    %v3243 = vld [vmem:[%s3227 + $0x3c] sm:$0xf]
    %v3260 = vunpack.c.l.b16 %v3228
    %v3261 = vunpack.c.l.b16 %v3229
    %v3262 = vunpack.c.l.b16 %v3230
    %v3263 = vunpack.c.l.b16 %v3231
    %v3264 = vunpack.c.l.b16 %v3232
    %v3265 = vunpack.c.l.b16 %v3233
    %v3266 = vunpack.c.l.b16 %v3234
    %v3267 = vunpack.c.l.b16 %v3235
    %v3268 = vunpack.c.l.b16 %v3236
    %v3269 = vunpack.c.l.b16 %v3237
    %v3270 = vunpack.c.l.b16 %v3238
    %v3271 = vunpack.c.l.b16 %v3239
    %v3272 = vunpack.c.l.b16 %v3240
    %v3273 = vunpack.c.l.b16 %v3241
    %v3274 = vunpack.c.l.b16 %v3242
    %v3275 = vunpack.c.l.b16 %v3243
    %v3276 = vpack.c.b16 %v3261, %v3260
    %v3277 = vpack.c.b16 %v3263, %v3262
    %v3278 = vpack.c.b16 %v3265, %v3264
    %v3279 = vpack.c.b16 %v3267, %v3266
    %v3280 = vpack.c.b16 %v3269, %v3268
    %v3281 = vpack.c.b16 %v3271, %v3270
    %v3282 = vpack.c.b16 %v3273, %v3272
    %v3283 = vpack.c.b16 %v3275, %v3274
    %3292 = vmatprep.subr.bf16.mxu0 0
    %3293 = vmatpush1.bf16.msra.mxu0 %v3283
    %3294 = vmatprep.subr.bf16.mxu0 0
    %3295 = vmatpush1.bf16.msra.mxu0 %v3282
    %3296 = vmatprep.subr.bf16.mxu0 0
    %3297 = vmatpush1.bf16.msra.mxu0 %v3281
    %3298 = vmatprep.subr.bf16.mxu0 0
    %3299 = vmatpush1.bf16.msra.mxu0 %v3280
    %3300 = vmatprep.subr.bf16.mxu0 0
    %3301 = vmatpush1.bf16.msra.mxu0 %v3279
    %3302 = vmatprep.subr.bf16.mxu0 0
    %3303 = vmatpush1.bf16.msra.mxu0 %v3278
    %3304 = vmatprep.subr.bf16.mxu0 0
    %3305 = vmatpush1.bf16.msra.mxu0 %v3277
    %3306 = vmatprep.subr.bf16.mxu0 0
    %3307 = vmatpush1.bf16.msra.mxu0 %v3276
    %3308 = vmatprep.subr.bf16.mxu0 0
    %3309 = vmatpush2.bf16.msra.mxu0 0
    %3310 = vmatprep.subr.bf16.mxu0 0
    %3311 = vmatpush2.bf16.msra.mxu0 0
    %3312 = vmatprep.subr.bf16.mxu0 0
    %3313 = vmatpush2.bf16.msra.mxu0 0
    %3314 = vmatprep.subr.bf16.mxu0 0
    %3315 = vmatpush2.bf16.msra.mxu0 0
    %3316 = vmatprep.subr.bf16.mxu0 0
    %3317 = vmatpush2.bf16.msra.mxu0 0
    %3318 = vmatprep.subr.bf16.mxu0 0
    %3319 = vmatpush2.bf16.msra.mxu0 0
    %3320 = vmatprep.subr.bf16.mxu0 0
    %3321 = vmatpush2.bf16.msra.mxu0 0
    %3322 = vmatprep.subr.bf16.mxu0 0
    %3323 = vmatpush2.bf16.msra.mxu0 0
    %3324 = vmatprep.mubr.bf16.mxu0 0
    %3325 = vmatmul.mubr.bf16.gmra.mxu0 %v3218
    %v3326 = vpop.f32.mrf.mxu0
    %v3327 = vadd.f32 0.0, %v3326
    %v3328 = vpop.f32.mrf.mxu0
    %v3329 = vpop.f32.mrf.mxu0
    %v3330 = vadd.f32 0.0, %v3329
    %v3331 = vpop.f32.mrf.mxu0
    %3332 = vmatprep.mubr.bf16.mxu0 0
    %3333 = vmatmul.mubr.bf16.gmra.mxu0 %v3219
    %v3334 = vpop.f32.mrf.mxu0
    %v3335 = vadd.f32 0.0, %v3334
    %v3336 = vpop.f32.mrf.mxu0
    %v3337 = vpop.f32.mrf.mxu0
    %v3338 = vadd.f32 0.0, %v3337
    %v3339 = vpop.f32.mrf.mxu0
    %3340 = vmatprep.mubr.bf16.mxu0 0
    %3341 = vmatmul.mubr.bf16.gmra.mxu0 %v3220
    %v3342 = vpop.f32.mrf.mxu0
    %v3343 = vadd.f32 0.0, %v3342
    %v3344 = vpop.f32.mrf.mxu0
    %v3345 = vpop.f32.mrf.mxu0
    %v3346 = vadd.f32 0.0, %v3345
    %v3347 = vpop.f32.mrf.mxu0
    %3348 = vmatprep.mubr.bf16.mxu0 0
    %3349 = vmatmul.mubr.bf16.gmra.mxu0 %v3221
    %v3350 = vpop.f32.mrf.mxu0
    %v3351 = vadd.f32 0.0, %v3350
    %v3352 = vpop.f32.mrf.mxu0
    %v3353 = vpop.f32.mrf.mxu0
    %v3354 = vadd.f32 0.0, %v3353
    %v3355 = vpop.f32.mrf.mxu0
    %3356 = vmatprep.mubr.bf16.mxu0 0
    %3357 = vmatmul.mubr.bf16.gmra.mxu0 %v3222
    %v3358 = vpop.f32.mrf.mxu0
    %v3359 = vadd.f32 0.0, %v3358
    %v3360 = vpop.f32.mrf.mxu0
    %v3361 = vpop.f32.mrf.mxu0
    %v3362 = vadd.f32 0.0, %v3361
    %v3363 = vpop.f32.mrf.mxu0
    %3364 = vmatprep.mubr.bf16.mxu0 0
    %3365 = vmatmul.mubr.bf16.gmra.mxu0 %v3223
    %v3366 = vpop.f32.mrf.mxu0
    %v3367 = vadd.f32 0.0, %v3366
    %v3368 = vpop.f32.mrf.mxu0
    %v3369 = vpop.f32.mrf.mxu0
    %v3370 = vadd.f32 0.0, %v3369
    %v3371 = vpop.f32.mrf.mxu0
    %3372 = vmatprep.mubr.bf16.mxu0 0
    %3373 = vmatmul.mubr.bf16.gmra.mxu0 %v3224
    %v3374 = vpop.f32.mrf.mxu0
    %v3375 = vadd.f32 0.0, %v3374
    %v3376 = vpop.f32.mrf.mxu0
    %v3377 = vpop.f32.mrf.mxu0
    %v3378 = vadd.f32 0.0, %v3377
    %v3379 = vpop.f32.mrf.mxu0
    %3380 = vmatprep.mubr.bf16.mxu0 0
    %3381 = vmatmul.mubr.bf16.gmra.mxu0 %v3225
    %v3382 = vpop.f32.mrf.mxu0
    %v3383 = vadd.f32 0.0, %v3382
    %v3384 = vpop.f32.mrf.mxu0
    %v3385 = vpop.f32.mrf.mxu0
    %v3386 = vadd.f32 0.0, %v3385
    %v3387 = vpop.f32.mrf.mxu0
    %3388 = vmatprep.mubr.bf16.mxu0 0
    %3389 = vmatmul.mubr.bf16.gmra.mxu0 %v3226
    %v3390 = vpop.f32.mrf.mxu0
    %v3391 = vadd.f32 0.0, %v3390
    %v3392 = vpop.f32.mrf.mxu0
    %v3393 = vpop.f32.mrf.mxu0
    %v3394 = vpop.f32.mrf.mxu0
    %3395 = vdwg.mxu0
    %v3396 = vadd.f32 %v3184, %v3327
    %v3397 = vadd.f32 %v3185, %v3330
    %v3398 = vadd.f32 %v3186, %v3335
    %v3399 = vadd.f32 %v3187, %v3338
    %v3400 = vadd.f32 %v3188, %v3343
    %v3401 = vadd.f32 %v3189, %v3346
    %v3402 = vadd.f32 %v3190, %v3351
    %v3403 = vadd.f32 %v3191, %v3354
    %v3404 = vadd.f32 %v3192, %v3359
    %v3405 = vadd.f32 %v3193, %v3362
    %v3406 = vadd.f32 %v3194, %v3367
    %v3407 = vadd.f32 %v3195, %v3370
    %v3408 = vadd.f32 %v3196, %v3375
    %v3409 = vadd.f32 %v3197, %v3378
    %v3410 = vadd.f32 %v3198, %v3383
    %v3411 = vadd.f32 %v3199, %v3386
    %v3412 = vadd.f32 %v3200, %v3391
    %v3413 = vld [vmem:[#allocation3 + $0x10] sm:$0xff]
    %v3414 = vld [vmem:[#allocation3 + $0x18] sm:$0xff]
    %v3415 = vld [vmem:[#allocation3 + $0x20] sm:$0xff]
    %v3416 = vld [vmem:[#allocation3 + $0x28] sm:$0xff]
    %v3417 = vld [vmem:[#allocation3 + $0x30] sm:$0xff]
    %v3418 = vld [vmem:[#allocation3 + $0x38] sm:$0xff]
    %v3419 = vld [vmem:[#allocation3 + $0x40] sm:$0xff]
    %v3420 = vld [vmem:[#allocation3 + $0x48] sm:$0xff]
    %v3421 = vld [vmem:[#allocation3 + $0x50] sm:$0xff]
    %v3422 = vld [vmem:[#allocation3 + $0x58] sm:$0xff]
    %v3423 = vld [vmem:[#allocation3 + $0x60] sm:$0xff]
    %v3424 = vld [vmem:[#allocation3 + $0x68] sm:$0xff]
    %v3425 = vld [vmem:[#allocation3 + $0x70] sm:$0xff]
    %v3426 = vld [vmem:[#allocation3 + $0x78] sm:$0xff]
    %v3427 = vld [vmem:[#allocation3 + $0x80] sm:$0xff]
    %v3428 = vld [vmem:[#allocation3 + $0x88] sm:$0xff]
    %v3429 = vld [vmem:[#allocation3 + $0x90] sm:$0xff]
    %v3430 = vpack.c.bf16 %v3414, %v3413
    %v3431 = vpack.c.bf16 %v3416, %v3415
    %v3432 = vpack.c.bf16 %v3418, %v3417
    %v3433 = vpack.c.bf16 %v3420, %v3419
    %v3434 = vpack.c.bf16 %v3422, %v3421
    %v3435 = vpack.c.bf16 %v3424, %v3423
    %v3436 = vpack.c.bf16 %v3426, %v3425
    %v3437 = vpack.c.bf16 %v3428, %v3427
    %v3438 = vpack.c.bf16 %v3429, %v3429
    %s3439 = scalar_lea.vmem %s2, 448
    %v3440 = vld [vmem:[%s3439] sm:$0xf]
    %v3441 = vld [vmem:[%s3439 + $0x4] sm:$0xf]
    %v3442 = vld [vmem:[%s3439 + $0x8] sm:$0xf]
    %v3443 = vld [vmem:[%s3439 + $0xc] sm:$0xf]
    %v3444 = vld [vmem:[%s3439 + $0x10] sm:$0xf]
    %v3445 = vld [vmem:[%s3439 + $0x14] sm:$0xf]
    %v3446 = vld [vmem:[%s3439 + $0x18] sm:$0xf]
    %v3447 = vld [vmem:[%s3439 + $0x1c] sm:$0xf]
    %v3448 = vld [vmem:[%s3439 + $0x20] sm:$0xf]
    %v3449 = vld [vmem:[%s3439 + $0x24] sm:$0xf]
    %v3450 = vld [vmem:[%s3439 + $0x28] sm:$0xf]
    %v3451 = vld [vmem:[%s3439 + $0x2c] sm:$0xf]
    %v3452 = vld [vmem:[%s3439 + $0x30] sm:$0xf]
    %v3453 = vld [vmem:[%s3439 + $0x34] sm:$0xf]
    %v3454 = vld [vmem:[%s3439 + $0x38] sm:$0xf]
    %v3455 = vld [vmem:[%s3439 + $0x3c] sm:$0xf]
    %v3472 = vunpack.c.l.b16 %v3440
    %v3473 = vunpack.c.l.b16 %v3441
    %v3474 = vunpack.c.l.b16 %v3442
    %v3475 = vunpack.c.l.b16 %v3443
    %v3476 = vunpack.c.l.b16 %v3444
    %v3477 = vunpack.c.l.b16 %v3445
    %v3478 = vunpack.c.l.b16 %v3446
    %v3479 = vunpack.c.l.b16 %v3447
    %v3480 = vunpack.c.l.b16 %v3448
    %v3481 = vunpack.c.l.b16 %v3449
    %v3482 = vunpack.c.l.b16 %v3450
    %v3483 = vunpack.c.l.b16 %v3451
    %v3484 = vunpack.c.l.b16 %v3452
    %v3485 = vunpack.c.l.b16 %v3453
    %v3486 = vunpack.c.l.b16 %v3454
    %v3487 = vunpack.c.l.b16 %v3455
    %v3488 = vpack.c.b16 %v3473, %v3472
    %v3489 = vpack.c.b16 %v3475, %v3474
    %v3490 = vpack.c.b16 %v3477, %v3476
    %v3491 = vpack.c.b16 %v3479, %v3478
    %v3492 = vpack.c.b16 %v3481, %v3480
    %v3493 = vpack.c.b16 %v3483, %v3482
    %v3494 = vpack.c.b16 %v3485, %v3484
    %v3495 = vpack.c.b16 %v3487, %v3486
    %3504 = vmatprep.subr.bf16.mxu0 0
    %3505 = vmatpush1.bf16.msra.mxu0 %v3495
    %3506 = vmatprep.subr.bf16.mxu0 0
    %3507 = vmatpush1.bf16.msra.mxu0 %v3494
    %3508 = vmatprep.subr.bf16.mxu0 0
    %3509 = vmatpush1.bf16.msra.mxu0 %v3493
    %3510 = vmatprep.subr.bf16.mxu0 0
    %3511 = vmatpush1.bf16.msra.mxu0 %v3492
    %3512 = vmatprep.subr.bf16.mxu0 0
    %3513 = vmatpush1.bf16.msra.mxu0 %v3491
    %3514 = vmatprep.subr.bf16.mxu0 0
    %3515 = vmatpush1.bf16.msra.mxu0 %v3490
    %3516 = vmatprep.subr.bf16.mxu0 0
    %3517 = vmatpush1.bf16.msra.mxu0 %v3489
    %3518 = vmatprep.subr.bf16.mxu0 0
    %3519 = vmatpush1.bf16.msra.mxu0 %v3488
    %3520 = vmatprep.subr.bf16.mxu0 0
    %3521 = vmatpush2.bf16.msra.mxu0 0
    %3522 = vmatprep.subr.bf16.mxu0 0
    %3523 = vmatpush2.bf16.msra.mxu0 0
    %3524 = vmatprep.subr.bf16.mxu0 0
    %3525 = vmatpush2.bf16.msra.mxu0 0
    %3526 = vmatprep.subr.bf16.mxu0 0
    %3527 = vmatpush2.bf16.msra.mxu0 0
    %3528 = vmatprep.subr.bf16.mxu0 0
    %3529 = vmatpush2.bf16.msra.mxu0 0
    %3530 = vmatprep.subr.bf16.mxu0 0
    %3531 = vmatpush2.bf16.msra.mxu0 0
    %3532 = vmatprep.subr.bf16.mxu0 0
    %3533 = vmatpush2.bf16.msra.mxu0 0
    %3534 = vmatprep.subr.bf16.mxu0 0
    %3535 = vmatpush2.bf16.msra.mxu0 0
    %3536 = vmatprep.mubr.bf16.mxu0 0
    %3537 = vmatmul.mubr.bf16.gmra.mxu0 %v3430
    %v3538 = vpop.f32.mrf.mxu0
    %v3539 = vadd.f32 0.0, %v3538
    %v3540 = vpop.f32.mrf.mxu0
    %v3541 = vpop.f32.mrf.mxu0
    %v3542 = vadd.f32 0.0, %v3541
    %v3543 = vpop.f32.mrf.mxu0
    %3544 = vmatprep.mubr.bf16.mxu0 0
    %3545 = vmatmul.mubr.bf16.gmra.mxu0 %v3431
    %v3546 = vpop.f32.mrf.mxu0
    %v3547 = vadd.f32 0.0, %v3546
    %v3548 = vpop.f32.mrf.mxu0
    %v3549 = vpop.f32.mrf.mxu0
    %v3550 = vadd.f32 0.0, %v3549
    %v3551 = vpop.f32.mrf.mxu0
    %3552 = vmatprep.mubr.bf16.mxu0 0
    %3553 = vmatmul.mubr.bf16.gmra.mxu0 %v3432
    %v3554 = vpop.f32.mrf.mxu0
    %v3555 = vadd.f32 0.0, %v3554
    %v3556 = vpop.f32.mrf.mxu0
    %v3557 = vpop.f32.mrf.mxu0
    %v3558 = vadd.f32 0.0, %v3557
    %v3559 = vpop.f32.mrf.mxu0
    %3560 = vmatprep.mubr.bf16.mxu0 0
    %3561 = vmatmul.mubr.bf16.gmra.mxu0 %v3433
    %v3562 = vpop.f32.mrf.mxu0
    %v3563 = vadd.f32 0.0, %v3562
    %v3564 = vpop.f32.mrf.mxu0
    %v3565 = vpop.f32.mrf.mxu0
    %v3566 = vadd.f32 0.0, %v3565
    %v3567 = vpop.f32.mrf.mxu0
    %3568 = vmatprep.mubr.bf16.mxu0 0
    %3569 = vmatmul.mubr.bf16.gmra.mxu0 %v3434
    %v3570 = vpop.f32.mrf.mxu0
    %v3571 = vadd.f32 0.0, %v3570
    %v3572 = vpop.f32.mrf.mxu0
    %v3573 = vpop.f32.mrf.mxu0
    %v3574 = vadd.f32 0.0, %v3573
    %v3575 = vpop.f32.mrf.mxu0
    %3576 = vmatprep.mubr.bf16.mxu0 0
    %3577 = vmatmul.mubr.bf16.gmra.mxu0 %v3435
    %v3578 = vpop.f32.mrf.mxu0
    %v3579 = vadd.f32 0.0, %v3578
    %v3580 = vpop.f32.mrf.mxu0
    %v3581 = vpop.f32.mrf.mxu0
    %v3582 = vadd.f32 0.0, %v3581
    %v3583 = vpop.f32.mrf.mxu0
    %3584 = vmatprep.mubr.bf16.mxu0 0
    %3585 = vmatmul.mubr.bf16.gmra.mxu0 %v3436
    %v3586 = vpop.f32.mrf.mxu0
    %v3587 = vadd.f32 0.0, %v3586
    %v3588 = vpop.f32.mrf.mxu0
    %v3589 = vpop.f32.mrf.mxu0
    %v3590 = vadd.f32 0.0, %v3589
    %v3591 = vpop.f32.mrf.mxu0
    %3592 = vmatprep.mubr.bf16.mxu0 0
    %3593 = vmatmul.mubr.bf16.gmra.mxu0 %v3437
    %v3594 = vpop.f32.mrf.mxu0
    %v3595 = vadd.f32 0.0, %v3594
    %v3596 = vpop.f32.mrf.mxu0
    %v3597 = vpop.f32.mrf.mxu0
    %v3598 = vadd.f32 0.0, %v3597
    %v3599 = vpop.f32.mrf.mxu0
    %3600 = vmatprep.mubr.bf16.mxu0 0
    %3601 = vmatmul.mubr.bf16.gmra.mxu0 %v3438
    %v3602 = vpop.f32.mrf.mxu0
    %v3603 = vadd.f32 0.0, %v3602
    %v3604 = vpop.f32.mrf.mxu0
    %v3605 = vpop.f32.mrf.mxu0
    %v3606 = vpop.f32.mrf.mxu0
    %3607 = vdwg.mxu0
    %v3608 = vadd.f32 %v3396, %v3539
    %v3609 = vadd.f32 %v3397, %v3542
    %v3610 = vadd.f32 %v3398, %v3547
    %v3611 = vadd.f32 %v3399, %v3550
    %v3612 = vadd.f32 %v3400, %v3555
    %v3613 = vadd.f32 %v3401, %v3558
    %v3614 = vadd.f32 %v3402, %v3563
    %v3615 = vadd.f32 %v3403, %v3566
    %v3616 = vadd.f32 %v3404, %v3571
    %v3617 = vadd.f32 %v3405, %v3574
    %v3618 = vadd.f32 %v3406, %v3579
    %v3619 = vadd.f32 %v3407, %v3582
    %v3620 = vadd.f32 %v3408, %v3587
    %v3621 = vadd.f32 %v3409, %v3590
    %v3622 = vadd.f32 %v3410, %v3595
    %v3623 = vadd.f32 %v3411, %v3598
    %v3624 = vadd.f32 %v3412, %v3603
    %v3625 = vld [vmem:[#allocation3 + $0x11] sm:$0xff]
    %v3626 = vld [vmem:[#allocation3 + $0x19] sm:$0xff]
    %v3627 = vld [vmem:[#allocation3 + $0x21] sm:$0xff]
    %v3628 = vld [vmem:[#allocation3 + $0x29] sm:$0xff]
    %v3629 = vld [vmem:[#allocation3 + $0x31] sm:$0xff]
    %v3630 = vld [vmem:[#allocation3 + $0x39] sm:$0xff]
    %v3631 = vld [vmem:[#allocation3 + $0x41] sm:$0xff]
    %v3632 = vld [vmem:[#allocation3 + $0x49] sm:$0xff]
    %v3633 = vld [vmem:[#allocation3 + $0x51] sm:$0xff]
    %v3634 = vld [vmem:[#allocation3 + $0x59] sm:$0xff]
    %v3635 = vld [vmem:[#allocation3 + $0x61] sm:$0xff]
    %v3636 = vld [vmem:[#allocation3 + $0x69] sm:$0xff]
    %v3637 = vld [vmem:[#allocation3 + $0x71] sm:$0xff]
    %v3638 = vld [vmem:[#allocation3 + $0x79] sm:$0xff]
    %v3639 = vld [vmem:[#allocation3 + $0x81] sm:$0xff]
    %v3640 = vld [vmem:[#allocation3 + $0x89] sm:$0xff]
    %v3641 = vld [vmem:[#allocation3 + $0x91] sm:$0xff]
    %v3642 = vpack.c.bf16 %v3626, %v3625
    %v3643 = vpack.c.bf16 %v3628, %v3627
    %v3644 = vpack.c.bf16 %v3630, %v3629
    %v3645 = vpack.c.bf16 %v3632, %v3631
    %v3646 = vpack.c.bf16 %v3634, %v3633
    %v3647 = vpack.c.bf16 %v3636, %v3635
    %v3648 = vpack.c.bf16 %v3638, %v3637
    %v3649 = vpack.c.bf16 %v3640, %v3639
    %v3650 = vpack.c.bf16 %v3641, %v3641
    %s3651 = scalar_lea.vmem %s2, 512
    %v3652 = vld [vmem:[%s3651] sm:$0xf]
    %v3653 = vld [vmem:[%s3651 + $0x4] sm:$0xf]
    %v3654 = vld [vmem:[%s3651 + $0x8] sm:$0xf]
    %v3655 = vld [vmem:[%s3651 + $0xc] sm:$0xf]
    %v3656 = vld [vmem:[%s3651 + $0x10] sm:$0xf]
    %v3657 = vld [vmem:[%s3651 + $0x14] sm:$0xf]
    %v3658 = vld [vmem:[%s3651 + $0x18] sm:$0xf]
    %v3659 = vld [vmem:[%s3651 + $0x1c] sm:$0xf]
    %v3660 = vld [vmem:[%s3651 + $0x20] sm:$0xf]
    %v3661 = vld [vmem:[%s3651 + $0x24] sm:$0xf]
    %v3662 = vld [vmem:[%s3651 + $0x28] sm:$0xf]
    %v3663 = vld [vmem:[%s3651 + $0x2c] sm:$0xf]
    %v3664 = vld [vmem:[%s3651 + $0x30] sm:$0xf]
    %v3665 = vld [vmem:[%s3651 + $0x34] sm:$0xf]
    %v3666 = vld [vmem:[%s3651 + $0x38] sm:$0xf]
    %v3667 = vld [vmem:[%s3651 + $0x3c] sm:$0xf]
    %v3684 = vunpack.c.l.b16 %v3652
    %v3685 = vunpack.c.l.b16 %v3653
    %v3686 = vunpack.c.l.b16 %v3654
    %v3687 = vunpack.c.l.b16 %v3655
    %v3688 = vunpack.c.l.b16 %v3656
    %v3689 = vunpack.c.l.b16 %v3657
    %v3690 = vunpack.c.l.b16 %v3658
    %v3691 = vunpack.c.l.b16 %v3659
    %v3692 = vunpack.c.l.b16 %v3660
    %v3693 = vunpack.c.l.b16 %v3661
    %v3694 = vunpack.c.l.b16 %v3662
    %v3695 = vunpack.c.l.b16 %v3663
    %v3696 = vunpack.c.l.b16 %v3664
    %v3697 = vunpack.c.l.b16 %v3665
    %v3698 = vunpack.c.l.b16 %v3666
    %v3699 = vunpack.c.l.b16 %v3667
    %v3700 = vpack.c.b16 %v3685, %v3684
    %v3701 = vpack.c.b16 %v3687, %v3686
    %v3702 = vpack.c.b16 %v3689, %v3688
    %v3703 = vpack.c.b16 %v3691, %v3690
    %v3704 = vpack.c.b16 %v3693, %v3692
    %v3705 = vpack.c.b16 %v3695, %v3694
    %v3706 = vpack.c.b16 %v3697, %v3696
    %v3707 = vpack.c.b16 %v3699, %v3698
    %3716 = vmatprep.subr.bf16.mxu0 0
    %3717 = vmatpush1.bf16.msra.mxu0 %v3707
    %3718 = vmatprep.subr.bf16.mxu0 0
    %3719 = vmatpush1.bf16.msra.mxu0 %v3706
    %3720 = vmatprep.subr.bf16.mxu0 0
    %3721 = vmatpush1.bf16.msra.mxu0 %v3705
    %3722 = vmatprep.subr.bf16.mxu0 0
    %3723 = vmatpush1.bf16.msra.mxu0 %v3704
    %3724 = vmatprep.subr.bf16.mxu0 0
    %3725 = vmatpush1.bf16.msra.mxu0 %v3703
    %3726 = vmatprep.subr.bf16.mxu0 0
    %3727 = vmatpush1.bf16.msra.mxu0 %v3702
    %3728 = vmatprep.subr.bf16.mxu0 0
    %3729 = vmatpush1.bf16.msra.mxu0 %v3701
    %3730 = vmatprep.subr.bf16.mxu0 0
    %3731 = vmatpush1.bf16.msra.mxu0 %v3700
    %3732 = vmatprep.subr.bf16.mxu0 0
    %3733 = vmatpush2.bf16.msra.mxu0 0
    %3734 = vmatprep.subr.bf16.mxu0 0
    %3735 = vmatpush2.bf16.msra.mxu0 0
    %3736 = vmatprep.subr.bf16.mxu0 0
    %3737 = vmatpush2.bf16.msra.mxu0 0
    %3738 = vmatprep.subr.bf16.mxu0 0
    %3739 = vmatpush2.bf16.msra.mxu0 0
    %3740 = vmatprep.subr.bf16.mxu0 0
    %3741 = vmatpush2.bf16.msra.mxu0 0
    %3742 = vmatprep.subr.bf16.mxu0 0
    %3743 = vmatpush2.bf16.msra.mxu0 0
    %3744 = vmatprep.subr.bf16.mxu0 0
    %3745 = vmatpush2.bf16.msra.mxu0 0
    %3746 = vmatprep.subr.bf16.mxu0 0
    %3747 = vmatpush2.bf16.msra.mxu0 0
    %3748 = vmatprep.mubr.bf16.mxu0 0
    %3749 = vmatmul.mubr.bf16.gmra.mxu0 %v3642
    %v3750 = vpop.f32.mrf.mxu0
    %v3751 = vadd.f32 0.0, %v3750
    %v3752 = vpop.f32.mrf.mxu0
    %v3753 = vpop.f32.mrf.mxu0
    %v3754 = vadd.f32 0.0, %v3753
    %v3755 = vpop.f32.mrf.mxu0
    %3756 = vmatprep.mubr.bf16.mxu0 0
    %3757 = vmatmul.mubr.bf16.gmra.mxu0 %v3643
    %v3758 = vpop.f32.mrf.mxu0
    %v3759 = vadd.f32 0.0, %v3758
    %v3760 = vpop.f32.mrf.mxu0
    %v3761 = vpop.f32.mrf.mxu0
    %v3762 = vadd.f32 0.0, %v3761
    %v3763 = vpop.f32.mrf.mxu0
    %3764 = vmatprep.mubr.bf16.mxu0 0
    %3765 = vmatmul.mubr.bf16.gmra.mxu0 %v3644
    %v3766 = vpop.f32.mrf.mxu0
    %v3767 = vadd.f32 0.0, %v3766
    %v3768 = vpop.f32.mrf.mxu0
    %v3769 = vpop.f32.mrf.mxu0
    %v3770 = vadd.f32 0.0, %v3769
    %v3771 = vpop.f32.mrf.mxu0
    %3772 = vmatprep.mubr.bf16.mxu0 0
    %3773 = vmatmul.mubr.bf16.gmra.mxu0 %v3645
    %v3774 = vpop.f32.mrf.mxu0
    %v3775 = vadd.f32 0.0, %v3774
    %v3776 = vpop.f32.mrf.mxu0
    %v3777 = vpop.f32.mrf.mxu0
    %v3778 = vadd.f32 0.0, %v3777
    %v3779 = vpop.f32.mrf.mxu0
    %3780 = vmatprep.mubr.bf16.mxu0 0
    %3781 = vmatmul.mubr.bf16.gmra.mxu0 %v3646
    %v3782 = vpop.f32.mrf.mxu0
    %v3783 = vadd.f32 0.0, %v3782
    %v3784 = vpop.f32.mrf.mxu0
    %v3785 = vpop.f32.mrf.mxu0
    %v3786 = vadd.f32 0.0, %v3785
    %v3787 = vpop.f32.mrf.mxu0
    %3788 = vmatprep.mubr.bf16.mxu0 0
    %3789 = vmatmul.mubr.bf16.gmra.mxu0 %v3647
    %v3790 = vpop.f32.mrf.mxu0
    %v3791 = vadd.f32 0.0, %v3790
    %v3792 = vpop.f32.mrf.mxu0
    %v3793 = vpop.f32.mrf.mxu0
    %v3794 = vadd.f32 0.0, %v3793
    %v3795 = vpop.f32.mrf.mxu0
    %3796 = vmatprep.mubr.bf16.mxu0 0
    %3797 = vmatmul.mubr.bf16.gmra.mxu0 %v3648
    %v3798 = vpop.f32.mrf.mxu0
    %v3799 = vadd.f32 0.0, %v3798
    %v3800 = vpop.f32.mrf.mxu0
    %v3801 = vpop.f32.mrf.mxu0
    %v3802 = vadd.f32 0.0, %v3801
    %v3803 = vpop.f32.mrf.mxu0
    %3804 = vmatprep.mubr.bf16.mxu0 0
    %3805 = vmatmul.mubr.bf16.gmra.mxu0 %v3649
    %v3806 = vpop.f32.mrf.mxu0
    %v3807 = vadd.f32 0.0, %v3806
    %v3808 = vpop.f32.mrf.mxu0
    %v3809 = vpop.f32.mrf.mxu0
    %v3810 = vadd.f32 0.0, %v3809
    %v3811 = vpop.f32.mrf.mxu0
    %3812 = vmatprep.mubr.bf16.mxu0 0
    %3813 = vmatmul.mubr.bf16.gmra.mxu0 %v3650
    %v3814 = vpop.f32.mrf.mxu0
    %v3815 = vadd.f32 0.0, %v3814
    %v3816 = vpop.f32.mrf.mxu0
    %v3817 = vpop.f32.mrf.mxu0
    %v3818 = vpop.f32.mrf.mxu0
    %3819 = vdwg.mxu0
    %v3820 = vadd.f32 %v3608, %v3751
    %v3821 = vadd.f32 %v3609, %v3754
    %v3822 = vadd.f32 %v3610, %v3759
    %v3823 = vadd.f32 %v3611, %v3762
    %v3824 = vadd.f32 %v3612, %v3767
    %v3825 = vadd.f32 %v3613, %v3770
    %v3826 = vadd.f32 %v3614, %v3775
    %v3827 = vadd.f32 %v3615, %v3778
    %v3828 = vadd.f32 %v3616, %v3783
    %v3829 = vadd.f32 %v3617, %v3786
    %v3830 = vadd.f32 %v3618, %v3791
    %v3831 = vadd.f32 %v3619, %v3794
    %v3832 = vadd.f32 %v3620, %v3799
    %v3833 = vadd.f32 %v3621, %v3802
    %v3834 = vadd.f32 %v3622, %v3807
    %v3835 = vadd.f32 %v3623, %v3810
    %v3836 = vadd.f32 %v3624, %v3815
    %v3837 = vld [vmem:[#allocation3 + $0x12] sm:$0xff]
    %v3838 = vld [vmem:[#allocation3 + $0x1a] sm:$0xff]
    %v3839 = vld [vmem:[#allocation3 + $0x22] sm:$0xff]
    %v3840 = vld [vmem:[#allocation3 + $0x2a] sm:$0xff]
    %v3841 = vld [vmem:[#allocation3 + $0x32] sm:$0xff]
    %v3842 = vld [vmem:[#allocation3 + $0x3a] sm:$0xff]
    %v3843 = vld [vmem:[#allocation3 + $0x42] sm:$0xff]
    %v3844 = vld [vmem:[#allocation3 + $0x4a] sm:$0xff]
    %v3845 = vld [vmem:[#allocation3 + $0x52] sm:$0xff]
    %v3846 = vld [vmem:[#allocation3 + $0x5a] sm:$0xff]
    %v3847 = vld [vmem:[#allocation3 + $0x62] sm:$0xff]
    %v3848 = vld [vmem:[#allocation3 + $0x6a] sm:$0xff]
    %v3849 = vld [vmem:[#allocation3 + $0x72] sm:$0xff]
    %v3850 = vld [vmem:[#allocation3 + $0x7a] sm:$0xff]
    %v3851 = vld [vmem:[#allocation3 + $0x82] sm:$0xff]
    %v3852 = vld [vmem:[#allocation3 + $0x8a] sm:$0xff]
    %v3853 = vld [vmem:[#allocation3 + $0x92] sm:$0xff]
    %v3854 = vpack.c.bf16 %v3838, %v3837
    %v3855 = vpack.c.bf16 %v3840, %v3839
    %v3856 = vpack.c.bf16 %v3842, %v3841
    %v3857 = vpack.c.bf16 %v3844, %v3843
    %v3858 = vpack.c.bf16 %v3846, %v3845
    %v3859 = vpack.c.bf16 %v3848, %v3847
    %v3860 = vpack.c.bf16 %v3850, %v3849
    %v3861 = vpack.c.bf16 %v3852, %v3851
    %v3862 = vpack.c.bf16 %v3853, %v3853
    %s3863 = scalar_lea.vmem %s2, 576
    %v3864 = vld [vmem:[%s3863] sm:$0xf]
    %v3865 = vld [vmem:[%s3863 + $0x4] sm:$0xf]
    %v3866 = vld [vmem:[%s3863 + $0x8] sm:$0xf]
    %v3867 = vld [vmem:[%s3863 + $0xc] sm:$0xf]
    %v3868 = vld [vmem:[%s3863 + $0x10] sm:$0xf]
    %v3869 = vld [vmem:[%s3863 + $0x14] sm:$0xf]
    %v3870 = vld [vmem:[%s3863 + $0x18] sm:$0xf]
    %v3871 = vld [vmem:[%s3863 + $0x1c] sm:$0xf]
    %v3872 = vld [vmem:[%s3863 + $0x20] sm:$0xf]
    %v3873 = vld [vmem:[%s3863 + $0x24] sm:$0xf]
    %v3874 = vld [vmem:[%s3863 + $0x28] sm:$0xf]
    %v3875 = vld [vmem:[%s3863 + $0x2c] sm:$0xf]
    %v3876 = vld [vmem:[%s3863 + $0x30] sm:$0xf]
    %v3877 = vld [vmem:[%s3863 + $0x34] sm:$0xf]
    %v3878 = vld [vmem:[%s3863 + $0x38] sm:$0xf]
    %v3879 = vld [vmem:[%s3863 + $0x3c] sm:$0xf]
    %v3896 = vunpack.c.l.b16 %v3864
    %v3897 = vunpack.c.l.b16 %v3865
    %v3898 = vunpack.c.l.b16 %v3866
    %v3899 = vunpack.c.l.b16 %v3867
    %v3900 = vunpack.c.l.b16 %v3868
    %v3901 = vunpack.c.l.b16 %v3869
    %v3902 = vunpack.c.l.b16 %v3870
    %v3903 = vunpack.c.l.b16 %v3871
    %v3904 = vunpack.c.l.b16 %v3872
    %v3905 = vunpack.c.l.b16 %v3873
    %v3906 = vunpack.c.l.b16 %v3874
    %v3907 = vunpack.c.l.b16 %v3875
    %v3908 = vunpack.c.l.b16 %v3876
    %v3909 = vunpack.c.l.b16 %v3877
    %v3910 = vunpack.c.l.b16 %v3878
    %v3911 = vunpack.c.l.b16 %v3879
    %v3912 = vpack.c.b16 %v3897, %v3896
    %v3913 = vpack.c.b16 %v3899, %v3898
    %v3914 = vpack.c.b16 %v3901, %v3900
    %v3915 = vpack.c.b16 %v3903, %v3902
    %v3916 = vpack.c.b16 %v3905, %v3904
    %v3917 = vpack.c.b16 %v3907, %v3906
    %v3918 = vpack.c.b16 %v3909, %v3908
    %v3919 = vpack.c.b16 %v3911, %v3910
    %3928 = vmatprep.subr.bf16.mxu0 0
    %3929 = vmatpush1.bf16.msra.mxu0 %v3919
    %3930 = vmatprep.subr.bf16.mxu0 0
    %3931 = vmatpush1.bf16.msra.mxu0 %v3918
    %3932 = vmatprep.subr.bf16.mxu0 0
    %3933 = vmatpush1.bf16.msra.mxu0 %v3917
    %3934 = vmatprep.subr.bf16.mxu0 0
    %3935 = vmatpush1.bf16.msra.mxu0 %v3916
    %3936 = vmatprep.subr.bf16.mxu0 0
    %3937 = vmatpush1.bf16.msra.mxu0 %v3915
    %3938 = vmatprep.subr.bf16.mxu0 0
    %3939 = vmatpush1.bf16.msra.mxu0 %v3914
    %3940 = vmatprep.subr.bf16.mxu0 0
    %3941 = vmatpush1.bf16.msra.mxu0 %v3913
    %3942 = vmatprep.subr.bf16.mxu0 0
    %3943 = vmatpush1.bf16.msra.mxu0 %v3912
    %3944 = vmatprep.subr.bf16.mxu0 0
    %3945 = vmatpush2.bf16.msra.mxu0 0
    %3946 = vmatprep.subr.bf16.mxu0 0
    %3947 = vmatpush2.bf16.msra.mxu0 0
    %3948 = vmatprep.subr.bf16.mxu0 0
    %3949 = vmatpush2.bf16.msra.mxu0 0
    %3950 = vmatprep.subr.bf16.mxu0 0
    %3951 = vmatpush2.bf16.msra.mxu0 0
    %3952 = vmatprep.subr.bf16.mxu0 0
    %3953 = vmatpush2.bf16.msra.mxu0 0
    %3954 = vmatprep.subr.bf16.mxu0 0
    %3955 = vmatpush2.bf16.msra.mxu0 0
    %3956 = vmatprep.subr.bf16.mxu0 0
    %3957 = vmatpush2.bf16.msra.mxu0 0
    %3958 = vmatprep.subr.bf16.mxu0 0
    %3959 = vmatpush2.bf16.msra.mxu0 0
    %3960 = vmatprep.mubr.bf16.mxu0 0
    %3961 = vmatmul.mubr.bf16.gmra.mxu0 %v3854
    %v3962 = vpop.f32.mrf.mxu0
    %v3963 = vadd.f32 0.0, %v3962
    %v3964 = vpop.f32.mrf.mxu0
    %v3965 = vpop.f32.mrf.mxu0
    %v3966 = vadd.f32 0.0, %v3965
    %v3967 = vpop.f32.mrf.mxu0
    %3968 = vmatprep.mubr.bf16.mxu0 0
    %3969 = vmatmul.mubr.bf16.gmra.mxu0 %v3855
    %v3970 = vpop.f32.mrf.mxu0
    %v3971 = vadd.f32 0.0, %v3970
    %v3972 = vpop.f32.mrf.mxu0
    %v3973 = vpop.f32.mrf.mxu0
    %v3974 = vadd.f32 0.0, %v3973
    %v3975 = vpop.f32.mrf.mxu0
    %3976 = vmatprep.mubr.bf16.mxu0 0
    %3977 = vmatmul.mubr.bf16.gmra.mxu0 %v3856
    %v3978 = vpop.f32.mrf.mxu0
    %v3979 = vadd.f32 0.0, %v3978
    %v3980 = vpop.f32.mrf.mxu0
    %v3981 = vpop.f32.mrf.mxu0
    %v3982 = vadd.f32 0.0, %v3981
    %v3983 = vpop.f32.mrf.mxu0
    %3984 = vmatprep.mubr.bf16.mxu0 0
    %3985 = vmatmul.mubr.bf16.gmra.mxu0 %v3857
    %v3986 = vpop.f32.mrf.mxu0
    %v3987 = vadd.f32 0.0, %v3986
    %v3988 = vpop.f32.mrf.mxu0
    %v3989 = vpop.f32.mrf.mxu0
    %v3990 = vadd.f32 0.0, %v3989
    %v3991 = vpop.f32.mrf.mxu0
    %3992 = vmatprep.mubr.bf16.mxu0 0
    %3993 = vmatmul.mubr.bf16.gmra.mxu0 %v3858
    %v3994 = vpop.f32.mrf.mxu0
    %v3995 = vadd.f32 0.0, %v3994
    %v3996 = vpop.f32.mrf.mxu0
    %v3997 = vpop.f32.mrf.mxu0
    %v3998 = vadd.f32 0.0, %v3997
    %v3999 = vpop.f32.mrf.mxu0
    %4000 = vmatprep.mubr.bf16.mxu0 0
    %4001 = vmatmul.mubr.bf16.gmra.mxu0 %v3859
    %v4002 = vpop.f32.mrf.mxu0
    %v4003 = vadd.f32 0.0, %v4002
    %v4004 = vpop.f32.mrf.mxu0
    %v4005 = vpop.f32.mrf.mxu0
    %v4006 = vadd.f32 0.0, %v4005
    %v4007 = vpop.f32.mrf.mxu0
    %4008 = vmatprep.mubr.bf16.mxu0 0
    %4009 = vmatmul.mubr.bf16.gmra.mxu0 %v3860
    %v4010 = vpop.f32.mrf.mxu0
    %v4011 = vadd.f32 0.0, %v4010
    %v4012 = vpop.f32.mrf.mxu0
    %v4013 = vpop.f32.mrf.mxu0
    %v4014 = vadd.f32 0.0, %v4013
    %v4015 = vpop.f32.mrf.mxu0
    %4016 = vmatprep.mubr.bf16.mxu0 0
    %4017 = vmatmul.mubr.bf16.gmra.mxu0 %v3861
    %v4018 = vpop.f32.mrf.mxu0
    %v4019 = vadd.f32 0.0, %v4018
    %v4020 = vpop.f32.mrf.mxu0
    %v4021 = vpop.f32.mrf.mxu0
    %v4022 = vadd.f32 0.0, %v4021
    %v4023 = vpop.f32.mrf.mxu0
    %4024 = vmatprep.mubr.bf16.mxu0 0
    %4025 = vmatmul.mubr.bf16.gmra.mxu0 %v3862
    %v4026 = vpop.f32.mrf.mxu0
    %v4027 = vadd.f32 0.0, %v4026
    %v4028 = vpop.f32.mrf.mxu0
    %v4029 = vpop.f32.mrf.mxu0
    %v4030 = vpop.f32.mrf.mxu0
    %4031 = vdwg.mxu0
    %v4032 = vadd.f32 %v3820, %v3963
    %v4033 = vadd.f32 %v3821, %v3966
    %v4034 = vadd.f32 %v3822, %v3971
    %v4035 = vadd.f32 %v3823, %v3974
    %v4036 = vadd.f32 %v3824, %v3979
    %v4037 = vadd.f32 %v3825, %v3982
    %v4038 = vadd.f32 %v3826, %v3987
    %v4039 = vadd.f32 %v3827, %v3990
    %v4040 = vadd.f32 %v3828, %v3995
    %v4041 = vadd.f32 %v3829, %v3998
    %v4042 = vadd.f32 %v3830, %v4003
    %v4043 = vadd.f32 %v3831, %v4006
    %v4044 = vadd.f32 %v3832, %v4011
    %v4045 = vadd.f32 %v3833, %v4014
    %v4046 = vadd.f32 %v3834, %v4019
    %v4047 = vadd.f32 %v3835, %v4022
    %v4048 = vadd.f32 %v3836, %v4027
    %v4049 = vld [vmem:[#allocation3 + $0x1c] sm:$0xff]
    %v4050 = vld [vmem:[#allocation3 + $0x24] sm:$0xff]
    %v4051 = vld [vmem:[#allocation3 + $0x2c] sm:$0xff]
    %v4052 = vld [vmem:[#allocation3 + $0x34] sm:$0xff]
    %v4053 = vld [vmem:[#allocation3 + $0x3c] sm:$0xff]
    %v4054 = vld [vmem:[#allocation3 + $0x44] sm:$0xff]
    %v4055 = vld [vmem:[#allocation3 + $0x4c] sm:$0xff]
    %v4056 = vld [vmem:[#allocation3 + $0x54] sm:$0xff]
    %v4057 = vld [vmem:[#allocation3 + $0x5c] sm:$0xff]
    %v4058 = vld [vmem:[#allocation3 + $0x64] sm:$0xff]
    %v4059 = vld [vmem:[#allocation3 + $0x6c] sm:$0xff]
    %v4060 = vld [vmem:[#allocation3 + $0x74] sm:$0xff]
    %v4061 = vld [vmem:[#allocation3 + $0x7c] sm:$0xff]
    %v4062 = vld [vmem:[#allocation3 + $0x84] sm:$0xff]
    %v4063 = vld [vmem:[#allocation3 + $0x8c] sm:$0xff]
    %v4064 = vld [vmem:[#allocation3 + $0x94] sm:$0xff]
    %v4065 = vld [vmem:[#allocation3 + $0x9c] sm:$0xff]
    %v4066 = vpack.c.bf16 %v4050, %v4049
    %v4067 = vpack.c.bf16 %v4052, %v4051
    %v4068 = vpack.c.bf16 %v4054, %v4053
    %v4069 = vpack.c.bf16 %v4056, %v4055
    %v4070 = vpack.c.bf16 %v4058, %v4057
    %v4071 = vpack.c.bf16 %v4060, %v4059
    %v4072 = vpack.c.bf16 %v4062, %v4061
    %v4073 = vpack.c.bf16 %v4064, %v4063
    %v4074 = vpack.c.bf16 %v4065, %v4065
    %s4075 = scalar_lea.vmem %s2, 640
    %v4076 = vld [vmem:[%s4075] sm:$0xf]
    %v4077 = vld [vmem:[%s4075 + $0x4] sm:$0xf]
    %v4078 = vld [vmem:[%s4075 + $0x8] sm:$0xf]
    %v4079 = vld [vmem:[%s4075 + $0xc] sm:$0xf]
    %v4080 = vld [vmem:[%s4075 + $0x10] sm:$0xf]
    %v4081 = vld [vmem:[%s4075 + $0x14] sm:$0xf]
    %v4082 = vld [vmem:[%s4075 + $0x18] sm:$0xf]
    %v4083 = vld [vmem:[%s4075 + $0x1c] sm:$0xf]
    %v4084 = vld [vmem:[%s4075 + $0x20] sm:$0xf]
    %v4085 = vld [vmem:[%s4075 + $0x24] sm:$0xf]
    %v4086 = vld [vmem:[%s4075 + $0x28] sm:$0xf]
    %v4087 = vld [vmem:[%s4075 + $0x2c] sm:$0xf]
    %v4088 = vld [vmem:[%s4075 + $0x30] sm:$0xf]
    %v4089 = vld [vmem:[%s4075 + $0x34] sm:$0xf]
    %v4090 = vld [vmem:[%s4075 + $0x38] sm:$0xf]
    %v4091 = vld [vmem:[%s4075 + $0x3c] sm:$0xf]
    %v4108 = vunpack.c.l.b16 %v4076
    %v4109 = vunpack.c.l.b16 %v4077
    %v4110 = vunpack.c.l.b16 %v4078
    %v4111 = vunpack.c.l.b16 %v4079
    %v4112 = vunpack.c.l.b16 %v4080
    %v4113 = vunpack.c.l.b16 %v4081
    %v4114 = vunpack.c.l.b16 %v4082
    %v4115 = vunpack.c.l.b16 %v4083
    %v4116 = vunpack.c.l.b16 %v4084
    %v4117 = vunpack.c.l.b16 %v4085
    %v4118 = vunpack.c.l.b16 %v4086
    %v4119 = vunpack.c.l.b16 %v4087
    %v4120 = vunpack.c.l.b16 %v4088
    %v4121 = vunpack.c.l.b16 %v4089
    %v4122 = vunpack.c.l.b16 %v4090
    %v4123 = vunpack.c.l.b16 %v4091
    %v4124 = vpack.c.b16 %v4109, %v4108
    %v4125 = vpack.c.b16 %v4111, %v4110
    %v4126 = vpack.c.b16 %v4113, %v4112
    %v4127 = vpack.c.b16 %v4115, %v4114
    %v4128 = vpack.c.b16 %v4117, %v4116
    %v4129 = vpack.c.b16 %v4119, %v4118
    %v4130 = vpack.c.b16 %v4121, %v4120
    %v4131 = vpack.c.b16 %v4123, %v4122
    %4140 = vmatprep.subr.bf16.mxu0 0
    %4141 = vmatpush1.bf16.msra.mxu0 %v4131
    %4142 = vmatprep.subr.bf16.mxu0 0
    %4143 = vmatpush1.bf16.msra.mxu0 %v4130
    %4144 = vmatprep.subr.bf16.mxu0 0
    %4145 = vmatpush1.bf16.msra.mxu0 %v4129
    %4146 = vmatprep.subr.bf16.mxu0 0
    %4147 = vmatpush1.bf16.msra.mxu0 %v4128
    %4148 = vmatprep.subr.bf16.mxu0 0
    %4149 = vmatpush1.bf16.msra.mxu0 %v4127
    %4150 = vmatprep.subr.bf16.mxu0 0
    %4151 = vmatpush1.bf16.msra.mxu0 %v4126
    %4152 = vmatprep.subr.bf16.mxu0 0
    %4153 = vmatpush1.bf16.msra.mxu0 %v4125
    %4154 = vmatprep.subr.bf16.mxu0 0
    %4155 = vmatpush1.bf16.msra.mxu0 %v4124
    %4156 = vmatprep.subr.bf16.mxu0 0
    %4157 = vmatpush2.bf16.msra.mxu0 0
    %4158 = vmatprep.subr.bf16.mxu0 0
    %4159 = vmatpush2.bf16.msra.mxu0 0
    %4160 = vmatprep.subr.bf16.mxu0 0
    %4161 = vmatpush2.bf16.msra.mxu0 0
    %4162 = vmatprep.subr.bf16.mxu0 0
    %4163 = vmatpush2.bf16.msra.mxu0 0
    %4164 = vmatprep.subr.bf16.mxu0 0
    %4165 = vmatpush2.bf16.msra.mxu0 0
    %4166 = vmatprep.subr.bf16.mxu0 0
    %4167 = vmatpush2.bf16.msra.mxu0 0
    %4168 = vmatprep.subr.bf16.mxu0 0
    %4169 = vmatpush2.bf16.msra.mxu0 0
    %4170 = vmatprep.subr.bf16.mxu0 0
    %4171 = vmatpush2.bf16.msra.mxu0 0
    %4172 = vmatprep.mubr.bf16.mxu0 0
    %4173 = vmatmul.mubr.bf16.gmra.mxu0 %v4066
    %v4174 = vpop.f32.mrf.mxu0
    %v4175 = vadd.f32 0.0, %v4174
    %v4176 = vpop.f32.mrf.mxu0
    %v4177 = vpop.f32.mrf.mxu0
    %v4178 = vadd.f32 0.0, %v4177
    %v4179 = vpop.f32.mrf.mxu0
    %4180 = vmatprep.mubr.bf16.mxu0 0
    %4181 = vmatmul.mubr.bf16.gmra.mxu0 %v4067
    %v4182 = vpop.f32.mrf.mxu0
    %v4183 = vadd.f32 0.0, %v4182
    %v4184 = vpop.f32.mrf.mxu0
    %v4185 = vpop.f32.mrf.mxu0
    %v4186 = vadd.f32 0.0, %v4185
    %v4187 = vpop.f32.mrf.mxu0
    %4188 = vmatprep.mubr.bf16.mxu0 0
    %4189 = vmatmul.mubr.bf16.gmra.mxu0 %v4068
    %v4190 = vpop.f32.mrf.mxu0
    %v4191 = vadd.f32 0.0, %v4190
    %v4192 = vpop.f32.mrf.mxu0
    %v4193 = vpop.f32.mrf.mxu0
    %v4194 = vadd.f32 0.0, %v4193
    %v4195 = vpop.f32.mrf.mxu0
    %4196 = vmatprep.mubr.bf16.mxu0 0
    %4197 = vmatmul.mubr.bf16.gmra.mxu0 %v4069
    %v4198 = vpop.f32.mrf.mxu0
    %v4199 = vadd.f32 0.0, %v4198
    %v4200 = vpop.f32.mrf.mxu0
    %v4201 = vpop.f32.mrf.mxu0
    %v4202 = vadd.f32 0.0, %v4201
    %v4203 = vpop.f32.mrf.mxu0
    %4204 = vmatprep.mubr.bf16.mxu0 0
    %4205 = vmatmul.mubr.bf16.gmra.mxu0 %v4070
    %v4206 = vpop.f32.mrf.mxu0
    %v4207 = vadd.f32 0.0, %v4206
    %v4208 = vpop.f32.mrf.mxu0
    %v4209 = vpop.f32.mrf.mxu0
    %v4210 = vadd.f32 0.0, %v4209
    %v4211 = vpop.f32.mrf.mxu0
    %4212 = vmatprep.mubr.bf16.mxu0 0
    %4213 = vmatmul.mubr.bf16.gmra.mxu0 %v4071
    %v4214 = vpop.f32.mrf.mxu0
    %v4215 = vadd.f32 0.0, %v4214
    %v4216 = vpop.f32.mrf.mxu0
    %v4217 = vpop.f32.mrf.mxu0
    %v4218 = vadd.f32 0.0, %v4217
    %v4219 = vpop.f32.mrf.mxu0
    %4220 = vmatprep.mubr.bf16.mxu0 0
    %4221 = vmatmul.mubr.bf16.gmra.mxu0 %v4072
    %v4222 = vpop.f32.mrf.mxu0
    %v4223 = vadd.f32 0.0, %v4222
    %v4224 = vpop.f32.mrf.mxu0
    %v4225 = vpop.f32.mrf.mxu0
    %v4226 = vadd.f32 0.0, %v4225
    %v4227 = vpop.f32.mrf.mxu0
    %4228 = vmatprep.mubr.bf16.mxu0 0
    %4229 = vmatmul.mubr.bf16.gmra.mxu0 %v4073
    %v4230 = vpop.f32.mrf.mxu0
    %v4231 = vadd.f32 0.0, %v4230
    %v4232 = vpop.f32.mrf.mxu0
    %v4233 = vpop.f32.mrf.mxu0
    %v4234 = vadd.f32 0.0, %v4233
    %v4235 = vpop.f32.mrf.mxu0
    %4236 = vmatprep.mubr.bf16.mxu0 0
    %4237 = vmatmul.mubr.bf16.gmra.mxu0 %v4074
    %v4238 = vpop.f32.mrf.mxu0
    %v4239 = vadd.f32 0.0, %v4238
    %v4240 = vpop.f32.mrf.mxu0
    %v4241 = vpop.f32.mrf.mxu0
    %v4242 = vpop.f32.mrf.mxu0
    %4243 = vdwg.mxu0
    %v4244 = vadd.f32 %v4032, %v4175
    %v4245 = vadd.f32 %v4033, %v4178
    %v4246 = vadd.f32 %v4034, %v4183
    %v4247 = vadd.f32 %v4035, %v4186
    %v4248 = vadd.f32 %v4036, %v4191
    %v4249 = vadd.f32 %v4037, %v4194
    %v4250 = vadd.f32 %v4038, %v4199
    %v4251 = vadd.f32 %v4039, %v4202
    %v4252 = vadd.f32 %v4040, %v4207
    %v4253 = vadd.f32 %v4041, %v4210
    %v4254 = vadd.f32 %v4042, %v4215
    %v4255 = vadd.f32 %v4043, %v4218
    %v4256 = vadd.f32 %v4044, %v4223
    %v4257 = vadd.f32 %v4045, %v4226
    %v4258 = vadd.f32 %v4046, %v4231
    %v4259 = vadd.f32 %v4047, %v4234
    %v4260 = vadd.f32 %v4048, %v4239
    %v4261 = vld [vmem:[#allocation3 + $0x1d] sm:$0xff]
    %v4262 = vld [vmem:[#allocation3 + $0x25] sm:$0xff]
    %v4263 = vld [vmem:[#allocation3 + $0x2d] sm:$0xff]
    %v4264 = vld [vmem:[#allocation3 + $0x35] sm:$0xff]
    %v4265 = vld [vmem:[#allocation3 + $0x3d] sm:$0xff]
    %v4266 = vld [vmem:[#allocation3 + $0x45] sm:$0xff]
    %v4267 = vld [vmem:[#allocation3 + $0x4d] sm:$0xff]
    %v4268 = vld [vmem:[#allocation3 + $0x55] sm:$0xff]
    %v4269 = vld [vmem:[#allocation3 + $0x5d] sm:$0xff]
    %v4270 = vld [vmem:[#allocation3 + $0x65] sm:$0xff]
    %v4271 = vld [vmem:[#allocation3 + $0x6d] sm:$0xff]
    %v4272 = vld [vmem:[#allocation3 + $0x75] sm:$0xff]
    %v4273 = vld [vmem:[#allocation3 + $0x7d] sm:$0xff]
    %v4274 = vld [vmem:[#allocation3 + $0x85] sm:$0xff]
    %v4275 = vld [vmem:[#allocation3 + $0x8d] sm:$0xff]
    %v4276 = vld [vmem:[#allocation3 + $0x95] sm:$0xff]
    %v4277 = vld [vmem:[#allocation3 + $0x9d] sm:$0xff]
    %v4278 = vpack.c.bf16 %v4262, %v4261
    %v4279 = vpack.c.bf16 %v4264, %v4263
    %v4280 = vpack.c.bf16 %v4266, %v4265
    %v4281 = vpack.c.bf16 %v4268, %v4267
    %v4282 = vpack.c.bf16 %v4270, %v4269
    %v4283 = vpack.c.bf16 %v4272, %v4271
    %v4284 = vpack.c.bf16 %v4274, %v4273
    %v4285 = vpack.c.bf16 %v4276, %v4275
    %v4286 = vpack.c.bf16 %v4277, %v4277
    %s4287 = scalar_lea.vmem %s2, 704
    %v4288 = vld [vmem:[%s4287] sm:$0xf]
    %v4289 = vld [vmem:[%s4287 + $0x4] sm:$0xf]
    %v4290 = vld [vmem:[%s4287 + $0x8] sm:$0xf]
    %v4291 = vld [vmem:[%s4287 + $0xc] sm:$0xf]
    %v4292 = vld [vmem:[%s4287 + $0x10] sm:$0xf]
    %v4293 = vld [vmem:[%s4287 + $0x14] sm:$0xf]
    %v4294 = vld [vmem:[%s4287 + $0x18] sm:$0xf]
    %v4295 = vld [vmem:[%s4287 + $0x1c] sm:$0xf]
    %v4296 = vld [vmem:[%s4287 + $0x20] sm:$0xf]
    %v4297 = vld [vmem:[%s4287 + $0x24] sm:$0xf]
    %v4298 = vld [vmem:[%s4287 + $0x28] sm:$0xf]
    %v4299 = vld [vmem:[%s4287 + $0x2c] sm:$0xf]
    %v4300 = vld [vmem:[%s4287 + $0x30] sm:$0xf]
    %v4301 = vld [vmem:[%s4287 + $0x34] sm:$0xf]
    %v4302 = vld [vmem:[%s4287 + $0x38] sm:$0xf]
    %v4303 = vld [vmem:[%s4287 + $0x3c] sm:$0xf]
    %v4320 = vunpack.c.l.b16 %v4288
    %v4321 = vunpack.c.l.b16 %v4289
    %v4322 = vunpack.c.l.b16 %v4290
    %v4323 = vunpack.c.l.b16 %v4291
    %v4324 = vunpack.c.l.b16 %v4292
    %v4325 = vunpack.c.l.b16 %v4293
    %v4326 = vunpack.c.l.b16 %v4294
    %v4327 = vunpack.c.l.b16 %v4295
    %v4328 = vunpack.c.l.b16 %v4296
    %v4329 = vunpack.c.l.b16 %v4297
    %v4330 = vunpack.c.l.b16 %v4298
    %v4331 = vunpack.c.l.b16 %v4299
    %v4332 = vunpack.c.l.b16 %v4300
    %v4333 = vunpack.c.l.b16 %v4301
    %v4334 = vunpack.c.l.b16 %v4302
    %v4335 = vunpack.c.l.b16 %v4303
    %v4336 = vpack.c.b16 %v4321, %v4320
    %v4337 = vpack.c.b16 %v4323, %v4322
    %v4338 = vpack.c.b16 %v4325, %v4324
    %v4339 = vpack.c.b16 %v4327, %v4326
    %v4340 = vpack.c.b16 %v4329, %v4328
    %v4341 = vpack.c.b16 %v4331, %v4330
    %v4342 = vpack.c.b16 %v4333, %v4332
    %v4343 = vpack.c.b16 %v4335, %v4334
    %4352 = vmatprep.subr.bf16.mxu0 0
    %4353 = vmatpush1.bf16.msra.mxu0 %v4343
    %4354 = vmatprep.subr.bf16.mxu0 0
    %4355 = vmatpush1.bf16.msra.mxu0 %v4342
    %4356 = vmatprep.subr.bf16.mxu0 0
    %4357 = vmatpush1.bf16.msra.mxu0 %v4341
    %4358 = vmatprep.subr.bf16.mxu0 0
    %4359 = vmatpush1.bf16.msra.mxu0 %v4340
    %4360 = vmatprep.subr.bf16.mxu0 0
    %4361 = vmatpush1.bf16.msra.mxu0 %v4339
    %4362 = vmatprep.subr.bf16.mxu0 0
    %4363 = vmatpush1.bf16.msra.mxu0 %v4338
    %4364 = vmatprep.subr.bf16.mxu0 0
    %4365 = vmatpush1.bf16.msra.mxu0 %v4337
    %4366 = vmatprep.subr.bf16.mxu0 0
    %4367 = vmatpush1.bf16.msra.mxu0 %v4336
    %4368 = vmatprep.subr.bf16.mxu0 0
    %4369 = vmatpush2.bf16.msra.mxu0 0
    %4370 = vmatprep.subr.bf16.mxu0 0
    %4371 = vmatpush2.bf16.msra.mxu0 0
    %4372 = vmatprep.subr.bf16.mxu0 0
    %4373 = vmatpush2.bf16.msra.mxu0 0
    %4374 = vmatprep.subr.bf16.mxu0 0
    %4375 = vmatpush2.bf16.msra.mxu0 0
    %4376 = vmatprep.subr.bf16.mxu0 0
    %4377 = vmatpush2.bf16.msra.mxu0 0
    %4378 = vmatprep.subr.bf16.mxu0 0
    %4379 = vmatpush2.bf16.msra.mxu0 0
    %4380 = vmatprep.subr.bf16.mxu0 0
    %4381 = vmatpush2.bf16.msra.mxu0 0
    %4382 = vmatprep.subr.bf16.mxu0 0
    %4383 = vmatpush2.bf16.msra.mxu0 0
    %4384 = vmatprep.mubr.bf16.mxu0 0
    %4385 = vmatmul.mubr.bf16.gmra.mxu0 %v4278
    %v4386 = vpop.f32.mrf.mxu0
    %v4387 = vadd.f32 0.0, %v4386
    %v4388 = vpop.f32.mrf.mxu0
    %v4389 = vpop.f32.mrf.mxu0
    %v4390 = vadd.f32 0.0, %v4389
    %v4391 = vpop.f32.mrf.mxu0
    %4392 = vmatprep.mubr.bf16.mxu0 0
    %4393 = vmatmul.mubr.bf16.gmra.mxu0 %v4279
    %v4394 = vpop.f32.mrf.mxu0
    %v4395 = vadd.f32 0.0, %v4394
    %v4396 = vpop.f32.mrf.mxu0
    %v4397 = vpop.f32.mrf.mxu0
    %v4398 = vadd.f32 0.0, %v4397
    %v4399 = vpop.f32.mrf.mxu0
    %4400 = vmatprep.mubr.bf16.mxu0 0
    %4401 = vmatmul.mubr.bf16.gmra.mxu0 %v4280
    %v4402 = vpop.f32.mrf.mxu0
    %v4403 = vadd.f32 0.0, %v4402
    %v4404 = vpop.f32.mrf.mxu0
    %v4405 = vpop.f32.mrf.mxu0
    %v4406 = vadd.f32 0.0, %v4405
    %v4407 = vpop.f32.mrf.mxu0
    %4408 = vmatprep.mubr.bf16.mxu0 0
    %4409 = vmatmul.mubr.bf16.gmra.mxu0 %v4281
    %v4410 = vpop.f32.mrf.mxu0
    %v4411 = vadd.f32 0.0, %v4410
    %v4412 = vpop.f32.mrf.mxu0
    %v4413 = vpop.f32.mrf.mxu0
    %v4414 = vadd.f32 0.0, %v4413
    %v4415 = vpop.f32.mrf.mxu0
    %4416 = vmatprep.mubr.bf16.mxu0 0
    %4417 = vmatmul.mubr.bf16.gmra.mxu0 %v4282
    %v4418 = vpop.f32.mrf.mxu0
    %v4419 = vadd.f32 0.0, %v4418
    %v4420 = vpop.f32.mrf.mxu0
    %v4421 = vpop.f32.mrf.mxu0
    %v4422 = vadd.f32 0.0, %v4421
    %v4423 = vpop.f32.mrf.mxu0
    %4424 = vmatprep.mubr.bf16.mxu0 0
    %4425 = vmatmul.mubr.bf16.gmra.mxu0 %v4283
    %v4426 = vpop.f32.mrf.mxu0
    %v4427 = vadd.f32 0.0, %v4426
    %v4428 = vpop.f32.mrf.mxu0
    %v4429 = vpop.f32.mrf.mxu0
    %v4430 = vadd.f32 0.0, %v4429
    %v4431 = vpop.f32.mrf.mxu0
    %4432 = vmatprep.mubr.bf16.mxu0 0
    %4433 = vmatmul.mubr.bf16.gmra.mxu0 %v4284
    %v4434 = vpop.f32.mrf.mxu0
    %v4435 = vadd.f32 0.0, %v4434
    %v4436 = vpop.f32.mrf.mxu0
    %v4437 = vpop.f32.mrf.mxu0
    %v4438 = vadd.f32 0.0, %v4437
    %v4439 = vpop.f32.mrf.mxu0
    %4440 = vmatprep.mubr.bf16.mxu0 0
    %4441 = vmatmul.mubr.bf16.gmra.mxu0 %v4285
    %v4442 = vpop.f32.mrf.mxu0
    %v4443 = vadd.f32 0.0, %v4442
    %v4444 = vpop.f32.mrf.mxu0
    %v4445 = vpop.f32.mrf.mxu0
    %v4446 = vadd.f32 0.0, %v4445
    %v4447 = vpop.f32.mrf.mxu0
    %4448 = vmatprep.mubr.bf16.mxu0 0
    %4449 = vmatmul.mubr.bf16.gmra.mxu0 %v4286
    %v4450 = vpop.f32.mrf.mxu0
    %v4451 = vadd.f32 0.0, %v4450
    %v4452 = vpop.f32.mrf.mxu0
    %v4453 = vpop.f32.mrf.mxu0
    %v4454 = vpop.f32.mrf.mxu0
    %4455 = vdwg.mxu0
    %v4456 = vadd.f32 %v4244, %v4387
    %v4457 = vadd.f32 %v4245, %v4390
    %v4458 = vadd.f32 %v4246, %v4395
    %v4459 = vadd.f32 %v4247, %v4398
    %v4460 = vadd.f32 %v4248, %v4403
    %v4461 = vadd.f32 %v4249, %v4406
    %v4462 = vadd.f32 %v4250, %v4411
    %v4463 = vadd.f32 %v4251, %v4414
    %v4464 = vadd.f32 %v4252, %v4419
    %v4465 = vadd.f32 %v4253, %v4422
    %v4466 = vadd.f32 %v4254, %v4427
    %v4467 = vadd.f32 %v4255, %v4430
    %v4468 = vadd.f32 %v4256, %v4435
    %v4469 = vadd.f32 %v4257, %v4438
    %v4470 = vadd.f32 %v4258, %v4443
    %v4471 = vadd.f32 %v4259, %v4446
    %v4472 = vadd.f32 %v4260, %v4451
    %v4473 = vld [vmem:[#allocation3 + $0x1e] sm:$0xff]
    %v4474 = vld [vmem:[#allocation3 + $0x26] sm:$0xff]
    %v4475 = vld [vmem:[#allocation3 + $0x2e] sm:$0xff]
    %v4476 = vld [vmem:[#allocation3 + $0x36] sm:$0xff]
    %v4477 = vld [vmem:[#allocation3 + $0x3e] sm:$0xff]
    %v4478 = vld [vmem:[#allocation3 + $0x46] sm:$0xff]
    %v4479 = vld [vmem:[#allocation3 + $0x4e] sm:$0xff]
    %v4480 = vld [vmem:[#allocation3 + $0x56] sm:$0xff]
    %v4481 = vld [vmem:[#allocation3 + $0x5e] sm:$0xff]
    %v4482 = vld [vmem:[#allocation3 + $0x66] sm:$0xff]
    %v4483 = vld [vmem:[#allocation3 + $0x6e] sm:$0xff]
    %v4484 = vld [vmem:[#allocation3 + $0x76] sm:$0xff]
    %v4485 = vld [vmem:[#allocation3 + $0x7e] sm:$0xff]
    %v4486 = vld [vmem:[#allocation3 + $0x86] sm:$0xff]
    %v4487 = vld [vmem:[#allocation3 + $0x8e] sm:$0xff]
    %v4488 = vld [vmem:[#allocation3 + $0x96] sm:$0xff]
    %v4489 = vld [vmem:[#allocation3 + $0x9e] sm:$0xff]
    %v4490 = vpack.c.bf16 %v4474, %v4473
    %v4491 = vpack.c.bf16 %v4476, %v4475
    %v4492 = vpack.c.bf16 %v4478, %v4477
    %v4493 = vpack.c.bf16 %v4480, %v4479
    %v4494 = vpack.c.bf16 %v4482, %v4481
    %v4495 = vpack.c.bf16 %v4484, %v4483
    %v4496 = vpack.c.bf16 %v4486, %v4485
    %v4497 = vpack.c.bf16 %v4488, %v4487
    %v4498 = vpack.c.bf16 %v4489, %v4489
    %s4499 = scalar_lea.vmem %s2, 768
    %v4500 = vld [vmem:[%s4499] sm:$0xf]
    %v4501 = vld [vmem:[%s4499 + $0x4] sm:$0xf]
    %v4502 = vld [vmem:[%s4499 + $0x8] sm:$0xf]
    %v4503 = vld [vmem:[%s4499 + $0xc] sm:$0xf]
    %v4504 = vld [vmem:[%s4499 + $0x10] sm:$0xf]
    %v4505 = vld [vmem:[%s4499 + $0x14] sm:$0xf]
    %v4506 = vld [vmem:[%s4499 + $0x18] sm:$0xf]
    %v4507 = vld [vmem:[%s4499 + $0x1c] sm:$0xf]
    %v4508 = vld [vmem:[%s4499 + $0x20] sm:$0xf]
    %v4509 = vld [vmem:[%s4499 + $0x24] sm:$0xf]
    %v4510 = vld [vmem:[%s4499 + $0x28] sm:$0xf]
    %v4511 = vld [vmem:[%s4499 + $0x2c] sm:$0xf]
    %v4512 = vld [vmem:[%s4499 + $0x30] sm:$0xf]
    %v4513 = vld [vmem:[%s4499 + $0x34] sm:$0xf]
    %v4514 = vld [vmem:[%s4499 + $0x38] sm:$0xf]
    %v4515 = vld [vmem:[%s4499 + $0x3c] sm:$0xf]
    %v4532 = vunpack.c.l.b16 %v4500
    %v4533 = vunpack.c.l.b16 %v4501
    %v4534 = vunpack.c.l.b16 %v4502
    %v4535 = vunpack.c.l.b16 %v4503
    %v4536 = vunpack.c.l.b16 %v4504
    %v4537 = vunpack.c.l.b16 %v4505
    %v4538 = vunpack.c.l.b16 %v4506
    %v4539 = vunpack.c.l.b16 %v4507
    %v4540 = vunpack.c.l.b16 %v4508
    %v4541 = vunpack.c.l.b16 %v4509
    %v4542 = vunpack.c.l.b16 %v4510
    %v4543 = vunpack.c.l.b16 %v4511
    %v4544 = vunpack.c.l.b16 %v4512
    %v4545 = vunpack.c.l.b16 %v4513
    %v4546 = vunpack.c.l.b16 %v4514
    %v4547 = vunpack.c.l.b16 %v4515
    %v4548 = vpack.c.b16 %v4533, %v4532
    %v4549 = vpack.c.b16 %v4535, %v4534
    %v4550 = vpack.c.b16 %v4537, %v4536
    %v4551 = vpack.c.b16 %v4539, %v4538
    %v4552 = vpack.c.b16 %v4541, %v4540
    %v4553 = vpack.c.b16 %v4543, %v4542
    %v4554 = vpack.c.b16 %v4545, %v4544
    %v4555 = vpack.c.b16 %v4547, %v4546
    %4564 = vmatprep.subr.bf16.mxu0 0
    %4565 = vmatpush1.bf16.msra.mxu0 %v4555
    %4566 = vmatprep.subr.bf16.mxu0 0
    %4567 = vmatpush1.bf16.msra.mxu0 %v4554
    %4568 = vmatprep.subr.bf16.mxu0 0
    %4569 = vmatpush1.bf16.msra.mxu0 %v4553
    %4570 = vmatprep.subr.bf16.mxu0 0
    %4571 = vmatpush1.bf16.msra.mxu0 %v4552
    %4572 = vmatprep.subr.bf16.mxu0 0
    %4573 = vmatpush1.bf16.msra.mxu0 %v4551
    %4574 = vmatprep.subr.bf16.mxu0 0
    %4575 = vmatpush1.bf16.msra.mxu0 %v4550
    %4576 = vmatprep.subr.bf16.mxu0 0
    %4577 = vmatpush1.bf16.msra.mxu0 %v4549
    %4578 = vmatprep.subr.bf16.mxu0 0
    %4579 = vmatpush1.bf16.msra.mxu0 %v4548
    %4580 = vmatprep.subr.bf16.mxu0 0
    %4581 = vmatpush2.bf16.msra.mxu0 0
    %4582 = vmatprep.subr.bf16.mxu0 0
    %4583 = vmatpush2.bf16.msra.mxu0 0
    %4584 = vmatprep.subr.bf16.mxu0 0
    %4585 = vmatpush2.bf16.msra.mxu0 0
    %4586 = vmatprep.subr.bf16.mxu0 0
    %4587 = vmatpush2.bf16.msra.mxu0 0
    %4588 = vmatprep.subr.bf16.mxu0 0
    %4589 = vmatpush2.bf16.msra.mxu0 0
    %4590 = vmatprep.subr.bf16.mxu0 0
    %4591 = vmatpush2.bf16.msra.mxu0 0
    %4592 = vmatprep.subr.bf16.mxu0 0
    %4593 = vmatpush2.bf16.msra.mxu0 0
    %4594 = vmatprep.subr.bf16.mxu0 0
    %4595 = vmatpush2.bf16.msra.mxu0 0
    %4596 = vmatprep.mubr.bf16.mxu0 0
    %4597 = vmatmul.mubr.bf16.gmra.mxu0 %v4490
    %v4598 = vpop.f32.mrf.mxu0
    %v4599 = vadd.f32 0.0, %v4598
    %v4600 = vpop.f32.mrf.mxu0
    %v4601 = vpop.f32.mrf.mxu0
    %v4602 = vadd.f32 0.0, %v4601
    %v4603 = vpop.f32.mrf.mxu0
    %4604 = vmatprep.mubr.bf16.mxu0 0
    %4605 = vmatmul.mubr.bf16.gmra.mxu0 %v4491
    %v4606 = vpop.f32.mrf.mxu0
    %v4607 = vadd.f32 0.0, %v4606
    %v4608 = vpop.f32.mrf.mxu0
    %v4609 = vpop.f32.mrf.mxu0
    %v4610 = vadd.f32 0.0, %v4609
    %v4611 = vpop.f32.mrf.mxu0
    %4612 = vmatprep.mubr.bf16.mxu0 0
    %4613 = vmatmul.mubr.bf16.gmra.mxu0 %v4492
    %v4614 = vpop.f32.mrf.mxu0
    %v4615 = vadd.f32 0.0, %v4614
    %v4616 = vpop.f32.mrf.mxu0
    %v4617 = vpop.f32.mrf.mxu0
    %v4618 = vadd.f32 0.0, %v4617
    %v4619 = vpop.f32.mrf.mxu0
    %4620 = vmatprep.mubr.bf16.mxu0 0
    %4621 = vmatmul.mubr.bf16.gmra.mxu0 %v4493
    %v4622 = vpop.f32.mrf.mxu0
    %v4623 = vadd.f32 0.0, %v4622
    %v4624 = vpop.f32.mrf.mxu0
    %v4625 = vpop.f32.mrf.mxu0
    %v4626 = vadd.f32 0.0, %v4625
    %v4627 = vpop.f32.mrf.mxu0
    %4628 = vmatprep.mubr.bf16.mxu0 0
    %4629 = vmatmul.mubr.bf16.gmra.mxu0 %v4494
    %v4630 = vpop.f32.mrf.mxu0
    %v4631 = vadd.f32 0.0, %v4630
    %v4632 = vpop.f32.mrf.mxu0
    %v4633 = vpop.f32.mrf.mxu0
    %v4634 = vadd.f32 0.0, %v4633
    %v4635 = vpop.f32.mrf.mxu0
    %4636 = vmatprep.mubr.bf16.mxu0 0
    %4637 = vmatmul.mubr.bf16.gmra.mxu0 %v4495
    %v4638 = vpop.f32.mrf.mxu0
    %v4639 = vadd.f32 0.0, %v4638
    %v4640 = vpop.f32.mrf.mxu0
    %v4641 = vpop.f32.mrf.mxu0
    %v4642 = vadd.f32 0.0, %v4641
    %v4643 = vpop.f32.mrf.mxu0
    %4644 = vmatprep.mubr.bf16.mxu0 0
    %4645 = vmatmul.mubr.bf16.gmra.mxu0 %v4496
    %v4646 = vpop.f32.mrf.mxu0
    %v4647 = vadd.f32 0.0, %v4646
    %v4648 = vpop.f32.mrf.mxu0
    %v4649 = vpop.f32.mrf.mxu0
    %v4650 = vadd.f32 0.0, %v4649
    %v4651 = vpop.f32.mrf.mxu0
    %4652 = vmatprep.mubr.bf16.mxu0 0
    %4653 = vmatmul.mubr.bf16.gmra.mxu0 %v4497
    %v4654 = vpop.f32.mrf.mxu0
    %v4655 = vadd.f32 0.0, %v4654
    %v4656 = vpop.f32.mrf.mxu0
    %v4657 = vpop.f32.mrf.mxu0
    %v4658 = vadd.f32 0.0, %v4657
    %v4659 = vpop.f32.mrf.mxu0
    %4660 = vmatprep.mubr.bf16.mxu0 0
    %4661 = vmatmul.mubr.bf16.gmra.mxu0 %v4498
    %v4662 = vpop.f32.mrf.mxu0
    %v4663 = vadd.f32 0.0, %v4662
    %v4664 = vpop.f32.mrf.mxu0
    %v4665 = vpop.f32.mrf.mxu0
    %v4666 = vpop.f32.mrf.mxu0
    %4667 = vdwg.mxu0
    %v4668 = vadd.f32 %v4456, %v4599
    %v4669 = vadd.f32 %v4457, %v4602
    %v4670 = vadd.f32 %v4458, %v4607
    %v4671 = vadd.f32 %v4459, %v4610
    %v4672 = vadd.f32 %v4460, %v4615
    %v4673 = vadd.f32 %v4461, %v4618
    %v4674 = vadd.f32 %v4462, %v4623
    %v4675 = vadd.f32 %v4463, %v4626
    %v4676 = vadd.f32 %v4464, %v4631
    %v4677 = vadd.f32 %v4465, %v4634
    %v4678 = vadd.f32 %v4466, %v4639
    %v4679 = vadd.f32 %v4467, %v4642
    %v4680 = vadd.f32 %v4468, %v4647
    %v4681 = vadd.f32 %v4469, %v4650
    %v4682 = vadd.f32 %v4470, %v4655
    %v4683 = vadd.f32 %v4471, %v4658
    %v4684 = vadd.f32 %v4472, %v4663
    %v4685 = vld [vmem:[#allocation3 + $0x1f] sm:$0xff]
    %v4686 = vld [vmem:[#allocation3 + $0x27] sm:$0xff]
    %v4687 = vld [vmem:[#allocation3 + $0x2f] sm:$0xff]
    %v4688 = vld [vmem:[#allocation3 + $0x37] sm:$0xff]
    %v4689 = vld [vmem:[#allocation3 + $0x3f] sm:$0xff]
    %v4690 = vld [vmem:[#allocation3 + $0x47] sm:$0xff]
    %v4691 = vld [vmem:[#allocation3 + $0x4f] sm:$0xff]
    %v4692 = vld [vmem:[#allocation3 + $0x57] sm:$0xff]
    %v4693 = vld [vmem:[#allocation3 + $0x5f] sm:$0xff]
    %v4694 = vld [vmem:[#allocation3 + $0x67] sm:$0xff]
    %v4695 = vld [vmem:[#allocation3 + $0x6f] sm:$0xff]
    %v4696 = vld [vmem:[#allocation3 + $0x77] sm:$0xff]
    %v4697 = vld [vmem:[#allocation3 + $0x7f] sm:$0xff]
    %v4698 = vld [vmem:[#allocation3 + $0x87] sm:$0xff]
    %v4699 = vld [vmem:[#allocation3 + $0x8f] sm:$0xff]
    %v4700 = vld [vmem:[#allocation3 + $0x97] sm:$0xff]
    %v4701 = vld [vmem:[#allocation3 + $0x9f] sm:$0xff]
    %v4702 = vpack.c.bf16 %v4686, %v4685
    %v4703 = vpack.c.bf16 %v4688, %v4687
    %v4704 = vpack.c.bf16 %v4690, %v4689
    %v4705 = vpack.c.bf16 %v4692, %v4691
    %v4706 = vpack.c.bf16 %v4694, %v4693
    %v4707 = vpack.c.bf16 %v4696, %v4695
    %v4708 = vpack.c.bf16 %v4698, %v4697
    %v4709 = vpack.c.bf16 %v4700, %v4699
    %v4710 = vpack.c.bf16 %v4701, %v4701
    %s4711 = scalar_lea.vmem %s2, 832
    %v4712 = vld [vmem:[%s4711] sm:$0xf]
    %v4713 = vld [vmem:[%s4711 + $0x4] sm:$0xf]
    %v4714 = vld [vmem:[%s4711 + $0x8] sm:$0xf]
    %v4715 = vld [vmem:[%s4711 + $0xc] sm:$0xf]
    %v4716 = vld [vmem:[%s4711 + $0x10] sm:$0xf]
    %v4717 = vld [vmem:[%s4711 + $0x14] sm:$0xf]
    %v4718 = vld [vmem:[%s4711 + $0x18] sm:$0xf]
    %v4719 = vld [vmem:[%s4711 + $0x1c] sm:$0xf]
    %v4720 = vld [vmem:[%s4711 + $0x20] sm:$0xf]
    %v4721 = vld [vmem:[%s4711 + $0x24] sm:$0xf]
    %v4722 = vld [vmem:[%s4711 + $0x28] sm:$0xf]
    %v4723 = vld [vmem:[%s4711 + $0x2c] sm:$0xf]
    %v4724 = vld [vmem:[%s4711 + $0x30] sm:$0xf]
    %v4725 = vld [vmem:[%s4711 + $0x34] sm:$0xf]
    %v4726 = vld [vmem:[%s4711 + $0x38] sm:$0xf]
    %v4727 = vld [vmem:[%s4711 + $0x3c] sm:$0xf]
    %v4744 = vunpack.c.l.b16 %v4712
    %v4745 = vunpack.c.l.b16 %v4713
    %v4746 = vunpack.c.l.b16 %v4714
    %v4747 = vunpack.c.l.b16 %v4715
    %v4748 = vunpack.c.l.b16 %v4716
    %v4749 = vunpack.c.l.b16 %v4717
    %v4750 = vunpack.c.l.b16 %v4718
    %v4751 = vunpack.c.l.b16 %v4719
    %v4752 = vunpack.c.l.b16 %v4720
    %v4753 = vunpack.c.l.b16 %v4721
    %v4754 = vunpack.c.l.b16 %v4722
    %v4755 = vunpack.c.l.b16 %v4723
    %v4756 = vunpack.c.l.b16 %v4724
    %v4757 = vunpack.c.l.b16 %v4725
    %v4758 = vunpack.c.l.b16 %v4726
    %v4759 = vunpack.c.l.b16 %v4727
    %v4760 = vpack.c.b16 %v4745, %v4744
    %v4761 = vpack.c.b16 %v4747, %v4746
    %v4762 = vpack.c.b16 %v4749, %v4748
    %v4763 = vpack.c.b16 %v4751, %v4750
    %v4764 = vpack.c.b16 %v4753, %v4752
    %v4765 = vpack.c.b16 %v4755, %v4754
    %v4766 = vpack.c.b16 %v4757, %v4756
    %v4767 = vpack.c.b16 %v4759, %v4758
    %4776 = vmatprep.subr.bf16.mxu0 0
    %4777 = vmatpush1.bf16.msra.mxu0 %v4767
    %4778 = vmatprep.subr.bf16.mxu0 0
    %4779 = vmatpush1.bf16.msra.mxu0 %v4766
    %4780 = vmatprep.subr.bf16.mxu0 0
    %4781 = vmatpush1.bf16.msra.mxu0 %v4765
    %4782 = vmatprep.subr.bf16.mxu0 0
    %4783 = vmatpush1.bf16.msra.mxu0 %v4764
    %4784 = vmatprep.subr.bf16.mxu0 0
    %4785 = vmatpush1.bf16.msra.mxu0 %v4763
    %4786 = vmatprep.subr.bf16.mxu0 0
    %4787 = vmatpush1.bf16.msra.mxu0 %v4762
    %4788 = vmatprep.subr.bf16.mxu0 0
    %4789 = vmatpush1.bf16.msra.mxu0 %v4761
    %4790 = vmatprep.subr.bf16.mxu0 0
    %4791 = vmatpush1.bf16.msra.mxu0 %v4760
    %4792 = vmatprep.subr.bf16.mxu0 0
    %4793 = vmatpush2.bf16.msra.mxu0 0
    %4794 = vmatprep.subr.bf16.mxu0 0
    %4795 = vmatpush2.bf16.msra.mxu0 0
    %4796 = vmatprep.subr.bf16.mxu0 0
    %4797 = vmatpush2.bf16.msra.mxu0 0
    %4798 = vmatprep.subr.bf16.mxu0 0
    %4799 = vmatpush2.bf16.msra.mxu0 0
    %4800 = vmatprep.subr.bf16.mxu0 0
    %4801 = vmatpush2.bf16.msra.mxu0 0
    %4802 = vmatprep.subr.bf16.mxu0 0
    %4803 = vmatpush2.bf16.msra.mxu0 0
    %4804 = vmatprep.subr.bf16.mxu0 0
    %4805 = vmatpush2.bf16.msra.mxu0 0
    %4806 = vmatprep.subr.bf16.mxu0 0
    %4807 = vmatpush2.bf16.msra.mxu0 0
    %4808 = vmatprep.mubr.bf16.mxu0 0
    %4809 = vmatmul.mubr.bf16.gmra.mxu0 %v4702
    %v4810 = vpop.f32.mrf.mxu0
    %v4811 = vadd.f32 0.0, %v4810
    %v4812 = vpop.f32.mrf.mxu0
    %v4813 = vpop.f32.mrf.mxu0
    %v4814 = vadd.f32 0.0, %v4813
    %v4815 = vpop.f32.mrf.mxu0
    %4816 = vmatprep.mubr.bf16.mxu0 0
    %4817 = vmatmul.mubr.bf16.gmra.mxu0 %v4703
    %v4818 = vpop.f32.mrf.mxu0
    %v4819 = vadd.f32 0.0, %v4818
    %v4820 = vpop.f32.mrf.mxu0
    %v4821 = vpop.f32.mrf.mxu0
    %v4822 = vadd.f32 0.0, %v4821
    %v4823 = vpop.f32.mrf.mxu0
    %4824 = vmatprep.mubr.bf16.mxu0 0
    %4825 = vmatmul.mubr.bf16.gmra.mxu0 %v4704
    %v4826 = vpop.f32.mrf.mxu0
    %v4827 = vadd.f32 0.0, %v4826
    %v4828 = vpop.f32.mrf.mxu0
    %v4829 = vpop.f32.mrf.mxu0
    %v4830 = vadd.f32 0.0, %v4829
    %v4831 = vpop.f32.mrf.mxu0
    %4832 = vmatprep.mubr.bf16.mxu0 0
    %4833 = vmatmul.mubr.bf16.gmra.mxu0 %v4705
    %v4834 = vpop.f32.mrf.mxu0
    %v4835 = vadd.f32 0.0, %v4834
    %v4836 = vpop.f32.mrf.mxu0
    %v4837 = vpop.f32.mrf.mxu0
    %v4838 = vadd.f32 0.0, %v4837
    %v4839 = vpop.f32.mrf.mxu0
    %4840 = vmatprep.mubr.bf16.mxu0 0
    %4841 = vmatmul.mubr.bf16.gmra.mxu0 %v4706
    %v4842 = vpop.f32.mrf.mxu0
    %v4843 = vadd.f32 0.0, %v4842
    %v4844 = vpop.f32.mrf.mxu0
    %v4845 = vpop.f32.mrf.mxu0
    %v4846 = vadd.f32 0.0, %v4845
    %v4847 = vpop.f32.mrf.mxu0
    %4848 = vmatprep.mubr.bf16.mxu0 0
    %4849 = vmatmul.mubr.bf16.gmra.mxu0 %v4707
    %v4850 = vpop.f32.mrf.mxu0
    %v4851 = vadd.f32 0.0, %v4850
    %v4852 = vpop.f32.mrf.mxu0
    %v4853 = vpop.f32.mrf.mxu0
    %v4854 = vadd.f32 0.0, %v4853
    %v4855 = vpop.f32.mrf.mxu0
    %4856 = vmatprep.mubr.bf16.mxu0 0
    %4857 = vmatmul.mubr.bf16.gmra.mxu0 %v4708
    %v4858 = vpop.f32.mrf.mxu0
    %v4859 = vadd.f32 0.0, %v4858
    %v4860 = vpop.f32.mrf.mxu0
    %v4861 = vpop.f32.mrf.mxu0
    %v4862 = vadd.f32 0.0, %v4861
    %v4863 = vpop.f32.mrf.mxu0
    %4864 = vmatprep.mubr.bf16.mxu0 0
    %4865 = vmatmul.mubr.bf16.gmra.mxu0 %v4709
    %v4866 = vpop.f32.mrf.mxu0
    %v4867 = vadd.f32 0.0, %v4866
    %v4868 = vpop.f32.mrf.mxu0
    %v4869 = vpop.f32.mrf.mxu0
    %v4870 = vadd.f32 0.0, %v4869
    %v4871 = vpop.f32.mrf.mxu0
    %4872 = vmatprep.mubr.bf16.mxu0 0
    %4873 = vmatmul.mubr.bf16.gmra.mxu0 %v4710
    %v4874 = vpop.f32.mrf.mxu0
    %v4875 = vadd.f32 0.0, %v4874
    %v4876 = vpop.f32.mrf.mxu0
    %v4877 = vpop.f32.mrf.mxu0
    %v4878 = vpop.f32.mrf.mxu0
    %4879 = vdwg.mxu0
    %v4880 = vadd.f32 %v4668, %v4811
    %v4881 = vadd.f32 %v4669, %v4814
    %v4882 = vadd.f32 %v4670, %v4819
    %v4883 = vadd.f32 %v4671, %v4822
    %v4884 = vadd.f32 %v4672, %v4827
    %v4885 = vadd.f32 %v4673, %v4830
    %v4886 = vadd.f32 %v4674, %v4835
    %v4887 = vadd.f32 %v4675, %v4838
    %v4888 = vadd.f32 %v4676, %v4843
    %v4889 = vadd.f32 %v4677, %v4846
    %v4890 = vadd.f32 %v4678, %v4851
    %v4891 = vadd.f32 %v4679, %v4854
    %v4892 = vadd.f32 %v4680, %v4859
    %v4893 = vadd.f32 %v4681, %v4862
    %v4894 = vadd.f32 %v4682, %v4867
    %v4895 = vadd.f32 %v4683, %v4870
    %v4896 = vadd.f32 %v4684, %v4875
    %v4897 = vld [vmem:[#allocation3 + $0x20] sm:$0xff]
    %v4898 = vld [vmem:[#allocation3 + $0x28] sm:$0xff]
    %v4899 = vld [vmem:[#allocation3 + $0x30] sm:$0xff]
    %v4900 = vld [vmem:[#allocation3 + $0x38] sm:$0xff]
    %v4901 = vld [vmem:[#allocation3 + $0x40] sm:$0xff]
    %v4902 = vld [vmem:[#allocation3 + $0x48] sm:$0xff]
    %v4903 = vld [vmem:[#allocation3 + $0x50] sm:$0xff]
    %v4904 = vld [vmem:[#allocation3 + $0x58] sm:$0xff]
    %v4905 = vld [vmem:[#allocation3 + $0x60] sm:$0xff]
    %v4906 = vld [vmem:[#allocation3 + $0x68] sm:$0xff]
    %v4907 = vld [vmem:[#allocation3 + $0x70] sm:$0xff]
    %v4908 = vld [vmem:[#allocation3 + $0x78] sm:$0xff]
    %v4909 = vld [vmem:[#allocation3 + $0x80] sm:$0xff]
    %v4910 = vld [vmem:[#allocation3 + $0x88] sm:$0xff]
    %v4911 = vld [vmem:[#allocation3 + $0x90] sm:$0xff]
    %v4912 = vld [vmem:[#allocation3 + $0x98] sm:$0xff]
    %v4913 = vld [vmem:[#allocation3 + $0xa0] sm:$0xff]
    %v4914 = vpack.c.bf16 %v4898, %v4897
    %v4915 = vpack.c.bf16 %v4900, %v4899
    %v4916 = vpack.c.bf16 %v4902, %v4901
    %v4917 = vpack.c.bf16 %v4904, %v4903
    %v4918 = vpack.c.bf16 %v4906, %v4905
    %v4919 = vpack.c.bf16 %v4908, %v4907
    %v4920 = vpack.c.bf16 %v4910, %v4909
    %v4921 = vpack.c.bf16 %v4912, %v4911
    %v4922 = vpack.c.bf16 %v4913, %v4913
    %s4923 = scalar_lea.vmem %s2, 896
    %v4924 = vld [vmem:[%s4923] sm:$0xf]
    %v4925 = vld [vmem:[%s4923 + $0x4] sm:$0xf]
    %v4926 = vld [vmem:[%s4923 + $0x8] sm:$0xf]
    %v4927 = vld [vmem:[%s4923 + $0xc] sm:$0xf]
    %v4928 = vld [vmem:[%s4923 + $0x10] sm:$0xf]
    %v4929 = vld [vmem:[%s4923 + $0x14] sm:$0xf]
    %v4930 = vld [vmem:[%s4923 + $0x18] sm:$0xf]
    %v4931 = vld [vmem:[%s4923 + $0x1c] sm:$0xf]
    %v4932 = vld [vmem:[%s4923 + $0x20] sm:$0xf]
    %v4933 = vld [vmem:[%s4923 + $0x24] sm:$0xf]
    %v4934 = vld [vmem:[%s4923 + $0x28] sm:$0xf]
    %v4935 = vld [vmem:[%s4923 + $0x2c] sm:$0xf]
    %v4936 = vld [vmem:[%s4923 + $0x30] sm:$0xf]
    %v4937 = vld [vmem:[%s4923 + $0x34] sm:$0xf]
    %v4938 = vld [vmem:[%s4923 + $0x38] sm:$0xf]
    %v4939 = vld [vmem:[%s4923 + $0x3c] sm:$0xf]
    %v4956 = vunpack.c.l.b16 %v4924
    %v4957 = vunpack.c.l.b16 %v4925
    %v4958 = vunpack.c.l.b16 %v4926
    %v4959 = vunpack.c.l.b16 %v4927
    %v4960 = vunpack.c.l.b16 %v4928
    %v4961 = vunpack.c.l.b16 %v4929
    %v4962 = vunpack.c.l.b16 %v4930
    %v4963 = vunpack.c.l.b16 %v4931
    %v4964 = vunpack.c.l.b16 %v4932
    %v4965 = vunpack.c.l.b16 %v4933
    %v4966 = vunpack.c.l.b16 %v4934
    %v4967 = vunpack.c.l.b16 %v4935
    %v4968 = vunpack.c.l.b16 %v4936
    %v4969 = vunpack.c.l.b16 %v4937
    %v4970 = vunpack.c.l.b16 %v4938
    %v4971 = vunpack.c.l.b16 %v4939
    %v4972 = vpack.c.b16 %v4957, %v4956
    %v4973 = vpack.c.b16 %v4959, %v4958
    %v4974 = vpack.c.b16 %v4961, %v4960
    %v4975 = vpack.c.b16 %v4963, %v4962
    %v4976 = vpack.c.b16 %v4965, %v4964
    %v4977 = vpack.c.b16 %v4967, %v4966
    %v4978 = vpack.c.b16 %v4969, %v4968
    %v4979 = vpack.c.b16 %v4971, %v4970
    %4988 = vmatprep.subr.bf16.mxu0 0
    %4989 = vmatpush1.bf16.msra.mxu0 %v4979
    %4990 = vmatprep.subr.bf16.mxu0 0
    %4991 = vmatpush1.bf16.msra.mxu0 %v4978
    %4992 = vmatprep.subr.bf16.mxu0 0
    %4993 = vmatpush1.bf16.msra.mxu0 %v4977
    %4994 = vmatprep.subr.bf16.mxu0 0
    %4995 = vmatpush1.bf16.msra.mxu0 %v4976
    %4996 = vmatprep.subr.bf16.mxu0 0
    %4997 = vmatpush1.bf16.msra.mxu0 %v4975
    %4998 = vmatprep.subr.bf16.mxu0 0
    %4999 = vmatpush1.bf16.msra.mxu0 %v4974
    %5000 = vmatprep.subr.bf16.mxu0 0
    %5001 = vmatpush1.bf16.msra.mxu0 %v4973
    %5002 = vmatprep.subr.bf16.mxu0 0
    %5003 = vmatpush1.bf16.msra.mxu0 %v4972
    %5004 = vmatprep.subr.bf16.mxu0 0
    %5005 = vmatpush2.bf16.msra.mxu0 0
    %5006 = vmatprep.subr.bf16.mxu0 0
    %5007 = vmatpush2.bf16.msra.mxu0 0
    %5008 = vmatprep.subr.bf16.mxu0 0
    %5009 = vmatpush2.bf16.msra.mxu0 0
    %5010 = vmatprep.subr.bf16.mxu0 0
    %5011 = vmatpush2.bf16.msra.mxu0 0
    %5012 = vmatprep.subr.bf16.mxu0 0
    %5013 = vmatpush2.bf16.msra.mxu0 0
    %5014 = vmatprep.subr.bf16.mxu0 0
    %5015 = vmatpush2.bf16.msra.mxu0 0
    %5016 = vmatprep.subr.bf16.mxu0 0
    %5017 = vmatpush2.bf16.msra.mxu0 0
    %5018 = vmatprep.subr.bf16.mxu0 0
    %5019 = vmatpush2.bf16.msra.mxu0 0
    %5020 = vmatprep.mubr.bf16.mxu0 0
    %5021 = vmatmul.mubr.bf16.gmra.mxu0 %v4914
    %v5022 = vpop.f32.mrf.mxu0
    %v5023 = vadd.f32 0.0, %v5022
    %v5024 = vpop.f32.mrf.mxu0
    %v5025 = vpop.f32.mrf.mxu0
    %v5026 = vadd.f32 0.0, %v5025
    %v5027 = vpop.f32.mrf.mxu0
    %5028 = vmatprep.mubr.bf16.mxu0 0
    %5029 = vmatmul.mubr.bf16.gmra.mxu0 %v4915
    %v5030 = vpop.f32.mrf.mxu0
    %v5031 = vadd.f32 0.0, %v5030
    %v5032 = vpop.f32.mrf.mxu0
    %v5033 = vpop.f32.mrf.mxu0
    %v5034 = vadd.f32 0.0, %v5033
    %v5035 = vpop.f32.mrf.mxu0
    %5036 = vmatprep.mubr.bf16.mxu0 0
    %5037 = vmatmul.mubr.bf16.gmra.mxu0 %v4916
    %v5038 = vpop.f32.mrf.mxu0
    %v5039 = vadd.f32 0.0, %v5038
    %v5040 = vpop.f32.mrf.mxu0
    %v5041 = vpop.f32.mrf.mxu0
    %v5042 = vadd.f32 0.0, %v5041
    %v5043 = vpop.f32.mrf.mxu0
    %5044 = vmatprep.mubr.bf16.mxu0 0
    %5045 = vmatmul.mubr.bf16.gmra.mxu0 %v4917
    %v5046 = vpop.f32.mrf.mxu0
    %v5047 = vadd.f32 0.0, %v5046
    %v5048 = vpop.f32.mrf.mxu0
    %v5049 = vpop.f32.mrf.mxu0
    %v5050 = vadd.f32 0.0, %v5049
    %v5051 = vpop.f32.mrf.mxu0
    %5052 = vmatprep.mubr.bf16.mxu0 0
    %5053 = vmatmul.mubr.bf16.gmra.mxu0 %v4918
    %v5054 = vpop.f32.mrf.mxu0
    %v5055 = vadd.f32 0.0, %v5054
    %v5056 = vpop.f32.mrf.mxu0
    %v5057 = vpop.f32.mrf.mxu0
    %v5058 = vadd.f32 0.0, %v5057
    %v5059 = vpop.f32.mrf.mxu0
    %5060 = vmatprep.mubr.bf16.mxu0 0
    %5061 = vmatmul.mubr.bf16.gmra.mxu0 %v4919
    %v5062 = vpop.f32.mrf.mxu0
    %v5063 = vadd.f32 0.0, %v5062
    %v5064 = vpop.f32.mrf.mxu0
    %v5065 = vpop.f32.mrf.mxu0
    %v5066 = vadd.f32 0.0, %v5065
    %v5067 = vpop.f32.mrf.mxu0
    %5068 = vmatprep.mubr.bf16.mxu0 0
    %5069 = vmatmul.mubr.bf16.gmra.mxu0 %v4920
    %v5070 = vpop.f32.mrf.mxu0
    %v5071 = vadd.f32 0.0, %v5070
    %v5072 = vpop.f32.mrf.mxu0
    %v5073 = vpop.f32.mrf.mxu0
    %v5074 = vadd.f32 0.0, %v5073
    %v5075 = vpop.f32.mrf.mxu0
    %5076 = vmatprep.mubr.bf16.mxu0 0
    %5077 = vmatmul.mubr.bf16.gmra.mxu0 %v4921
    %v5078 = vpop.f32.mrf.mxu0
    %v5079 = vadd.f32 0.0, %v5078
    %v5080 = vpop.f32.mrf.mxu0
    %v5081 = vpop.f32.mrf.mxu0
    %v5082 = vadd.f32 0.0, %v5081
    %v5083 = vpop.f32.mrf.mxu0
    %5084 = vmatprep.mubr.bf16.mxu0 0
    %5085 = vmatmul.mubr.bf16.gmra.mxu0 %v4922
    %v5086 = vpop.f32.mrf.mxu0
    %v5087 = vadd.f32 0.0, %v5086
    %v5088 = vpop.f32.mrf.mxu0
    %v5089 = vpop.f32.mrf.mxu0
    %v5090 = vpop.f32.mrf.mxu0
    %5091 = vdwg.mxu0
    %v5092 = vadd.f32 %v4880, %v5023
    %v5093 = vadd.f32 %v4881, %v5026
    %v5094 = vadd.f32 %v4882, %v5031
    %v5095 = vadd.f32 %v4883, %v5034
    %v5096 = vadd.f32 %v4884, %v5039
    %v5097 = vadd.f32 %v4885, %v5042
    %v5098 = vadd.f32 %v4886, %v5047
    %v5099 = vadd.f32 %v4887, %v5050
    %v5100 = vadd.f32 %v4888, %v5055
    %v5101 = vadd.f32 %v4889, %v5058
    %v5102 = vadd.f32 %v4890, %v5063
    %v5103 = vadd.f32 %v4891, %v5066
    %v5104 = vadd.f32 %v4892, %v5071
    %v5105 = vadd.f32 %v4893, %v5074
    %v5106 = vadd.f32 %v4894, %v5079
    %v5107 = vadd.f32 %v4895, %v5082
    %v5108 = vadd.f32 %v4896, %v5087
    %v5109 = vld [vmem:[#allocation3 + $0x2a] sm:$0xff]
    %v5110 = vld [vmem:[#allocation3 + $0x32] sm:$0xff]
    %v5111 = vld [vmem:[#allocation3 + $0x3a] sm:$0xff]
    %v5112 = vld [vmem:[#allocation3 + $0x42] sm:$0xff]
    %v5113 = vld [vmem:[#allocation3 + $0x4a] sm:$0xff]
    %v5114 = vld [vmem:[#allocation3 + $0x52] sm:$0xff]
    %v5115 = vld [vmem:[#allocation3 + $0x5a] sm:$0xff]
    %v5116 = vld [vmem:[#allocation3 + $0x62] sm:$0xff]
    %v5117 = vld [vmem:[#allocation3 + $0x6a] sm:$0xff]
    %v5118 = vld [vmem:[#allocation3 + $0x72] sm:$0xff]
    %v5119 = vld [vmem:[#allocation3 + $0x7a] sm:$0xff]
    %v5120 = vld [vmem:[#allocation3 + $0x82] sm:$0xff]
    %v5121 = vld [vmem:[#allocation3 + $0x8a] sm:$0xff]
    %v5122 = vld [vmem:[#allocation3 + $0x92] sm:$0xff]
    %v5123 = vld [vmem:[#allocation3 + $0x9a] sm:$0xff]
    %v5124 = vld [vmem:[#allocation3 + $0xa2] sm:$0xff]
    %v5125 = vld [vmem:[#allocation3 + $0xaa] sm:$0xff]
    %v5126 = vpack.c.bf16 %v5110, %v5109
    %v5127 = vpack.c.bf16 %v5112, %v5111
    %v5128 = vpack.c.bf16 %v5114, %v5113
    %v5129 = vpack.c.bf16 %v5116, %v5115
    %v5130 = vpack.c.bf16 %v5118, %v5117
    %v5131 = vpack.c.bf16 %v5120, %v5119
    %v5132 = vpack.c.bf16 %v5122, %v5121
    %v5133 = vpack.c.bf16 %v5124, %v5123
    %v5134 = vpack.c.bf16 %v5125, %v5125
    %s5135 = scalar_lea.vmem %s2, 960
    %v5136 = vld [vmem:[%s5135] sm:$0xf]
    %v5137 = vld [vmem:[%s5135 + $0x4] sm:$0xf]
    %v5138 = vld [vmem:[%s5135 + $0x8] sm:$0xf]
    %v5139 = vld [vmem:[%s5135 + $0xc] sm:$0xf]
    %v5140 = vld [vmem:[%s5135 + $0x10] sm:$0xf]
    %v5141 = vld [vmem:[%s5135 + $0x14] sm:$0xf]
    %v5142 = vld [vmem:[%s5135 + $0x18] sm:$0xf]
    %v5143 = vld [vmem:[%s5135 + $0x1c] sm:$0xf]
    %v5144 = vld [vmem:[%s5135 + $0x20] sm:$0xf]
    %v5145 = vld [vmem:[%s5135 + $0x24] sm:$0xf]
    %v5146 = vld [vmem:[%s5135 + $0x28] sm:$0xf]
    %v5147 = vld [vmem:[%s5135 + $0x2c] sm:$0xf]
    %v5148 = vld [vmem:[%s5135 + $0x30] sm:$0xf]
    %v5149 = vld [vmem:[%s5135 + $0x34] sm:$0xf]
    %v5150 = vld [vmem:[%s5135 + $0x38] sm:$0xf]
    %v5151 = vld [vmem:[%s5135 + $0x3c] sm:$0xf]
    %v5168 = vunpack.c.l.b16 %v5136
    %v5169 = vunpack.c.l.b16 %v5137
    %v5170 = vunpack.c.l.b16 %v5138
    %v5171 = vunpack.c.l.b16 %v5139
    %v5172 = vunpack.c.l.b16 %v5140
    %v5173 = vunpack.c.l.b16 %v5141
    %v5174 = vunpack.c.l.b16 %v5142
    %v5175 = vunpack.c.l.b16 %v5143
    %v5176 = vunpack.c.l.b16 %v5144
    %v5177 = vunpack.c.l.b16 %v5145
    %v5178 = vunpack.c.l.b16 %v5146
    %v5179 = vunpack.c.l.b16 %v5147
    %v5180 = vunpack.c.l.b16 %v5148
    %v5181 = vunpack.c.l.b16 %v5149
    %v5182 = vunpack.c.l.b16 %v5150
    %v5183 = vunpack.c.l.b16 %v5151
    %v5184 = vpack.c.b16 %v5169, %v5168
    %v5185 = vpack.c.b16 %v5171, %v5170
    %v5186 = vpack.c.b16 %v5173, %v5172
    %v5187 = vpack.c.b16 %v5175, %v5174
    %v5188 = vpack.c.b16 %v5177, %v5176
    %v5189 = vpack.c.b16 %v5179, %v5178
    %v5190 = vpack.c.b16 %v5181, %v5180
    %v5191 = vpack.c.b16 %v5183, %v5182
    %5200 = vmatprep.subr.bf16.mxu0 0
    %5201 = vmatpush1.bf16.msra.mxu0 %v5191
    %5202 = vmatprep.subr.bf16.mxu0 0
    %5203 = vmatpush1.bf16.msra.mxu0 %v5190
    %5204 = vmatprep.subr.bf16.mxu0 0
    %5205 = vmatpush1.bf16.msra.mxu0 %v5189
    %5206 = vmatprep.subr.bf16.mxu0 0
    %5207 = vmatpush1.bf16.msra.mxu0 %v5188
    %5208 = vmatprep.subr.bf16.mxu0 0
    %5209 = vmatpush1.bf16.msra.mxu0 %v5187
    %5210 = vmatprep.subr.bf16.mxu0 0
    %5211 = vmatpush1.bf16.msra.mxu0 %v5186
    %5212 = vmatprep.subr.bf16.mxu0 0
    %5213 = vmatpush1.bf16.msra.mxu0 %v5185
    %5214 = vmatprep.subr.bf16.mxu0 0
    %5215 = vmatpush1.bf16.msra.mxu0 %v5184
    %5216 = vmatprep.subr.bf16.mxu0 0
    %5217 = vmatpush2.bf16.msra.mxu0 0
    %5218 = vmatprep.subr.bf16.mxu0 0
    %5219 = vmatpush2.bf16.msra.mxu0 0
    %5220 = vmatprep.subr.bf16.mxu0 0
    %5221 = vmatpush2.bf16.msra.mxu0 0
    %5222 = vmatprep.subr.bf16.mxu0 0
    %5223 = vmatpush2.bf16.msra.mxu0 0
    %5224 = vmatprep.subr.bf16.mxu0 0
    %5225 = vmatpush2.bf16.msra.mxu0 0
    %5226 = vmatprep.subr.bf16.mxu0 0
    %5227 = vmatpush2.bf16.msra.mxu0 0
    %5228 = vmatprep.subr.bf16.mxu0 0
    %5229 = vmatpush2.bf16.msra.mxu0 0
    %5230 = vmatprep.subr.bf16.mxu0 0
    %5231 = vmatpush2.bf16.msra.mxu0 0
    %5232 = vmatprep.mubr.bf16.mxu0 0
    %5233 = vmatmul.mubr.bf16.gmra.mxu0 %v5126
    %v5234 = vpop.f32.mrf.mxu0
    %v5235 = vadd.f32 0.0, %v5234
    %v5236 = vpop.f32.mrf.mxu0
    %v5237 = vpop.f32.mrf.mxu0
    %v5238 = vadd.f32 0.0, %v5237
    %v5239 = vpop.f32.mrf.mxu0
    %5240 = vmatprep.mubr.bf16.mxu0 0
    %5241 = vmatmul.mubr.bf16.gmra.mxu0 %v5127
    %v5242 = vpop.f32.mrf.mxu0
    %v5243 = vadd.f32 0.0, %v5242
    %v5244 = vpop.f32.mrf.mxu0
    %v5245 = vpop.f32.mrf.mxu0
    %v5246 = vadd.f32 0.0, %v5245
    %v5247 = vpop.f32.mrf.mxu0
    %5248 = vmatprep.mubr.bf16.mxu0 0
    %5249 = vmatmul.mubr.bf16.gmra.mxu0 %v5128
    %v5250 = vpop.f32.mrf.mxu0
    %v5251 = vadd.f32 0.0, %v5250
    %v5252 = vpop.f32.mrf.mxu0
    %v5253 = vpop.f32.mrf.mxu0
    %v5254 = vadd.f32 0.0, %v5253
    %v5255 = vpop.f32.mrf.mxu0
    %5256 = vmatprep.mubr.bf16.mxu0 0
    %5257 = vmatmul.mubr.bf16.gmra.mxu0 %v5129
    %v5258 = vpop.f32.mrf.mxu0
    %v5259 = vadd.f32 0.0, %v5258
    %v5260 = vpop.f32.mrf.mxu0
    %v5261 = vpop.f32.mrf.mxu0
    %v5262 = vadd.f32 0.0, %v5261
    %v5263 = vpop.f32.mrf.mxu0
    %5264 = vmatprep.mubr.bf16.mxu0 0
    %5265 = vmatmul.mubr.bf16.gmra.mxu0 %v5130
    %v5266 = vpop.f32.mrf.mxu0
    %v5267 = vadd.f32 0.0, %v5266
    %v5268 = vpop.f32.mrf.mxu0
    %v5269 = vpop.f32.mrf.mxu0
    %v5270 = vadd.f32 0.0, %v5269
    %v5271 = vpop.f32.mrf.mxu0
    %5272 = vmatprep.mubr.bf16.mxu0 0
    %5273 = vmatmul.mubr.bf16.gmra.mxu0 %v5131
    %v5274 = vpop.f32.mrf.mxu0
    %v5275 = vadd.f32 0.0, %v5274
    %v5276 = vpop.f32.mrf.mxu0
    %v5277 = vpop.f32.mrf.mxu0
    %v5278 = vadd.f32 0.0, %v5277
    %v5279 = vpop.f32.mrf.mxu0
    %5280 = vmatprep.mubr.bf16.mxu0 0
    %5281 = vmatmul.mubr.bf16.gmra.mxu0 %v5132
    %v5282 = vpop.f32.mrf.mxu0
    %v5283 = vadd.f32 0.0, %v5282
    %v5284 = vpop.f32.mrf.mxu0
    %v5285 = vpop.f32.mrf.mxu0
    %v5286 = vadd.f32 0.0, %v5285
    %v5287 = vpop.f32.mrf.mxu0
    %5288 = vmatprep.mubr.bf16.mxu0 0
    %5289 = vmatmul.mubr.bf16.gmra.mxu0 %v5133
    %v5290 = vpop.f32.mrf.mxu0
    %v5291 = vadd.f32 0.0, %v5290
    %v5292 = vpop.f32.mrf.mxu0
    %v5293 = vpop.f32.mrf.mxu0
    %v5294 = vadd.f32 0.0, %v5293
    %v5295 = vpop.f32.mrf.mxu0
    %5296 = vmatprep.mubr.bf16.mxu0 0
    %5297 = vmatmul.mubr.bf16.gmra.mxu0 %v5134
    %v5298 = vpop.f32.mrf.mxu0
    %v5299 = vadd.f32 0.0, %v5298
    %v5300 = vpop.f32.mrf.mxu0
    %v5301 = vpop.f32.mrf.mxu0
    %v5302 = vpop.f32.mrf.mxu0
    %5303 = vdwg.mxu0
    %v5304 = vadd.f32 %v5092, %v5235
    %v5305 = vadd.f32 %v5093, %v5238
    %v5306 = vadd.f32 %v5094, %v5243
    %v5307 = vadd.f32 %v5095, %v5246
    %v5308 = vadd.f32 %v5096, %v5251
    %v5309 = vadd.f32 %v5097, %v5254
    %v5310 = vadd.f32 %v5098, %v5259
    %v5311 = vadd.f32 %v5099, %v5262
    %v5312 = vadd.f32 %v5100, %v5267
    %v5313 = vadd.f32 %v5101, %v5270
    %v5314 = vadd.f32 %v5102, %v5275
    %v5315 = vadd.f32 %v5103, %v5278
    %v5316 = vadd.f32 %v5104, %v5283
    %v5317 = vadd.f32 %v5105, %v5286
    %v5318 = vadd.f32 %v5106, %v5291
    %v5319 = vadd.f32 %v5107, %v5294
    %v5320 = vadd.f32 %v5108, %v5299
    %v5321 = vld [vmem:[#allocation3 + $0x2b] sm:$0xff]
    %v5322 = vld [vmem:[#allocation3 + $0x33] sm:$0xff]
    %v5323 = vld [vmem:[#allocation3 + $0x3b] sm:$0xff]
    %v5324 = vld [vmem:[#allocation3 + $0x43] sm:$0xff]
    %v5325 = vld [vmem:[#allocation3 + $0x4b] sm:$0xff]
    %v5326 = vld [vmem:[#allocation3 + $0x53] sm:$0xff]
    %v5327 = vld [vmem:[#allocation3 + $0x5b] sm:$0xff]
    %v5328 = vld [vmem:[#allocation3 + $0x63] sm:$0xff]
    %v5329 = vld [vmem:[#allocation3 + $0x6b] sm:$0xff]
    %v5330 = vld [vmem:[#allocation3 + $0x73] sm:$0xff]
    %v5331 = vld [vmem:[#allocation3 + $0x7b] sm:$0xff]
    %v5332 = vld [vmem:[#allocation3 + $0x83] sm:$0xff]
    %v5333 = vld [vmem:[#allocation3 + $0x8b] sm:$0xff]
    %v5334 = vld [vmem:[#allocation3 + $0x93] sm:$0xff]
    %v5335 = vld [vmem:[#allocation3 + $0x9b] sm:$0xff]
    %v5336 = vld [vmem:[#allocation3 + $0xa3] sm:$0xff]
    %v5337 = vld [vmem:[#allocation3 + $0xab] sm:$0xff]
    %v5338 = vpack.c.bf16 %v5322, %v5321
    %v5339 = vpack.c.bf16 %v5324, %v5323
    %v5340 = vpack.c.bf16 %v5326, %v5325
    %v5341 = vpack.c.bf16 %v5328, %v5327
    %v5342 = vpack.c.bf16 %v5330, %v5329
    %v5343 = vpack.c.bf16 %v5332, %v5331
    %v5344 = vpack.c.bf16 %v5334, %v5333
    %v5345 = vpack.c.bf16 %v5336, %v5335
    %v5346 = vpack.c.bf16 %v5337, %v5337
    %s5347 = scalar_lea.vmem %s2, 1024
    %v5348 = vld [vmem:[%s5347] sm:$0xf]
    %v5349 = vld [vmem:[%s5347 + $0x4] sm:$0xf]
    %v5350 = vld [vmem:[%s5347 + $0x8] sm:$0xf]
    %v5351 = vld [vmem:[%s5347 + $0xc] sm:$0xf]
    %v5352 = vld [vmem:[%s5347 + $0x10] sm:$0xf]
    %v5353 = vld [vmem:[%s5347 + $0x14] sm:$0xf]
    %v5354 = vld [vmem:[%s5347 + $0x18] sm:$0xf]
    %v5355 = vld [vmem:[%s5347 + $0x1c] sm:$0xf]
    %v5356 = vld [vmem:[%s5347 + $0x20] sm:$0xf]
    %v5357 = vld [vmem:[%s5347 + $0x24] sm:$0xf]
    %v5358 = vld [vmem:[%s5347 + $0x28] sm:$0xf]
    %v5359 = vld [vmem:[%s5347 + $0x2c] sm:$0xf]
    %v5360 = vld [vmem:[%s5347 + $0x30] sm:$0xf]
    %v5361 = vld [vmem:[%s5347 + $0x34] sm:$0xf]
    %v5362 = vld [vmem:[%s5347 + $0x38] sm:$0xf]
    %v5363 = vld [vmem:[%s5347 + $0x3c] sm:$0xf]
    %v5380 = vunpack.c.l.b16 %v5348
    %v5381 = vunpack.c.l.b16 %v5349
    %v5382 = vunpack.c.l.b16 %v5350
    %v5383 = vunpack.c.l.b16 %v5351
    %v5384 = vunpack.c.l.b16 %v5352
    %v5385 = vunpack.c.l.b16 %v5353
    %v5386 = vunpack.c.l.b16 %v5354
    %v5387 = vunpack.c.l.b16 %v5355
    %v5388 = vunpack.c.l.b16 %v5356
    %v5389 = vunpack.c.l.b16 %v5357
    %v5390 = vunpack.c.l.b16 %v5358
    %v5391 = vunpack.c.l.b16 %v5359
    %v5392 = vunpack.c.l.b16 %v5360
    %v5393 = vunpack.c.l.b16 %v5361
    %v5394 = vunpack.c.l.b16 %v5362
    %v5395 = vunpack.c.l.b16 %v5363
    %v5396 = vpack.c.b16 %v5381, %v5380
    %v5397 = vpack.c.b16 %v5383, %v5382
    %v5398 = vpack.c.b16 %v5385, %v5384
    %v5399 = vpack.c.b16 %v5387, %v5386
    %v5400 = vpack.c.b16 %v5389, %v5388
    %v5401 = vpack.c.b16 %v5391, %v5390
    %v5402 = vpack.c.b16 %v5393, %v5392
    %v5403 = vpack.c.b16 %v5395, %v5394
    %5412 = vmatprep.subr.bf16.mxu0 0
    %5413 = vmatpush1.bf16.msra.mxu0 %v5403
    %5414 = vmatprep.subr.bf16.mxu0 0
    %5415 = vmatpush1.bf16.msra.mxu0 %v5402
    %5416 = vmatprep.subr.bf16.mxu0 0
    %5417 = vmatpush1.bf16.msra.mxu0 %v5401
    %5418 = vmatprep.subr.bf16.mxu0 0
    %5419 = vmatpush1.bf16.msra.mxu0 %v5400
    %5420 = vmatprep.subr.bf16.mxu0 0
    %5421 = vmatpush1.bf16.msra.mxu0 %v5399
    %5422 = vmatprep.subr.bf16.mxu0 0
    %5423 = vmatpush1.bf16.msra.mxu0 %v5398
    %5424 = vmatprep.subr.bf16.mxu0 0
    %5425 = vmatpush1.bf16.msra.mxu0 %v5397
    %5426 = vmatprep.subr.bf16.mxu0 0
    %5427 = vmatpush1.bf16.msra.mxu0 %v5396
    %5428 = vmatprep.subr.bf16.mxu0 0
    %5429 = vmatpush2.bf16.msra.mxu0 0
    %5430 = vmatprep.subr.bf16.mxu0 0
    %5431 = vmatpush2.bf16.msra.mxu0 0
    %5432 = vmatprep.subr.bf16.mxu0 0
    %5433 = vmatpush2.bf16.msra.mxu0 0
    %5434 = vmatprep.subr.bf16.mxu0 0
    %5435 = vmatpush2.bf16.msra.mxu0 0
    %5436 = vmatprep.subr.bf16.mxu0 0
    %5437 = vmatpush2.bf16.msra.mxu0 0
    %5438 = vmatprep.subr.bf16.mxu0 0
    %5439 = vmatpush2.bf16.msra.mxu0 0
    %5440 = vmatprep.subr.bf16.mxu0 0
    %5441 = vmatpush2.bf16.msra.mxu0 0
    %5442 = vmatprep.subr.bf16.mxu0 0
    %5443 = vmatpush2.bf16.msra.mxu0 0
    %5444 = vmatprep.mubr.bf16.mxu0 0
    %5445 = vmatmul.mubr.bf16.gmra.mxu0 %v5338
    %v5446 = vpop.f32.mrf.mxu0
    %v5447 = vadd.f32 0.0, %v5446
    %v5448 = vpop.f32.mrf.mxu0
    %v5449 = vpop.f32.mrf.mxu0
    %v5450 = vadd.f32 0.0, %v5449
    %v5451 = vpop.f32.mrf.mxu0
    %5452 = vmatprep.mubr.bf16.mxu0 0
    %5453 = vmatmul.mubr.bf16.gmra.mxu0 %v5339
    %v5454 = vpop.f32.mrf.mxu0
    %v5455 = vadd.f32 0.0, %v5454
    %v5456 = vpop.f32.mrf.mxu0
    %v5457 = vpop.f32.mrf.mxu0
    %v5458 = vadd.f32 0.0, %v5457
    %v5459 = vpop.f32.mrf.mxu0
    %5460 = vmatprep.mubr.bf16.mxu0 0
    %5461 = vmatmul.mubr.bf16.gmra.mxu0 %v5340
    %v5462 = vpop.f32.mrf.mxu0
    %v5463 = vadd.f32 0.0, %v5462
    %v5464 = vpop.f32.mrf.mxu0
    %v5465 = vpop.f32.mrf.mxu0
    %v5466 = vadd.f32 0.0, %v5465
    %v5467 = vpop.f32.mrf.mxu0
    %5468 = vmatprep.mubr.bf16.mxu0 0
    %5469 = vmatmul.mubr.bf16.gmra.mxu0 %v5341
    %v5470 = vpop.f32.mrf.mxu0
    %v5471 = vadd.f32 0.0, %v5470
    %v5472 = vpop.f32.mrf.mxu0
    %v5473 = vpop.f32.mrf.mxu0
    %v5474 = vadd.f32 0.0, %v5473
    %v5475 = vpop.f32.mrf.mxu0
    %5476 = vmatprep.mubr.bf16.mxu0 0
    %5477 = vmatmul.mubr.bf16.gmra.mxu0 %v5342
    %v5478 = vpop.f32.mrf.mxu0
    %v5479 = vadd.f32 0.0, %v5478
    %v5480 = vpop.f32.mrf.mxu0
    %v5481 = vpop.f32.mrf.mxu0
    %v5482 = vadd.f32 0.0, %v5481
    %v5483 = vpop.f32.mrf.mxu0
    %5484 = vmatprep.mubr.bf16.mxu0 0
    %5485 = vmatmul.mubr.bf16.gmra.mxu0 %v5343
    %v5486 = vpop.f32.mrf.mxu0
    %v5487 = vadd.f32 0.0, %v5486
    %v5488 = vpop.f32.mrf.mxu0
    %v5489 = vpop.f32.mrf.mxu0
    %v5490 = vadd.f32 0.0, %v5489
    %v5491 = vpop.f32.mrf.mxu0
    %5492 = vmatprep.mubr.bf16.mxu0 0
    %5493 = vmatmul.mubr.bf16.gmra.mxu0 %v5344
    %v5494 = vpop.f32.mrf.mxu0
    %v5495 = vadd.f32 0.0, %v5494
    %v5496 = vpop.f32.mrf.mxu0
    %v5497 = vpop.f32.mrf.mxu0
    %v5498 = vadd.f32 0.0, %v5497
    %v5499 = vpop.f32.mrf.mxu0
    %5500 = vmatprep.mubr.bf16.mxu0 0
    %5501 = vmatmul.mubr.bf16.gmra.mxu0 %v5345
    %v5502 = vpop.f32.mrf.mxu0
    %v5503 = vadd.f32 0.0, %v5502
    %v5504 = vpop.f32.mrf.mxu0
    %v5505 = vpop.f32.mrf.mxu0
    %v5506 = vadd.f32 0.0, %v5505
    %v5507 = vpop.f32.mrf.mxu0
    %5508 = vmatprep.mubr.bf16.mxu0 0
    %5509 = vmatmul.mubr.bf16.gmra.mxu0 %v5346
    %v5510 = vpop.f32.mrf.mxu0
    %v5511 = vadd.f32 0.0, %v5510
    %v5512 = vpop.f32.mrf.mxu0
    %v5513 = vpop.f32.mrf.mxu0
    %v5514 = vpop.f32.mrf.mxu0
    %5515 = vdwg.mxu0
    %v5516 = vadd.f32 %v5304, %v5447
    %v5517 = vadd.f32 %v5305, %v5450
    %v5518 = vadd.f32 %v5306, %v5455
    %v5519 = vadd.f32 %v5307, %v5458
    %v5520 = vadd.f32 %v5308, %v5463
    %v5521 = vadd.f32 %v5309, %v5466
    %v5522 = vadd.f32 %v5310, %v5471
    %v5523 = vadd.f32 %v5311, %v5474
    %v5524 = vadd.f32 %v5312, %v5479
    %v5525 = vadd.f32 %v5313, %v5482
    %v5526 = vadd.f32 %v5314, %v5487
    %v5527 = vadd.f32 %v5315, %v5490
    %v5528 = vadd.f32 %v5316, %v5495
    %v5529 = vadd.f32 %v5317, %v5498
    %v5530 = vadd.f32 %v5318, %v5503
    %v5531 = vadd.f32 %v5319, %v5506
    %v5532 = vadd.f32 %v5320, %v5511
    %v5533 = vld [vmem:[#allocation3 + $0x2c] sm:$0xff]
    %v5534 = vld [vmem:[#allocation3 + $0x34] sm:$0xff]
    %v5535 = vld [vmem:[#allocation3 + $0x3c] sm:$0xff]
    %v5536 = vld [vmem:[#allocation3 + $0x44] sm:$0xff]
    %v5537 = vld [vmem:[#allocation3 + $0x4c] sm:$0xff]
    %v5538 = vld [vmem:[#allocation3 + $0x54] sm:$0xff]
    %v5539 = vld [vmem:[#allocation3 + $0x5c] sm:$0xff]
    %v5540 = vld [vmem:[#allocation3 + $0x64] sm:$0xff]
    %v5541 = vld [vmem:[#allocation3 + $0x6c] sm:$0xff]
    %v5542 = vld [vmem:[#allocation3 + $0x74] sm:$0xff]
    %v5543 = vld [vmem:[#allocation3 + $0x7c] sm:$0xff]
    %v5544 = vld [vmem:[#allocation3 + $0x84] sm:$0xff]
    %v5545 = vld [vmem:[#allocation3 + $0x8c] sm:$0xff]
    %v5546 = vld [vmem:[#allocation3 + $0x94] sm:$0xff]
    %v5547 = vld [vmem:[#allocation3 + $0x9c] sm:$0xff]
    %v5548 = vld [vmem:[#allocation3 + $0xa4] sm:$0xff]
    %v5549 = vld [vmem:[#allocation3 + $0xac] sm:$0xff]
    %v5550 = vpack.c.bf16 %v5534, %v5533
    %v5551 = vpack.c.bf16 %v5536, %v5535
    %v5552 = vpack.c.bf16 %v5538, %v5537
    %v5553 = vpack.c.bf16 %v5540, %v5539
    %v5554 = vpack.c.bf16 %v5542, %v5541
    %v5555 = vpack.c.bf16 %v5544, %v5543
    %v5556 = vpack.c.bf16 %v5546, %v5545
    %v5557 = vpack.c.bf16 %v5548, %v5547
    %v5558 = vpack.c.bf16 %v5549, %v5549
    %s5559 = scalar_lea.vmem %s2, 1088
    %v5560 = vld [vmem:[%s5559] sm:$0xf]
    %v5561 = vld [vmem:[%s5559 + $0x4] sm:$0xf]
    %v5562 = vld [vmem:[%s5559 + $0x8] sm:$0xf]
    %v5563 = vld [vmem:[%s5559 + $0xc] sm:$0xf]
    %v5564 = vld [vmem:[%s5559 + $0x10] sm:$0xf]
    %v5565 = vld [vmem:[%s5559 + $0x14] sm:$0xf]
    %v5566 = vld [vmem:[%s5559 + $0x18] sm:$0xf]
    %v5567 = vld [vmem:[%s5559 + $0x1c] sm:$0xf]
    %v5568 = vld [vmem:[%s5559 + $0x20] sm:$0xf]
    %v5569 = vld [vmem:[%s5559 + $0x24] sm:$0xf]
    %v5570 = vld [vmem:[%s5559 + $0x28] sm:$0xf]
    %v5571 = vld [vmem:[%s5559 + $0x2c] sm:$0xf]
    %v5572 = vld [vmem:[%s5559 + $0x30] sm:$0xf]
    %v5573 = vld [vmem:[%s5559 + $0x34] sm:$0xf]
    %v5574 = vld [vmem:[%s5559 + $0x38] sm:$0xf]
    %v5575 = vld [vmem:[%s5559 + $0x3c] sm:$0xf]
    %v5592 = vunpack.c.l.b16 %v5560
    %v5593 = vunpack.c.l.b16 %v5561
    %v5594 = vunpack.c.l.b16 %v5562
    %v5595 = vunpack.c.l.b16 %v5563
    %v5596 = vunpack.c.l.b16 %v5564
    %v5597 = vunpack.c.l.b16 %v5565
    %v5598 = vunpack.c.l.b16 %v5566
    %v5599 = vunpack.c.l.b16 %v5567
    %v5600 = vunpack.c.l.b16 %v5568
    %v5601 = vunpack.c.l.b16 %v5569
    %v5602 = vunpack.c.l.b16 %v5570
    %v5603 = vunpack.c.l.b16 %v5571
    %v5604 = vunpack.c.l.b16 %v5572
    %v5605 = vunpack.c.l.b16 %v5573
    %v5606 = vunpack.c.l.b16 %v5574
    %v5607 = vunpack.c.l.b16 %v5575
    %v5608 = vpack.c.b16 %v5593, %v5592
    %v5609 = vpack.c.b16 %v5595, %v5594
    %v5610 = vpack.c.b16 %v5597, %v5596
    %v5611 = vpack.c.b16 %v5599, %v5598
    %v5612 = vpack.c.b16 %v5601, %v5600
    %v5613 = vpack.c.b16 %v5603, %v5602
    %v5614 = vpack.c.b16 %v5605, %v5604
    %v5615 = vpack.c.b16 %v5607, %v5606
    %5624 = vmatprep.subr.bf16.mxu0 0
    %5625 = vmatpush1.bf16.msra.mxu0 %v5615
    %5626 = vmatprep.subr.bf16.mxu0 0
    %5627 = vmatpush1.bf16.msra.mxu0 %v5614
    %5628 = vmatprep.subr.bf16.mxu0 0
    %5629 = vmatpush1.bf16.msra.mxu0 %v5613
    %5630 = vmatprep.subr.bf16.mxu0 0
    %5631 = vmatpush1.bf16.msra.mxu0 %v5612
    %5632 = vmatprep.subr.bf16.mxu0 0
    %5633 = vmatpush1.bf16.msra.mxu0 %v5611
    %5634 = vmatprep.subr.bf16.mxu0 0
    %5635 = vmatpush1.bf16.msra.mxu0 %v5610
    %5636 = vmatprep.subr.bf16.mxu0 0
    %5637 = vmatpush1.bf16.msra.mxu0 %v5609
    %5638 = vmatprep.subr.bf16.mxu0 0
    %5639 = vmatpush1.bf16.msra.mxu0 %v5608
    %5640 = vmatprep.subr.bf16.mxu0 0
    %5641 = vmatpush2.bf16.msra.mxu0 0
    %5642 = vmatprep.subr.bf16.mxu0 0
    %5643 = vmatpush2.bf16.msra.mxu0 0
    %5644 = vmatprep.subr.bf16.mxu0 0
    %5645 = vmatpush2.bf16.msra.mxu0 0
    %5646 = vmatprep.subr.bf16.mxu0 0
    %5647 = vmatpush2.bf16.msra.mxu0 0
    %5648 = vmatprep.subr.bf16.mxu0 0
    %5649 = vmatpush2.bf16.msra.mxu0 0
    %5650 = vmatprep.subr.bf16.mxu0 0
    %5651 = vmatpush2.bf16.msra.mxu0 0
    %5652 = vmatprep.subr.bf16.mxu0 0
    %5653 = vmatpush2.bf16.msra.mxu0 0
    %5654 = vmatprep.subr.bf16.mxu0 0
    %5655 = vmatpush2.bf16.msra.mxu0 0
    %5656 = vmatprep.mubr.bf16.mxu0 0
    %5657 = vmatmul.mubr.bf16.gmra.mxu0 %v5550
    %v5658 = vpop.f32.mrf.mxu0
    %v5659 = vadd.f32 0.0, %v5658
    %v5660 = vpop.f32.mrf.mxu0
    %v5661 = vpop.f32.mrf.mxu0
    %v5662 = vadd.f32 0.0, %v5661
    %v5663 = vpop.f32.mrf.mxu0
    %5664 = vmatprep.mubr.bf16.mxu0 0
    %5665 = vmatmul.mubr.bf16.gmra.mxu0 %v5551
    %v5666 = vpop.f32.mrf.mxu0
    %v5667 = vadd.f32 0.0, %v5666
    %v5668 = vpop.f32.mrf.mxu0
    %v5669 = vpop.f32.mrf.mxu0
    %v5670 = vadd.f32 0.0, %v5669
    %v5671 = vpop.f32.mrf.mxu0
    %5672 = vmatprep.mubr.bf16.mxu0 0
    %5673 = vmatmul.mubr.bf16.gmra.mxu0 %v5552
    %v5674 = vpop.f32.mrf.mxu0
    %v5675 = vadd.f32 0.0, %v5674
    %v5676 = vpop.f32.mrf.mxu0
    %v5677 = vpop.f32.mrf.mxu0
    %v5678 = vadd.f32 0.0, %v5677
    %v5679 = vpop.f32.mrf.mxu0
    %5680 = vmatprep.mubr.bf16.mxu0 0
    %5681 = vmatmul.mubr.bf16.gmra.mxu0 %v5553
    %v5682 = vpop.f32.mrf.mxu0
    %v5683 = vadd.f32 0.0, %v5682
    %v5684 = vpop.f32.mrf.mxu0
    %v5685 = vpop.f32.mrf.mxu0
    %v5686 = vadd.f32 0.0, %v5685
    %v5687 = vpop.f32.mrf.mxu0
    %5688 = vmatprep.mubr.bf16.mxu0 0
    %5689 = vmatmul.mubr.bf16.gmra.mxu0 %v5554
    %v5690 = vpop.f32.mrf.mxu0
    %v5691 = vadd.f32 0.0, %v5690
    %v5692 = vpop.f32.mrf.mxu0
    %v5693 = vpop.f32.mrf.mxu0
    %v5694 = vadd.f32 0.0, %v5693
    %v5695 = vpop.f32.mrf.mxu0
    %5696 = vmatprep.mubr.bf16.mxu0 0
    %5697 = vmatmul.mubr.bf16.gmra.mxu0 %v5555
    %v5698 = vpop.f32.mrf.mxu0
    %v5699 = vadd.f32 0.0, %v5698
    %v5700 = vpop.f32.mrf.mxu0
    %v5701 = vpop.f32.mrf.mxu0
    %v5702 = vadd.f32 0.0, %v5701
    %v5703 = vpop.f32.mrf.mxu0
    %5704 = vmatprep.mubr.bf16.mxu0 0
    %5705 = vmatmul.mubr.bf16.gmra.mxu0 %v5556
    %v5706 = vpop.f32.mrf.mxu0
    %v5707 = vadd.f32 0.0, %v5706
    %v5708 = vpop.f32.mrf.mxu0
    %v5709 = vpop.f32.mrf.mxu0
    %v5710 = vadd.f32 0.0, %v5709
    %v5711 = vpop.f32.mrf.mxu0
    %5712 = vmatprep.mubr.bf16.mxu0 0
    %5713 = vmatmul.mubr.bf16.gmra.mxu0 %v5557
    %v5714 = vpop.f32.mrf.mxu0
    %v5715 = vadd.f32 0.0, %v5714
    %v5716 = vpop.f32.mrf.mxu0
    %v5717 = vpop.f32.mrf.mxu0
    %v5718 = vadd.f32 0.0, %v5717
    %v5719 = vpop.f32.mrf.mxu0
    %5720 = vmatprep.mubr.bf16.mxu0 0
    %5721 = vmatmul.mubr.bf16.gmra.mxu0 %v5558
    %v5722 = vpop.f32.mrf.mxu0
    %v5723 = vadd.f32 0.0, %v5722
    %v5724 = vpop.f32.mrf.mxu0
    %v5725 = vpop.f32.mrf.mxu0
    %v5726 = vpop.f32.mrf.mxu0
    %5727 = vdwg.mxu0
    %v5728 = vadd.f32 %v5516, %v5659
    %v5729 = vadd.f32 %v5517, %v5662
    %v5730 = vadd.f32 %v5518, %v5667
    %v5731 = vadd.f32 %v5519, %v5670
    %v5732 = vadd.f32 %v5520, %v5675
    %v5733 = vadd.f32 %v5521, %v5678
    %v5734 = vadd.f32 %v5522, %v5683
    %v5735 = vadd.f32 %v5523, %v5686
    %v5736 = vadd.f32 %v5524, %v5691
    %v5737 = vadd.f32 %v5525, %v5694
    %v5738 = vadd.f32 %v5526, %v5699
    %v5739 = vadd.f32 %v5527, %v5702
    %v5740 = vadd.f32 %v5528, %v5707
    %v5741 = vadd.f32 %v5529, %v5710
    %v5742 = vadd.f32 %v5530, %v5715
    %v5743 = vadd.f32 %v5531, %v5718
    %v5744 = vadd.f32 %v5532, %v5723
    %v5745 = vld [vmem:[#allocation3 + $0x2d] sm:$0xff]
    %v5746 = vld [vmem:[#allocation3 + $0x35] sm:$0xff]
    %v5747 = vld [vmem:[#allocation3 + $0x3d] sm:$0xff]
    %v5748 = vld [vmem:[#allocation3 + $0x45] sm:$0xff]
    %v5749 = vld [vmem:[#allocation3 + $0x4d] sm:$0xff]
    %v5750 = vld [vmem:[#allocation3 + $0x55] sm:$0xff]
    %v5751 = vld [vmem:[#allocation3 + $0x5d] sm:$0xff]
    %v5752 = vld [vmem:[#allocation3 + $0x65] sm:$0xff]
    %v5753 = vld [vmem:[#allocation3 + $0x6d] sm:$0xff]
    %v5754 = vld [vmem:[#allocation3 + $0x75] sm:$0xff]
    %v5755 = vld [vmem:[#allocation3 + $0x7d] sm:$0xff]
    %v5756 = vld [vmem:[#allocation3 + $0x85] sm:$0xff]
    %v5757 = vld [vmem:[#allocation3 + $0x8d] sm:$0xff]
    %v5758 = vld [vmem:[#allocation3 + $0x95] sm:$0xff]
    %v5759 = vld [vmem:[#allocation3 + $0x9d] sm:$0xff]
    %v5760 = vld [vmem:[#allocation3 + $0xa5] sm:$0xff]
    %v5761 = vld [vmem:[#allocation3 + $0xad] sm:$0xff]
    %v5762 = vpack.c.bf16 %v5746, %v5745
    %v5763 = vpack.c.bf16 %v5748, %v5747
    %v5764 = vpack.c.bf16 %v5750, %v5749
    %v5765 = vpack.c.bf16 %v5752, %v5751
    %v5766 = vpack.c.bf16 %v5754, %v5753
    %v5767 = vpack.c.bf16 %v5756, %v5755
    %v5768 = vpack.c.bf16 %v5758, %v5757
    %v5769 = vpack.c.bf16 %v5760, %v5759
    %v5770 = vpack.c.bf16 %v5761, %v5761
    %s5771 = scalar_lea.vmem %s2, 1152
    %v5772 = vld [vmem:[%s5771] sm:$0xf]
    %v5773 = vld [vmem:[%s5771 + $0x4] sm:$0xf]
    %v5774 = vld [vmem:[%s5771 + $0x8] sm:$0xf]
    %v5775 = vld [vmem:[%s5771 + $0xc] sm:$0xf]
    %v5776 = vld [vmem:[%s5771 + $0x10] sm:$0xf]
    %v5777 = vld [vmem:[%s5771 + $0x14] sm:$0xf]
    %v5778 = vld [vmem:[%s5771 + $0x18] sm:$0xf]
    %v5779 = vld [vmem:[%s5771 + $0x1c] sm:$0xf]
    %v5780 = vld [vmem:[%s5771 + $0x20] sm:$0xf]
    %v5781 = vld [vmem:[%s5771 + $0x24] sm:$0xf]
    %v5782 = vld [vmem:[%s5771 + $0x28] sm:$0xf]
    %v5783 = vld [vmem:[%s5771 + $0x2c] sm:$0xf]
    %v5784 = vld [vmem:[%s5771 + $0x30] sm:$0xf]
    %v5785 = vld [vmem:[%s5771 + $0x34] sm:$0xf]
    %v5786 = vld [vmem:[%s5771 + $0x38] sm:$0xf]
    %v5787 = vld [vmem:[%s5771 + $0x3c] sm:$0xf]
    %v5804 = vunpack.c.l.b16 %v5772
    %v5805 = vunpack.c.l.b16 %v5773
    %v5806 = vunpack.c.l.b16 %v5774
    %v5807 = vunpack.c.l.b16 %v5775
    %v5808 = vunpack.c.l.b16 %v5776
    %v5809 = vunpack.c.l.b16 %v5777
    %v5810 = vunpack.c.l.b16 %v5778
    %v5811 = vunpack.c.l.b16 %v5779
    %v5812 = vunpack.c.l.b16 %v5780
    %v5813 = vunpack.c.l.b16 %v5781
    %v5814 = vunpack.c.l.b16 %v5782
    %v5815 = vunpack.c.l.b16 %v5783
    %v5816 = vunpack.c.l.b16 %v5784
    %v5817 = vunpack.c.l.b16 %v5785
    %v5818 = vunpack.c.l.b16 %v5786
    %v5819 = vunpack.c.l.b16 %v5787
    %v5820 = vpack.c.b16 %v5805, %v5804
    %v5821 = vpack.c.b16 %v5807, %v5806
    %v5822 = vpack.c.b16 %v5809, %v5808
    %v5823 = vpack.c.b16 %v5811, %v5810
    %v5824 = vpack.c.b16 %v5813, %v5812
    %v5825 = vpack.c.b16 %v5815, %v5814
    %v5826 = vpack.c.b16 %v5817, %v5816
    %v5827 = vpack.c.b16 %v5819, %v5818
    %5836 = vmatprep.subr.bf16.mxu0 0
    %5837 = vmatpush1.bf16.msra.mxu0 %v5827
    %5838 = vmatprep.subr.bf16.mxu0 0
    %5839 = vmatpush1.bf16.msra.mxu0 %v5826
    %5840 = vmatprep.subr.bf16.mxu0 0
    %5841 = vmatpush1.bf16.msra.mxu0 %v5825
    %5842 = vmatprep.subr.bf16.mxu0 0
    %5843 = vmatpush1.bf16.msra.mxu0 %v5824
    %5844 = vmatprep.subr.bf16.mxu0 0
    %5845 = vmatpush1.bf16.msra.mxu0 %v5823
    %5846 = vmatprep.subr.bf16.mxu0 0
    %5847 = vmatpush1.bf16.msra.mxu0 %v5822
    %5848 = vmatprep.subr.bf16.mxu0 0
    %5849 = vmatpush1.bf16.msra.mxu0 %v5821
    %5850 = vmatprep.subr.bf16.mxu0 0
    %5851 = vmatpush1.bf16.msra.mxu0 %v5820
    %5852 = vmatprep.subr.bf16.mxu0 0
    %5853 = vmatpush2.bf16.msra.mxu0 0
    %5854 = vmatprep.subr.bf16.mxu0 0
    %5855 = vmatpush2.bf16.msra.mxu0 0
    %5856 = vmatprep.subr.bf16.mxu0 0
    %5857 = vmatpush2.bf16.msra.mxu0 0
    %5858 = vmatprep.subr.bf16.mxu0 0
    %5859 = vmatpush2.bf16.msra.mxu0 0
    %5860 = vmatprep.subr.bf16.mxu0 0
    %5861 = vmatpush2.bf16.msra.mxu0 0
    %5862 = vmatprep.subr.bf16.mxu0 0
    %5863 = vmatpush2.bf16.msra.mxu0 0
    %5864 = vmatprep.subr.bf16.mxu0 0
    %5865 = vmatpush2.bf16.msra.mxu0 0
    %5866 = vmatprep.subr.bf16.mxu0 0
    %5867 = vmatpush2.bf16.msra.mxu0 0
    %5868 = vmatprep.mubr.bf16.mxu0 0
    %5869 = vmatmul.mubr.bf16.gmra.mxu0 %v5762
    %v5870 = vpop.f32.mrf.mxu0
    %v5871 = vadd.f32 0.0, %v5870
    %v5872 = vpop.f32.mrf.mxu0
    %v5873 = vpop.f32.mrf.mxu0
    %v5874 = vadd.f32 0.0, %v5873
    %v5875 = vpop.f32.mrf.mxu0
    %5876 = vmatprep.mubr.bf16.mxu0 0
    %5877 = vmatmul.mubr.bf16.gmra.mxu0 %v5763
    %v5878 = vpop.f32.mrf.mxu0
    %v5879 = vadd.f32 0.0, %v5878
    %v5880 = vpop.f32.mrf.mxu0
    %v5881 = vpop.f32.mrf.mxu0
    %v5882 = vadd.f32 0.0, %v5881
    %v5883 = vpop.f32.mrf.mxu0
    %5884 = vmatprep.mubr.bf16.mxu0 0
    %5885 = vmatmul.mubr.bf16.gmra.mxu0 %v5764
    %v5886 = vpop.f32.mrf.mxu0
    %v5887 = vadd.f32 0.0, %v5886
    %v5888 = vpop.f32.mrf.mxu0
    %v5889 = vpop.f32.mrf.mxu0
    %v5890 = vadd.f32 0.0, %v5889
    %v5891 = vpop.f32.mrf.mxu0
    %5892 = vmatprep.mubr.bf16.mxu0 0
    %5893 = vmatmul.mubr.bf16.gmra.mxu0 %v5765
    %v5894 = vpop.f32.mrf.mxu0
    %v5895 = vadd.f32 0.0, %v5894
    %v5896 = vpop.f32.mrf.mxu0
    %v5897 = vpop.f32.mrf.mxu0
    %v5898 = vadd.f32 0.0, %v5897
    %v5899 = vpop.f32.mrf.mxu0
    %5900 = vmatprep.mubr.bf16.mxu0 0
    %5901 = vmatmul.mubr.bf16.gmra.mxu0 %v5766
    %v5902 = vpop.f32.mrf.mxu0
    %v5903 = vadd.f32 0.0, %v5902
    %v5904 = vpop.f32.mrf.mxu0
    %v5905 = vpop.f32.mrf.mxu0
    %v5906 = vadd.f32 0.0, %v5905
    %v5907 = vpop.f32.mrf.mxu0
    %5908 = vmatprep.mubr.bf16.mxu0 0
    %5909 = vmatmul.mubr.bf16.gmra.mxu0 %v5767
    %v5910 = vpop.f32.mrf.mxu0
    %v5911 = vadd.f32 0.0, %v5910
    %v5912 = vpop.f32.mrf.mxu0
    %v5913 = vpop.f32.mrf.mxu0
    %v5914 = vadd.f32 0.0, %v5913
    %v5915 = vpop.f32.mrf.mxu0
    %5916 = vmatprep.mubr.bf16.mxu0 0
    %5917 = vmatmul.mubr.bf16.gmra.mxu0 %v5768
    %v5918 = vpop.f32.mrf.mxu0
    %v5919 = vadd.f32 0.0, %v5918
    %v5920 = vpop.f32.mrf.mxu0
    %v5921 = vpop.f32.mrf.mxu0
    %v5922 = vadd.f32 0.0, %v5921
    %v5923 = vpop.f32.mrf.mxu0
    %5924 = vmatprep.mubr.bf16.mxu0 0
    %5925 = vmatmul.mubr.bf16.gmra.mxu0 %v5769
    %v5926 = vpop.f32.mrf.mxu0
    %v5927 = vadd.f32 0.0, %v5926
    %v5928 = vpop.f32.mrf.mxu0
    %v5929 = vpop.f32.mrf.mxu0
    %v5930 = vadd.f32 0.0, %v5929
    %v5931 = vpop.f32.mrf.mxu0
    %5932 = vmatprep.mubr.bf16.mxu0 0
    %5933 = vmatmul.mubr.bf16.gmra.mxu0 %v5770
    %v5934 = vpop.f32.mrf.mxu0
    %v5935 = vadd.f32 0.0, %v5934
    %v5936 = vpop.f32.mrf.mxu0
    %v5937 = vpop.f32.mrf.mxu0
    %v5938 = vpop.f32.mrf.mxu0
    %5939 = vdwg.mxu0
    %v5940 = vadd.f32 %v5728, %v5871
    %v5941 = vadd.f32 %v5729, %v5874
    %v5942 = vadd.f32 %v5730, %v5879
    %v5943 = vadd.f32 %v5731, %v5882
    %v5944 = vadd.f32 %v5732, %v5887
    %v5945 = vadd.f32 %v5733, %v5890
    %v5946 = vadd.f32 %v5734, %v5895
    %v5947 = vadd.f32 %v5735, %v5898
    %v5948 = vadd.f32 %v5736, %v5903
    %v5949 = vadd.f32 %v5737, %v5906
    %v5950 = vadd.f32 %v5738, %v5911
    %v5951 = vadd.f32 %v5739, %v5914
    %v5952 = vadd.f32 %v5740, %v5919
    %v5953 = vadd.f32 %v5741, %v5922
    %v5954 = vadd.f32 %v5742, %v5927
    %v5955 = vadd.f32 %v5743, %v5930
    %v5956 = vadd.f32 %v5744, %v5935
    %v5957 = vld [vmem:[#allocation3 + $0x2e] sm:$0xff]
    %v5958 = vld [vmem:[#allocation3 + $0x36] sm:$0xff]
    %v5959 = vld [vmem:[#allocation3 + $0x3e] sm:$0xff]
    %v5960 = vld [vmem:[#allocation3 + $0x46] sm:$0xff]
    %v5961 = vld [vmem:[#allocation3 + $0x4e] sm:$0xff]
    %v5962 = vld [vmem:[#allocation3 + $0x56] sm:$0xff]
    %v5963 = vld [vmem:[#allocation3 + $0x5e] sm:$0xff]
    %v5964 = vld [vmem:[#allocation3 + $0x66] sm:$0xff]
    %v5965 = vld [vmem:[#allocation3 + $0x6e] sm:$0xff]
    %v5966 = vld [vmem:[#allocation3 + $0x76] sm:$0xff]
    %v5967 = vld [vmem:[#allocation3 + $0x7e] sm:$0xff]
    %v5968 = vld [vmem:[#allocation3 + $0x86] sm:$0xff]
    %v5969 = vld [vmem:[#allocation3 + $0x8e] sm:$0xff]
    %v5970 = vld [vmem:[#allocation3 + $0x96] sm:$0xff]
    %v5971 = vld [vmem:[#allocation3 + $0x9e] sm:$0xff]
    %v5972 = vld [vmem:[#allocation3 + $0xa6] sm:$0xff]
    %v5973 = vld [vmem:[#allocation3 + $0xae] sm:$0xff]
    %v5974 = vpack.c.bf16 %v5958, %v5957
    %v5975 = vpack.c.bf16 %v5960, %v5959
    %v5976 = vpack.c.bf16 %v5962, %v5961
    %v5977 = vpack.c.bf16 %v5964, %v5963
    %v5978 = vpack.c.bf16 %v5966, %v5965
    %v5979 = vpack.c.bf16 %v5968, %v5967
    %v5980 = vpack.c.bf16 %v5970, %v5969
    %v5981 = vpack.c.bf16 %v5972, %v5971
    %v5982 = vpack.c.bf16 %v5973, %v5973
    %s5983 = scalar_lea.vmem %s2, 1216
    %v5984 = vld [vmem:[%s5983] sm:$0xf]
    %v5985 = vld [vmem:[%s5983 + $0x4] sm:$0xf]
    %v5986 = vld [vmem:[%s5983 + $0x8] sm:$0xf]
    %v5987 = vld [vmem:[%s5983 + $0xc] sm:$0xf]
    %v5988 = vld [vmem:[%s5983 + $0x10] sm:$0xf]
    %v5989 = vld [vmem:[%s5983 + $0x14] sm:$0xf]
    %v5990 = vld [vmem:[%s5983 + $0x18] sm:$0xf]
    %v5991 = vld [vmem:[%s5983 + $0x1c] sm:$0xf]
    %v5992 = vld [vmem:[%s5983 + $0x20] sm:$0xf]
    %v5993 = vld [vmem:[%s5983 + $0x24] sm:$0xf]
    %v5994 = vld [vmem:[%s5983 + $0x28] sm:$0xf]
    %v5995 = vld [vmem:[%s5983 + $0x2c] sm:$0xf]
    %v5996 = vld [vmem:[%s5983 + $0x30] sm:$0xf]
    %v5997 = vld [vmem:[%s5983 + $0x34] sm:$0xf]
    %v5998 = vld [vmem:[%s5983 + $0x38] sm:$0xf]
    %v5999 = vld [vmem:[%s5983 + $0x3c] sm:$0xf]
    %v6016 = vunpack.c.l.b16 %v5984
    %v6017 = vunpack.c.l.b16 %v5985
    %v6018 = vunpack.c.l.b16 %v5986
    %v6019 = vunpack.c.l.b16 %v5987
    %v6020 = vunpack.c.l.b16 %v5988
    %v6021 = vunpack.c.l.b16 %v5989
    %v6022 = vunpack.c.l.b16 %v5990
    %v6023 = vunpack.c.l.b16 %v5991
    %v6024 = vunpack.c.l.b16 %v5992
    %v6025 = vunpack.c.l.b16 %v5993
    %v6026 = vunpack.c.l.b16 %v5994
    %v6027 = vunpack.c.l.b16 %v5995
    %v6028 = vunpack.c.l.b16 %v5996
    %v6029 = vunpack.c.l.b16 %v5997
    %v6030 = vunpack.c.l.b16 %v5998
    %v6031 = vunpack.c.l.b16 %v5999
    %v6032 = vpack.c.b16 %v6017, %v6016
    %v6033 = vpack.c.b16 %v6019, %v6018
    %v6034 = vpack.c.b16 %v6021, %v6020
    %v6035 = vpack.c.b16 %v6023, %v6022
    %v6036 = vpack.c.b16 %v6025, %v6024
    %v6037 = vpack.c.b16 %v6027, %v6026
    %v6038 = vpack.c.b16 %v6029, %v6028
    %v6039 = vpack.c.b16 %v6031, %v6030
    %6048 = vmatprep.subr.bf16.mxu0 0
    %6049 = vmatpush1.bf16.msra.mxu0 %v6039
    %6050 = vmatprep.subr.bf16.mxu0 0
    %6051 = vmatpush1.bf16.msra.mxu0 %v6038
    %6052 = vmatprep.subr.bf16.mxu0 0
    %6053 = vmatpush1.bf16.msra.mxu0 %v6037
    %6054 = vmatprep.subr.bf16.mxu0 0
    %6055 = vmatpush1.bf16.msra.mxu0 %v6036
    %6056 = vmatprep.subr.bf16.mxu0 0
    %6057 = vmatpush1.bf16.msra.mxu0 %v6035
    %6058 = vmatprep.subr.bf16.mxu0 0
    %6059 = vmatpush1.bf16.msra.mxu0 %v6034
    %6060 = vmatprep.subr.bf16.mxu0 0
    %6061 = vmatpush1.bf16.msra.mxu0 %v6033
    %6062 = vmatprep.subr.bf16.mxu0 0
    %6063 = vmatpush1.bf16.msra.mxu0 %v6032
    %6064 = vmatprep.subr.bf16.mxu0 0
    %6065 = vmatpush2.bf16.msra.mxu0 0
    %6066 = vmatprep.subr.bf16.mxu0 0
    %6067 = vmatpush2.bf16.msra.mxu0 0
    %6068 = vmatprep.subr.bf16.mxu0 0
    %6069 = vmatpush2.bf16.msra.mxu0 0
    %6070 = vmatprep.subr.bf16.mxu0 0
    %6071 = vmatpush2.bf16.msra.mxu0 0
    %6072 = vmatprep.subr.bf16.mxu0 0
    %6073 = vmatpush2.bf16.msra.mxu0 0
    %6074 = vmatprep.subr.bf16.mxu0 0
    %6075 = vmatpush2.bf16.msra.mxu0 0
    %6076 = vmatprep.subr.bf16.mxu0 0
    %6077 = vmatpush2.bf16.msra.mxu0 0
    %6078 = vmatprep.subr.bf16.mxu0 0
    %6079 = vmatpush2.bf16.msra.mxu0 0
    %6080 = vmatprep.mubr.bf16.mxu0 0
    %6081 = vmatmul.mubr.bf16.gmra.mxu0 %v5974
    %v6082 = vpop.f32.mrf.mxu0
    %v6083 = vadd.f32 0.0, %v6082
    %v6084 = vpop.f32.mrf.mxu0
    %v6085 = vpop.f32.mrf.mxu0
    %v6086 = vadd.f32 0.0, %v6085
    %v6087 = vpop.f32.mrf.mxu0
    %6088 = vmatprep.mubr.bf16.mxu0 0
    %6089 = vmatmul.mubr.bf16.gmra.mxu0 %v5975
    %v6090 = vpop.f32.mrf.mxu0
    %v6091 = vadd.f32 0.0, %v6090
    %v6092 = vpop.f32.mrf.mxu0
    %v6093 = vpop.f32.mrf.mxu0
    %v6094 = vadd.f32 0.0, %v6093
    %v6095 = vpop.f32.mrf.mxu0
    %6096 = vmatprep.mubr.bf16.mxu0 0
    %6097 = vmatmul.mubr.bf16.gmra.mxu0 %v5976
    %v6098 = vpop.f32.mrf.mxu0
    %v6099 = vadd.f32 0.0, %v6098
    %v6100 = vpop.f32.mrf.mxu0
    %v6101 = vpop.f32.mrf.mxu0
    %v6102 = vadd.f32 0.0, %v6101
    %v6103 = vpop.f32.mrf.mxu0
    %6104 = vmatprep.mubr.bf16.mxu0 0
    %6105 = vmatmul.mubr.bf16.gmra.mxu0 %v5977
    %v6106 = vpop.f32.mrf.mxu0
    %v6107 = vadd.f32 0.0, %v6106
    %v6108 = vpop.f32.mrf.mxu0
    %v6109 = vpop.f32.mrf.mxu0
    %v6110 = vadd.f32 0.0, %v6109
    %v6111 = vpop.f32.mrf.mxu0
    %6112 = vmatprep.mubr.bf16.mxu0 0
    %6113 = vmatmul.mubr.bf16.gmra.mxu0 %v5978
    %v6114 = vpop.f32.mrf.mxu0
    %v6115 = vadd.f32 0.0, %v6114
    %v6116 = vpop.f32.mrf.mxu0
    %v6117 = vpop.f32.mrf.mxu0
    %v6118 = vadd.f32 0.0, %v6117
    %v6119 = vpop.f32.mrf.mxu0
    %6120 = vmatprep.mubr.bf16.mxu0 0
    %6121 = vmatmul.mubr.bf16.gmra.mxu0 %v5979
    %v6122 = vpop.f32.mrf.mxu0
    %v6123 = vadd.f32 0.0, %v6122
    %v6124 = vpop.f32.mrf.mxu0
    %v6125 = vpop.f32.mrf.mxu0
    %v6126 = vadd.f32 0.0, %v6125
    %v6127 = vpop.f32.mrf.mxu0
    %6128 = vmatprep.mubr.bf16.mxu0 0
    %6129 = vmatmul.mubr.bf16.gmra.mxu0 %v5980
    %v6130 = vpop.f32.mrf.mxu0
    %v6131 = vadd.f32 0.0, %v6130
    %v6132 = vpop.f32.mrf.mxu0
    %v6133 = vpop.f32.mrf.mxu0
    %v6134 = vadd.f32 0.0, %v6133
    %v6135 = vpop.f32.mrf.mxu0
    %6136 = vmatprep.mubr.bf16.mxu0 0
    %6137 = vmatmul.mubr.bf16.gmra.mxu0 %v5981
    %v6138 = vpop.f32.mrf.mxu0
    %v6139 = vadd.f32 0.0, %v6138
    %v6140 = vpop.f32.mrf.mxu0
    %v6141 = vpop.f32.mrf.mxu0
    %v6142 = vadd.f32 0.0, %v6141
    %v6143 = vpop.f32.mrf.mxu0
    %6144 = vmatprep.mubr.bf16.mxu0 0
    %6145 = vmatmul.mubr.bf16.gmra.mxu0 %v5982
    %v6146 = vpop.f32.mrf.mxu0
    %v6147 = vadd.f32 0.0, %v6146
    %v6148 = vpop.f32.mrf.mxu0
    %v6149 = vpop.f32.mrf.mxu0
    %v6150 = vpop.f32.mrf.mxu0
    %6151 = vdwg.mxu0
    %v6152 = vadd.f32 %v5940, %v6083
    %v6153 = vadd.f32 %v5941, %v6086
    %v6154 = vadd.f32 %v5942, %v6091
    %v6155 = vadd.f32 %v5943, %v6094
    %v6156 = vadd.f32 %v5944, %v6099
    %v6157 = vadd.f32 %v5945, %v6102
    %v6158 = vadd.f32 %v5946, %v6107
    %v6159 = vadd.f32 %v5947, %v6110
    %v6160 = vadd.f32 %v5948, %v6115
    %v6161 = vadd.f32 %v5949, %v6118
    %v6162 = vadd.f32 %v5950, %v6123
    %v6163 = vadd.f32 %v5951, %v6126
    %v6164 = vadd.f32 %v5952, %v6131
    %v6165 = vadd.f32 %v5953, %v6134
    %v6166 = vadd.f32 %v5954, %v6139
    %v6167 = vadd.f32 %v5955, %v6142
    %v6168 = vadd.f32 %v5956, %v6147
    %v6169 = vld [vmem:[#allocation3 + $0x38] sm:$0xff]
    %v6170 = vld [vmem:[#allocation3 + $0x40] sm:$0xff]
    %v6171 = vld [vmem:[#allocation3 + $0x48] sm:$0xff]
    %v6172 = vld [vmem:[#allocation3 + $0x50] sm:$0xff]
    %v6173 = vld [vmem:[#allocation3 + $0x58] sm:$0xff]
    %v6174 = vld [vmem:[#allocation3 + $0x60] sm:$0xff]
    %v6175 = vld [vmem:[#allocation3 + $0x68] sm:$0xff]
    %v6176 = vld [vmem:[#allocation3 + $0x70] sm:$0xff]
    %v6177 = vld [vmem:[#allocation3 + $0x78] sm:$0xff]
    %v6178 = vld [vmem:[#allocation3 + $0x80] sm:$0xff]
    %v6179 = vld [vmem:[#allocation3 + $0x88] sm:$0xff]
    %v6180 = vld [vmem:[#allocation3 + $0x90] sm:$0xff]
    %v6181 = vld [vmem:[#allocation3 + $0x98] sm:$0xff]
    %v6182 = vld [vmem:[#allocation3 + $0xa0] sm:$0xff]
    %v6183 = vld [vmem:[#allocation3 + $0xa8] sm:$0xff]
    %v6184 = vld [vmem:[#allocation3 + $0xb0] sm:$0xff]
    %v6185 = vld [vmem:[#allocation3 + $0xb8] sm:$0xff]
    %v6186 = vpack.c.bf16 %v6170, %v6169
    %v6187 = vpack.c.bf16 %v6172, %v6171
    %v6188 = vpack.c.bf16 %v6174, %v6173
    %v6189 = vpack.c.bf16 %v6176, %v6175
    %v6190 = vpack.c.bf16 %v6178, %v6177
    %v6191 = vpack.c.bf16 %v6180, %v6179
    %v6192 = vpack.c.bf16 %v6182, %v6181
    %v6193 = vpack.c.bf16 %v6184, %v6183
    %v6194 = vpack.c.bf16 %v6185, %v6185
    %s6195 = scalar_lea.vmem %s2, 1280
    %v6196 = vld [vmem:[%s6195] sm:$0xf]
    %v6197 = vld [vmem:[%s6195 + $0x4] sm:$0xf]
    %v6198 = vld [vmem:[%s6195 + $0x8] sm:$0xf]
    %v6199 = vld [vmem:[%s6195 + $0xc] sm:$0xf]
    %v6200 = vld [vmem:[%s6195 + $0x10] sm:$0xf]
    %v6201 = vld [vmem:[%s6195 + $0x14] sm:$0xf]
    %v6202 = vld [vmem:[%s6195 + $0x18] sm:$0xf]
    %v6203 = vld [vmem:[%s6195 + $0x1c] sm:$0xf]
    %v6204 = vld [vmem:[%s6195 + $0x20] sm:$0xf]
    %v6205 = vld [vmem:[%s6195 + $0x24] sm:$0xf]
    %v6206 = vld [vmem:[%s6195 + $0x28] sm:$0xf]
    %v6207 = vld [vmem:[%s6195 + $0x2c] sm:$0xf]
    %v6208 = vld [vmem:[%s6195 + $0x30] sm:$0xf]
    %v6209 = vld [vmem:[%s6195 + $0x34] sm:$0xf]
    %v6210 = vld [vmem:[%s6195 + $0x38] sm:$0xf]
    %v6211 = vld [vmem:[%s6195 + $0x3c] sm:$0xf]
    %v6228 = vunpack.c.l.b16 %v6196
    %v6229 = vunpack.c.l.b16 %v6197
    %v6230 = vunpack.c.l.b16 %v6198
    %v6231 = vunpack.c.l.b16 %v6199
    %v6232 = vunpack.c.l.b16 %v6200
    %v6233 = vunpack.c.l.b16 %v6201
    %v6234 = vunpack.c.l.b16 %v6202
    %v6235 = vunpack.c.l.b16 %v6203
    %v6236 = vunpack.c.l.b16 %v6204
    %v6237 = vunpack.c.l.b16 %v6205
    %v6238 = vunpack.c.l.b16 %v6206
    %v6239 = vunpack.c.l.b16 %v6207
    %v6240 = vunpack.c.l.b16 %v6208
    %v6241 = vunpack.c.l.b16 %v6209
    %v6242 = vunpack.c.l.b16 %v6210
    %v6243 = vunpack.c.l.b16 %v6211
    %v6244 = vpack.c.b16 %v6229, %v6228
    %v6245 = vpack.c.b16 %v6231, %v6230
    %v6246 = vpack.c.b16 %v6233, %v6232
    %v6247 = vpack.c.b16 %v6235, %v6234
    %v6248 = vpack.c.b16 %v6237, %v6236
    %v6249 = vpack.c.b16 %v6239, %v6238
    %v6250 = vpack.c.b16 %v6241, %v6240
    %v6251 = vpack.c.b16 %v6243, %v6242
    %6260 = vmatprep.subr.bf16.mxu0 0
    %6261 = vmatpush1.bf16.msra.mxu0 %v6251
    %6262 = vmatprep.subr.bf16.mxu0 0
    %6263 = vmatpush1.bf16.msra.mxu0 %v6250
    %6264 = vmatprep.subr.bf16.mxu0 0
    %6265 = vmatpush1.bf16.msra.mxu0 %v6249
    %6266 = vmatprep.subr.bf16.mxu0 0
    %6267 = vmatpush1.bf16.msra.mxu0 %v6248
    %6268 = vmatprep.subr.bf16.mxu0 0
    %6269 = vmatpush1.bf16.msra.mxu0 %v6247
    %6270 = vmatprep.subr.bf16.mxu0 0
    %6271 = vmatpush1.bf16.msra.mxu0 %v6246
    %6272 = vmatprep.subr.bf16.mxu0 0
    %6273 = vmatpush1.bf16.msra.mxu0 %v6245
    %6274 = vmatprep.subr.bf16.mxu0 0
    %6275 = vmatpush1.bf16.msra.mxu0 %v6244
    %6276 = vmatprep.subr.bf16.mxu0 0
    %6277 = vmatpush2.bf16.msra.mxu0 0
    %6278 = vmatprep.subr.bf16.mxu0 0
    %6279 = vmatpush2.bf16.msra.mxu0 0
    %6280 = vmatprep.subr.bf16.mxu0 0
    %6281 = vmatpush2.bf16.msra.mxu0 0
    %6282 = vmatprep.subr.bf16.mxu0 0
    %6283 = vmatpush2.bf16.msra.mxu0 0
    %6284 = vmatprep.subr.bf16.mxu0 0
    %6285 = vmatpush2.bf16.msra.mxu0 0
    %6286 = vmatprep.subr.bf16.mxu0 0
    %6287 = vmatpush2.bf16.msra.mxu0 0
    %6288 = vmatprep.subr.bf16.mxu0 0
    %6289 = vmatpush2.bf16.msra.mxu0 0
    %6290 = vmatprep.subr.bf16.mxu0 0
    %6291 = vmatpush2.bf16.msra.mxu0 0
    %6292 = vmatprep.mubr.bf16.mxu0 0
    %6293 = vmatmul.mubr.bf16.gmra.mxu0 %v6186
    %v6294 = vpop.f32.mrf.mxu0
    %v6295 = vadd.f32 0.0, %v6294
    %v6296 = vpop.f32.mrf.mxu0
    %v6297 = vpop.f32.mrf.mxu0
    %v6298 = vadd.f32 0.0, %v6297
    %v6299 = vpop.f32.mrf.mxu0
    %6300 = vmatprep.mubr.bf16.mxu0 0
    %6301 = vmatmul.mubr.bf16.gmra.mxu0 %v6187
    %v6302 = vpop.f32.mrf.mxu0
    %v6303 = vadd.f32 0.0, %v6302
    %v6304 = vpop.f32.mrf.mxu0
    %v6305 = vpop.f32.mrf.mxu0
    %v6306 = vadd.f32 0.0, %v6305
    %v6307 = vpop.f32.mrf.mxu0
    %6308 = vmatprep.mubr.bf16.mxu0 0
    %6309 = vmatmul.mubr.bf16.gmra.mxu0 %v6188
    %v6310 = vpop.f32.mrf.mxu0
    %v6311 = vadd.f32 0.0, %v6310
    %v6312 = vpop.f32.mrf.mxu0
    %v6313 = vpop.f32.mrf.mxu0
    %v6314 = vadd.f32 0.0, %v6313
    %v6315 = vpop.f32.mrf.mxu0
    %6316 = vmatprep.mubr.bf16.mxu0 0
    %6317 = vmatmul.mubr.bf16.gmra.mxu0 %v6189
    %v6318 = vpop.f32.mrf.mxu0
    %v6319 = vadd.f32 0.0, %v6318
    %v6320 = vpop.f32.mrf.mxu0
    %v6321 = vpop.f32.mrf.mxu0
    %v6322 = vadd.f32 0.0, %v6321
    %v6323 = vpop.f32.mrf.mxu0
    %6324 = vmatprep.mubr.bf16.mxu0 0
    %6325 = vmatmul.mubr.bf16.gmra.mxu0 %v6190
    %v6326 = vpop.f32.mrf.mxu0
    %v6327 = vadd.f32 0.0, %v6326
    %v6328 = vpop.f32.mrf.mxu0
    %v6329 = vpop.f32.mrf.mxu0
    %v6330 = vadd.f32 0.0, %v6329
    %v6331 = vpop.f32.mrf.mxu0
    %6332 = vmatprep.mubr.bf16.mxu0 0
    %6333 = vmatmul.mubr.bf16.gmra.mxu0 %v6191
    %v6334 = vpop.f32.mrf.mxu0
    %v6335 = vadd.f32 0.0, %v6334
    %v6336 = vpop.f32.mrf.mxu0
    %v6337 = vpop.f32.mrf.mxu0
    %v6338 = vadd.f32 0.0, %v6337
    %v6339 = vpop.f32.mrf.mxu0
    %6340 = vmatprep.mubr.bf16.mxu0 0
    %6341 = vmatmul.mubr.bf16.gmra.mxu0 %v6192
    %v6342 = vpop.f32.mrf.mxu0
    %v6343 = vadd.f32 0.0, %v6342
    %v6344 = vpop.f32.mrf.mxu0
    %v6345 = vpop.f32.mrf.mxu0
    %v6346 = vadd.f32 0.0, %v6345
    %v6347 = vpop.f32.mrf.mxu0
    %6348 = vmatprep.mubr.bf16.mxu0 0
    %6349 = vmatmul.mubr.bf16.gmra.mxu0 %v6193
    %v6350 = vpop.f32.mrf.mxu0
    %v6351 = vadd.f32 0.0, %v6350
    %v6352 = vpop.f32.mrf.mxu0
    %v6353 = vpop.f32.mrf.mxu0
    %v6354 = vadd.f32 0.0, %v6353
    %v6355 = vpop.f32.mrf.mxu0
    %6356 = vmatprep.mubr.bf16.mxu0 0
    %6357 = vmatmul.mubr.bf16.gmra.mxu0 %v6194
    %v6358 = vpop.f32.mrf.mxu0
    %v6359 = vadd.f32 0.0, %v6358
    %v6360 = vpop.f32.mrf.mxu0
    %v6361 = vpop.f32.mrf.mxu0
    %v6362 = vpop.f32.mrf.mxu0
    %6363 = vdwg.mxu0
    %v6364 = vadd.f32 %v6152, %v6295
    %v6365 = vadd.f32 %v6153, %v6298
    %v6366 = vadd.f32 %v6154, %v6303
    %v6367 = vadd.f32 %v6155, %v6306
    %v6368 = vadd.f32 %v6156, %v6311
    %v6369 = vadd.f32 %v6157, %v6314
    %v6370 = vadd.f32 %v6158, %v6319
    %v6371 = vadd.f32 %v6159, %v6322
    %v6372 = vadd.f32 %v6160, %v6327
    %v6373 = vadd.f32 %v6161, %v6330
    %v6374 = vadd.f32 %v6162, %v6335
    %v6375 = vadd.f32 %v6163, %v6338
    %v6376 = vadd.f32 %v6164, %v6343
    %v6377 = vadd.f32 %v6165, %v6346
    %v6378 = vadd.f32 %v6166, %v6351
    %v6379 = vadd.f32 %v6167, %v6354
    %v6380 = vadd.f32 %v6168, %v6359
    %v6381 = vld [vmem:[#allocation3 + $0x39] sm:$0xff]
    %v6382 = vld [vmem:[#allocation3 + $0x41] sm:$0xff]
    %v6383 = vld [vmem:[#allocation3 + $0x49] sm:$0xff]
    %v6384 = vld [vmem:[#allocation3 + $0x51] sm:$0xff]
    %v6385 = vld [vmem:[#allocation3 + $0x59] sm:$0xff]
    %v6386 = vld [vmem:[#allocation3 + $0x61] sm:$0xff]
    %v6387 = vld [vmem:[#allocation3 + $0x69] sm:$0xff]
    %v6388 = vld [vmem:[#allocation3 + $0x71] sm:$0xff]
    %v6389 = vld [vmem:[#allocation3 + $0x79] sm:$0xff]
    %v6390 = vld [vmem:[#allocation3 + $0x81] sm:$0xff]
    %v6391 = vld [vmem:[#allocation3 + $0x89] sm:$0xff]
    %v6392 = vld [vmem:[#allocation3 + $0x91] sm:$0xff]
    %v6393 = vld [vmem:[#allocation3 + $0x99] sm:$0xff]
    %v6394 = vld [vmem:[#allocation3 + $0xa1] sm:$0xff]
    %v6395 = vld [vmem:[#allocation3 + $0xa9] sm:$0xff]
    %v6396 = vld [vmem:[#allocation3 + $0xb1] sm:$0xff]
    %v6397 = vld [vmem:[#allocation3 + $0xb9] sm:$0xff]
    %v6398 = vpack.c.bf16 %v6382, %v6381
    %v6399 = vpack.c.bf16 %v6384, %v6383
    %v6400 = vpack.c.bf16 %v6386, %v6385
    %v6401 = vpack.c.bf16 %v6388, %v6387
    %v6402 = vpack.c.bf16 %v6390, %v6389
    %v6403 = vpack.c.bf16 %v6392, %v6391
    %v6404 = vpack.c.bf16 %v6394, %v6393
    %v6405 = vpack.c.bf16 %v6396, %v6395
    %v6406 = vpack.c.bf16 %v6397, %v6397
    %s6407 = scalar_lea.vmem %s2, 1344
    %v6408 = vld [vmem:[%s6407] sm:$0xf]
    %v6409 = vld [vmem:[%s6407 + $0x4] sm:$0xf]
    %v6410 = vld [vmem:[%s6407 + $0x8] sm:$0xf]
    %v6411 = vld [vmem:[%s6407 + $0xc] sm:$0xf]
    %v6412 = vld [vmem:[%s6407 + $0x10] sm:$0xf]
    %v6413 = vld [vmem:[%s6407 + $0x14] sm:$0xf]
    %v6414 = vld [vmem:[%s6407 + $0x18] sm:$0xf]
    %v6415 = vld [vmem:[%s6407 + $0x1c] sm:$0xf]
    %v6416 = vld [vmem:[%s6407 + $0x20] sm:$0xf]
    %v6417 = vld [vmem:[%s6407 + $0x24] sm:$0xf]
    %v6418 = vld [vmem:[%s6407 + $0x28] sm:$0xf]
    %v6419 = vld [vmem:[%s6407 + $0x2c] sm:$0xf]
    %v6420 = vld [vmem:[%s6407 + $0x30] sm:$0xf]
    %v6421 = vld [vmem:[%s6407 + $0x34] sm:$0xf]
    %v6422 = vld [vmem:[%s6407 + $0x38] sm:$0xf]
    %v6423 = vld [vmem:[%s6407 + $0x3c] sm:$0xf]
    %v6440 = vunpack.c.l.b16 %v6408
    %v6441 = vunpack.c.l.b16 %v6409
    %v6442 = vunpack.c.l.b16 %v6410
    %v6443 = vunpack.c.l.b16 %v6411
    %v6444 = vunpack.c.l.b16 %v6412
    %v6445 = vunpack.c.l.b16 %v6413
    %v6446 = vunpack.c.l.b16 %v6414
    %v6447 = vunpack.c.l.b16 %v6415
    %v6448 = vunpack.c.l.b16 %v6416
    %v6449 = vunpack.c.l.b16 %v6417
    %v6450 = vunpack.c.l.b16 %v6418
    %v6451 = vunpack.c.l.b16 %v6419
    %v6452 = vunpack.c.l.b16 %v6420
    %v6453 = vunpack.c.l.b16 %v6421
    %v6454 = vunpack.c.l.b16 %v6422
    %v6455 = vunpack.c.l.b16 %v6423
    %v6456 = vpack.c.b16 %v6441, %v6440
    %v6457 = vpack.c.b16 %v6443, %v6442
    %v6458 = vpack.c.b16 %v6445, %v6444
    %v6459 = vpack.c.b16 %v6447, %v6446
    %v6460 = vpack.c.b16 %v6449, %v6448
    %v6461 = vpack.c.b16 %v6451, %v6450
    %v6462 = vpack.c.b16 %v6453, %v6452
    %v6463 = vpack.c.b16 %v6455, %v6454
    %6472 = vmatprep.subr.bf16.mxu0 0
    %6473 = vmatpush1.bf16.msra.mxu0 %v6463
    %6474 = vmatprep.subr.bf16.mxu0 0
    %6475 = vmatpush1.bf16.msra.mxu0 %v6462
    %6476 = vmatprep.subr.bf16.mxu0 0
    %6477 = vmatpush1.bf16.msra.mxu0 %v6461
    %6478 = vmatprep.subr.bf16.mxu0 0
    %6479 = vmatpush1.bf16.msra.mxu0 %v6460
    %6480 = vmatprep.subr.bf16.mxu0 0
    %6481 = vmatpush1.bf16.msra.mxu0 %v6459
    %6482 = vmatprep.subr.bf16.mxu0 0
    %6483 = vmatpush1.bf16.msra.mxu0 %v6458
    %6484 = vmatprep.subr.bf16.mxu0 0
    %6485 = vmatpush1.bf16.msra.mxu0 %v6457
    %6486 = vmatprep.subr.bf16.mxu0 0
    %6487 = vmatpush1.bf16.msra.mxu0 %v6456
    %6488 = vmatprep.subr.bf16.mxu0 0
    %6489 = vmatpush2.bf16.msra.mxu0 0
    %6490 = vmatprep.subr.bf16.mxu0 0
    %6491 = vmatpush2.bf16.msra.mxu0 0
    %6492 = vmatprep.subr.bf16.mxu0 0
    %6493 = vmatpush2.bf16.msra.mxu0 0
    %6494 = vmatprep.subr.bf16.mxu0 0
    %6495 = vmatpush2.bf16.msra.mxu0 0
    %6496 = vmatprep.subr.bf16.mxu0 0
    %6497 = vmatpush2.bf16.msra.mxu0 0
    %6498 = vmatprep.subr.bf16.mxu0 0
    %6499 = vmatpush2.bf16.msra.mxu0 0
    %6500 = vmatprep.subr.bf16.mxu0 0
    %6501 = vmatpush2.bf16.msra.mxu0 0
    %6502 = vmatprep.subr.bf16.mxu0 0
    %6503 = vmatpush2.bf16.msra.mxu0 0
    %6504 = vmatprep.mubr.bf16.mxu0 0
    %6505 = vmatmul.mubr.bf16.gmra.mxu0 %v6398
    %v6506 = vpop.f32.mrf.mxu0
    %v6507 = vadd.f32 0.0, %v6506
    %v6508 = vpop.f32.mrf.mxu0
    %v6509 = vpop.f32.mrf.mxu0
    %v6510 = vadd.f32 0.0, %v6509
    %v6511 = vpop.f32.mrf.mxu0
    %6512 = vmatprep.mubr.bf16.mxu0 0
    %6513 = vmatmul.mubr.bf16.gmra.mxu0 %v6399
    %v6514 = vpop.f32.mrf.mxu0
    %v6515 = vadd.f32 0.0, %v6514
    %v6516 = vpop.f32.mrf.mxu0
    %v6517 = vpop.f32.mrf.mxu0
    %v6518 = vadd.f32 0.0, %v6517
    %v6519 = vpop.f32.mrf.mxu0
    %6520 = vmatprep.mubr.bf16.mxu0 0
    %6521 = vmatmul.mubr.bf16.gmra.mxu0 %v6400
    %v6522 = vpop.f32.mrf.mxu0
    %v6523 = vadd.f32 0.0, %v6522
    %v6524 = vpop.f32.mrf.mxu0
    %v6525 = vpop.f32.mrf.mxu0
    %v6526 = vadd.f32 0.0, %v6525
    %v6527 = vpop.f32.mrf.mxu0
    %6528 = vmatprep.mubr.bf16.mxu0 0
    %6529 = vmatmul.mubr.bf16.gmra.mxu0 %v6401
    %v6530 = vpop.f32.mrf.mxu0
    %v6531 = vadd.f32 0.0, %v6530
    %v6532 = vpop.f32.mrf.mxu0
    %v6533 = vpop.f32.mrf.mxu0
    %v6534 = vadd.f32 0.0, %v6533
    %v6535 = vpop.f32.mrf.mxu0
    %6536 = vmatprep.mubr.bf16.mxu0 0
    %6537 = vmatmul.mubr.bf16.gmra.mxu0 %v6402
    %v6538 = vpop.f32.mrf.mxu0
    %v6539 = vadd.f32 0.0, %v6538
    %v6540 = vpop.f32.mrf.mxu0
    %v6541 = vpop.f32.mrf.mxu0
    %v6542 = vadd.f32 0.0, %v6541
    %v6543 = vpop.f32.mrf.mxu0
    %6544 = vmatprep.mubr.bf16.mxu0 0
    %6545 = vmatmul.mubr.bf16.gmra.mxu0 %v6403
    %v6546 = vpop.f32.mrf.mxu0
    %v6547 = vadd.f32 0.0, %v6546
    %v6548 = vpop.f32.mrf.mxu0
    %v6549 = vpop.f32.mrf.mxu0
    %v6550 = vadd.f32 0.0, %v6549
    %v6551 = vpop.f32.mrf.mxu0
    %6552 = vmatprep.mubr.bf16.mxu0 0
    %6553 = vmatmul.mubr.bf16.gmra.mxu0 %v6404
    %v6554 = vpop.f32.mrf.mxu0
    %v6555 = vadd.f32 0.0, %v6554
    %v6556 = vpop.f32.mrf.mxu0
    %v6557 = vpop.f32.mrf.mxu0
    %v6558 = vadd.f32 0.0, %v6557
    %v6559 = vpop.f32.mrf.mxu0
    %6560 = vmatprep.mubr.bf16.mxu0 0
    %6561 = vmatmul.mubr.bf16.gmra.mxu0 %v6405
    %v6562 = vpop.f32.mrf.mxu0
    %v6563 = vadd.f32 0.0, %v6562
    %v6564 = vpop.f32.mrf.mxu0
    %v6565 = vpop.f32.mrf.mxu0
    %v6566 = vadd.f32 0.0, %v6565
    %v6567 = vpop.f32.mrf.mxu0
    %6568 = vmatprep.mubr.bf16.mxu0 0
    %6569 = vmatmul.mubr.bf16.gmra.mxu0 %v6406
    %v6570 = vpop.f32.mrf.mxu0
    %v6571 = vadd.f32 0.0, %v6570
    %v6572 = vpop.f32.mrf.mxu0
    %v6573 = vpop.f32.mrf.mxu0
    %v6574 = vpop.f32.mrf.mxu0
    %6575 = vdwg.mxu0
    %v6576 = vadd.f32 %v6364, %v6507
    %v6577 = vadd.f32 %v6365, %v6510
    %v6578 = vadd.f32 %v6366, %v6515
    %v6579 = vadd.f32 %v6367, %v6518
    %v6580 = vadd.f32 %v6368, %v6523
    %v6581 = vadd.f32 %v6369, %v6526
    %v6582 = vadd.f32 %v6370, %v6531
    %v6583 = vadd.f32 %v6371, %v6534
    %v6584 = vadd.f32 %v6372, %v6539
    %v6585 = vadd.f32 %v6373, %v6542
    %v6586 = vadd.f32 %v6374, %v6547
    %v6587 = vadd.f32 %v6375, %v6550
    %v6588 = vadd.f32 %v6376, %v6555
    %v6589 = vadd.f32 %v6377, %v6558
    %v6590 = vadd.f32 %v6378, %v6563
    %v6591 = vadd.f32 %v6379, %v6566
    %v6592 = vadd.f32 %v6380, %v6571
    %v6593 = vld [vmem:[#allocation3 + $0x3a] sm:$0xff]
    %v6594 = vld [vmem:[#allocation3 + $0x42] sm:$0xff]
    %v6595 = vld [vmem:[#allocation3 + $0x4a] sm:$0xff]
    %v6596 = vld [vmem:[#allocation3 + $0x52] sm:$0xff]
    %v6597 = vld [vmem:[#allocation3 + $0x5a] sm:$0xff]
    %v6598 = vld [vmem:[#allocation3 + $0x62] sm:$0xff]
    %v6599 = vld [vmem:[#allocation3 + $0x6a] sm:$0xff]
    %v6600 = vld [vmem:[#allocation3 + $0x72] sm:$0xff]
    %v6601 = vld [vmem:[#allocation3 + $0x7a] sm:$0xff]
    %v6602 = vld [vmem:[#allocation3 + $0x82] sm:$0xff]
    %v6603 = vld [vmem:[#allocation3 + $0x8a] sm:$0xff]
    %v6604 = vld [vmem:[#allocation3 + $0x92] sm:$0xff]
    %v6605 = vld [vmem:[#allocation3 + $0x9a] sm:$0xff]
    %v6606 = vld [vmem:[#allocation3 + $0xa2] sm:$0xff]
    %v6607 = vld [vmem:[#allocation3 + $0xaa] sm:$0xff]
    %v6608 = vld [vmem:[#allocation3 + $0xb2] sm:$0xff]
    %v6609 = vld [vmem:[#allocation3 + $0xba] sm:$0xff]
    %v6610 = vpack.c.bf16 %v6594, %v6593
    %v6611 = vpack.c.bf16 %v6596, %v6595
    %v6612 = vpack.c.bf16 %v6598, %v6597
    %v6613 = vpack.c.bf16 %v6600, %v6599
    %v6614 = vpack.c.bf16 %v6602, %v6601
    %v6615 = vpack.c.bf16 %v6604, %v6603
    %v6616 = vpack.c.bf16 %v6606, %v6605
    %v6617 = vpack.c.bf16 %v6608, %v6607
    %v6618 = vpack.c.bf16 %v6609, %v6609
    %s6619 = scalar_lea.vmem %s2, 1408
    %v6620 = vld [vmem:[%s6619] sm:$0xf]
    %v6621 = vld [vmem:[%s6619 + $0x4] sm:$0xf]
    %v6622 = vld [vmem:[%s6619 + $0x8] sm:$0xf]
    %v6623 = vld [vmem:[%s6619 + $0xc] sm:$0xf]
    %v6624 = vld [vmem:[%s6619 + $0x10] sm:$0xf]
    %v6625 = vld [vmem:[%s6619 + $0x14] sm:$0xf]
    %v6626 = vld [vmem:[%s6619 + $0x18] sm:$0xf]
    %v6627 = vld [vmem:[%s6619 + $0x1c] sm:$0xf]
    %v6628 = vld [vmem:[%s6619 + $0x20] sm:$0xf]
    %v6629 = vld [vmem:[%s6619 + $0x24] sm:$0xf]
    %v6630 = vld [vmem:[%s6619 + $0x28] sm:$0xf]
    %v6631 = vld [vmem:[%s6619 + $0x2c] sm:$0xf]
    %v6632 = vld [vmem:[%s6619 + $0x30] sm:$0xf]
    %v6633 = vld [vmem:[%s6619 + $0x34] sm:$0xf]
    %v6634 = vld [vmem:[%s6619 + $0x38] sm:$0xf]
    %v6635 = vld [vmem:[%s6619 + $0x3c] sm:$0xf]
    %v6652 = vunpack.c.l.b16 %v6620
    %v6653 = vunpack.c.l.b16 %v6621
    %v6654 = vunpack.c.l.b16 %v6622
    %v6655 = vunpack.c.l.b16 %v6623
    %v6656 = vunpack.c.l.b16 %v6624
    %v6657 = vunpack.c.l.b16 %v6625
    %v6658 = vunpack.c.l.b16 %v6626
    %v6659 = vunpack.c.l.b16 %v6627
    %v6660 = vunpack.c.l.b16 %v6628
    %v6661 = vunpack.c.l.b16 %v6629
    %v6662 = vunpack.c.l.b16 %v6630
    %v6663 = vunpack.c.l.b16 %v6631
    %v6664 = vunpack.c.l.b16 %v6632
    %v6665 = vunpack.c.l.b16 %v6633
    %v6666 = vunpack.c.l.b16 %v6634
    %v6667 = vunpack.c.l.b16 %v6635
    %v6668 = vpack.c.b16 %v6653, %v6652
    %v6669 = vpack.c.b16 %v6655, %v6654
    %v6670 = vpack.c.b16 %v6657, %v6656
    %v6671 = vpack.c.b16 %v6659, %v6658
    %v6672 = vpack.c.b16 %v6661, %v6660
    %v6673 = vpack.c.b16 %v6663, %v6662
    %v6674 = vpack.c.b16 %v6665, %v6664
    %v6675 = vpack.c.b16 %v6667, %v6666
    %6684 = vmatprep.subr.bf16.mxu0 0
    %6685 = vmatpush1.bf16.msra.mxu0 %v6675
    %6686 = vmatprep.subr.bf16.mxu0 0
    %6687 = vmatpush1.bf16.msra.mxu0 %v6674
    %6688 = vmatprep.subr.bf16.mxu0 0
    %6689 = vmatpush1.bf16.msra.mxu0 %v6673
    %6690 = vmatprep.subr.bf16.mxu0 0
    %6691 = vmatpush1.bf16.msra.mxu0 %v6672
    %6692 = vmatprep.subr.bf16.mxu0 0
    %6693 = vmatpush1.bf16.msra.mxu0 %v6671
    %6694 = vmatprep.subr.bf16.mxu0 0
    %6695 = vmatpush1.bf16.msra.mxu0 %v6670
    %6696 = vmatprep.subr.bf16.mxu0 0
    %6697 = vmatpush1.bf16.msra.mxu0 %v6669
    %6698 = vmatprep.subr.bf16.mxu0 0
    %6699 = vmatpush1.bf16.msra.mxu0 %v6668
    %6700 = vmatprep.subr.bf16.mxu0 0
    %6701 = vmatpush2.bf16.msra.mxu0 0
    %6702 = vmatprep.subr.bf16.mxu0 0
    %6703 = vmatpush2.bf16.msra.mxu0 0
    %6704 = vmatprep.subr.bf16.mxu0 0
    %6705 = vmatpush2.bf16.msra.mxu0 0
    %6706 = vmatprep.subr.bf16.mxu0 0
    %6707 = vmatpush2.bf16.msra.mxu0 0
    %6708 = vmatprep.subr.bf16.mxu0 0
    %6709 = vmatpush2.bf16.msra.mxu0 0
    %6710 = vmatprep.subr.bf16.mxu0 0
    %6711 = vmatpush2.bf16.msra.mxu0 0
    %6712 = vmatprep.subr.bf16.mxu0 0
    %6713 = vmatpush2.bf16.msra.mxu0 0
    %6714 = vmatprep.subr.bf16.mxu0 0
    %6715 = vmatpush2.bf16.msra.mxu0 0
    %6716 = vmatprep.mubr.bf16.mxu0 0
    %6717 = vmatmul.mubr.bf16.gmra.mxu0 %v6610
    %v6718 = vpop.f32.mrf.mxu0
    %v6719 = vadd.f32 0.0, %v6718
    %v6720 = vpop.f32.mrf.mxu0
    %v6721 = vpop.f32.mrf.mxu0
    %v6722 = vadd.f32 0.0, %v6721
    %v6723 = vpop.f32.mrf.mxu0
    %6724 = vmatprep.mubr.bf16.mxu0 0
    %6725 = vmatmul.mubr.bf16.gmra.mxu0 %v6611
    %v6726 = vpop.f32.mrf.mxu0
    %v6727 = vadd.f32 0.0, %v6726
    %v6728 = vpop.f32.mrf.mxu0
    %v6729 = vpop.f32.mrf.mxu0
    %v6730 = vadd.f32 0.0, %v6729
    %v6731 = vpop.f32.mrf.mxu0
    %6732 = vmatprep.mubr.bf16.mxu0 0
    %6733 = vmatmul.mubr.bf16.gmra.mxu0 %v6612
    %v6734 = vpop.f32.mrf.mxu0
    %v6735 = vadd.f32 0.0, %v6734
    %v6736 = vpop.f32.mrf.mxu0
    %v6737 = vpop.f32.mrf.mxu0
    %v6738 = vadd.f32 0.0, %v6737
    %v6739 = vpop.f32.mrf.mxu0
    %6740 = vmatprep.mubr.bf16.mxu0 0
    %6741 = vmatmul.mubr.bf16.gmra.mxu0 %v6613
    %v6742 = vpop.f32.mrf.mxu0
    %v6743 = vadd.f32 0.0, %v6742
    %v6744 = vpop.f32.mrf.mxu0
    %v6745 = vpop.f32.mrf.mxu0
    %v6746 = vadd.f32 0.0, %v6745
    %v6747 = vpop.f32.mrf.mxu0
    %6748 = vmatprep.mubr.bf16.mxu0 0
    %6749 = vmatmul.mubr.bf16.gmra.mxu0 %v6614
    %v6750 = vpop.f32.mrf.mxu0
    %v6751 = vadd.f32 0.0, %v6750
    %v6752 = vpop.f32.mrf.mxu0
    %v6753 = vpop.f32.mrf.mxu0
    %v6754 = vadd.f32 0.0, %v6753
    %v6755 = vpop.f32.mrf.mxu0
    %6756 = vmatprep.mubr.bf16.mxu0 0
    %6757 = vmatmul.mubr.bf16.gmra.mxu0 %v6615
    %v6758 = vpop.f32.mrf.mxu0
    %v6759 = vadd.f32 0.0, %v6758
    %v6760 = vpop.f32.mrf.mxu0
    %v6761 = vpop.f32.mrf.mxu0
    %v6762 = vadd.f32 0.0, %v6761
    %v6763 = vpop.f32.mrf.mxu0
    %6764 = vmatprep.mubr.bf16.mxu0 0
    %6765 = vmatmul.mubr.bf16.gmra.mxu0 %v6616
    %v6766 = vpop.f32.mrf.mxu0
    %v6767 = vadd.f32 0.0, %v6766
    %v6768 = vpop.f32.mrf.mxu0
    %v6769 = vpop.f32.mrf.mxu0
    %v6770 = vadd.f32 0.0, %v6769
    %v6771 = vpop.f32.mrf.mxu0
    %6772 = vmatprep.mubr.bf16.mxu0 0
    %6773 = vmatmul.mubr.bf16.gmra.mxu0 %v6617
    %v6774 = vpop.f32.mrf.mxu0
    %v6775 = vadd.f32 0.0, %v6774
    %v6776 = vpop.f32.mrf.mxu0
    %v6777 = vpop.f32.mrf.mxu0
    %v6778 = vadd.f32 0.0, %v6777
    %v6779 = vpop.f32.mrf.mxu0
    %6780 = vmatprep.mubr.bf16.mxu0 0
    %6781 = vmatmul.mubr.bf16.gmra.mxu0 %v6618
    %v6782 = vpop.f32.mrf.mxu0
    %v6783 = vadd.f32 0.0, %v6782
    %v6784 = vpop.f32.mrf.mxu0
    %v6785 = vpop.f32.mrf.mxu0
    %v6786 = vpop.f32.mrf.mxu0
    %6787 = vdwg.mxu0
    %v6788 = vadd.f32 %v6576, %v6719
    %v6789 = vadd.f32 %v6577, %v6722
    %v6790 = vadd.f32 %v6578, %v6727
    %v6791 = vadd.f32 %v6579, %v6730
    %v6792 = vadd.f32 %v6580, %v6735
    %v6793 = vadd.f32 %v6581, %v6738
    %v6794 = vadd.f32 %v6582, %v6743
    %v6795 = vadd.f32 %v6583, %v6746
    %v6796 = vadd.f32 %v6584, %v6751
    %v6797 = vadd.f32 %v6585, %v6754
    %v6798 = vadd.f32 %v6586, %v6759
    %v6799 = vadd.f32 %v6587, %v6762
    %v6800 = vadd.f32 %v6588, %v6767
    %v6801 = vadd.f32 %v6589, %v6770
    %v6802 = vadd.f32 %v6590, %v6775
    %v6803 = vadd.f32 %v6591, %v6778
    %v6804 = vadd.f32 %v6592, %v6783
    %v6805 = vld [vmem:[#allocation3 + $0x3b] sm:$0xff]
    %v6806 = vld [vmem:[#allocation3 + $0x43] sm:$0xff]
    %v6807 = vld [vmem:[#allocation3 + $0x4b] sm:$0xff]
    %v6808 = vld [vmem:[#allocation3 + $0x53] sm:$0xff]
    %v6809 = vld [vmem:[#allocation3 + $0x5b] sm:$0xff]
    %v6810 = vld [vmem:[#allocation3 + $0x63] sm:$0xff]
    %v6811 = vld [vmem:[#allocation3 + $0x6b] sm:$0xff]
    %v6812 = vld [vmem:[#allocation3 + $0x73] sm:$0xff]
    %v6813 = vld [vmem:[#allocation3 + $0x7b] sm:$0xff]
    %v6814 = vld [vmem:[#allocation3 + $0x83] sm:$0xff]
    %v6815 = vld [vmem:[#allocation3 + $0x8b] sm:$0xff]
    %v6816 = vld [vmem:[#allocation3 + $0x93] sm:$0xff]
    %v6817 = vld [vmem:[#allocation3 + $0x9b] sm:$0xff]
    %v6818 = vld [vmem:[#allocation3 + $0xa3] sm:$0xff]
    %v6819 = vld [vmem:[#allocation3 + $0xab] sm:$0xff]
    %v6820 = vld [vmem:[#allocation3 + $0xb3] sm:$0xff]
    %v6821 = vld [vmem:[#allocation3 + $0xbb] sm:$0xff]
    %v6822 = vpack.c.bf16 %v6806, %v6805
    %v6823 = vpack.c.bf16 %v6808, %v6807
    %v6824 = vpack.c.bf16 %v6810, %v6809
    %v6825 = vpack.c.bf16 %v6812, %v6811
    %v6826 = vpack.c.bf16 %v6814, %v6813
    %v6827 = vpack.c.bf16 %v6816, %v6815
    %v6828 = vpack.c.bf16 %v6818, %v6817
    %v6829 = vpack.c.bf16 %v6820, %v6819
    %v6830 = vpack.c.bf16 %v6821, %v6821
    %s6831 = scalar_lea.vmem %s2, 1472
    %v6832 = vld [vmem:[%s6831] sm:$0xf]
    %v6833 = vld [vmem:[%s6831 + $0x4] sm:$0xf]
    %v6834 = vld [vmem:[%s6831 + $0x8] sm:$0xf]
    %v6835 = vld [vmem:[%s6831 + $0xc] sm:$0xf]
    %v6836 = vld [vmem:[%s6831 + $0x10] sm:$0xf]
    %v6837 = vld [vmem:[%s6831 + $0x14] sm:$0xf]
    %v6838 = vld [vmem:[%s6831 + $0x18] sm:$0xf]
    %v6839 = vld [vmem:[%s6831 + $0x1c] sm:$0xf]
    %v6840 = vld [vmem:[%s6831 + $0x20] sm:$0xf]
    %v6841 = vld [vmem:[%s6831 + $0x24] sm:$0xf]
    %v6842 = vld [vmem:[%s6831 + $0x28] sm:$0xf]
    %v6843 = vld [vmem:[%s6831 + $0x2c] sm:$0xf]
    %v6844 = vld [vmem:[%s6831 + $0x30] sm:$0xf]
    %v6845 = vld [vmem:[%s6831 + $0x34] sm:$0xf]
    %v6846 = vld [vmem:[%s6831 + $0x38] sm:$0xf]
    %v6847 = vld [vmem:[%s6831 + $0x3c] sm:$0xf]
    %v6864 = vunpack.c.l.b16 %v6832
    %v6865 = vunpack.c.l.b16 %v6833
    %v6866 = vunpack.c.l.b16 %v6834
    %v6867 = vunpack.c.l.b16 %v6835
    %v6868 = vunpack.c.l.b16 %v6836
    %v6869 = vunpack.c.l.b16 %v6837
    %v6870 = vunpack.c.l.b16 %v6838
    %v6871 = vunpack.c.l.b16 %v6839
    %v6872 = vunpack.c.l.b16 %v6840
    %v6873 = vunpack.c.l.b16 %v6841
    %v6874 = vunpack.c.l.b16 %v6842
    %v6875 = vunpack.c.l.b16 %v6843
    %v6876 = vunpack.c.l.b16 %v6844
    %v6877 = vunpack.c.l.b16 %v6845
    %v6878 = vunpack.c.l.b16 %v6846
    %v6879 = vunpack.c.l.b16 %v6847
    %v6880 = vpack.c.b16 %v6865, %v6864
    %v6881 = vpack.c.b16 %v6867, %v6866
    %v6882 = vpack.c.b16 %v6869, %v6868
    %v6883 = vpack.c.b16 %v6871, %v6870
    %v6884 = vpack.c.b16 %v6873, %v6872
    %v6885 = vpack.c.b16 %v6875, %v6874
    %v6886 = vpack.c.b16 %v6877, %v6876
    %v6887 = vpack.c.b16 %v6879, %v6878
    %6896 = vmatprep.subr.bf16.mxu0 0
    %6897 = vmatpush1.bf16.msra.mxu0 %v6887
    %6898 = vmatprep.subr.bf16.mxu0 0
    %6899 = vmatpush1.bf16.msra.mxu0 %v6886
    %6900 = vmatprep.subr.bf16.mxu0 0
    %6901 = vmatpush1.bf16.msra.mxu0 %v6885
    %6902 = vmatprep.subr.bf16.mxu0 0
    %6903 = vmatpush1.bf16.msra.mxu0 %v6884
    %6904 = vmatprep.subr.bf16.mxu0 0
    %6905 = vmatpush1.bf16.msra.mxu0 %v6883
    %6906 = vmatprep.subr.bf16.mxu0 0
    %6907 = vmatpush1.bf16.msra.mxu0 %v6882
    %6908 = vmatprep.subr.bf16.mxu0 0
    %6909 = vmatpush1.bf16.msra.mxu0 %v6881
    %6910 = vmatprep.subr.bf16.mxu0 0
    %6911 = vmatpush1.bf16.msra.mxu0 %v6880
    %6912 = vmatprep.subr.bf16.mxu0 0
    %6913 = vmatpush2.bf16.msra.mxu0 0
    %6914 = vmatprep.subr.bf16.mxu0 0
    %6915 = vmatpush2.bf16.msra.mxu0 0
    %6916 = vmatprep.subr.bf16.mxu0 0
    %6917 = vmatpush2.bf16.msra.mxu0 0
    %6918 = vmatprep.subr.bf16.mxu0 0
    %6919 = vmatpush2.bf16.msra.mxu0 0
    %6920 = vmatprep.subr.bf16.mxu0 0
    %6921 = vmatpush2.bf16.msra.mxu0 0
    %6922 = vmatprep.subr.bf16.mxu0 0
    %6923 = vmatpush2.bf16.msra.mxu0 0
    %6924 = vmatprep.subr.bf16.mxu0 0
    %6925 = vmatpush2.bf16.msra.mxu0 0
    %6926 = vmatprep.subr.bf16.mxu0 0
    %6927 = vmatpush2.bf16.msra.mxu0 0
    %6928 = vmatprep.mubr.bf16.mxu0 0
    %6929 = vmatmul.mubr.bf16.gmra.mxu0 %v6822
    %v6930 = vpop.f32.mrf.mxu0
    %v6931 = vadd.f32 0.0, %v6930
    %v6932 = vpop.f32.mrf.mxu0
    %v6933 = vpop.f32.mrf.mxu0
    %v6934 = vadd.f32 0.0, %v6933
    %v6935 = vpop.f32.mrf.mxu0
    %6936 = vmatprep.mubr.bf16.mxu0 0
    %6937 = vmatmul.mubr.bf16.gmra.mxu0 %v6823
    %v6938 = vpop.f32.mrf.mxu0
    %v6939 = vadd.f32 0.0, %v6938
    %v6940 = vpop.f32.mrf.mxu0
    %v6941 = vpop.f32.mrf.mxu0
    %v6942 = vadd.f32 0.0, %v6941
    %v6943 = vpop.f32.mrf.mxu0
    %6944 = vmatprep.mubr.bf16.mxu0 0
    %6945 = vmatmul.mubr.bf16.gmra.mxu0 %v6824
    %v6946 = vpop.f32.mrf.mxu0
    %v6947 = vadd.f32 0.0, %v6946
    %v6948 = vpop.f32.mrf.mxu0
    %v6949 = vpop.f32.mrf.mxu0
    %v6950 = vadd.f32 0.0, %v6949
    %v6951 = vpop.f32.mrf.mxu0
    %6952 = vmatprep.mubr.bf16.mxu0 0
    %6953 = vmatmul.mubr.bf16.gmra.mxu0 %v6825
    %v6954 = vpop.f32.mrf.mxu0
    %v6955 = vadd.f32 0.0, %v6954
    %v6956 = vpop.f32.mrf.mxu0
    %v6957 = vpop.f32.mrf.mxu0
    %v6958 = vadd.f32 0.0, %v6957
    %v6959 = vpop.f32.mrf.mxu0
    %6960 = vmatprep.mubr.bf16.mxu0 0
    %6961 = vmatmul.mubr.bf16.gmra.mxu0 %v6826
    %v6962 = vpop.f32.mrf.mxu0
    %v6963 = vadd.f32 0.0, %v6962
    %v6964 = vpop.f32.mrf.mxu0
    %v6965 = vpop.f32.mrf.mxu0
    %v6966 = vadd.f32 0.0, %v6965
    %v6967 = vpop.f32.mrf.mxu0
    %6968 = vmatprep.mubr.bf16.mxu0 0
    %6969 = vmatmul.mubr.bf16.gmra.mxu0 %v6827
    %v6970 = vpop.f32.mrf.mxu0
    %v6971 = vadd.f32 0.0, %v6970
    %v6972 = vpop.f32.mrf.mxu0
    %v6973 = vpop.f32.mrf.mxu0
    %v6974 = vadd.f32 0.0, %v6973
    %v6975 = vpop.f32.mrf.mxu0
    %6976 = vmatprep.mubr.bf16.mxu0 0
    %6977 = vmatmul.mubr.bf16.gmra.mxu0 %v6828
    %v6978 = vpop.f32.mrf.mxu0
    %v6979 = vadd.f32 0.0, %v6978
    %v6980 = vpop.f32.mrf.mxu0
    %v6981 = vpop.f32.mrf.mxu0
    %v6982 = vadd.f32 0.0, %v6981
    %v6983 = vpop.f32.mrf.mxu0
    %6984 = vmatprep.mubr.bf16.mxu0 0
    %6985 = vmatmul.mubr.bf16.gmra.mxu0 %v6829
    %v6986 = vpop.f32.mrf.mxu0
    %v6987 = vadd.f32 0.0, %v6986
    %v6988 = vpop.f32.mrf.mxu0
    %v6989 = vpop.f32.mrf.mxu0
    %v6990 = vadd.f32 0.0, %v6989
    %v6991 = vpop.f32.mrf.mxu0
    %6992 = vmatprep.mubr.bf16.mxu0 0
    %6993 = vmatmul.mubr.bf16.gmra.mxu0 %v6830
    %v6994 = vpop.f32.mrf.mxu0
    %v6995 = vadd.f32 0.0, %v6994
    %v6996 = vpop.f32.mrf.mxu0
    %v6997 = vpop.f32.mrf.mxu0
    %v6998 = vpop.f32.mrf.mxu0
    %6999 = vdwg.mxu0
    %v7000 = vadd.f32 %v6788, %v6931
    %v7001 = vadd.f32 %v6789, %v6934
    %v7002 = vadd.f32 %v6790, %v6939
    %v7003 = vadd.f32 %v6791, %v6942
    %v7004 = vadd.f32 %v6792, %v6947
    %v7005 = vadd.f32 %v6793, %v6950
    %v7006 = vadd.f32 %v6794, %v6955
    %v7007 = vadd.f32 %v6795, %v6958
    %v7008 = vadd.f32 %v6796, %v6963
    %v7009 = vadd.f32 %v6797, %v6966
    %v7010 = vadd.f32 %v6798, %v6971
    %v7011 = vadd.f32 %v6799, %v6974
    %v7012 = vadd.f32 %v6800, %v6979
    %v7013 = vadd.f32 %v6801, %v6982
    %v7014 = vadd.f32 %v6802, %v6987
    %v7015 = vadd.f32 %v6803, %v6990
    %v7016 = vadd.f32 %v6804, %v6995
    %v7017 = vld [vmem:[#allocation3 + $0x3c] sm:$0xff]
    %v7018 = vld [vmem:[#allocation3 + $0x44] sm:$0xff]
    %v7019 = vld [vmem:[#allocation3 + $0x4c] sm:$0xff]
    %v7020 = vld [vmem:[#allocation3 + $0x54] sm:$0xff]
    %v7021 = vld [vmem:[#allocation3 + $0x5c] sm:$0xff]
    %v7022 = vld [vmem:[#allocation3 + $0x64] sm:$0xff]
    %v7023 = vld [vmem:[#allocation3 + $0x6c] sm:$0xff]
    %v7024 = vld [vmem:[#allocation3 + $0x74] sm:$0xff]
    %v7025 = vld [vmem:[#allocation3 + $0x7c] sm:$0xff]
    %v7026 = vld [vmem:[#allocation3 + $0x84] sm:$0xff]
    %v7027 = vld [vmem:[#allocation3 + $0x8c] sm:$0xff]
    %v7028 = vld [vmem:[#allocation3 + $0x94] sm:$0xff]
    %v7029 = vld [vmem:[#allocation3 + $0x9c] sm:$0xff]
    %v7030 = vld [vmem:[#allocation3 + $0xa4] sm:$0xff]
    %v7031 = vld [vmem:[#allocation3 + $0xac] sm:$0xff]
    %v7032 = vld [vmem:[#allocation3 + $0xb4] sm:$0xff]
    %v7033 = vld [vmem:[#allocation3 + $0xbc] sm:$0xff]
    %v7034 = vpack.c.bf16 %v7018, %v7017
    %v7035 = vpack.c.bf16 %v7020, %v7019
    %v7036 = vpack.c.bf16 %v7022, %v7021
    %v7037 = vpack.c.bf16 %v7024, %v7023
    %v7038 = vpack.c.bf16 %v7026, %v7025
    %v7039 = vpack.c.bf16 %v7028, %v7027
    %v7040 = vpack.c.bf16 %v7030, %v7029
    %v7041 = vpack.c.bf16 %v7032, %v7031
    %v7042 = vpack.c.bf16 %v7033, %v7033
    %s7043 = scalar_lea.vmem %s2, 1536
    %v7044 = vld [vmem:[%s7043] sm:$0xf]
    %v7045 = vld [vmem:[%s7043 + $0x4] sm:$0xf]
    %v7046 = vld [vmem:[%s7043 + $0x8] sm:$0xf]
    %v7047 = vld [vmem:[%s7043 + $0xc] sm:$0xf]
    %v7048 = vld [vmem:[%s7043 + $0x10] sm:$0xf]
    %v7049 = vld [vmem:[%s7043 + $0x14] sm:$0xf]
    %v7050 = vld [vmem:[%s7043 + $0x18] sm:$0xf]
    %v7051 = vld [vmem:[%s7043 + $0x1c] sm:$0xf]
    %v7052 = vld [vmem:[%s7043 + $0x20] sm:$0xf]
    %v7053 = vld [vmem:[%s7043 + $0x24] sm:$0xf]
    %v7054 = vld [vmem:[%s7043 + $0x28] sm:$0xf]
    %v7055 = vld [vmem:[%s7043 + $0x2c] sm:$0xf]
    %v7056 = vld [vmem:[%s7043 + $0x30] sm:$0xf]
    %v7057 = vld [vmem:[%s7043 + $0x34] sm:$0xf]
    %v7058 = vld [vmem:[%s7043 + $0x38] sm:$0xf]
    %v7059 = vld [vmem:[%s7043 + $0x3c] sm:$0xf]
    %v7076 = vunpack.c.l.b16 %v7044
    %v7077 = vunpack.c.l.b16 %v7045
    %v7078 = vunpack.c.l.b16 %v7046
    %v7079 = vunpack.c.l.b16 %v7047
    %v7080 = vunpack.c.l.b16 %v7048
    %v7081 = vunpack.c.l.b16 %v7049
    %v7082 = vunpack.c.l.b16 %v7050
    %v7083 = vunpack.c.l.b16 %v7051
    %v7084 = vunpack.c.l.b16 %v7052
    %v7085 = vunpack.c.l.b16 %v7053
    %v7086 = vunpack.c.l.b16 %v7054
    %v7087 = vunpack.c.l.b16 %v7055
    %v7088 = vunpack.c.l.b16 %v7056
    %v7089 = vunpack.c.l.b16 %v7057
    %v7090 = vunpack.c.l.b16 %v7058
    %v7091 = vunpack.c.l.b16 %v7059
    %v7092 = vpack.c.b16 %v7077, %v7076
    %v7093 = vpack.c.b16 %v7079, %v7078
    %v7094 = vpack.c.b16 %v7081, %v7080
    %v7095 = vpack.c.b16 %v7083, %v7082
    %v7096 = vpack.c.b16 %v7085, %v7084
    %v7097 = vpack.c.b16 %v7087, %v7086
    %v7098 = vpack.c.b16 %v7089, %v7088
    %v7099 = vpack.c.b16 %v7091, %v7090
    %7108 = vmatprep.subr.bf16.mxu0 0
    %7109 = vmatpush1.bf16.msra.mxu0 %v7099
    %7110 = vmatprep.subr.bf16.mxu0 0
    %7111 = vmatpush1.bf16.msra.mxu0 %v7098
    %7112 = vmatprep.subr.bf16.mxu0 0
    %7113 = vmatpush1.bf16.msra.mxu0 %v7097
    %7114 = vmatprep.subr.bf16.mxu0 0
    %7115 = vmatpush1.bf16.msra.mxu0 %v7096
    %7116 = vmatprep.subr.bf16.mxu0 0
    %7117 = vmatpush1.bf16.msra.mxu0 %v7095
    %7118 = vmatprep.subr.bf16.mxu0 0
    %7119 = vmatpush1.bf16.msra.mxu0 %v7094
    %7120 = vmatprep.subr.bf16.mxu0 0
    %7121 = vmatpush1.bf16.msra.mxu0 %v7093
    %7122 = vmatprep.subr.bf16.mxu0 0
    %7123 = vmatpush1.bf16.msra.mxu0 %v7092
    %7124 = vmatprep.subr.bf16.mxu0 0
    %7125 = vmatpush2.bf16.msra.mxu0 0
    %7126 = vmatprep.subr.bf16.mxu0 0
    %7127 = vmatpush2.bf16.msra.mxu0 0
    %7128 = vmatprep.subr.bf16.mxu0 0
    %7129 = vmatpush2.bf16.msra.mxu0 0
    %7130 = vmatprep.subr.bf16.mxu0 0
    %7131 = vmatpush2.bf16.msra.mxu0 0
    %7132 = vmatprep.subr.bf16.mxu0 0
    %7133 = vmatpush2.bf16.msra.mxu0 0
    %7134 = vmatprep.subr.bf16.mxu0 0
    %7135 = vmatpush2.bf16.msra.mxu0 0
    %7136 = vmatprep.subr.bf16.mxu0 0
    %7137 = vmatpush2.bf16.msra.mxu0 0
    %7138 = vmatprep.subr.bf16.mxu0 0
    %7139 = vmatpush2.bf16.msra.mxu0 0
    %7140 = vmatprep.mubr.bf16.mxu0 0
    %7141 = vmatmul.mubr.bf16.gmra.mxu0 %v7034
    %v7142 = vpop.f32.mrf.mxu0
    %v7143 = vadd.f32 0.0, %v7142
    %v7144 = vpop.f32.mrf.mxu0
    %v7145 = vpop.f32.mrf.mxu0
    %v7146 = vadd.f32 0.0, %v7145
    %v7147 = vpop.f32.mrf.mxu0
    %7148 = vmatprep.mubr.bf16.mxu0 0
    %7149 = vmatmul.mubr.bf16.gmra.mxu0 %v7035
    %v7150 = vpop.f32.mrf.mxu0
    %v7151 = vadd.f32 0.0, %v7150
    %v7152 = vpop.f32.mrf.mxu0
    %v7153 = vpop.f32.mrf.mxu0
    %v7154 = vadd.f32 0.0, %v7153
    %v7155 = vpop.f32.mrf.mxu0
    %7156 = vmatprep.mubr.bf16.mxu0 0
    %7157 = vmatmul.mubr.bf16.gmra.mxu0 %v7036
    %v7158 = vpop.f32.mrf.mxu0
    %v7159 = vadd.f32 0.0, %v7158
    %v7160 = vpop.f32.mrf.mxu0
    %v7161 = vpop.f32.mrf.mxu0
    %v7162 = vadd.f32 0.0, %v7161
    %v7163 = vpop.f32.mrf.mxu0
    %7164 = vmatprep.mubr.bf16.mxu0 0
    %7165 = vmatmul.mubr.bf16.gmra.mxu0 %v7037
    %v7166 = vpop.f32.mrf.mxu0
    %v7167 = vadd.f32 0.0, %v7166
    %v7168 = vpop.f32.mrf.mxu0
    %v7169 = vpop.f32.mrf.mxu0
    %v7170 = vadd.f32 0.0, %v7169
    %v7171 = vpop.f32.mrf.mxu0
    %7172 = vmatprep.mubr.bf16.mxu0 0
    %7173 = vmatmul.mubr.bf16.gmra.mxu0 %v7038
    %v7174 = vpop.f32.mrf.mxu0
    %v7175 = vadd.f32 0.0, %v7174
    %v7176 = vpop.f32.mrf.mxu0
    %v7177 = vpop.f32.mrf.mxu0
    %v7178 = vadd.f32 0.0, %v7177
    %v7179 = vpop.f32.mrf.mxu0
    %7180 = vmatprep.mubr.bf16.mxu0 0
    %7181 = vmatmul.mubr.bf16.gmra.mxu0 %v7039
    %v7182 = vpop.f32.mrf.mxu0
    %v7183 = vadd.f32 0.0, %v7182
    %v7184 = vpop.f32.mrf.mxu0
    %v7185 = vpop.f32.mrf.mxu0
    %v7186 = vadd.f32 0.0, %v7185
    %v7187 = vpop.f32.mrf.mxu0
    %7188 = vmatprep.mubr.bf16.mxu0 0
    %7189 = vmatmul.mubr.bf16.gmra.mxu0 %v7040
    %v7190 = vpop.f32.mrf.mxu0
    %v7191 = vadd.f32 0.0, %v7190
    %v7192 = vpop.f32.mrf.mxu0
    %v7193 = vpop.f32.mrf.mxu0
    %v7194 = vadd.f32 0.0, %v7193
    %v7195 = vpop.f32.mrf.mxu0
    %7196 = vmatprep.mubr.bf16.mxu0 0
    %7197 = vmatmul.mubr.bf16.gmra.mxu0 %v7041
    %v7198 = vpop.f32.mrf.mxu0
    %v7199 = vadd.f32 0.0, %v7198
    %v7200 = vpop.f32.mrf.mxu0
    %v7201 = vpop.f32.mrf.mxu0
    %v7202 = vadd.f32 0.0, %v7201
    %v7203 = vpop.f32.mrf.mxu0
    %7204 = vmatprep.mubr.bf16.mxu0 0
    %7205 = vmatmul.mubr.bf16.gmra.mxu0 %v7042
    %v7206 = vpop.f32.mrf.mxu0
    %v7207 = vadd.f32 0.0, %v7206
    %v7208 = vpop.f32.mrf.mxu0
    %v7209 = vpop.f32.mrf.mxu0
    %v7210 = vpop.f32.mrf.mxu0
    %7211 = vdwg.mxu0
    %v7212 = vadd.f32 %v7000, %v7143
    %v7213 = vadd.f32 %v7001, %v7146
    %v7214 = vadd.f32 %v7002, %v7151
    %v7215 = vadd.f32 %v7003, %v7154
    %v7216 = vadd.f32 %v7004, %v7159
    %v7217 = vadd.f32 %v7005, %v7162
    %v7218 = vadd.f32 %v7006, %v7167
    %v7219 = vadd.f32 %v7007, %v7170
    %v7220 = vadd.f32 %v7008, %v7175
    %v7221 = vadd.f32 %v7009, %v7178
    %v7222 = vadd.f32 %v7010, %v7183
    %v7223 = vadd.f32 %v7011, %v7186
    %v7224 = vadd.f32 %v7012, %v7191
    %v7225 = vadd.f32 %v7013, %v7194
    %v7226 = vadd.f32 %v7014, %v7199
    %v7227 = vadd.f32 %v7015, %v7202
    %v7228 = vadd.f32 %v7016, %v7207
    %v7229 = vlaneseq
    %v7230 = vshrl.u32 %v7229, 7
    %v7231 = vsub.s32 0, %v7230
    %v7232 = vrot.slane %v31, %v7231
    %v7233 = vadd.f32 %v7212, %v7232
    %v7234 = vadd.f32 %v7213, %v7232
    %v7235 = vadd.f32 %v7214, %v7232
    %v7236 = vadd.f32 %v7215, %v7232
    %v7237 = vadd.f32 %v7216, %v7232
    %v7238 = vadd.f32 %v7217, %v7232
    %v7239 = vadd.f32 %v7218, %v7232
    %v7240 = vadd.f32 %v7219, %v7232
    %v7241 = vadd.f32 %v7220, %v7232
    %v7242 = vadd.f32 %v7221, %v7232
    %v7243 = vadd.f32 %v7222, %v7232
    %v7244 = vadd.f32 %v7223, %v7232
    %v7245 = vadd.f32 %v7224, %v7232
    %v7246 = vadd.f32 %v7225, %v7232
    %v7247 = vadd.f32 %v7226, %v7232
    %v7248 = vadd.f32 %v7227, %v7232
    %v7249 = vadd.f32 %v7228, %v7232
    %v7250 = vtanh.pop %v7233
    %v7251 = vtanh.pop %v7234
    %v7252 = vtanh.pop %v7235
    %v7253 = vtanh.pop %v7236
    %v7254 = vtanh.pop %v7237
    %v7255 = vtanh.pop %v7238
    %v7256 = vtanh.pop %v7239
    %v7257 = vtanh.pop %v7240
    %v7258 = vtanh.pop %v7241
    %v7259 = vtanh.pop %v7242
    %v7260 = vtanh.pop %v7243
    %v7261 = vtanh.pop %v7244
    %v7262 = vtanh.pop %v7245
    %v7263 = vtanh.pop %v7246
    %v7264 = vtanh.pop %v7247
    %v7265 = vtanh.pop %v7248
    %v7266 = vtanh.pop %v7249
    %v7267 = vld [vmem:[%s7] sm:$0xff]
    %v7268 = vld [vmem:[%s7 + $0x8] sm:$0xff]
    %v7269 = vld [vmem:[%s7 + $0x10] sm:$0xff]
    %v7270 = vld [vmem:[%s7 + $0x18] sm:$0xff]
    %v7271 = vld [vmem:[%s7 + $0x20] sm:$0xff]
    %v7272 = vld [vmem:[%s7 + $0x28] sm:$0xff]
    %v7273 = vpack.c.bf16 %v7251, %v7250
    %v7274 = vpack.c.bf16 %v7253, %v7252
    %v7275 = vpack.c.bf16 %v7255, %v7254
    %v7276 = vpack.c.bf16 %v7257, %v7256
    %v7277 = vpack.c.bf16 %v7259, %v7258
    %v7278 = vpack.c.bf16 %v7261, %v7260
    %v7279 = vpack.c.bf16 %v7263, %v7262
    %v7280 = vpack.c.bf16 %v7265, %v7264
    %v7281 = vpack.c.bf16 %v7266, %v7266
    %v7288 = vunpack.c.l.b16 %v7267
    %v7289 = vunpack.c.h.b16 %v7267
    %v7290 = vunpack.c.l.b16 %v7268
    %v7291 = vunpack.c.h.b16 %v7268
    %v7292 = vunpack.c.l.b16 %v7269
    %v7293 = vunpack.c.h.b16 %v7269
    %v7294 = vunpack.c.l.b16 %v7270
    %v7295 = vunpack.c.h.b16 %v7270
    %v7296 = vunpack.c.l.b16 %v7271
    %v7297 = vunpack.c.h.b16 %v7271
    %v7298 = vunpack.c.l.b16 %v7272
    %v7299 = vunpack.c.h.b16 %v7272
    %v7300 = vpack.c.b16 %v7290, %v7288
    %v7301 = vpack.c.b16 %v7291, %v7289
    %v7302 = vpack.c.b16 %v7294, %v7292
    %v7303 = vpack.c.b16 %v7295, %v7293
    %v7304 = vpack.c.b16 %v7298, %v7296
    %v7305 = vpack.c.b16 %v7299, %v7297
    %vm7309 = vcmask 64512
    %v7311 = vsel %vm7309, %v7301, 0
    %v7314 = vsel %vm7309, %v7303, 0
    %v7317 = vsel %vm7309, %v7305, 0
    %vm7319 = vcmask 1043456
    %v7321 = vsel %vm7319, %v7281, 0
    %7323 = vmatprep.subr.bf16.mxu0 0
    %7324 = vmatpush1.bf16.msra.mxu0 %v7280
    %7325 = vmatprep.subr.bf16.mxu0 0
    %7326 = vmatpush1.bf16.msra.mxu0 %v7279
    %7327 = vmatprep.subr.bf16.mxu0 0
    %7328 = vmatpush1.bf16.msra.mxu0 %v7278
    %7329 = vmatprep.subr.bf16.mxu0 0
    %7330 = vmatpush1.bf16.msra.mxu0 %v7277
    %7331 = vmatprep.subr.bf16.mxu0 0
    %7332 = vmatpush1.bf16.msra.mxu0 %v7276
    %7333 = vmatprep.subr.bf16.mxu0 0
    %7334 = vmatpush1.bf16.msra.mxu0 %v7275
    %7335 = vmatprep.subr.bf16.mxu0 0
    %7336 = vmatpush1.bf16.msra.mxu0 %v7274
    %7337 = vmatprep.subr.bf16.mxu0 0
    %7338 = vmatpush1.bf16.msra.mxu0 %v7273
    %7339 = vmatprep.subr.bf16.mxu0 0
    %7340 = vmatpush2.bf16.msra.mxu0 0
    %7341 = vmatprep.subr.bf16.mxu0 0
    %7342 = vmatpush2.bf16.msra.mxu0 0
    %7343 = vmatprep.subr.bf16.mxu0 0
    %7344 = vmatpush2.bf16.msra.mxu0 0
    %7345 = vmatprep.subr.bf16.mxu0 0
    %7346 = vmatpush2.bf16.msra.mxu0 0
    %7347 = vmatprep.subr.bf16.mxu0 0
    %7348 = vmatpush2.bf16.msra.mxu0 0
    %7349 = vmatprep.subr.bf16.mxu0 0
    %7350 = vmatpush2.bf16.msra.mxu0 0
    %7351 = vmatprep.subr.bf16.mxu0 0
    %7352 = vmatpush2.bf16.msra.mxu0 0
    %7353 = vmatprep.subr.bf16.mxu0 0
    %7354 = vmatpush2.bf16.msra.mxu0 %v7321
    %7355 = vmatprep.mubr.bf16.mxu0 %v7311
    %7356 = vmatmul.mubr.bf16.gmra.mxu0 %v7300
    %v7357 = vpop.f32.mrf.mxu0
    %v7358 = vadd.f32 0.0, %v7357
    %v7359 = vpop.f32.mrf.mxu0
    %v7360 = vpop.f32.mrf.mxu0
    %v7361 = vadd.f32 0.0, %v7360
    %v7362 = vpop.f32.mrf.mxu0
    %7363 = vmatprep.mubr.bf16.mxu0 %v7314
    %7364 = vmatmul.mubr.bf16.gmra.mxu0 %v7302
    %v7365 = vpop.f32.mrf.mxu0
    %v7366 = vadd.f32 0.0, %v7365
    %v7367 = vpop.f32.mrf.mxu0
    %v7368 = vpop.f32.mrf.mxu0
    %v7369 = vadd.f32 0.0, %v7368
    %v7370 = vpop.f32.mrf.mxu0
    %7371 = vmatprep.mubr.bf16.mxu0 %v7317
    %7372 = vmatmul.mubr.bf16.gmra.mxu0 %v7304
    %v7373 = vpop.f32.mrf.mxu0
    %v7374 = vadd.f32 0.0, %v7373
    %v7375 = vpop.f32.mrf.mxu0
    %v7376 = vpop.f32.mrf.mxu0
    %v7377 = vadd.f32 0.0, %v7376
    %v7378 = vpop.f32.mrf.mxu0
    %7379 = vdwg.mxu0
    %7380 = vst [vmem:[#allocation4] sm:$0xff] %v7358
    %7381 = vst [vmem:[#allocation4 + $0x8] sm:$0xff] %v7361
    %7382 = vst [vmem:[#allocation4 + $0x10] sm:$0xff] %v7366
    %7383 = vst [vmem:[#allocation4 + $0x18] sm:$0xff] %v7369
    %7384 = vst [vmem:[#allocation4 + $0x20] sm:$0xff] %v7374
    %7385 = vst [vmem:[#allocation4 + $0x28] sm:$0xff] %v7377
    %v7386 = vld [vmem:[#allocation4] sm:$0xff]
    %v7387 = vpack.c.bf16 %v7386, %v7386
    %v7388 = vld [vmem:[%s3] sm:$0xf]
    %v7389 = vld [vmem:[%s3 + $0x4] sm:$0xf]
    %v7390 = vld [vmem:[%s3 + $0x8] sm:$0xf]
    %v7391 = vld [vmem:[%s3 + $0xc] sm:$0xf]
    %v7392 = vld [vmem:[%s3 + $0x10] sm:$0xf]
    %v7393 = vld [vmem:[%s3 + $0x14] sm:$0xf]
    %v7394 = vld [vmem:[%s3 + $0x18] sm:$0xf]
    %v7395 = vld [vmem:[%s3 + $0x1c] sm:$0xf]
    %v7396 = vld [vmem:[%s3 + $0x20] sm:$0xf]
    %v7397 = vld [vmem:[%s3 + $0x24] sm:$0xf]
    %v7398 = vld [vmem:[%s3 + $0x28] sm:$0xf]
    %v7399 = vld [vmem:[%s3 + $0x2c] sm:$0xf]
    %v7400 = vld [vmem:[%s3 + $0x30] sm:$0xf]
    %v7401 = vld [vmem:[%s3 + $0x34] sm:$0xf]
    %v7402 = vld [vmem:[%s3 + $0x38] sm:$0xf]
    %v7403 = vld [vmem:[%s3 + $0x3c] sm:$0xf]
    %v7404 = vld [vmem:[#allocation4 + $0x1] sm:$0xff]
    %v7405 = vpack.c.bf16 %v7404, %v7404
    %s7406 = scalar_lea.vmem %s3, 64
    %v7407 = vld [vmem:[%s7406] sm:$0xf]
    %v7408 = vld [vmem:[%s7406 + $0x4] sm:$0xf]
    %v7409 = vld [vmem:[%s7406 + $0x8] sm:$0xf]
    %v7410 = vld [vmem:[%s7406 + $0xc] sm:$0xf]
    %v7411 = vld [vmem:[%s7406 + $0x10] sm:$0xf]
    %v7412 = vld [vmem:[%s7406 + $0x14] sm:$0xf]
    %v7413 = vld [vmem:[%s7406 + $0x18] sm:$0xf]
    %v7414 = vld [vmem:[%s7406 + $0x1c] sm:$0xf]
    %v7415 = vld [vmem:[%s7406 + $0x20] sm:$0xf]
    %v7416 = vld [vmem:[%s7406 + $0x24] sm:$0xf]
    %v7417 = vld [vmem:[%s7406 + $0x28] sm:$0xf]
    %v7418 = vld [vmem:[%s7406 + $0x2c] sm:$0xf]
    %v7419 = vld [vmem:[%s7406 + $0x30] sm:$0xf]
    %v7420 = vld [vmem:[%s7406 + $0x34] sm:$0xf]
    %v7421 = vld [vmem:[%s7406 + $0x38] sm:$0xf]
    %v7422 = vld [vmem:[%s7406 + $0x3c] sm:$0xf]
    %v7439 = vunpack.c.l.b16 %v7407
    %v7440 = vunpack.c.l.b16 %v7408
    %v7441 = vunpack.c.l.b16 %v7409
    %v7442 = vunpack.c.l.b16 %v7410
    %v7443 = vunpack.c.l.b16 %v7411
    %v7444 = vunpack.c.l.b16 %v7412
    %v7445 = vunpack.c.l.b16 %v7413
    %v7446 = vunpack.c.l.b16 %v7414
    %v7447 = vunpack.c.l.b16 %v7415
    %v7448 = vunpack.c.l.b16 %v7416
    %v7449 = vunpack.c.l.b16 %v7417
    %v7450 = vunpack.c.l.b16 %v7418
    %v7451 = vunpack.c.l.b16 %v7419
    %v7452 = vunpack.c.l.b16 %v7420
    %v7453 = vunpack.c.l.b16 %v7421
    %v7454 = vunpack.c.l.b16 %v7422
    %v7455 = vpack.c.b16 %v7440, %v7439
    %v7456 = vpack.c.b16 %v7442, %v7441
    %v7457 = vpack.c.b16 %v7444, %v7443
    %v7458 = vpack.c.b16 %v7446, %v7445
    %v7459 = vpack.c.b16 %v7448, %v7447
    %v7460 = vpack.c.b16 %v7450, %v7449
    %v7461 = vpack.c.b16 %v7452, %v7451
    %v7462 = vpack.c.b16 %v7454, %v7453
    %7471 = vmatprep.subr.bf16.mxu0 0
    %7472 = vmatpush1.bf16.msra.mxu0 %v7462
    %7473 = vmatprep.subr.bf16.mxu0 0
    %7474 = vmatpush1.bf16.msra.mxu0 %v7461
    %7475 = vmatprep.subr.bf16.mxu0 0
    %7476 = vmatpush1.bf16.msra.mxu0 %v7460
    %7477 = vmatprep.subr.bf16.mxu0 0
    %7478 = vmatpush1.bf16.msra.mxu0 %v7459
    %7479 = vmatprep.subr.bf16.mxu0 0
    %7480 = vmatpush1.bf16.msra.mxu0 %v7458
    %7481 = vmatprep.subr.bf16.mxu0 0
    %7482 = vmatpush1.bf16.msra.mxu0 %v7457
    %7483 = vmatprep.subr.bf16.mxu0 0
    %7484 = vmatpush1.bf16.msra.mxu0 %v7456
    %7485 = vmatprep.subr.bf16.mxu0 0
    %7486 = vmatpush1.bf16.msra.mxu0 %v7455
    %7487 = vmatprep.subr.bf16.mxu0 0
    %7488 = vmatpush2.bf16.msra.mxu0 0
    %7489 = vmatprep.subr.bf16.mxu0 0
    %7490 = vmatpush2.bf16.msra.mxu0 0
    %7491 = vmatprep.subr.bf16.mxu0 0
    %7492 = vmatpush2.bf16.msra.mxu0 0
    %7493 = vmatprep.subr.bf16.mxu0 0
    %7494 = vmatpush2.bf16.msra.mxu0 0
    %7495 = vmatprep.subr.bf16.mxu0 0
    %7496 = vmatpush2.bf16.msra.mxu0 0
    %7497 = vmatprep.subr.bf16.mxu0 0
    %7498 = vmatpush2.bf16.msra.mxu0 0
    %7499 = vmatprep.subr.bf16.mxu0 0
    %7500 = vmatpush2.bf16.msra.mxu0 0
    %7501 = vmatprep.subr.bf16.mxu0 0
    %7502 = vmatpush2.bf16.msra.mxu0 0
    %7503 = vmatprep.mubr.bf16.mxu0 0
    %7504 = vmatmul.mubr.bf16.gmra.mxu0 %v7405
    %v7505 = vpop.f32.mrf.mxu0
    %v7506 = vadd.f32 0.0, %v7505
    %v7507 = vpop.f32.mrf.mxu0
    %v7508 = vpop.f32.mrf.mxu0
    %v7509 = vpop.f32.mrf.mxu0
    %7510 = vdwg.mxu0
    %v7527 = vunpack.c.l.b16 %v7388
    %v7528 = vunpack.c.l.b16 %v7389
    %v7529 = vunpack.c.l.b16 %v7390
    %v7530 = vunpack.c.l.b16 %v7391
    %v7531 = vunpack.c.l.b16 %v7392
    %v7532 = vunpack.c.l.b16 %v7393
    %v7533 = vunpack.c.l.b16 %v7394
    %v7534 = vunpack.c.l.b16 %v7395
    %v7535 = vunpack.c.l.b16 %v7396
    %v7536 = vunpack.c.l.b16 %v7397
    %v7537 = vunpack.c.l.b16 %v7398
    %v7538 = vunpack.c.l.b16 %v7399
    %v7539 = vunpack.c.l.b16 %v7400
    %v7540 = vunpack.c.l.b16 %v7401
    %v7541 = vunpack.c.l.b16 %v7402
    %v7542 = vunpack.c.l.b16 %v7403
    %v7543 = vpack.c.b16 %v7528, %v7527
    %v7544 = vpack.c.b16 %v7530, %v7529
    %v7545 = vpack.c.b16 %v7532, %v7531
    %v7546 = vpack.c.b16 %v7534, %v7533
    %v7547 = vpack.c.b16 %v7536, %v7535
    %v7548 = vpack.c.b16 %v7538, %v7537
    %v7549 = vpack.c.b16 %v7540, %v7539
    %v7550 = vpack.c.b16 %v7542, %v7541
    %7559 = vmatprep.subr.bf16.mxu0 0
    %7560 = vmatpush1.bf16.msra.mxu0 %v7550
    %7561 = vmatprep.subr.bf16.mxu0 0
    %7562 = vmatpush1.bf16.msra.mxu0 %v7549
    %7563 = vmatprep.subr.bf16.mxu0 0
    %7564 = vmatpush1.bf16.msra.mxu0 %v7548
    %7565 = vmatprep.subr.bf16.mxu0 0
    %7566 = vmatpush1.bf16.msra.mxu0 %v7547
    %7567 = vmatprep.subr.bf16.mxu0 0
    %7568 = vmatpush1.bf16.msra.mxu0 %v7546
    %7569 = vmatprep.subr.bf16.mxu0 0
    %7570 = vmatpush1.bf16.msra.mxu0 %v7545
    %7571 = vmatprep.subr.bf16.mxu0 0
    %7572 = vmatpush1.bf16.msra.mxu0 %v7544
    %7573 = vmatprep.subr.bf16.mxu0 0
    %7574 = vmatpush1.bf16.msra.mxu0 %v7543
    %7575 = vmatprep.subr.bf16.mxu0 0
    %7576 = vmatpush2.bf16.msra.mxu0 0
    %7577 = vmatprep.subr.bf16.mxu0 0
    %7578 = vmatpush2.bf16.msra.mxu0 0
    %7579 = vmatprep.subr.bf16.mxu0 0
    %7580 = vmatpush2.bf16.msra.mxu0 0
    %7581 = vmatprep.subr.bf16.mxu0 0
    %7582 = vmatpush2.bf16.msra.mxu0 0
    %7583 = vmatprep.subr.bf16.mxu0 0
    %7584 = vmatpush2.bf16.msra.mxu0 0
    %7585 = vmatprep.subr.bf16.mxu0 0
    %7586 = vmatpush2.bf16.msra.mxu0 0
    %7587 = vmatprep.subr.bf16.mxu0 0
    %7588 = vmatpush2.bf16.msra.mxu0 0
    %7589 = vmatprep.subr.bf16.mxu0 0
    %7590 = vmatpush2.bf16.msra.mxu0 0
    %7591 = vmatprep.mubr.bf16.mxu0 0
    %7592 = vmatmul.mubr.bf16.gmra.mxu0 %v7387
    %v7593 = vpop.f32.mrf.mxu0
    %v7594 = vadd.f32 %v7506, %v7593
    %v7595 = vpop.f32.mrf.mxu0
    %v7596 = vpop.f32.mrf.mxu0
    %v7597 = vpop.f32.mrf.mxu0
    %7598 = vdwg.mxu0
    %v7599 = vld [vmem:[#allocation4 + $0x2] sm:$0xff]
    %v7600 = vpack.c.bf16 %v7599, %v7599
    %s7601 = scalar_lea.vmem %s3, 128
    %v7602 = vld [vmem:[%s7601] sm:$0xf]
    %v7603 = vld [vmem:[%s7601 + $0x4] sm:$0xf]
    %v7604 = vld [vmem:[%s7601 + $0x8] sm:$0xf]
    %v7605 = vld [vmem:[%s7601 + $0xc] sm:$0xf]
    %v7606 = vld [vmem:[%s7601 + $0x10] sm:$0xf]
    %v7607 = vld [vmem:[%s7601 + $0x14] sm:$0xf]
    %v7608 = vld [vmem:[%s7601 + $0x18] sm:$0xf]
    %v7609 = vld [vmem:[%s7601 + $0x1c] sm:$0xf]
    %v7610 = vld [vmem:[%s7601 + $0x20] sm:$0xf]
    %v7611 = vld [vmem:[%s7601 + $0x24] sm:$0xf]
    %v7612 = vld [vmem:[%s7601 + $0x28] sm:$0xf]
    %v7613 = vld [vmem:[%s7601 + $0x2c] sm:$0xf]
    %v7614 = vld [vmem:[%s7601 + $0x30] sm:$0xf]
    %v7615 = vld [vmem:[%s7601 + $0x34] sm:$0xf]
    %v7616 = vld [vmem:[%s7601 + $0x38] sm:$0xf]
    %v7617 = vld [vmem:[%s7601 + $0x3c] sm:$0xf]
    %v7634 = vunpack.c.l.b16 %v7602
    %v7635 = vunpack.c.l.b16 %v7603
    %v7636 = vunpack.c.l.b16 %v7604
    %v7637 = vunpack.c.l.b16 %v7605
    %v7638 = vunpack.c.l.b16 %v7606
    %v7639 = vunpack.c.l.b16 %v7607
    %v7640 = vunpack.c.l.b16 %v7608
    %v7641 = vunpack.c.l.b16 %v7609
    %v7642 = vunpack.c.l.b16 %v7610
    %v7643 = vunpack.c.l.b16 %v7611
    %v7644 = vunpack.c.l.b16 %v7612
    %v7645 = vunpack.c.l.b16 %v7613
    %v7646 = vunpack.c.l.b16 %v7614
    %v7647 = vunpack.c.l.b16 %v7615
    %v7648 = vunpack.c.l.b16 %v7616
    %v7649 = vunpack.c.l.b16 %v7617
    %v7650 = vpack.c.b16 %v7635, %v7634
    %v7651 = vpack.c.b16 %v7637, %v7636
    %v7652 = vpack.c.b16 %v7639, %v7638
    %v7653 = vpack.c.b16 %v7641, %v7640
    %v7654 = vpack.c.b16 %v7643, %v7642
    %v7655 = vpack.c.b16 %v7645, %v7644
    %v7656 = vpack.c.b16 %v7647, %v7646
    %v7657 = vpack.c.b16 %v7649, %v7648
    %7666 = vmatprep.subr.bf16.mxu0 0
    %7667 = vmatpush1.bf16.msra.mxu0 %v7657
    %7668 = vmatprep.subr.bf16.mxu0 0
    %7669 = vmatpush1.bf16.msra.mxu0 %v7656
    %7670 = vmatprep.subr.bf16.mxu0 0
    %7671 = vmatpush1.bf16.msra.mxu0 %v7655
    %7672 = vmatprep.subr.bf16.mxu0 0
    %7673 = vmatpush1.bf16.msra.mxu0 %v7654
    %7674 = vmatprep.subr.bf16.mxu0 0
    %7675 = vmatpush1.bf16.msra.mxu0 %v7653
    %7676 = vmatprep.subr.bf16.mxu0 0
    %7677 = vmatpush1.bf16.msra.mxu0 %v7652
    %7678 = vmatprep.subr.bf16.mxu0 0
    %7679 = vmatpush1.bf16.msra.mxu0 %v7651
    %7680 = vmatprep.subr.bf16.mxu0 0
    %7681 = vmatpush1.bf16.msra.mxu0 %v7650
    %7682 = vmatprep.subr.bf16.mxu0 0
    %7683 = vmatpush2.bf16.msra.mxu0 0
    %7684 = vmatprep.subr.bf16.mxu0 0
    %7685 = vmatpush2.bf16.msra.mxu0 0
    %7686 = vmatprep.subr.bf16.mxu0 0
    %7687 = vmatpush2.bf16.msra.mxu0 0
    %7688 = vmatprep.subr.bf16.mxu0 0
    %7689 = vmatpush2.bf16.msra.mxu0 0
    %7690 = vmatprep.subr.bf16.mxu0 0
    %7691 = vmatpush2.bf16.msra.mxu0 0
    %7692 = vmatprep.subr.bf16.mxu0 0
    %7693 = vmatpush2.bf16.msra.mxu0 0
    %7694 = vmatprep.subr.bf16.mxu0 0
    %7695 = vmatpush2.bf16.msra.mxu0 0
    %7696 = vmatprep.subr.bf16.mxu0 0
    %7697 = vmatpush2.bf16.msra.mxu0 0
    %7698 = vmatprep.mubr.bf16.mxu0 0
    %7699 = vmatmul.mubr.bf16.gmra.mxu0 %v7600
    %v7700 = vpop.f32.mrf.mxu0
    %v7701 = vadd.f32 0.0, %v7700
    %v7702 = vpop.f32.mrf.mxu0
    %v7703 = vpop.f32.mrf.mxu0
    %v7704 = vpop.f32.mrf.mxu0
    %7705 = vdwg.mxu0
    %v7706 = vadd.f32 %v7594, %v7701
    %v7707 = vld [vmem:[#allocation4 + $0x3] sm:$0xff]
    %v7708 = vpack.c.bf16 %v7707, %v7707
    %s7709 = scalar_lea.vmem %s3, 192
    %v7710 = vld [vmem:[%s7709] sm:$0xf]
    %v7711 = vld [vmem:[%s7709 + $0x4] sm:$0xf]
    %v7712 = vld [vmem:[%s7709 + $0x8] sm:$0xf]
    %v7713 = vld [vmem:[%s7709 + $0xc] sm:$0xf]
    %v7714 = vld [vmem:[%s7709 + $0x10] sm:$0xf]
    %v7715 = vld [vmem:[%s7709 + $0x14] sm:$0xf]
    %v7716 = vld [vmem:[%s7709 + $0x18] sm:$0xf]
    %v7717 = vld [vmem:[%s7709 + $0x1c] sm:$0xf]
    %v7718 = vld [vmem:[%s7709 + $0x20] sm:$0xf]
    %v7719 = vld [vmem:[%s7709 + $0x24] sm:$0xf]
    %v7720 = vld [vmem:[%s7709 + $0x28] sm:$0xf]
    %v7721 = vld [vmem:[%s7709 + $0x2c] sm:$0xf]
    %v7722 = vld [vmem:[%s7709 + $0x30] sm:$0xf]
    %v7723 = vld [vmem:[%s7709 + $0x34] sm:$0xf]
    %v7724 = vld [vmem:[%s7709 + $0x38] sm:$0xf]
    %v7725 = vld [vmem:[%s7709 + $0x3c] sm:$0xf]
    %v7742 = vunpack.c.l.b16 %v7710
    %v7743 = vunpack.c.l.b16 %v7711
    %v7744 = vunpack.c.l.b16 %v7712
    %v7745 = vunpack.c.l.b16 %v7713
    %v7746 = vunpack.c.l.b16 %v7714
    %v7747 = vunpack.c.l.b16 %v7715
    %v7748 = vunpack.c.l.b16 %v7716
    %v7749 = vunpack.c.l.b16 %v7717
    %v7750 = vunpack.c.l.b16 %v7718
    %v7751 = vunpack.c.l.b16 %v7719
    %v7752 = vunpack.c.l.b16 %v7720
    %v7753 = vunpack.c.l.b16 %v7721
    %v7754 = vunpack.c.l.b16 %v7722
    %v7755 = vunpack.c.l.b16 %v7723
    %v7756 = vunpack.c.l.b16 %v7724
    %v7757 = vunpack.c.l.b16 %v7725
    %v7758 = vpack.c.b16 %v7743, %v7742
    %v7759 = vpack.c.b16 %v7745, %v7744
    %v7760 = vpack.c.b16 %v7747, %v7746
    %v7761 = vpack.c.b16 %v7749, %v7748
    %v7762 = vpack.c.b16 %v7751, %v7750
    %v7763 = vpack.c.b16 %v7753, %v7752
    %v7764 = vpack.c.b16 %v7755, %v7754
    %v7765 = vpack.c.b16 %v7757, %v7756
    %7774 = vmatprep.subr.bf16.mxu0 0
    %7775 = vmatpush1.bf16.msra.mxu0 %v7765
    %7776 = vmatprep.subr.bf16.mxu0 0
    %7777 = vmatpush1.bf16.msra.mxu0 %v7764
    %7778 = vmatprep.subr.bf16.mxu0 0
    %7779 = vmatpush1.bf16.msra.mxu0 %v7763
    %7780 = vmatprep.subr.bf16.mxu0 0
    %7781 = vmatpush1.bf16.msra.mxu0 %v7762
    %7782 = vmatprep.subr.bf16.mxu0 0
    %7783 = vmatpush1.bf16.msra.mxu0 %v7761
    %7784 = vmatprep.subr.bf16.mxu0 0
    %7785 = vmatpush1.bf16.msra.mxu0 %v7760
    %7786 = vmatprep.subr.bf16.mxu0 0
    %7787 = vmatpush1.bf16.msra.mxu0 %v7759
    %7788 = vmatprep.subr.bf16.mxu0 0
    %7789 = vmatpush1.bf16.msra.mxu0 %v7758
    %7790 = vmatprep.subr.bf16.mxu0 0
    %7791 = vmatpush2.bf16.msra.mxu0 0
    %7792 = vmatprep.subr.bf16.mxu0 0
    %7793 = vmatpush2.bf16.msra.mxu0 0
    %7794 = vmatprep.subr.bf16.mxu0 0
    %7795 = vmatpush2.bf16.msra.mxu0 0
    %7796 = vmatprep.subr.bf16.mxu0 0
    %7797 = vmatpush2.bf16.msra.mxu0 0
    %7798 = vmatprep.subr.bf16.mxu0 0
    %7799 = vmatpush2.bf16.msra.mxu0 0
    %7800 = vmatprep.subr.bf16.mxu0 0
    %7801 = vmatpush2.bf16.msra.mxu0 0
    %7802 = vmatprep.subr.bf16.mxu0 0
    %7803 = vmatpush2.bf16.msra.mxu0 0
    %7804 = vmatprep.subr.bf16.mxu0 0
    %7805 = vmatpush2.bf16.msra.mxu0 0
    %7806 = vmatprep.mubr.bf16.mxu0 0
    %7807 = vmatmul.mubr.bf16.gmra.mxu0 %v7708
    %v7808 = vpop.f32.mrf.mxu0
    %v7809 = vadd.f32 0.0, %v7808
    %v7810 = vpop.f32.mrf.mxu0
    %v7811 = vpop.f32.mrf.mxu0
    %v7812 = vpop.f32.mrf.mxu0
    %7813 = vdwg.mxu0
    %v7814 = vadd.f32 %v7706, %v7809
    %v7815 = vld [vmem:[#allocation4 + $0x4] sm:$0xff]
    %v7816 = vpack.c.bf16 %v7815, %v7815
    %s7817 = scalar_lea.vmem %s3, 256
    %v7818 = vld [vmem:[%s7817] sm:$0xf]
    %v7819 = vld [vmem:[%s7817 + $0x4] sm:$0xf]
    %v7820 = vld [vmem:[%s7817 + $0x8] sm:$0xf]
    %v7821 = vld [vmem:[%s7817 + $0xc] sm:$0xf]
    %v7822 = vld [vmem:[%s7817 + $0x10] sm:$0xf]
    %v7823 = vld [vmem:[%s7817 + $0x14] sm:$0xf]
    %v7824 = vld [vmem:[%s7817 + $0x18] sm:$0xf]
    %v7825 = vld [vmem:[%s7817 + $0x1c] sm:$0xf]
    %v7826 = vld [vmem:[%s7817 + $0x20] sm:$0xf]
    %v7827 = vld [vmem:[%s7817 + $0x24] sm:$0xf]
    %v7828 = vld [vmem:[%s7817 + $0x28] sm:$0xf]
    %v7829 = vld [vmem:[%s7817 + $0x2c] sm:$0xf]
    %v7830 = vld [vmem:[%s7817 + $0x30] sm:$0xf]
    %v7831 = vld [vmem:[%s7817 + $0x34] sm:$0xf]
    %v7832 = vld [vmem:[%s7817 + $0x38] sm:$0xf]
    %v7833 = vld [vmem:[%s7817 + $0x3c] sm:$0xf]
    %v7850 = vunpack.c.l.b16 %v7818
    %v7851 = vunpack.c.l.b16 %v7819
    %v7852 = vunpack.c.l.b16 %v7820
    %v7853 = vunpack.c.l.b16 %v7821
    %v7854 = vunpack.c.l.b16 %v7822
    %v7855 = vunpack.c.l.b16 %v7823
    %v7856 = vunpack.c.l.b16 %v7824
    %v7857 = vunpack.c.l.b16 %v7825
    %v7858 = vunpack.c.l.b16 %v7826
    %v7859 = vunpack.c.l.b16 %v7827
    %v7860 = vunpack.c.l.b16 %v7828
    %v7861 = vunpack.c.l.b16 %v7829
    %v7862 = vunpack.c.l.b16 %v7830
    %v7863 = vunpack.c.l.b16 %v7831
    %v7864 = vunpack.c.l.b16 %v7832
    %v7865 = vunpack.c.l.b16 %v7833
    %v7866 = vpack.c.b16 %v7851, %v7850
    %v7867 = vpack.c.b16 %v7853, %v7852
    %v7868 = vpack.c.b16 %v7855, %v7854
    %v7869 = vpack.c.b16 %v7857, %v7856
    %v7870 = vpack.c.b16 %v7859, %v7858
    %v7871 = vpack.c.b16 %v7861, %v7860
    %v7872 = vpack.c.b16 %v7863, %v7862
    %v7873 = vpack.c.b16 %v7865, %v7864
    %7882 = vmatprep.subr.bf16.mxu0 0
    %7883 = vmatpush1.bf16.msra.mxu0 %v7873
    %7884 = vmatprep.subr.bf16.mxu0 0
    %7885 = vmatpush1.bf16.msra.mxu0 %v7872
    %7886 = vmatprep.subr.bf16.mxu0 0
    %7887 = vmatpush1.bf16.msra.mxu0 %v7871
    %7888 = vmatprep.subr.bf16.mxu0 0
    %7889 = vmatpush1.bf16.msra.mxu0 %v7870
    %7890 = vmatprep.subr.bf16.mxu0 0
    %7891 = vmatpush1.bf16.msra.mxu0 %v7869
    %7892 = vmatprep.subr.bf16.mxu0 0
    %7893 = vmatpush1.bf16.msra.mxu0 %v7868
    %7894 = vmatprep.subr.bf16.mxu0 0
    %7895 = vmatpush1.bf16.msra.mxu0 %v7867
    %7896 = vmatprep.subr.bf16.mxu0 0
    %7897 = vmatpush1.bf16.msra.mxu0 %v7866
    %7898 = vmatprep.subr.bf16.mxu0 0
    %7899 = vmatpush2.bf16.msra.mxu0 0
    %7900 = vmatprep.subr.bf16.mxu0 0
    %7901 = vmatpush2.bf16.msra.mxu0 0
    %7902 = vmatprep.subr.bf16.mxu0 0
    %7903 = vmatpush2.bf16.msra.mxu0 0
    %7904 = vmatprep.subr.bf16.mxu0 0
    %7905 = vmatpush2.bf16.msra.mxu0 0
    %7906 = vmatprep.subr.bf16.mxu0 0
    %7907 = vmatpush2.bf16.msra.mxu0 0
    %7908 = vmatprep.subr.bf16.mxu0 0
    %7909 = vmatpush2.bf16.msra.mxu0 0
    %7910 = vmatprep.subr.bf16.mxu0 0
    %7911 = vmatpush2.bf16.msra.mxu0 0
    %7912 = vmatprep.subr.bf16.mxu0 0
    %7913 = vmatpush2.bf16.msra.mxu0 0
    %7914 = vmatprep.mubr.bf16.mxu0 0
    %7915 = vmatmul.mubr.bf16.gmra.mxu0 %v7816
    %v7916 = vpop.f32.mrf.mxu0
    %v7917 = vadd.f32 0.0, %v7916
    %v7918 = vpop.f32.mrf.mxu0
    %v7919 = vpop.f32.mrf.mxu0
    %v7920 = vpop.f32.mrf.mxu0
    %7921 = vdwg.mxu0
    %v7922 = vadd.f32 %v7814, %v7917
    %v7923 = vld [vmem:[#allocation4 + $0x8] sm:$0xff]
    %v7924 = vpack.c.bf16 %v7923, %v7923
    %s7925 = scalar_lea.vmem %s3, 320
    %v7926 = vld [vmem:[%s7925] sm:$0xf]
    %v7927 = vld [vmem:[%s7925 + $0x4] sm:$0xf]
    %v7928 = vld [vmem:[%s7925 + $0x8] sm:$0xf]
    %v7929 = vld [vmem:[%s7925 + $0xc] sm:$0xf]
    %v7930 = vld [vmem:[%s7925 + $0x10] sm:$0xf]
    %v7931 = vld [vmem:[%s7925 + $0x14] sm:$0xf]
    %v7932 = vld [vmem:[%s7925 + $0x18] sm:$0xf]
    %v7933 = vld [vmem:[%s7925 + $0x1c] sm:$0xf]
    %v7934 = vld [vmem:[%s7925 + $0x20] sm:$0xf]
    %v7935 = vld [vmem:[%s7925 + $0x24] sm:$0xf]
    %v7936 = vld [vmem:[%s7925 + $0x28] sm:$0xf]
    %v7937 = vld [vmem:[%s7925 + $0x2c] sm:$0xf]
    %v7938 = vld [vmem:[%s7925 + $0x30] sm:$0xf]
    %v7939 = vld [vmem:[%s7925 + $0x34] sm:$0xf]
    %v7940 = vld [vmem:[%s7925 + $0x38] sm:$0xf]
    %v7941 = vld [vmem:[%s7925 + $0x3c] sm:$0xf]
    %v7958 = vunpack.c.l.b16 %v7926
    %v7959 = vunpack.c.l.b16 %v7927
    %v7960 = vunpack.c.l.b16 %v7928
    %v7961 = vunpack.c.l.b16 %v7929
    %v7962 = vunpack.c.l.b16 %v7930
    %v7963 = vunpack.c.l.b16 %v7931
    %v7964 = vunpack.c.l.b16 %v7932
    %v7965 = vunpack.c.l.b16 %v7933
    %v7966 = vunpack.c.l.b16 %v7934
    %v7967 = vunpack.c.l.b16 %v7935
    %v7968 = vunpack.c.l.b16 %v7936
    %v7969 = vunpack.c.l.b16 %v7937
    %v7970 = vunpack.c.l.b16 %v7938
    %v7971 = vunpack.c.l.b16 %v7939
    %v7972 = vunpack.c.l.b16 %v7940
    %v7973 = vunpack.c.l.b16 %v7941
    %v7974 = vpack.c.b16 %v7959, %v7958
    %v7975 = vpack.c.b16 %v7961, %v7960
    %v7976 = vpack.c.b16 %v7963, %v7962
    %v7977 = vpack.c.b16 %v7965, %v7964
    %v7978 = vpack.c.b16 %v7967, %v7966
    %v7979 = vpack.c.b16 %v7969, %v7968
    %v7980 = vpack.c.b16 %v7971, %v7970
    %v7981 = vpack.c.b16 %v7973, %v7972
    %7990 = vmatprep.subr.bf16.mxu0 0
    %7991 = vmatpush1.bf16.msra.mxu0 %v7981
    %7992 = vmatprep.subr.bf16.mxu0 0
    %7993 = vmatpush1.bf16.msra.mxu0 %v7980
    %7994 = vmatprep.subr.bf16.mxu0 0
    %7995 = vmatpush1.bf16.msra.mxu0 %v7979
    %7996 = vmatprep.subr.bf16.mxu0 0
    %7997 = vmatpush1.bf16.msra.mxu0 %v7978
    %7998 = vmatprep.subr.bf16.mxu0 0
    %7999 = vmatpush1.bf16.msra.mxu0 %v7977
    %8000 = vmatprep.subr.bf16.mxu0 0
    %8001 = vmatpush1.bf16.msra.mxu0 %v7976
    %8002 = vmatprep.subr.bf16.mxu0 0
    %8003 = vmatpush1.bf16.msra.mxu0 %v7975
    %8004 = vmatprep.subr.bf16.mxu0 0
    %8005 = vmatpush1.bf16.msra.mxu0 %v7974
    %8006 = vmatprep.subr.bf16.mxu0 0
    %8007 = vmatpush2.bf16.msra.mxu0 0
    %8008 = vmatprep.subr.bf16.mxu0 0
    %8009 = vmatpush2.bf16.msra.mxu0 0
    %8010 = vmatprep.subr.bf16.mxu0 0
    %8011 = vmatpush2.bf16.msra.mxu0 0
    %8012 = vmatprep.subr.bf16.mxu0 0
    %8013 = vmatpush2.bf16.msra.mxu0 0
    %8014 = vmatprep.subr.bf16.mxu0 0
    %8015 = vmatpush2.bf16.msra.mxu0 0
    %8016 = vmatprep.subr.bf16.mxu0 0
    %8017 = vmatpush2.bf16.msra.mxu0 0
    %8018 = vmatprep.subr.bf16.mxu0 0
    %8019 = vmatpush2.bf16.msra.mxu0 0
    %8020 = vmatprep.subr.bf16.mxu0 0
    %8021 = vmatpush2.bf16.msra.mxu0 0
    %8022 = vmatprep.mubr.bf16.mxu0 0
    %8023 = vmatmul.mubr.bf16.gmra.mxu0 %v7924
    %v8024 = vpop.f32.mrf.mxu0
    %v8025 = vadd.f32 0.0, %v8024
    %v8026 = vpop.f32.mrf.mxu0
    %v8027 = vpop.f32.mrf.mxu0
    %v8028 = vpop.f32.mrf.mxu0
    %8029 = vdwg.mxu0
    %v8030 = vadd.f32 %v7922, %v8025
    %v8031 = vld [vmem:[#allocation4 + $0x9] sm:$0xff]
    %v8032 = vpack.c.bf16 %v8031, %v8031
    %s8033 = scalar_lea.vmem %s3, 384
    %v8034 = vld [vmem:[%s8033] sm:$0xf]
    %v8035 = vld [vmem:[%s8033 + $0x4] sm:$0xf]
    %v8036 = vld [vmem:[%s8033 + $0x8] sm:$0xf]
    %v8037 = vld [vmem:[%s8033 + $0xc] sm:$0xf]
    %v8038 = vld [vmem:[%s8033 + $0x10] sm:$0xf]
    %v8039 = vld [vmem:[%s8033 + $0x14] sm:$0xf]
    %v8040 = vld [vmem:[%s8033 + $0x18] sm:$0xf]
    %v8041 = vld [vmem:[%s8033 + $0x1c] sm:$0xf]
    %v8042 = vld [vmem:[%s8033 + $0x20] sm:$0xf]
    %v8043 = vld [vmem:[%s8033 + $0x24] sm:$0xf]
    %v8044 = vld [vmem:[%s8033 + $0x28] sm:$0xf]
    %v8045 = vld [vmem:[%s8033 + $0x2c] sm:$0xf]
    %v8046 = vld [vmem:[%s8033 + $0x30] sm:$0xf]
    %v8047 = vld [vmem:[%s8033 + $0x34] sm:$0xf]
    %v8048 = vld [vmem:[%s8033 + $0x38] sm:$0xf]
    %v8049 = vld [vmem:[%s8033 + $0x3c] sm:$0xf]
    %v8066 = vunpack.c.l.b16 %v8034
    %v8067 = vunpack.c.l.b16 %v8035
    %v8068 = vunpack.c.l.b16 %v8036
    %v8069 = vunpack.c.l.b16 %v8037
    %v8070 = vunpack.c.l.b16 %v8038
    %v8071 = vunpack.c.l.b16 %v8039
    %v8072 = vunpack.c.l.b16 %v8040
    %v8073 = vunpack.c.l.b16 %v8041
    %v8074 = vunpack.c.l.b16 %v8042
    %v8075 = vunpack.c.l.b16 %v8043
    %v8076 = vunpack.c.l.b16 %v8044
    %v8077 = vunpack.c.l.b16 %v8045
    %v8078 = vunpack.c.l.b16 %v8046
    %v8079 = vunpack.c.l.b16 %v8047
    %v8080 = vunpack.c.l.b16 %v8048
    %v8081 = vunpack.c.l.b16 %v8049
    %v8082 = vpack.c.b16 %v8067, %v8066
    %v8083 = vpack.c.b16 %v8069, %v8068
    %v8084 = vpack.c.b16 %v8071, %v8070
    %v8085 = vpack.c.b16 %v8073, %v8072
    %v8086 = vpack.c.b16 %v8075, %v8074
    %v8087 = vpack.c.b16 %v8077, %v8076
    %v8088 = vpack.c.b16 %v8079, %v8078
    %v8089 = vpack.c.b16 %v8081, %v8080
    %8098 = vmatprep.subr.bf16.mxu0 0
    %8099 = vmatpush1.bf16.msra.mxu0 %v8089
    %8100 = vmatprep.subr.bf16.mxu0 0
    %8101 = vmatpush1.bf16.msra.mxu0 %v8088
    %8102 = vmatprep.subr.bf16.mxu0 0
    %8103 = vmatpush1.bf16.msra.mxu0 %v8087
    %8104 = vmatprep.subr.bf16.mxu0 0
    %8105 = vmatpush1.bf16.msra.mxu0 %v8086
    %8106 = vmatprep.subr.bf16.mxu0 0
    %8107 = vmatpush1.bf16.msra.mxu0 %v8085
    %8108 = vmatprep.subr.bf16.mxu0 0
    %8109 = vmatpush1.bf16.msra.mxu0 %v8084
    %8110 = vmatprep.subr.bf16.mxu0 0
    %8111 = vmatpush1.bf16.msra.mxu0 %v8083
    %8112 = vmatprep.subr.bf16.mxu0 0
    %8113 = vmatpush1.bf16.msra.mxu0 %v8082
    %8114 = vmatprep.subr.bf16.mxu0 0
    %8115 = vmatpush2.bf16.msra.mxu0 0
    %8116 = vmatprep.subr.bf16.mxu0 0
    %8117 = vmatpush2.bf16.msra.mxu0 0
    %8118 = vmatprep.subr.bf16.mxu0 0
    %8119 = vmatpush2.bf16.msra.mxu0 0
    %8120 = vmatprep.subr.bf16.mxu0 0
    %8121 = vmatpush2.bf16.msra.mxu0 0
    %8122 = vmatprep.subr.bf16.mxu0 0
    %8123 = vmatpush2.bf16.msra.mxu0 0
    %8124 = vmatprep.subr.bf16.mxu0 0
    %8125 = vmatpush2.bf16.msra.mxu0 0
    %8126 = vmatprep.subr.bf16.mxu0 0
    %8127 = vmatpush2.bf16.msra.mxu0 0
    %8128 = vmatprep.subr.bf16.mxu0 0
    %8129 = vmatpush2.bf16.msra.mxu0 0
    %8130 = vmatprep.mubr.bf16.mxu0 0
    %8131 = vmatmul.mubr.bf16.gmra.mxu0 %v8032
    %v8132 = vpop.f32.mrf.mxu0
    %v8133 = vadd.f32 0.0, %v8132
    %v8134 = vpop.f32.mrf.mxu0
    %v8135 = vpop.f32.mrf.mxu0
    %v8136 = vpop.f32.mrf.mxu0
    %8137 = vdwg.mxu0
    %v8138 = vadd.f32 %v8030, %v8133
    %v8139 = vld [vmem:[#allocation4 + $0xa] sm:$0xff]
    %v8140 = vpack.c.bf16 %v8139, %v8139
    %s8141 = scalar_lea.vmem %s3, 448
    %v8142 = vld [vmem:[%s8141] sm:$0xf]
    %v8143 = vld [vmem:[%s8141 + $0x4] sm:$0xf]
    %v8144 = vld [vmem:[%s8141 + $0x8] sm:$0xf]
    %v8145 = vld [vmem:[%s8141 + $0xc] sm:$0xf]
    %v8146 = vld [vmem:[%s8141 + $0x10] sm:$0xf]
    %v8147 = vld [vmem:[%s8141 + $0x14] sm:$0xf]
    %v8148 = vld [vmem:[%s8141 + $0x18] sm:$0xf]
    %v8149 = vld [vmem:[%s8141 + $0x1c] sm:$0xf]
    %v8150 = vld [vmem:[%s8141 + $0x20] sm:$0xf]
    %v8151 = vld [vmem:[%s8141 + $0x24] sm:$0xf]
    %v8152 = vld [vmem:[%s8141 + $0x28] sm:$0xf]
    %v8153 = vld [vmem:[%s8141 + $0x2c] sm:$0xf]
    %v8154 = vld [vmem:[%s8141 + $0x30] sm:$0xf]
    %v8155 = vld [vmem:[%s8141 + $0x34] sm:$0xf]
    %v8156 = vld [vmem:[%s8141 + $0x38] sm:$0xf]
    %v8157 = vld [vmem:[%s8141 + $0x3c] sm:$0xf]
    %v8174 = vunpack.c.l.b16 %v8142
    %v8175 = vunpack.c.l.b16 %v8143
    %v8176 = vunpack.c.l.b16 %v8144
    %v8177 = vunpack.c.l.b16 %v8145
    %v8178 = vunpack.c.l.b16 %v8146
    %v8179 = vunpack.c.l.b16 %v8147
    %v8180 = vunpack.c.l.b16 %v8148
    %v8181 = vunpack.c.l.b16 %v8149
    %v8182 = vunpack.c.l.b16 %v8150
    %v8183 = vunpack.c.l.b16 %v8151
    %v8184 = vunpack.c.l.b16 %v8152
    %v8185 = vunpack.c.l.b16 %v8153
    %v8186 = vunpack.c.l.b16 %v8154
    %v8187 = vunpack.c.l.b16 %v8155
    %v8188 = vunpack.c.l.b16 %v8156
    %v8189 = vunpack.c.l.b16 %v8157
    %v8190 = vpack.c.b16 %v8175, %v8174
    %v8191 = vpack.c.b16 %v8177, %v8176
    %v8192 = vpack.c.b16 %v8179, %v8178
    %v8193 = vpack.c.b16 %v8181, %v8180
    %v8194 = vpack.c.b16 %v8183, %v8182
    %v8195 = vpack.c.b16 %v8185, %v8184
    %v8196 = vpack.c.b16 %v8187, %v8186
    %v8197 = vpack.c.b16 %v8189, %v8188
    %8206 = vmatprep.subr.bf16.mxu0 0
    %8207 = vmatpush1.bf16.msra.mxu0 %v8197
    %8208 = vmatprep.subr.bf16.mxu0 0
    %8209 = vmatpush1.bf16.msra.mxu0 %v8196
    %8210 = vmatprep.subr.bf16.mxu0 0
    %8211 = vmatpush1.bf16.msra.mxu0 %v8195
    %8212 = vmatprep.subr.bf16.mxu0 0
    %8213 = vmatpush1.bf16.msra.mxu0 %v8194
    %8214 = vmatprep.subr.bf16.mxu0 0
    %8215 = vmatpush1.bf16.msra.mxu0 %v8193
    %8216 = vmatprep.subr.bf16.mxu0 0
    %8217 = vmatpush1.bf16.msra.mxu0 %v8192
    %8218 = vmatprep.subr.bf16.mxu0 0
    %8219 = vmatpush1.bf16.msra.mxu0 %v8191
    %8220 = vmatprep.subr.bf16.mxu0 0
    %8221 = vmatpush1.bf16.msra.mxu0 %v8190
    %8222 = vmatprep.subr.bf16.mxu0 0
    %8223 = vmatpush2.bf16.msra.mxu0 0
    %8224 = vmatprep.subr.bf16.mxu0 0
    %8225 = vmatpush2.bf16.msra.mxu0 0
    %8226 = vmatprep.subr.bf16.mxu0 0
    %8227 = vmatpush2.bf16.msra.mxu0 0
    %8228 = vmatprep.subr.bf16.mxu0 0
    %8229 = vmatpush2.bf16.msra.mxu0 0
    %8230 = vmatprep.subr.bf16.mxu0 0
    %8231 = vmatpush2.bf16.msra.mxu0 0
    %8232 = vmatprep.subr.bf16.mxu0 0
    %8233 = vmatpush2.bf16.msra.mxu0 0
    %8234 = vmatprep.subr.bf16.mxu0 0
    %8235 = vmatpush2.bf16.msra.mxu0 0
    %8236 = vmatprep.subr.bf16.mxu0 0
    %8237 = vmatpush2.bf16.msra.mxu0 0
    %8238 = vmatprep.mubr.bf16.mxu0 0
    %8239 = vmatmul.mubr.bf16.gmra.mxu0 %v8140
    %v8240 = vpop.f32.mrf.mxu0
    %v8241 = vadd.f32 0.0, %v8240
    %v8242 = vpop.f32.mrf.mxu0
    %v8243 = vpop.f32.mrf.mxu0
    %v8244 = vpop.f32.mrf.mxu0
    %8245 = vdwg.mxu0
    %v8246 = vadd.f32 %v8138, %v8241
    %v8247 = vld [vmem:[#allocation4 + $0xb] sm:$0xff]
    %v8248 = vpack.c.bf16 %v8247, %v8247
    %s8249 = scalar_lea.vmem %s3, 512
    %v8250 = vld [vmem:[%s8249] sm:$0xf]
    %v8251 = vld [vmem:[%s8249 + $0x4] sm:$0xf]
    %v8252 = vld [vmem:[%s8249 + $0x8] sm:$0xf]
    %v8253 = vld [vmem:[%s8249 + $0xc] sm:$0xf]
    %v8254 = vld [vmem:[%s8249 + $0x10] sm:$0xf]
    %v8255 = vld [vmem:[%s8249 + $0x14] sm:$0xf]
    %v8256 = vld [vmem:[%s8249 + $0x18] sm:$0xf]
    %v8257 = vld [vmem:[%s8249 + $0x1c] sm:$0xf]
    %v8258 = vld [vmem:[%s8249 + $0x20] sm:$0xf]
    %v8259 = vld [vmem:[%s8249 + $0x24] sm:$0xf]
    %v8260 = vld [vmem:[%s8249 + $0x28] sm:$0xf]
    %v8261 = vld [vmem:[%s8249 + $0x2c] sm:$0xf]
    %v8262 = vld [vmem:[%s8249 + $0x30] sm:$0xf]
    %v8263 = vld [vmem:[%s8249 + $0x34] sm:$0xf]
    %v8264 = vld [vmem:[%s8249 + $0x38] sm:$0xf]
    %v8265 = vld [vmem:[%s8249 + $0x3c] sm:$0xf]
    %v8282 = vunpack.c.l.b16 %v8250
    %v8283 = vunpack.c.l.b16 %v8251
    %v8284 = vunpack.c.l.b16 %v8252
    %v8285 = vunpack.c.l.b16 %v8253
    %v8286 = vunpack.c.l.b16 %v8254
    %v8287 = vunpack.c.l.b16 %v8255
    %v8288 = vunpack.c.l.b16 %v8256
    %v8289 = vunpack.c.l.b16 %v8257
    %v8290 = vunpack.c.l.b16 %v8258
    %v8291 = vunpack.c.l.b16 %v8259
    %v8292 = vunpack.c.l.b16 %v8260
    %v8293 = vunpack.c.l.b16 %v8261
    %v8294 = vunpack.c.l.b16 %v8262
    %v8295 = vunpack.c.l.b16 %v8263
    %v8296 = vunpack.c.l.b16 %v8264
    %v8297 = vunpack.c.l.b16 %v8265
    %v8298 = vpack.c.b16 %v8283, %v8282
    %v8299 = vpack.c.b16 %v8285, %v8284
    %v8300 = vpack.c.b16 %v8287, %v8286
    %v8301 = vpack.c.b16 %v8289, %v8288
    %v8302 = vpack.c.b16 %v8291, %v8290
    %v8303 = vpack.c.b16 %v8293, %v8292
    %v8304 = vpack.c.b16 %v8295, %v8294
    %v8305 = vpack.c.b16 %v8297, %v8296
    %8314 = vmatprep.subr.bf16.mxu0 0
    %8315 = vmatpush1.bf16.msra.mxu0 %v8305
    %8316 = vmatprep.subr.bf16.mxu0 0
    %8317 = vmatpush1.bf16.msra.mxu0 %v8304
    %8318 = vmatprep.subr.bf16.mxu0 0
    %8319 = vmatpush1.bf16.msra.mxu0 %v8303
    %8320 = vmatprep.subr.bf16.mxu0 0
    %8321 = vmatpush1.bf16.msra.mxu0 %v8302
    %8322 = vmatprep.subr.bf16.mxu0 0
    %8323 = vmatpush1.bf16.msra.mxu0 %v8301
    %8324 = vmatprep.subr.bf16.mxu0 0
    %8325 = vmatpush1.bf16.msra.mxu0 %v8300
    %8326 = vmatprep.subr.bf16.mxu0 0
    %8327 = vmatpush1.bf16.msra.mxu0 %v8299
    %8328 = vmatprep.subr.bf16.mxu0 0
    %8329 = vmatpush1.bf16.msra.mxu0 %v8298
    %8330 = vmatprep.subr.bf16.mxu0 0
    %8331 = vmatpush2.bf16.msra.mxu0 0
    %8332 = vmatprep.subr.bf16.mxu0 0
    %8333 = vmatpush2.bf16.msra.mxu0 0
    %8334 = vmatprep.subr.bf16.mxu0 0
    %8335 = vmatpush2.bf16.msra.mxu0 0
    %8336 = vmatprep.subr.bf16.mxu0 0
    %8337 = vmatpush2.bf16.msra.mxu0 0
    %8338 = vmatprep.subr.bf16.mxu0 0
    %8339 = vmatpush2.bf16.msra.mxu0 0
    %8340 = vmatprep.subr.bf16.mxu0 0
    %8341 = vmatpush2.bf16.msra.mxu0 0
    %8342 = vmatprep.subr.bf16.mxu0 0
    %8343 = vmatpush2.bf16.msra.mxu0 0
    %8344 = vmatprep.subr.bf16.mxu0 0
    %8345 = vmatpush2.bf16.msra.mxu0 0
    %8346 = vmatprep.mubr.bf16.mxu0 0
    %8347 = vmatmul.mubr.bf16.gmra.mxu0 %v8248
    %v8348 = vpop.f32.mrf.mxu0
    %v8349 = vadd.f32 0.0, %v8348
    %v8350 = vpop.f32.mrf.mxu0
    %v8351 = vpop.f32.mrf.mxu0
    %v8352 = vpop.f32.mrf.mxu0
    %8353 = vdwg.mxu0
    %v8354 = vadd.f32 %v8246, %v8349
    %v8355 = vld [vmem:[#allocation4 + $0xc] sm:$0xff]
    %v8356 = vpack.c.bf16 %v8355, %v8355
    %s8357 = scalar_lea.vmem %s3, 576
    %v8358 = vld [vmem:[%s8357] sm:$0xf]
    %v8359 = vld [vmem:[%s8357 + $0x4] sm:$0xf]
    %v8360 = vld [vmem:[%s8357 + $0x8] sm:$0xf]
    %v8361 = vld [vmem:[%s8357 + $0xc] sm:$0xf]
    %v8362 = vld [vmem:[%s8357 + $0x10] sm:$0xf]
    %v8363 = vld [vmem:[%s8357 + $0x14] sm:$0xf]
    %v8364 = vld [vmem:[%s8357 + $0x18] sm:$0xf]
    %v8365 = vld [vmem:[%s8357 + $0x1c] sm:$0xf]
    %v8366 = vld [vmem:[%s8357 + $0x20] sm:$0xf]
    %v8367 = vld [vmem:[%s8357 + $0x24] sm:$0xf]
    %v8368 = vld [vmem:[%s8357 + $0x28] sm:$0xf]
    %v8369 = vld [vmem:[%s8357 + $0x2c] sm:$0xf]
    %v8370 = vld [vmem:[%s8357 + $0x30] sm:$0xf]
    %v8371 = vld [vmem:[%s8357 + $0x34] sm:$0xf]
    %v8372 = vld [vmem:[%s8357 + $0x38] sm:$0xf]
    %v8373 = vld [vmem:[%s8357 + $0x3c] sm:$0xf]
    %v8390 = vunpack.c.l.b16 %v8358
    %v8391 = vunpack.c.l.b16 %v8359
    %v8392 = vunpack.c.l.b16 %v8360
    %v8393 = vunpack.c.l.b16 %v8361
    %v8394 = vunpack.c.l.b16 %v8362
    %v8395 = vunpack.c.l.b16 %v8363
    %v8396 = vunpack.c.l.b16 %v8364
    %v8397 = vunpack.c.l.b16 %v8365
    %v8398 = vunpack.c.l.b16 %v8366
    %v8399 = vunpack.c.l.b16 %v8367
    %v8400 = vunpack.c.l.b16 %v8368
    %v8401 = vunpack.c.l.b16 %v8369
    %v8402 = vunpack.c.l.b16 %v8370
    %v8403 = vunpack.c.l.b16 %v8371
    %v8404 = vunpack.c.l.b16 %v8372
    %v8405 = vunpack.c.l.b16 %v8373
    %v8406 = vpack.c.b16 %v8391, %v8390
    %v8407 = vpack.c.b16 %v8393, %v8392
    %v8408 = vpack.c.b16 %v8395, %v8394
    %v8409 = vpack.c.b16 %v8397, %v8396
    %v8410 = vpack.c.b16 %v8399, %v8398
    %v8411 = vpack.c.b16 %v8401, %v8400
    %v8412 = vpack.c.b16 %v8403, %v8402
    %v8413 = vpack.c.b16 %v8405, %v8404
    %8422 = vmatprep.subr.bf16.mxu0 0
    %8423 = vmatpush1.bf16.msra.mxu0 %v8413
    %8424 = vmatprep.subr.bf16.mxu0 0
    %8425 = vmatpush1.bf16.msra.mxu0 %v8412
    %8426 = vmatprep.subr.bf16.mxu0 0
    %8427 = vmatpush1.bf16.msra.mxu0 %v8411
    %8428 = vmatprep.subr.bf16.mxu0 0
    %8429 = vmatpush1.bf16.msra.mxu0 %v8410
    %8430 = vmatprep.subr.bf16.mxu0 0
    %8431 = vmatpush1.bf16.msra.mxu0 %v8409
    %8432 = vmatprep.subr.bf16.mxu0 0
    %8433 = vmatpush1.bf16.msra.mxu0 %v8408
    %8434 = vmatprep.subr.bf16.mxu0 0
    %8435 = vmatpush1.bf16.msra.mxu0 %v8407
    %8436 = vmatprep.subr.bf16.mxu0 0
    %8437 = vmatpush1.bf16.msra.mxu0 %v8406
    %8438 = vmatprep.subr.bf16.mxu0 0
    %8439 = vmatpush2.bf16.msra.mxu0 0
    %8440 = vmatprep.subr.bf16.mxu0 0
    %8441 = vmatpush2.bf16.msra.mxu0 0
    %8442 = vmatprep.subr.bf16.mxu0 0
    %8443 = vmatpush2.bf16.msra.mxu0 0
    %8444 = vmatprep.subr.bf16.mxu0 0
    %8445 = vmatpush2.bf16.msra.mxu0 0
    %8446 = vmatprep.subr.bf16.mxu0 0
    %8447 = vmatpush2.bf16.msra.mxu0 0
    %8448 = vmatprep.subr.bf16.mxu0 0
    %8449 = vmatpush2.bf16.msra.mxu0 0
    %8450 = vmatprep.subr.bf16.mxu0 0
    %8451 = vmatpush2.bf16.msra.mxu0 0
    %8452 = vmatprep.subr.bf16.mxu0 0
    %8453 = vmatpush2.bf16.msra.mxu0 0
    %8454 = vmatprep.mubr.bf16.mxu0 0
    %8455 = vmatmul.mubr.bf16.gmra.mxu0 %v8356
    %v8456 = vpop.f32.mrf.mxu0
    %v8457 = vadd.f32 0.0, %v8456
    %v8458 = vpop.f32.mrf.mxu0
    %v8459 = vpop.f32.mrf.mxu0
    %v8460 = vpop.f32.mrf.mxu0
    %8461 = vdwg.mxu0
    %v8462 = vadd.f32 %v8354, %v8457
    %v8463 = vld [vmem:[#allocation4 + $0x10] sm:$0xff]
    %v8464 = vpack.c.bf16 %v8463, %v8463
    %s8465 = scalar_lea.vmem %s3, 640
    %v8466 = vld [vmem:[%s8465] sm:$0xf]
    %v8467 = vld [vmem:[%s8465 + $0x4] sm:$0xf]
    %v8468 = vld [vmem:[%s8465 + $0x8] sm:$0xf]
    %v8469 = vld [vmem:[%s8465 + $0xc] sm:$0xf]
    %v8470 = vld [vmem:[%s8465 + $0x10] sm:$0xf]
    %v8471 = vld [vmem:[%s8465 + $0x14] sm:$0xf]
    %v8472 = vld [vmem:[%s8465 + $0x18] sm:$0xf]
    %v8473 = vld [vmem:[%s8465 + $0x1c] sm:$0xf]
    %v8474 = vld [vmem:[%s8465 + $0x20] sm:$0xf]
    %v8475 = vld [vmem:[%s8465 + $0x24] sm:$0xf]
    %v8476 = vld [vmem:[%s8465 + $0x28] sm:$0xf]
    %v8477 = vld [vmem:[%s8465 + $0x2c] sm:$0xf]
    %v8478 = vld [vmem:[%s8465 + $0x30] sm:$0xf]
    %v8479 = vld [vmem:[%s8465 + $0x34] sm:$0xf]
    %v8480 = vld [vmem:[%s8465 + $0x38] sm:$0xf]
    %v8481 = vld [vmem:[%s8465 + $0x3c] sm:$0xf]
    %v8498 = vunpack.c.l.b16 %v8466
    %v8499 = vunpack.c.l.b16 %v8467
    %v8500 = vunpack.c.l.b16 %v8468
    %v8501 = vunpack.c.l.b16 %v8469
    %v8502 = vunpack.c.l.b16 %v8470
    %v8503 = vunpack.c.l.b16 %v8471
    %v8504 = vunpack.c.l.b16 %v8472
    %v8505 = vunpack.c.l.b16 %v8473
    %v8506 = vunpack.c.l.b16 %v8474
    %v8507 = vunpack.c.l.b16 %v8475
    %v8508 = vunpack.c.l.b16 %v8476
    %v8509 = vunpack.c.l.b16 %v8477
    %v8510 = vunpack.c.l.b16 %v8478
    %v8511 = vunpack.c.l.b16 %v8479
    %v8512 = vunpack.c.l.b16 %v8480
    %v8513 = vunpack.c.l.b16 %v8481
    %v8514 = vpack.c.b16 %v8499, %v8498
    %v8515 = vpack.c.b16 %v8501, %v8500
    %v8516 = vpack.c.b16 %v8503, %v8502
    %v8517 = vpack.c.b16 %v8505, %v8504
    %v8518 = vpack.c.b16 %v8507, %v8506
    %v8519 = vpack.c.b16 %v8509, %v8508
    %v8520 = vpack.c.b16 %v8511, %v8510
    %v8521 = vpack.c.b16 %v8513, %v8512
    %8530 = vmatprep.subr.bf16.mxu0 0
    %8531 = vmatpush1.bf16.msra.mxu0 %v8521
    %8532 = vmatprep.subr.bf16.mxu0 0
    %8533 = vmatpush1.bf16.msra.mxu0 %v8520
    %8534 = vmatprep.subr.bf16.mxu0 0
    %8535 = vmatpush1.bf16.msra.mxu0 %v8519
    %8536 = vmatprep.subr.bf16.mxu0 0
    %8537 = vmatpush1.bf16.msra.mxu0 %v8518
    %8538 = vmatprep.subr.bf16.mxu0 0
    %8539 = vmatpush1.bf16.msra.mxu0 %v8517
    %8540 = vmatprep.subr.bf16.mxu0 0
    %8541 = vmatpush1.bf16.msra.mxu0 %v8516
    %8542 = vmatprep.subr.bf16.mxu0 0
    %8543 = vmatpush1.bf16.msra.mxu0 %v8515
    %8544 = vmatprep.subr.bf16.mxu0 0
    %8545 = vmatpush1.bf16.msra.mxu0 %v8514
    %8546 = vmatprep.subr.bf16.mxu0 0
    %8547 = vmatpush2.bf16.msra.mxu0 0
    %8548 = vmatprep.subr.bf16.mxu0 0
    %8549 = vmatpush2.bf16.msra.mxu0 0
    %8550 = vmatprep.subr.bf16.mxu0 0
    %8551 = vmatpush2.bf16.msra.mxu0 0
    %8552 = vmatprep.subr.bf16.mxu0 0
    %8553 = vmatpush2.bf16.msra.mxu0 0
    %8554 = vmatprep.subr.bf16.mxu0 0
    %8555 = vmatpush2.bf16.msra.mxu0 0
    %8556 = vmatprep.subr.bf16.mxu0 0
    %8557 = vmatpush2.bf16.msra.mxu0 0
    %8558 = vmatprep.subr.bf16.mxu0 0
    %8559 = vmatpush2.bf16.msra.mxu0 0
    %8560 = vmatprep.subr.bf16.mxu0 0
    %8561 = vmatpush2.bf16.msra.mxu0 0
    %8562 = vmatprep.mubr.bf16.mxu0 0
    %8563 = vmatmul.mubr.bf16.gmra.mxu0 %v8464
    %v8564 = vpop.f32.mrf.mxu0
    %v8565 = vadd.f32 0.0, %v8564
    %v8566 = vpop.f32.mrf.mxu0
    %v8567 = vpop.f32.mrf.mxu0
    %v8568 = vpop.f32.mrf.mxu0
    %8569 = vdwg.mxu0
    %v8570 = vadd.f32 %v8462, %v8565
    %v8571 = vld [vmem:[#allocation4 + $0x11] sm:$0xff]
    %v8572 = vpack.c.bf16 %v8571, %v8571
    %s8573 = scalar_lea.vmem %s3, 704
    %v8574 = vld [vmem:[%s8573] sm:$0xf]
    %v8575 = vld [vmem:[%s8573 + $0x4] sm:$0xf]
    %v8576 = vld [vmem:[%s8573 + $0x8] sm:$0xf]
    %v8577 = vld [vmem:[%s8573 + $0xc] sm:$0xf]
    %v8578 = vld [vmem:[%s8573 + $0x10] sm:$0xf]
    %v8579 = vld [vmem:[%s8573 + $0x14] sm:$0xf]
    %v8580 = vld [vmem:[%s8573 + $0x18] sm:$0xf]
    %v8581 = vld [vmem:[%s8573 + $0x1c] sm:$0xf]
    %v8582 = vld [vmem:[%s8573 + $0x20] sm:$0xf]
    %v8583 = vld [vmem:[%s8573 + $0x24] sm:$0xf]
    %v8584 = vld [vmem:[%s8573 + $0x28] sm:$0xf]
    %v8585 = vld [vmem:[%s8573 + $0x2c] sm:$0xf]
    %v8586 = vld [vmem:[%s8573 + $0x30] sm:$0xf]
    %v8587 = vld [vmem:[%s8573 + $0x34] sm:$0xf]
    %v8588 = vld [vmem:[%s8573 + $0x38] sm:$0xf]
    %v8589 = vld [vmem:[%s8573 + $0x3c] sm:$0xf]
    %v8606 = vunpack.c.l.b16 %v8574
    %v8607 = vunpack.c.l.b16 %v8575
    %v8608 = vunpack.c.l.b16 %v8576
    %v8609 = vunpack.c.l.b16 %v8577
    %v8610 = vunpack.c.l.b16 %v8578
    %v8611 = vunpack.c.l.b16 %v8579
    %v8612 = vunpack.c.l.b16 %v8580
    %v8613 = vunpack.c.l.b16 %v8581
    %v8614 = vunpack.c.l.b16 %v8582
    %v8615 = vunpack.c.l.b16 %v8583
    %v8616 = vunpack.c.l.b16 %v8584
    %v8617 = vunpack.c.l.b16 %v8585
    %v8618 = vunpack.c.l.b16 %v8586
    %v8619 = vunpack.c.l.b16 %v8587
    %v8620 = vunpack.c.l.b16 %v8588
    %v8621 = vunpack.c.l.b16 %v8589
    %v8622 = vpack.c.b16 %v8607, %v8606
    %v8623 = vpack.c.b16 %v8609, %v8608
    %v8624 = vpack.c.b16 %v8611, %v8610
    %v8625 = vpack.c.b16 %v8613, %v8612
    %v8626 = vpack.c.b16 %v8615, %v8614
    %v8627 = vpack.c.b16 %v8617, %v8616
    %v8628 = vpack.c.b16 %v8619, %v8618
    %v8629 = vpack.c.b16 %v8621, %v8620
    %8638 = vmatprep.subr.bf16.mxu0 0
    %8639 = vmatpush1.bf16.msra.mxu0 %v8629
    %8640 = vmatprep.subr.bf16.mxu0 0
    %8641 = vmatpush1.bf16.msra.mxu0 %v8628
    %8642 = vmatprep.subr.bf16.mxu0 0
    %8643 = vmatpush1.bf16.msra.mxu0 %v8627
    %8644 = vmatprep.subr.bf16.mxu0 0
    %8645 = vmatpush1.bf16.msra.mxu0 %v8626
    %8646 = vmatprep.subr.bf16.mxu0 0
    %8647 = vmatpush1.bf16.msra.mxu0 %v8625
    %8648 = vmatprep.subr.bf16.mxu0 0
    %8649 = vmatpush1.bf16.msra.mxu0 %v8624
    %8650 = vmatprep.subr.bf16.mxu0 0
    %8651 = vmatpush1.bf16.msra.mxu0 %v8623
    %8652 = vmatprep.subr.bf16.mxu0 0
    %8653 = vmatpush1.bf16.msra.mxu0 %v8622
    %8654 = vmatprep.subr.bf16.mxu0 0
    %8655 = vmatpush2.bf16.msra.mxu0 0
    %8656 = vmatprep.subr.bf16.mxu0 0
    %8657 = vmatpush2.bf16.msra.mxu0 0
    %8658 = vmatprep.subr.bf16.mxu0 0
    %8659 = vmatpush2.bf16.msra.mxu0 0
    %8660 = vmatprep.subr.bf16.mxu0 0
    %8661 = vmatpush2.bf16.msra.mxu0 0
    %8662 = vmatprep.subr.bf16.mxu0 0
    %8663 = vmatpush2.bf16.msra.mxu0 0
    %8664 = vmatprep.subr.bf16.mxu0 0
    %8665 = vmatpush2.bf16.msra.mxu0 0
    %8666 = vmatprep.subr.bf16.mxu0 0
    %8667 = vmatpush2.bf16.msra.mxu0 0
    %8668 = vmatprep.subr.bf16.mxu0 0
    %8669 = vmatpush2.bf16.msra.mxu0 0
    %8670 = vmatprep.mubr.bf16.mxu0 0
    %8671 = vmatmul.mubr.bf16.gmra.mxu0 %v8572
    %v8672 = vpop.f32.mrf.mxu0
    %v8673 = vadd.f32 0.0, %v8672
    %v8674 = vpop.f32.mrf.mxu0
    %v8675 = vpop.f32.mrf.mxu0
    %v8676 = vpop.f32.mrf.mxu0
    %8677 = vdwg.mxu0
    %v8678 = vadd.f32 %v8570, %v8673
    %v8679 = vld [vmem:[#allocation4 + $0x12] sm:$0xff]
    %v8680 = vpack.c.bf16 %v8679, %v8679
    %s8681 = scalar_lea.vmem %s3, 768
    %v8682 = vld [vmem:[%s8681] sm:$0xf]
    %v8683 = vld [vmem:[%s8681 + $0x4] sm:$0xf]
    %v8684 = vld [vmem:[%s8681 + $0x8] sm:$0xf]
    %v8685 = vld [vmem:[%s8681 + $0xc] sm:$0xf]
    %v8686 = vld [vmem:[%s8681 + $0x10] sm:$0xf]
    %v8687 = vld [vmem:[%s8681 + $0x14] sm:$0xf]
    %v8688 = vld [vmem:[%s8681 + $0x18] sm:$0xf]
    %v8689 = vld [vmem:[%s8681 + $0x1c] sm:$0xf]
    %v8690 = vld [vmem:[%s8681 + $0x20] sm:$0xf]
    %v8691 = vld [vmem:[%s8681 + $0x24] sm:$0xf]
    %v8692 = vld [vmem:[%s8681 + $0x28] sm:$0xf]
    %v8693 = vld [vmem:[%s8681 + $0x2c] sm:$0xf]
    %v8694 = vld [vmem:[%s8681 + $0x30] sm:$0xf]
    %v8695 = vld [vmem:[%s8681 + $0x34] sm:$0xf]
    %v8696 = vld [vmem:[%s8681 + $0x38] sm:$0xf]
    %v8697 = vld [vmem:[%s8681 + $0x3c] sm:$0xf]
    %v8714 = vunpack.c.l.b16 %v8682
    %v8715 = vunpack.c.l.b16 %v8683
    %v8716 = vunpack.c.l.b16 %v8684
    %v8717 = vunpack.c.l.b16 %v8685
    %v8718 = vunpack.c.l.b16 %v8686
    %v8719 = vunpack.c.l.b16 %v8687
    %v8720 = vunpack.c.l.b16 %v8688
    %v8721 = vunpack.c.l.b16 %v8689
    %v8722 = vunpack.c.l.b16 %v8690
    %v8723 = vunpack.c.l.b16 %v8691
    %v8724 = vunpack.c.l.b16 %v8692
    %v8725 = vunpack.c.l.b16 %v8693
    %v8726 = vunpack.c.l.b16 %v8694
    %v8727 = vunpack.c.l.b16 %v8695
    %v8728 = vunpack.c.l.b16 %v8696
    %v8729 = vunpack.c.l.b16 %v8697
    %v8730 = vpack.c.b16 %v8715, %v8714
    %v8731 = vpack.c.b16 %v8717, %v8716
    %v8732 = vpack.c.b16 %v8719, %v8718
    %v8733 = vpack.c.b16 %v8721, %v8720
    %v8734 = vpack.c.b16 %v8723, %v8722
    %v8735 = vpack.c.b16 %v8725, %v8724
    %v8736 = vpack.c.b16 %v8727, %v8726
    %v8737 = vpack.c.b16 %v8729, %v8728
    %8746 = vmatprep.subr.bf16.mxu0 0
    %8747 = vmatpush1.bf16.msra.mxu0 %v8737
    %8748 = vmatprep.subr.bf16.mxu0 0
    %8749 = vmatpush1.bf16.msra.mxu0 %v8736
    %8750 = vmatprep.subr.bf16.mxu0 0
    %8751 = vmatpush1.bf16.msra.mxu0 %v8735
    %8752 = vmatprep.subr.bf16.mxu0 0
    %8753 = vmatpush1.bf16.msra.mxu0 %v8734
    %8754 = vmatprep.subr.bf16.mxu0 0
    %8755 = vmatpush1.bf16.msra.mxu0 %v8733
    %8756 = vmatprep.subr.bf16.mxu0 0
    %8757 = vmatpush1.bf16.msra.mxu0 %v8732
    %8758 = vmatprep.subr.bf16.mxu0 0
    %8759 = vmatpush1.bf16.msra.mxu0 %v8731
    %8760 = vmatprep.subr.bf16.mxu0 0
    %8761 = vmatpush1.bf16.msra.mxu0 %v8730
    %8762 = vmatprep.subr.bf16.mxu0 0
    %8763 = vmatpush2.bf16.msra.mxu0 0
    %8764 = vmatprep.subr.bf16.mxu0 0
    %8765 = vmatpush2.bf16.msra.mxu0 0
    %8766 = vmatprep.subr.bf16.mxu0 0
    %8767 = vmatpush2.bf16.msra.mxu0 0
    %8768 = vmatprep.subr.bf16.mxu0 0
    %8769 = vmatpush2.bf16.msra.mxu0 0
    %8770 = vmatprep.subr.bf16.mxu0 0
    %8771 = vmatpush2.bf16.msra.mxu0 0
    %8772 = vmatprep.subr.bf16.mxu0 0
    %8773 = vmatpush2.bf16.msra.mxu0 0
    %8774 = vmatprep.subr.bf16.mxu0 0
    %8775 = vmatpush2.bf16.msra.mxu0 0
    %8776 = vmatprep.subr.bf16.mxu0 0
    %8777 = vmatpush2.bf16.msra.mxu0 0
    %8778 = vmatprep.mubr.bf16.mxu0 0
    %8779 = vmatmul.mubr.bf16.gmra.mxu0 %v8680
    %v8780 = vpop.f32.mrf.mxu0
    %v8781 = vadd.f32 0.0, %v8780
    %v8782 = vpop.f32.mrf.mxu0
    %v8783 = vpop.f32.mrf.mxu0
    %v8784 = vpop.f32.mrf.mxu0
    %8785 = vdwg.mxu0
    %v8786 = vadd.f32 %v8678, %v8781
    %v8787 = vld [vmem:[#allocation4 + $0x13] sm:$0xff]
    %v8788 = vpack.c.bf16 %v8787, %v8787
    %s8789 = scalar_lea.vmem %s3, 832
    %v8790 = vld [vmem:[%s8789] sm:$0xf]
    %v8791 = vld [vmem:[%s8789 + $0x4] sm:$0xf]
    %v8792 = vld [vmem:[%s8789 + $0x8] sm:$0xf]
    %v8793 = vld [vmem:[%s8789 + $0xc] sm:$0xf]
    %v8794 = vld [vmem:[%s8789 + $0x10] sm:$0xf]
    %v8795 = vld [vmem:[%s8789 + $0x14] sm:$0xf]
    %v8796 = vld [vmem:[%s8789 + $0x18] sm:$0xf]
    %v8797 = vld [vmem:[%s8789 + $0x1c] sm:$0xf]
    %v8798 = vld [vmem:[%s8789 + $0x20] sm:$0xf]
    %v8799 = vld [vmem:[%s8789 + $0x24] sm:$0xf]
    %v8800 = vld [vmem:[%s8789 + $0x28] sm:$0xf]
    %v8801 = vld [vmem:[%s8789 + $0x2c] sm:$0xf]
    %v8802 = vld [vmem:[%s8789 + $0x30] sm:$0xf]
    %v8803 = vld [vmem:[%s8789 + $0x34] sm:$0xf]
    %v8804 = vld [vmem:[%s8789 + $0x38] sm:$0xf]
    %v8805 = vld [vmem:[%s8789 + $0x3c] sm:$0xf]
    %v8822 = vunpack.c.l.b16 %v8790
    %v8823 = vunpack.c.l.b16 %v8791
    %v8824 = vunpack.c.l.b16 %v8792
    %v8825 = vunpack.c.l.b16 %v8793
    %v8826 = vunpack.c.l.b16 %v8794
    %v8827 = vunpack.c.l.b16 %v8795
    %v8828 = vunpack.c.l.b16 %v8796
    %v8829 = vunpack.c.l.b16 %v8797
    %v8830 = vunpack.c.l.b16 %v8798
    %v8831 = vunpack.c.l.b16 %v8799
    %v8832 = vunpack.c.l.b16 %v8800
    %v8833 = vunpack.c.l.b16 %v8801
    %v8834 = vunpack.c.l.b16 %v8802
    %v8835 = vunpack.c.l.b16 %v8803
    %v8836 = vunpack.c.l.b16 %v8804
    %v8837 = vunpack.c.l.b16 %v8805
    %v8838 = vpack.c.b16 %v8823, %v8822
    %v8839 = vpack.c.b16 %v8825, %v8824
    %v8840 = vpack.c.b16 %v8827, %v8826
    %v8841 = vpack.c.b16 %v8829, %v8828
    %v8842 = vpack.c.b16 %v8831, %v8830
    %v8843 = vpack.c.b16 %v8833, %v8832
    %v8844 = vpack.c.b16 %v8835, %v8834
    %v8845 = vpack.c.b16 %v8837, %v8836
    %8854 = vmatprep.subr.bf16.mxu0 0
    %8855 = vmatpush1.bf16.msra.mxu0 %v8845
    %8856 = vmatprep.subr.bf16.mxu0 0
    %8857 = vmatpush1.bf16.msra.mxu0 %v8844
    %8858 = vmatprep.subr.bf16.mxu0 0
    %8859 = vmatpush1.bf16.msra.mxu0 %v8843
    %8860 = vmatprep.subr.bf16.mxu0 0
    %8861 = vmatpush1.bf16.msra.mxu0 %v8842
    %8862 = vmatprep.subr.bf16.mxu0 0
    %8863 = vmatpush1.bf16.msra.mxu0 %v8841
    %8864 = vmatprep.subr.bf16.mxu0 0
    %8865 = vmatpush1.bf16.msra.mxu0 %v8840
    %8866 = vmatprep.subr.bf16.mxu0 0
    %8867 = vmatpush1.bf16.msra.mxu0 %v8839
    %8868 = vmatprep.subr.bf16.mxu0 0
    %8869 = vmatpush1.bf16.msra.mxu0 %v8838
    %8870 = vmatprep.subr.bf16.mxu0 0
    %8871 = vmatpush2.bf16.msra.mxu0 0
    %8872 = vmatprep.subr.bf16.mxu0 0
    %8873 = vmatpush2.bf16.msra.mxu0 0
    %8874 = vmatprep.subr.bf16.mxu0 0
    %8875 = vmatpush2.bf16.msra.mxu0 0
    %8876 = vmatprep.subr.bf16.mxu0 0
    %8877 = vmatpush2.bf16.msra.mxu0 0
    %8878 = vmatprep.subr.bf16.mxu0 0
    %8879 = vmatpush2.bf16.msra.mxu0 0
    %8880 = vmatprep.subr.bf16.mxu0 0
    %8881 = vmatpush2.bf16.msra.mxu0 0
    %8882 = vmatprep.subr.bf16.mxu0 0
    %8883 = vmatpush2.bf16.msra.mxu0 0
    %8884 = vmatprep.subr.bf16.mxu0 0
    %8885 = vmatpush2.bf16.msra.mxu0 0
    %8886 = vmatprep.mubr.bf16.mxu0 0
    %8887 = vmatmul.mubr.bf16.gmra.mxu0 %v8788
    %v8888 = vpop.f32.mrf.mxu0
    %v8889 = vadd.f32 0.0, %v8888
    %v8890 = vpop.f32.mrf.mxu0
    %v8891 = vpop.f32.mrf.mxu0
    %v8892 = vpop.f32.mrf.mxu0
    %8893 = vdwg.mxu0
    %v8894 = vadd.f32 %v8786, %v8889
    %v8895 = vld [vmem:[#allocation4 + $0x14] sm:$0xff]
    %v8896 = vpack.c.bf16 %v8895, %v8895
    %s8897 = scalar_lea.vmem %s3, 896
    %v8898 = vld [vmem:[%s8897] sm:$0xf]
    %v8899 = vld [vmem:[%s8897 + $0x4] sm:$0xf]
    %v8900 = vld [vmem:[%s8897 + $0x8] sm:$0xf]
    %v8901 = vld [vmem:[%s8897 + $0xc] sm:$0xf]
    %v8902 = vld [vmem:[%s8897 + $0x10] sm:$0xf]
    %v8903 = vld [vmem:[%s8897 + $0x14] sm:$0xf]
    %v8904 = vld [vmem:[%s8897 + $0x18] sm:$0xf]
    %v8905 = vld [vmem:[%s8897 + $0x1c] sm:$0xf]
    %v8906 = vld [vmem:[%s8897 + $0x20] sm:$0xf]
    %v8907 = vld [vmem:[%s8897 + $0x24] sm:$0xf]
    %v8908 = vld [vmem:[%s8897 + $0x28] sm:$0xf]
    %v8909 = vld [vmem:[%s8897 + $0x2c] sm:$0xf]
    %v8910 = vld [vmem:[%s8897 + $0x30] sm:$0xf]
    %v8911 = vld [vmem:[%s8897 + $0x34] sm:$0xf]
    %v8912 = vld [vmem:[%s8897 + $0x38] sm:$0xf]
    %v8913 = vld [vmem:[%s8897 + $0x3c] sm:$0xf]
    %v8930 = vunpack.c.l.b16 %v8898
    %v8931 = vunpack.c.l.b16 %v8899
    %v8932 = vunpack.c.l.b16 %v8900
    %v8933 = vunpack.c.l.b16 %v8901
    %v8934 = vunpack.c.l.b16 %v8902
    %v8935 = vunpack.c.l.b16 %v8903
    %v8936 = vunpack.c.l.b16 %v8904
    %v8937 = vunpack.c.l.b16 %v8905
    %v8938 = vunpack.c.l.b16 %v8906
    %v8939 = vunpack.c.l.b16 %v8907
    %v8940 = vunpack.c.l.b16 %v8908
    %v8941 = vunpack.c.l.b16 %v8909
    %v8942 = vunpack.c.l.b16 %v8910
    %v8943 = vunpack.c.l.b16 %v8911
    %v8944 = vunpack.c.l.b16 %v8912
    %v8945 = vunpack.c.l.b16 %v8913
    %v8946 = vpack.c.b16 %v8931, %v8930
    %v8947 = vpack.c.b16 %v8933, %v8932
    %v8948 = vpack.c.b16 %v8935, %v8934
    %v8949 = vpack.c.b16 %v8937, %v8936
    %v8950 = vpack.c.b16 %v8939, %v8938
    %v8951 = vpack.c.b16 %v8941, %v8940
    %v8952 = vpack.c.b16 %v8943, %v8942
    %v8953 = vpack.c.b16 %v8945, %v8944
    %8962 = vmatprep.subr.bf16.mxu0 0
    %8963 = vmatpush1.bf16.msra.mxu0 %v8953
    %8964 = vmatprep.subr.bf16.mxu0 0
    %8965 = vmatpush1.bf16.msra.mxu0 %v8952
    %8966 = vmatprep.subr.bf16.mxu0 0
    %8967 = vmatpush1.bf16.msra.mxu0 %v8951
    %8968 = vmatprep.subr.bf16.mxu0 0
    %8969 = vmatpush1.bf16.msra.mxu0 %v8950
    %8970 = vmatprep.subr.bf16.mxu0 0
    %8971 = vmatpush1.bf16.msra.mxu0 %v8949
    %8972 = vmatprep.subr.bf16.mxu0 0
    %8973 = vmatpush1.bf16.msra.mxu0 %v8948
    %8974 = vmatprep.subr.bf16.mxu0 0
    %8975 = vmatpush1.bf16.msra.mxu0 %v8947
    %8976 = vmatprep.subr.bf16.mxu0 0
    %8977 = vmatpush1.bf16.msra.mxu0 %v8946
    %8978 = vmatprep.subr.bf16.mxu0 0
    %8979 = vmatpush2.bf16.msra.mxu0 0
    %8980 = vmatprep.subr.bf16.mxu0 0
    %8981 = vmatpush2.bf16.msra.mxu0 0
    %8982 = vmatprep.subr.bf16.mxu0 0
    %8983 = vmatpush2.bf16.msra.mxu0 0
    %8984 = vmatprep.subr.bf16.mxu0 0
    %8985 = vmatpush2.bf16.msra.mxu0 0
    %8986 = vmatprep.subr.bf16.mxu0 0
    %8987 = vmatpush2.bf16.msra.mxu0 0
    %8988 = vmatprep.subr.bf16.mxu0 0
    %8989 = vmatpush2.bf16.msra.mxu0 0
    %8990 = vmatprep.subr.bf16.mxu0 0
    %8991 = vmatpush2.bf16.msra.mxu0 0
    %8992 = vmatprep.subr.bf16.mxu0 0
    %8993 = vmatpush2.bf16.msra.mxu0 0
    %8994 = vmatprep.mubr.bf16.mxu0 0
    %8995 = vmatmul.mubr.bf16.gmra.mxu0 %v8896
    %v8996 = vpop.f32.mrf.mxu0
    %v8997 = vadd.f32 0.0, %v8996
    %v8998 = vpop.f32.mrf.mxu0
    %v8999 = vpop.f32.mrf.mxu0
    %v9000 = vpop.f32.mrf.mxu0
    %9001 = vdwg.mxu0
    %v9002 = vadd.f32 %v8894, %v8997
    %v9003 = vld [vmem:[#allocation4 + $0x18] sm:$0xff]
    %v9004 = vpack.c.bf16 %v9003, %v9003
    %s9005 = scalar_lea.vmem %s3, 960
    %v9006 = vld [vmem:[%s9005] sm:$0xf]
    %v9007 = vld [vmem:[%s9005 + $0x4] sm:$0xf]
    %v9008 = vld [vmem:[%s9005 + $0x8] sm:$0xf]
    %v9009 = vld [vmem:[%s9005 + $0xc] sm:$0xf]
    %v9010 = vld [vmem:[%s9005 + $0x10] sm:$0xf]
    %v9011 = vld [vmem:[%s9005 + $0x14] sm:$0xf]
    %v9012 = vld [vmem:[%s9005 + $0x18] sm:$0xf]
    %v9013 = vld [vmem:[%s9005 + $0x1c] sm:$0xf]
    %v9014 = vld [vmem:[%s9005 + $0x20] sm:$0xf]
    %v9015 = vld [vmem:[%s9005 + $0x24] sm:$0xf]
    %v9016 = vld [vmem:[%s9005 + $0x28] sm:$0xf]
    %v9017 = vld [vmem:[%s9005 + $0x2c] sm:$0xf]
    %v9018 = vld [vmem:[%s9005 + $0x30] sm:$0xf]
    %v9019 = vld [vmem:[%s9005 + $0x34] sm:$0xf]
    %v9020 = vld [vmem:[%s9005 + $0x38] sm:$0xf]
    %v9021 = vld [vmem:[%s9005 + $0x3c] sm:$0xf]
    %v9038 = vunpack.c.l.b16 %v9006
    %v9039 = vunpack.c.l.b16 %v9007
    %v9040 = vunpack.c.l.b16 %v9008
    %v9041 = vunpack.c.l.b16 %v9009
    %v9042 = vunpack.c.l.b16 %v9010
    %v9043 = vunpack.c.l.b16 %v9011
    %v9044 = vunpack.c.l.b16 %v9012
    %v9045 = vunpack.c.l.b16 %v9013
    %v9046 = vunpack.c.l.b16 %v9014
    %v9047 = vunpack.c.l.b16 %v9015
    %v9048 = vunpack.c.l.b16 %v9016
    %v9049 = vunpack.c.l.b16 %v9017
    %v9050 = vunpack.c.l.b16 %v9018
    %v9051 = vunpack.c.l.b16 %v9019
    %v9052 = vunpack.c.l.b16 %v9020
    %v9053 = vunpack.c.l.b16 %v9021
    %v9054 = vpack.c.b16 %v9039, %v9038
    %v9055 = vpack.c.b16 %v9041, %v9040
    %v9056 = vpack.c.b16 %v9043, %v9042
    %v9057 = vpack.c.b16 %v9045, %v9044
    %v9058 = vpack.c.b16 %v9047, %v9046
    %v9059 = vpack.c.b16 %v9049, %v9048
    %v9060 = vpack.c.b16 %v9051, %v9050
    %v9061 = vpack.c.b16 %v9053, %v9052
    %9070 = vmatprep.subr.bf16.mxu0 0
    %9071 = vmatpush1.bf16.msra.mxu0 %v9061
    %9072 = vmatprep.subr.bf16.mxu0 0
    %9073 = vmatpush1.bf16.msra.mxu0 %v9060
    %9074 = vmatprep.subr.bf16.mxu0 0
    %9075 = vmatpush1.bf16.msra.mxu0 %v9059
    %9076 = vmatprep.subr.bf16.mxu0 0
    %9077 = vmatpush1.bf16.msra.mxu0 %v9058
    %9078 = vmatprep.subr.bf16.mxu0 0
    %9079 = vmatpush1.bf16.msra.mxu0 %v9057
    %9080 = vmatprep.subr.bf16.mxu0 0
    %9081 = vmatpush1.bf16.msra.mxu0 %v9056
    %9082 = vmatprep.subr.bf16.mxu0 0
    %9083 = vmatpush1.bf16.msra.mxu0 %v9055
    %9084 = vmatprep.subr.bf16.mxu0 0
    %9085 = vmatpush1.bf16.msra.mxu0 %v9054
    %9086 = vmatprep.subr.bf16.mxu0 0
    %9087 = vmatpush2.bf16.msra.mxu0 0
    %9088 = vmatprep.subr.bf16.mxu0 0
    %9089 = vmatpush2.bf16.msra.mxu0 0
    %9090 = vmatprep.subr.bf16.mxu0 0
    %9091 = vmatpush2.bf16.msra.mxu0 0
    %9092 = vmatprep.subr.bf16.mxu0 0
    %9093 = vmatpush2.bf16.msra.mxu0 0
    %9094 = vmatprep.subr.bf16.mxu0 0
    %9095 = vmatpush2.bf16.msra.mxu0 0
    %9096 = vmatprep.subr.bf16.mxu0 0
    %9097 = vmatpush2.bf16.msra.mxu0 0
    %9098 = vmatprep.subr.bf16.mxu0 0
    %9099 = vmatpush2.bf16.msra.mxu0 0
    %9100 = vmatprep.subr.bf16.mxu0 0
    %9101 = vmatpush2.bf16.msra.mxu0 0
    %9102 = vmatprep.mubr.bf16.mxu0 0
    %9103 = vmatmul.mubr.bf16.gmra.mxu0 %v9004
    %v9104 = vpop.f32.mrf.mxu0
    %v9105 = vadd.f32 0.0, %v9104
    %v9106 = vpop.f32.mrf.mxu0
    %v9107 = vpop.f32.mrf.mxu0
    %v9108 = vpop.f32.mrf.mxu0
    %9109 = vdwg.mxu0
    %v9110 = vadd.f32 %v9002, %v9105
    %v9111 = vld [vmem:[#allocation4 + $0x19] sm:$0xff]
    %v9112 = vpack.c.bf16 %v9111, %v9111
    %s9113 = scalar_lea.vmem %s3, 1024
    %v9114 = vld [vmem:[%s9113] sm:$0xf]
    %v9115 = vld [vmem:[%s9113 + $0x4] sm:$0xf]
    %v9116 = vld [vmem:[%s9113 + $0x8] sm:$0xf]
    %v9117 = vld [vmem:[%s9113 + $0xc] sm:$0xf]
    %v9118 = vld [vmem:[%s9113 + $0x10] sm:$0xf]
    %v9119 = vld [vmem:[%s9113 + $0x14] sm:$0xf]
    %v9120 = vld [vmem:[%s9113 + $0x18] sm:$0xf]
    %v9121 = vld [vmem:[%s9113 + $0x1c] sm:$0xf]
    %v9122 = vld [vmem:[%s9113 + $0x20] sm:$0xf]
    %v9123 = vld [vmem:[%s9113 + $0x24] sm:$0xf]
    %v9124 = vld [vmem:[%s9113 + $0x28] sm:$0xf]
    %v9125 = vld [vmem:[%s9113 + $0x2c] sm:$0xf]
    %v9126 = vld [vmem:[%s9113 + $0x30] sm:$0xf]
    %v9127 = vld [vmem:[%s9113 + $0x34] sm:$0xf]
    %v9128 = vld [vmem:[%s9113 + $0x38] sm:$0xf]
    %v9129 = vld [vmem:[%s9113 + $0x3c] sm:$0xf]
    %v9146 = vunpack.c.l.b16 %v9114
    %v9147 = vunpack.c.l.b16 %v9115
    %v9148 = vunpack.c.l.b16 %v9116
    %v9149 = vunpack.c.l.b16 %v9117
    %v9150 = vunpack.c.l.b16 %v9118
    %v9151 = vunpack.c.l.b16 %v9119
    %v9152 = vunpack.c.l.b16 %v9120
    %v9153 = vunpack.c.l.b16 %v9121
    %v9154 = vunpack.c.l.b16 %v9122
    %v9155 = vunpack.c.l.b16 %v9123
    %v9156 = vunpack.c.l.b16 %v9124
    %v9157 = vunpack.c.l.b16 %v9125
    %v9158 = vunpack.c.l.b16 %v9126
    %v9159 = vunpack.c.l.b16 %v9127
    %v9160 = vunpack.c.l.b16 %v9128
    %v9161 = vunpack.c.l.b16 %v9129
    %v9162 = vpack.c.b16 %v9147, %v9146
    %v9163 = vpack.c.b16 %v9149, %v9148
    %v9164 = vpack.c.b16 %v9151, %v9150
    %v9165 = vpack.c.b16 %v9153, %v9152
    %v9166 = vpack.c.b16 %v9155, %v9154
    %v9167 = vpack.c.b16 %v9157, %v9156
    %v9168 = vpack.c.b16 %v9159, %v9158
    %v9169 = vpack.c.b16 %v9161, %v9160
    %9178 = vmatprep.subr.bf16.mxu0 0
    %9179 = vmatpush1.bf16.msra.mxu0 %v9169
    %9180 = vmatprep.subr.bf16.mxu0 0
    %9181 = vmatpush1.bf16.msra.mxu0 %v9168
    %9182 = vmatprep.subr.bf16.mxu0 0
    %9183 = vmatpush1.bf16.msra.mxu0 %v9167
    %9184 = vmatprep.subr.bf16.mxu0 0
    %9185 = vmatpush1.bf16.msra.mxu0 %v9166
    %9186 = vmatprep.subr.bf16.mxu0 0
    %9187 = vmatpush1.bf16.msra.mxu0 %v9165
    %9188 = vmatprep.subr.bf16.mxu0 0
    %9189 = vmatpush1.bf16.msra.mxu0 %v9164
    %9190 = vmatprep.subr.bf16.mxu0 0
    %9191 = vmatpush1.bf16.msra.mxu0 %v9163
    %9192 = vmatprep.subr.bf16.mxu0 0
    %9193 = vmatpush1.bf16.msra.mxu0 %v9162
    %9194 = vmatprep.subr.bf16.mxu0 0
    %9195 = vmatpush2.bf16.msra.mxu0 0
    %9196 = vmatprep.subr.bf16.mxu0 0
    %9197 = vmatpush2.bf16.msra.mxu0 0
    %9198 = vmatprep.subr.bf16.mxu0 0
    %9199 = vmatpush2.bf16.msra.mxu0 0
    %9200 = vmatprep.subr.bf16.mxu0 0
    %9201 = vmatpush2.bf16.msra.mxu0 0
    %9202 = vmatprep.subr.bf16.mxu0 0
    %9203 = vmatpush2.bf16.msra.mxu0 0
    %9204 = vmatprep.subr.bf16.mxu0 0
    %9205 = vmatpush2.bf16.msra.mxu0 0
    %9206 = vmatprep.subr.bf16.mxu0 0
    %9207 = vmatpush2.bf16.msra.mxu0 0
    %9208 = vmatprep.subr.bf16.mxu0 0
    %9209 = vmatpush2.bf16.msra.mxu0 0
    %9210 = vmatprep.mubr.bf16.mxu0 0
    %9211 = vmatmul.mubr.bf16.gmra.mxu0 %v9112
    %v9212 = vpop.f32.mrf.mxu0
    %v9213 = vadd.f32 0.0, %v9212
    %v9214 = vpop.f32.mrf.mxu0
    %v9215 = vpop.f32.mrf.mxu0
    %v9216 = vpop.f32.mrf.mxu0
    %9217 = vdwg.mxu0
    %v9218 = vadd.f32 %v9110, %v9213
    %v9219 = vld [vmem:[#allocation4 + $0x1a] sm:$0xff]
    %v9220 = vpack.c.bf16 %v9219, %v9219
    %s9221 = scalar_lea.vmem %s3, 1088
    %v9222 = vld [vmem:[%s9221] sm:$0xf]
    %v9223 = vld [vmem:[%s9221 + $0x4] sm:$0xf]
    %v9224 = vld [vmem:[%s9221 + $0x8] sm:$0xf]
    %v9225 = vld [vmem:[%s9221 + $0xc] sm:$0xf]
    %v9226 = vld [vmem:[%s9221 + $0x10] sm:$0xf]
    %v9227 = vld [vmem:[%s9221 + $0x14] sm:$0xf]
    %v9228 = vld [vmem:[%s9221 + $0x18] sm:$0xf]
    %v9229 = vld [vmem:[%s9221 + $0x1c] sm:$0xf]
    %v9230 = vld [vmem:[%s9221 + $0x20] sm:$0xf]
    %v9231 = vld [vmem:[%s9221 + $0x24] sm:$0xf]
    %v9232 = vld [vmem:[%s9221 + $0x28] sm:$0xf]
    %v9233 = vld [vmem:[%s9221 + $0x2c] sm:$0xf]
    %v9234 = vld [vmem:[%s9221 + $0x30] sm:$0xf]
    %v9235 = vld [vmem:[%s9221 + $0x34] sm:$0xf]
    %v9236 = vld [vmem:[%s9221 + $0x38] sm:$0xf]
    %v9237 = vld [vmem:[%s9221 + $0x3c] sm:$0xf]
    %v9254 = vunpack.c.l.b16 %v9222
    %v9255 = vunpack.c.l.b16 %v9223
    %v9256 = vunpack.c.l.b16 %v9224
    %v9257 = vunpack.c.l.b16 %v9225
    %v9258 = vunpack.c.l.b16 %v9226
    %v9259 = vunpack.c.l.b16 %v9227
    %v9260 = vunpack.c.l.b16 %v9228
    %v9261 = vunpack.c.l.b16 %v9229
    %v9262 = vunpack.c.l.b16 %v9230
    %v9263 = vunpack.c.l.b16 %v9231
    %v9264 = vunpack.c.l.b16 %v9232
    %v9265 = vunpack.c.l.b16 %v9233
    %v9266 = vunpack.c.l.b16 %v9234
    %v9267 = vunpack.c.l.b16 %v9235
    %v9268 = vunpack.c.l.b16 %v9236
    %v9269 = vunpack.c.l.b16 %v9237
    %v9270 = vpack.c.b16 %v9255, %v9254
    %v9271 = vpack.c.b16 %v9257, %v9256
    %v9272 = vpack.c.b16 %v9259, %v9258
    %v9273 = vpack.c.b16 %v9261, %v9260
    %v9274 = vpack.c.b16 %v9263, %v9262
    %v9275 = vpack.c.b16 %v9265, %v9264
    %v9276 = vpack.c.b16 %v9267, %v9266
    %v9277 = vpack.c.b16 %v9269, %v9268
    %9286 = vmatprep.subr.bf16.mxu0 0
    %9287 = vmatpush1.bf16.msra.mxu0 %v9277
    %9288 = vmatprep.subr.bf16.mxu0 0
    %9289 = vmatpush1.bf16.msra.mxu0 %v9276
    %9290 = vmatprep.subr.bf16.mxu0 0
    %9291 = vmatpush1.bf16.msra.mxu0 %v9275
    %9292 = vmatprep.subr.bf16.mxu0 0
    %9293 = vmatpush1.bf16.msra.mxu0 %v9274
    %9294 = vmatprep.subr.bf16.mxu0 0
    %9295 = vmatpush1.bf16.msra.mxu0 %v9273
    %9296 = vmatprep.subr.bf16.mxu0 0
    %9297 = vmatpush1.bf16.msra.mxu0 %v9272
    %9298 = vmatprep.subr.bf16.mxu0 0
    %9299 = vmatpush1.bf16.msra.mxu0 %v9271
    %9300 = vmatprep.subr.bf16.mxu0 0
    %9301 = vmatpush1.bf16.msra.mxu0 %v9270
    %9302 = vmatprep.subr.bf16.mxu0 0
    %9303 = vmatpush2.bf16.msra.mxu0 0
    %9304 = vmatprep.subr.bf16.mxu0 0
    %9305 = vmatpush2.bf16.msra.mxu0 0
    %9306 = vmatprep.subr.bf16.mxu0 0
    %9307 = vmatpush2.bf16.msra.mxu0 0
    %9308 = vmatprep.subr.bf16.mxu0 0
    %9309 = vmatpush2.bf16.msra.mxu0 0
    %9310 = vmatprep.subr.bf16.mxu0 0
    %9311 = vmatpush2.bf16.msra.mxu0 0
    %9312 = vmatprep.subr.bf16.mxu0 0
    %9313 = vmatpush2.bf16.msra.mxu0 0
    %9314 = vmatprep.subr.bf16.mxu0 0
    %9315 = vmatpush2.bf16.msra.mxu0 0
    %9316 = vmatprep.subr.bf16.mxu0 0
    %9317 = vmatpush2.bf16.msra.mxu0 0
    %9318 = vmatprep.mubr.bf16.mxu0 0
    %9319 = vmatmul.mubr.bf16.gmra.mxu0 %v9220
    %v9320 = vpop.f32.mrf.mxu0
    %v9321 = vadd.f32 0.0, %v9320
    %v9322 = vpop.f32.mrf.mxu0
    %v9323 = vpop.f32.mrf.mxu0
    %v9324 = vpop.f32.mrf.mxu0
    %9325 = vdwg.mxu0
    %v9326 = vadd.f32 %v9218, %v9321
    %v9327 = vld [vmem:[#allocation4 + $0x1b] sm:$0xff]
    %v9328 = vpack.c.bf16 %v9327, %v9327
    %s9329 = scalar_lea.vmem %s3, 1152
    %v9330 = vld [vmem:[%s9329] sm:$0xf]
    %v9331 = vld [vmem:[%s9329 + $0x4] sm:$0xf]
    %v9332 = vld [vmem:[%s9329 + $0x8] sm:$0xf]
    %v9333 = vld [vmem:[%s9329 + $0xc] sm:$0xf]
    %v9334 = vld [vmem:[%s9329 + $0x10] sm:$0xf]
    %v9335 = vld [vmem:[%s9329 + $0x14] sm:$0xf]
    %v9336 = vld [vmem:[%s9329 + $0x18] sm:$0xf]
    %v9337 = vld [vmem:[%s9329 + $0x1c] sm:$0xf]
    %v9338 = vld [vmem:[%s9329 + $0x20] sm:$0xf]
    %v9339 = vld [vmem:[%s9329 + $0x24] sm:$0xf]
    %v9340 = vld [vmem:[%s9329 + $0x28] sm:$0xf]
    %v9341 = vld [vmem:[%s9329 + $0x2c] sm:$0xf]
    %v9342 = vld [vmem:[%s9329 + $0x30] sm:$0xf]
    %v9343 = vld [vmem:[%s9329 + $0x34] sm:$0xf]
    %v9344 = vld [vmem:[%s9329 + $0x38] sm:$0xf]
    %v9345 = vld [vmem:[%s9329 + $0x3c] sm:$0xf]
    %v9362 = vunpack.c.l.b16 %v9330
    %v9363 = vunpack.c.l.b16 %v9331
    %v9364 = vunpack.c.l.b16 %v9332
    %v9365 = vunpack.c.l.b16 %v9333
    %v9366 = vunpack.c.l.b16 %v9334
    %v9367 = vunpack.c.l.b16 %v9335
    %v9368 = vunpack.c.l.b16 %v9336
    %v9369 = vunpack.c.l.b16 %v9337
    %v9370 = vunpack.c.l.b16 %v9338
    %v9371 = vunpack.c.l.b16 %v9339
    %v9372 = vunpack.c.l.b16 %v9340
    %v9373 = vunpack.c.l.b16 %v9341
    %v9374 = vunpack.c.l.b16 %v9342
    %v9375 = vunpack.c.l.b16 %v9343
    %v9376 = vunpack.c.l.b16 %v9344
    %v9377 = vunpack.c.l.b16 %v9345
    %v9378 = vpack.c.b16 %v9363, %v9362
    %v9379 = vpack.c.b16 %v9365, %v9364
    %v9380 = vpack.c.b16 %v9367, %v9366
    %v9381 = vpack.c.b16 %v9369, %v9368
    %v9382 = vpack.c.b16 %v9371, %v9370
    %v9383 = vpack.c.b16 %v9373, %v9372
    %v9384 = vpack.c.b16 %v9375, %v9374
    %v9385 = vpack.c.b16 %v9377, %v9376
    %9394 = vmatprep.subr.bf16.mxu0 0
    %9395 = vmatpush1.bf16.msra.mxu0 %v9385
    %9396 = vmatprep.subr.bf16.mxu0 0
    %9397 = vmatpush1.bf16.msra.mxu0 %v9384
    %9398 = vmatprep.subr.bf16.mxu0 0
    %9399 = vmatpush1.bf16.msra.mxu0 %v9383
    %9400 = vmatprep.subr.bf16.mxu0 0
    %9401 = vmatpush1.bf16.msra.mxu0 %v9382
    %9402 = vmatprep.subr.bf16.mxu0 0
    %9403 = vmatpush1.bf16.msra.mxu0 %v9381
    %9404 = vmatprep.subr.bf16.mxu0 0
    %9405 = vmatpush1.bf16.msra.mxu0 %v9380
    %9406 = vmatprep.subr.bf16.mxu0 0
    %9407 = vmatpush1.bf16.msra.mxu0 %v9379
    %9408 = vmatprep.subr.bf16.mxu0 0
    %9409 = vmatpush1.bf16.msra.mxu0 %v9378
    %9410 = vmatprep.subr.bf16.mxu0 0
    %9411 = vmatpush2.bf16.msra.mxu0 0
    %9412 = vmatprep.subr.bf16.mxu0 0
    %9413 = vmatpush2.bf16.msra.mxu0 0
    %9414 = vmatprep.subr.bf16.mxu0 0
    %9415 = vmatpush2.bf16.msra.mxu0 0
    %9416 = vmatprep.subr.bf16.mxu0 0
    %9417 = vmatpush2.bf16.msra.mxu0 0
    %9418 = vmatprep.subr.bf16.mxu0 0
    %9419 = vmatpush2.bf16.msra.mxu0 0
    %9420 = vmatprep.subr.bf16.mxu0 0
    %9421 = vmatpush2.bf16.msra.mxu0 0
    %9422 = vmatprep.subr.bf16.mxu0 0
    %9423 = vmatpush2.bf16.msra.mxu0 0
    %9424 = vmatprep.subr.bf16.mxu0 0
    %9425 = vmatpush2.bf16.msra.mxu0 0
    %9426 = vmatprep.mubr.bf16.mxu0 0
    %9427 = vmatmul.mubr.bf16.gmra.mxu0 %v9328
    %v9428 = vpop.f32.mrf.mxu0
    %v9429 = vadd.f32 0.0, %v9428
    %v9430 = vpop.f32.mrf.mxu0
    %v9431 = vpop.f32.mrf.mxu0
    %v9432 = vpop.f32.mrf.mxu0
    %9433 = vdwg.mxu0
    %v9434 = vadd.f32 %v9326, %v9429
    %v9435 = vld [vmem:[#allocation4 + $0x1c] sm:$0xff]
    %v9436 = vpack.c.bf16 %v9435, %v9435
    %s9437 = scalar_lea.vmem %s3, 1216
    %v9438 = vld [vmem:[%s9437] sm:$0xf]
    %v9439 = vld [vmem:[%s9437 + $0x4] sm:$0xf]
    %v9440 = vld [vmem:[%s9437 + $0x8] sm:$0xf]
    %v9441 = vld [vmem:[%s9437 + $0xc] sm:$0xf]
    %v9442 = vld [vmem:[%s9437 + $0x10] sm:$0xf]
    %v9443 = vld [vmem:[%s9437 + $0x14] sm:$0xf]
    %v9444 = vld [vmem:[%s9437 + $0x18] sm:$0xf]
    %v9445 = vld [vmem:[%s9437 + $0x1c] sm:$0xf]
    %v9446 = vld [vmem:[%s9437 + $0x20] sm:$0xf]
    %v9447 = vld [vmem:[%s9437 + $0x24] sm:$0xf]
    %v9448 = vld [vmem:[%s9437 + $0x28] sm:$0xf]
    %v9449 = vld [vmem:[%s9437 + $0x2c] sm:$0xf]
    %v9450 = vld [vmem:[%s9437 + $0x30] sm:$0xf]
    %v9451 = vld [vmem:[%s9437 + $0x34] sm:$0xf]
    %v9452 = vld [vmem:[%s9437 + $0x38] sm:$0xf]
    %v9453 = vld [vmem:[%s9437 + $0x3c] sm:$0xf]
    %v9470 = vunpack.c.l.b16 %v9438
    %v9471 = vunpack.c.l.b16 %v9439
    %v9472 = vunpack.c.l.b16 %v9440
    %v9473 = vunpack.c.l.b16 %v9441
    %v9474 = vunpack.c.l.b16 %v9442
    %v9475 = vunpack.c.l.b16 %v9443
    %v9476 = vunpack.c.l.b16 %v9444
    %v9477 = vunpack.c.l.b16 %v9445
    %v9478 = vunpack.c.l.b16 %v9446
    %v9479 = vunpack.c.l.b16 %v9447
    %v9480 = vunpack.c.l.b16 %v9448
    %v9481 = vunpack.c.l.b16 %v9449
    %v9482 = vunpack.c.l.b16 %v9450
    %v9483 = vunpack.c.l.b16 %v9451
    %v9484 = vunpack.c.l.b16 %v9452
    %v9485 = vunpack.c.l.b16 %v9453
    %v9486 = vpack.c.b16 %v9471, %v9470
    %v9487 = vpack.c.b16 %v9473, %v9472
    %v9488 = vpack.c.b16 %v9475, %v9474
    %v9489 = vpack.c.b16 %v9477, %v9476
    %v9490 = vpack.c.b16 %v9479, %v9478
    %v9491 = vpack.c.b16 %v9481, %v9480
    %v9492 = vpack.c.b16 %v9483, %v9482
    %v9493 = vpack.c.b16 %v9485, %v9484
    %9502 = vmatprep.subr.bf16.mxu0 0
    %9503 = vmatpush1.bf16.msra.mxu0 %v9493
    %9504 = vmatprep.subr.bf16.mxu0 0
    %9505 = vmatpush1.bf16.msra.mxu0 %v9492
    %9506 = vmatprep.subr.bf16.mxu0 0
    %9507 = vmatpush1.bf16.msra.mxu0 %v9491
    %9508 = vmatprep.subr.bf16.mxu0 0
    %9509 = vmatpush1.bf16.msra.mxu0 %v9490
    %9510 = vmatprep.subr.bf16.mxu0 0
    %9511 = vmatpush1.bf16.msra.mxu0 %v9489
    %9512 = vmatprep.subr.bf16.mxu0 0
    %9513 = vmatpush1.bf16.msra.mxu0 %v9488
    %9514 = vmatprep.subr.bf16.mxu0 0
    %9515 = vmatpush1.bf16.msra.mxu0 %v9487
    %9516 = vmatprep.subr.bf16.mxu0 0
    %9517 = vmatpush1.bf16.msra.mxu0 %v9486
    %9518 = vmatprep.subr.bf16.mxu0 0
    %9519 = vmatpush2.bf16.msra.mxu0 0
    %9520 = vmatprep.subr.bf16.mxu0 0
    %9521 = vmatpush2.bf16.msra.mxu0 0
    %9522 = vmatprep.subr.bf16.mxu0 0
    %9523 = vmatpush2.bf16.msra.mxu0 0
    %9524 = vmatprep.subr.bf16.mxu0 0
    %9525 = vmatpush2.bf16.msra.mxu0 0
    %9526 = vmatprep.subr.bf16.mxu0 0
    %9527 = vmatpush2.bf16.msra.mxu0 0
    %9528 = vmatprep.subr.bf16.mxu0 0
    %9529 = vmatpush2.bf16.msra.mxu0 0
    %9530 = vmatprep.subr.bf16.mxu0 0
    %9531 = vmatpush2.bf16.msra.mxu0 0
    %9532 = vmatprep.subr.bf16.mxu0 0
    %9533 = vmatpush2.bf16.msra.mxu0 0
    %9534 = vmatprep.mubr.bf16.mxu0 0
    %9535 = vmatmul.mubr.bf16.gmra.mxu0 %v9436
    %v9536 = vpop.f32.mrf.mxu0
    %v9537 = vadd.f32 0.0, %v9536
    %v9538 = vpop.f32.mrf.mxu0
    %v9539 = vpop.f32.mrf.mxu0
    %v9540 = vpop.f32.mrf.mxu0
    %9541 = vdwg.mxu0
    %v9542 = vadd.f32 %v9434, %v9537
    %v9543 = vld [vmem:[#allocation4 + $0x20] sm:$0xff]
    %v9544 = vpack.c.bf16 %v9543, %v9543
    %s9545 = scalar_lea.vmem %s3, 1280
    %v9546 = vld [vmem:[%s9545] sm:$0xf]
    %v9547 = vld [vmem:[%s9545 + $0x4] sm:$0xf]
    %v9548 = vld [vmem:[%s9545 + $0x8] sm:$0xf]
    %v9549 = vld [vmem:[%s9545 + $0xc] sm:$0xf]
    %v9550 = vld [vmem:[%s9545 + $0x10] sm:$0xf]
    %v9551 = vld [vmem:[%s9545 + $0x14] sm:$0xf]
    %v9552 = vld [vmem:[%s9545 + $0x18] sm:$0xf]
    %v9553 = vld [vmem:[%s9545 + $0x1c] sm:$0xf]
    %v9554 = vld [vmem:[%s9545 + $0x20] sm:$0xf]
    %v9555 = vld [vmem:[%s9545 + $0x24] sm:$0xf]
    %v9556 = vld [vmem:[%s9545 + $0x28] sm:$0xf]
    %v9557 = vld [vmem:[%s9545 + $0x2c] sm:$0xf]
    %v9558 = vld [vmem:[%s9545 + $0x30] sm:$0xf]
    %v9559 = vld [vmem:[%s9545 + $0x34] sm:$0xf]
    %v9560 = vld [vmem:[%s9545 + $0x38] sm:$0xf]
    %v9561 = vld [vmem:[%s9545 + $0x3c] sm:$0xf]
    %v9578 = vunpack.c.l.b16 %v9546
    %v9579 = vunpack.c.l.b16 %v9547
    %v9580 = vunpack.c.l.b16 %v9548
    %v9581 = vunpack.c.l.b16 %v9549
    %v9582 = vunpack.c.l.b16 %v9550
    %v9583 = vunpack.c.l.b16 %v9551
    %v9584 = vunpack.c.l.b16 %v9552
    %v9585 = vunpack.c.l.b16 %v9553
    %v9586 = vunpack.c.l.b16 %v9554
    %v9587 = vunpack.c.l.b16 %v9555
    %v9588 = vunpack.c.l.b16 %v9556
    %v9589 = vunpack.c.l.b16 %v9557
    %v9590 = vunpack.c.l.b16 %v9558
    %v9591 = vunpack.c.l.b16 %v9559
    %v9592 = vunpack.c.l.b16 %v9560
    %v9593 = vunpack.c.l.b16 %v9561
    %v9594 = vpack.c.b16 %v9579, %v9578
    %v9595 = vpack.c.b16 %v9581, %v9580
    %v9596 = vpack.c.b16 %v9583, %v9582
    %v9597 = vpack.c.b16 %v9585, %v9584
    %v9598 = vpack.c.b16 %v9587, %v9586
    %v9599 = vpack.c.b16 %v9589, %v9588
    %v9600 = vpack.c.b16 %v9591, %v9590
    %v9601 = vpack.c.b16 %v9593, %v9592
    %9610 = vmatprep.subr.bf16.mxu0 0
    %9611 = vmatpush1.bf16.msra.mxu0 %v9601
    %9612 = vmatprep.subr.bf16.mxu0 0
    %9613 = vmatpush1.bf16.msra.mxu0 %v9600
    %9614 = vmatprep.subr.bf16.mxu0 0
    %9615 = vmatpush1.bf16.msra.mxu0 %v9599
    %9616 = vmatprep.subr.bf16.mxu0 0
    %9617 = vmatpush1.bf16.msra.mxu0 %v9598
    %9618 = vmatprep.subr.bf16.mxu0 0
    %9619 = vmatpush1.bf16.msra.mxu0 %v9597
    %9620 = vmatprep.subr.bf16.mxu0 0
    %9621 = vmatpush1.bf16.msra.mxu0 %v9596
    %9622 = vmatprep.subr.bf16.mxu0 0
    %9623 = vmatpush1.bf16.msra.mxu0 %v9595
    %9624 = vmatprep.subr.bf16.mxu0 0
    %9625 = vmatpush1.bf16.msra.mxu0 %v9594
    %9626 = vmatprep.subr.bf16.mxu0 0
    %9627 = vmatpush2.bf16.msra.mxu0 0
    %9628 = vmatprep.subr.bf16.mxu0 0
    %9629 = vmatpush2.bf16.msra.mxu0 0
    %9630 = vmatprep.subr.bf16.mxu0 0
    %9631 = vmatpush2.bf16.msra.mxu0 0
    %9632 = vmatprep.subr.bf16.mxu0 0
    %9633 = vmatpush2.bf16.msra.mxu0 0
    %9634 = vmatprep.subr.bf16.mxu0 0
    %9635 = vmatpush2.bf16.msra.mxu0 0
    %9636 = vmatprep.subr.bf16.mxu0 0
    %9637 = vmatpush2.bf16.msra.mxu0 0
    %9638 = vmatprep.subr.bf16.mxu0 0
    %9639 = vmatpush2.bf16.msra.mxu0 0
    %9640 = vmatprep.subr.bf16.mxu0 0
    %9641 = vmatpush2.bf16.msra.mxu0 0
    %9642 = vmatprep.mubr.bf16.mxu0 0
    %9643 = vmatmul.mubr.bf16.gmra.mxu0 %v9544
    %v9644 = vpop.f32.mrf.mxu0
    %v9645 = vadd.f32 0.0, %v9644
    %v9646 = vpop.f32.mrf.mxu0
    %v9647 = vpop.f32.mrf.mxu0
    %v9648 = vpop.f32.mrf.mxu0
    %9649 = vdwg.mxu0
    %v9650 = vadd.f32 %v9542, %v9645
    %v9651 = vld [vmem:[#allocation4 + $0x21] sm:$0xff]
    %v9652 = vpack.c.bf16 %v9651, %v9651
    %s9653 = scalar_lea.vmem %s3, 1344
    %v9654 = vld [vmem:[%s9653] sm:$0xf]
    %v9655 = vld [vmem:[%s9653 + $0x4] sm:$0xf]
    %v9656 = vld [vmem:[%s9653 + $0x8] sm:$0xf]
    %v9657 = vld [vmem:[%s9653 + $0xc] sm:$0xf]
    %v9658 = vld [vmem:[%s9653 + $0x10] sm:$0xf]
    %v9659 = vld [vmem:[%s9653 + $0x14] sm:$0xf]
    %v9660 = vld [vmem:[%s9653 + $0x18] sm:$0xf]
    %v9661 = vld [vmem:[%s9653 + $0x1c] sm:$0xf]
    %v9662 = vld [vmem:[%s9653 + $0x20] sm:$0xf]
    %v9663 = vld [vmem:[%s9653 + $0x24] sm:$0xf]
    %v9664 = vld [vmem:[%s9653 + $0x28] sm:$0xf]
    %v9665 = vld [vmem:[%s9653 + $0x2c] sm:$0xf]
    %v9666 = vld [vmem:[%s9653 + $0x30] sm:$0xf]
    %v9667 = vld [vmem:[%s9653 + $0x34] sm:$0xf]
    %v9668 = vld [vmem:[%s9653 + $0x38] sm:$0xf]
    %v9669 = vld [vmem:[%s9653 + $0x3c] sm:$0xf]
    %v9686 = vunpack.c.l.b16 %v9654
    %v9687 = vunpack.c.l.b16 %v9655
    %v9688 = vunpack.c.l.b16 %v9656
    %v9689 = vunpack.c.l.b16 %v9657
    %v9690 = vunpack.c.l.b16 %v9658
    %v9691 = vunpack.c.l.b16 %v9659
    %v9692 = vunpack.c.l.b16 %v9660
    %v9693 = vunpack.c.l.b16 %v9661
    %v9694 = vunpack.c.l.b16 %v9662
    %v9695 = vunpack.c.l.b16 %v9663
    %v9696 = vunpack.c.l.b16 %v9664
    %v9697 = vunpack.c.l.b16 %v9665
    %v9698 = vunpack.c.l.b16 %v9666
    %v9699 = vunpack.c.l.b16 %v9667
    %v9700 = vunpack.c.l.b16 %v9668
    %v9701 = vunpack.c.l.b16 %v9669
    %v9702 = vpack.c.b16 %v9687, %v9686
    %v9703 = vpack.c.b16 %v9689, %v9688
    %v9704 = vpack.c.b16 %v9691, %v9690
    %v9705 = vpack.c.b16 %v9693, %v9692
    %v9706 = vpack.c.b16 %v9695, %v9694
    %v9707 = vpack.c.b16 %v9697, %v9696
    %v9708 = vpack.c.b16 %v9699, %v9698
    %v9709 = vpack.c.b16 %v9701, %v9700
    %9718 = vmatprep.subr.bf16.mxu0 0
    %9719 = vmatpush1.bf16.msra.mxu0 %v9709
    %9720 = vmatprep.subr.bf16.mxu0 0
    %9721 = vmatpush1.bf16.msra.mxu0 %v9708
    %9722 = vmatprep.subr.bf16.mxu0 0
    %9723 = vmatpush1.bf16.msra.mxu0 %v9707
    %9724 = vmatprep.subr.bf16.mxu0 0
    %9725 = vmatpush1.bf16.msra.mxu0 %v9706
    %9726 = vmatprep.subr.bf16.mxu0 0
    %9727 = vmatpush1.bf16.msra.mxu0 %v9705
    %9728 = vmatprep.subr.bf16.mxu0 0
    %9729 = vmatpush1.bf16.msra.mxu0 %v9704
    %9730 = vmatprep.subr.bf16.mxu0 0
    %9731 = vmatpush1.bf16.msra.mxu0 %v9703
    %9732 = vmatprep.subr.bf16.mxu0 0
    %9733 = vmatpush1.bf16.msra.mxu0 %v9702
    %9734 = vmatprep.subr.bf16.mxu0 0
    %9735 = vmatpush2.bf16.msra.mxu0 0
    %9736 = vmatprep.subr.bf16.mxu0 0
    %9737 = vmatpush2.bf16.msra.mxu0 0
    %9738 = vmatprep.subr.bf16.mxu0 0
    %9739 = vmatpush2.bf16.msra.mxu0 0
    %9740 = vmatprep.subr.bf16.mxu0 0
    %9741 = vmatpush2.bf16.msra.mxu0 0
    %9742 = vmatprep.subr.bf16.mxu0 0
    %9743 = vmatpush2.bf16.msra.mxu0 0
    %9744 = vmatprep.subr.bf16.mxu0 0
    %9745 = vmatpush2.bf16.msra.mxu0 0
    %9746 = vmatprep.subr.bf16.mxu0 0
    %9747 = vmatpush2.bf16.msra.mxu0 0
    %9748 = vmatprep.subr.bf16.mxu0 0
    %9749 = vmatpush2.bf16.msra.mxu0 0
    %9750 = vmatprep.mubr.bf16.mxu0 0
    %9751 = vmatmul.mubr.bf16.gmra.mxu0 %v9652
    %v9752 = vpop.f32.mrf.mxu0
    %v9753 = vadd.f32 0.0, %v9752
    %v9754 = vpop.f32.mrf.mxu0
    %v9755 = vpop.f32.mrf.mxu0
    %v9756 = vpop.f32.mrf.mxu0
    %9757 = vdwg.mxu0
    %v9758 = vadd.f32 %v9650, %v9753
    %v9759 = vld [vmem:[#allocation4 + $0x22] sm:$0xff]
    %v9760 = vpack.c.bf16 %v9759, %v9759
    %s9761 = scalar_lea.vmem %s3, 1408
    %v9762 = vld [vmem:[%s9761] sm:$0xf]
    %v9763 = vld [vmem:[%s9761 + $0x4] sm:$0xf]
    %v9764 = vld [vmem:[%s9761 + $0x8] sm:$0xf]
    %v9765 = vld [vmem:[%s9761 + $0xc] sm:$0xf]
    %v9766 = vld [vmem:[%s9761 + $0x10] sm:$0xf]
    %v9767 = vld [vmem:[%s9761 + $0x14] sm:$0xf]
    %v9768 = vld [vmem:[%s9761 + $0x18] sm:$0xf]
    %v9769 = vld [vmem:[%s9761 + $0x1c] sm:$0xf]
    %v9770 = vld [vmem:[%s9761 + $0x20] sm:$0xf]
    %v9771 = vld [vmem:[%s9761 + $0x24] sm:$0xf]
    %v9772 = vld [vmem:[%s9761 + $0x28] sm:$0xf]
    %v9773 = vld [vmem:[%s9761 + $0x2c] sm:$0xf]
    %v9774 = vld [vmem:[%s9761 + $0x30] sm:$0xf]
    %v9775 = vld [vmem:[%s9761 + $0x34] sm:$0xf]
    %v9776 = vld [vmem:[%s9761 + $0x38] sm:$0xf]
    %v9777 = vld [vmem:[%s9761 + $0x3c] sm:$0xf]
    %v9794 = vunpack.c.l.b16 %v9762
    %v9795 = vunpack.c.l.b16 %v9763
    %v9796 = vunpack.c.l.b16 %v9764
    %v9797 = vunpack.c.l.b16 %v9765
    %v9798 = vunpack.c.l.b16 %v9766
    %v9799 = vunpack.c.l.b16 %v9767
    %v9800 = vunpack.c.l.b16 %v9768
    %v9801 = vunpack.c.l.b16 %v9769
    %v9802 = vunpack.c.l.b16 %v9770
    %v9803 = vunpack.c.l.b16 %v9771
    %v9804 = vunpack.c.l.b16 %v9772
    %v9805 = vunpack.c.l.b16 %v9773
    %v9806 = vunpack.c.l.b16 %v9774
    %v9807 = vunpack.c.l.b16 %v9775
    %v9808 = vunpack.c.l.b16 %v9776
    %v9809 = vunpack.c.l.b16 %v9777
    %v9810 = vpack.c.b16 %v9795, %v9794
    %v9811 = vpack.c.b16 %v9797, %v9796
    %v9812 = vpack.c.b16 %v9799, %v9798
    %v9813 = vpack.c.b16 %v9801, %v9800
    %v9814 = vpack.c.b16 %v9803, %v9802
    %v9815 = vpack.c.b16 %v9805, %v9804
    %v9816 = vpack.c.b16 %v9807, %v9806
    %v9817 = vpack.c.b16 %v9809, %v9808
    %9826 = vmatprep.subr.bf16.mxu0 0
    %9827 = vmatpush1.bf16.msra.mxu0 %v9817
    %9828 = vmatprep.subr.bf16.mxu0 0
    %9829 = vmatpush1.bf16.msra.mxu0 %v9816
    %9830 = vmatprep.subr.bf16.mxu0 0
    %9831 = vmatpush1.bf16.msra.mxu0 %v9815
    %9832 = vmatprep.subr.bf16.mxu0 0
    %9833 = vmatpush1.bf16.msra.mxu0 %v9814
    %9834 = vmatprep.subr.bf16.mxu0 0
    %9835 = vmatpush1.bf16.msra.mxu0 %v9813
    %9836 = vmatprep.subr.bf16.mxu0 0
    %9837 = vmatpush1.bf16.msra.mxu0 %v9812
    %9838 = vmatprep.subr.bf16.mxu0 0
    %9839 = vmatpush1.bf16.msra.mxu0 %v9811
    %9840 = vmatprep.subr.bf16.mxu0 0
    %9841 = vmatpush1.bf16.msra.mxu0 %v9810
    %9842 = vmatprep.subr.bf16.mxu0 0
    %9843 = vmatpush2.bf16.msra.mxu0 0
    %9844 = vmatprep.subr.bf16.mxu0 0
    %9845 = vmatpush2.bf16.msra.mxu0 0
    %9846 = vmatprep.subr.bf16.mxu0 0
    %9847 = vmatpush2.bf16.msra.mxu0 0
    %9848 = vmatprep.subr.bf16.mxu0 0
    %9849 = vmatpush2.bf16.msra.mxu0 0
    %9850 = vmatprep.subr.bf16.mxu0 0
    %9851 = vmatpush2.bf16.msra.mxu0 0
    %9852 = vmatprep.subr.bf16.mxu0 0
    %9853 = vmatpush2.bf16.msra.mxu0 0
    %9854 = vmatprep.subr.bf16.mxu0 0
    %9855 = vmatpush2.bf16.msra.mxu0 0
    %9856 = vmatprep.subr.bf16.mxu0 0
    %9857 = vmatpush2.bf16.msra.mxu0 0
    %9858 = vmatprep.mubr.bf16.mxu0 0
    %9859 = vmatmul.mubr.bf16.gmra.mxu0 %v9760
    %v9860 = vpop.f32.mrf.mxu0
    %v9861 = vadd.f32 0.0, %v9860
    %v9862 = vpop.f32.mrf.mxu0
    %v9863 = vpop.f32.mrf.mxu0
    %v9864 = vpop.f32.mrf.mxu0
    %9865 = vdwg.mxu0
    %v9866 = vadd.f32 %v9758, %v9861
    %v9867 = vld [vmem:[#allocation4 + $0x23] sm:$0xff]
    %v9868 = vpack.c.bf16 %v9867, %v9867
    %s9869 = scalar_lea.vmem %s3, 1472
    %v9870 = vld [vmem:[%s9869] sm:$0xf]
    %v9871 = vld [vmem:[%s9869 + $0x4] sm:$0xf]
    %v9872 = vld [vmem:[%s9869 + $0x8] sm:$0xf]
    %v9873 = vld [vmem:[%s9869 + $0xc] sm:$0xf]
    %v9874 = vld [vmem:[%s9869 + $0x10] sm:$0xf]
    %v9875 = vld [vmem:[%s9869 + $0x14] sm:$0xf]
    %v9876 = vld [vmem:[%s9869 + $0x18] sm:$0xf]
    %v9877 = vld [vmem:[%s9869 + $0x1c] sm:$0xf]
    %v9878 = vld [vmem:[%s9869 + $0x20] sm:$0xf]
    %v9879 = vld [vmem:[%s9869 + $0x24] sm:$0xf]
    %v9880 = vld [vmem:[%s9869 + $0x28] sm:$0xf]
    %v9881 = vld [vmem:[%s9869 + $0x2c] sm:$0xf]
    %v9882 = vld [vmem:[%s9869 + $0x30] sm:$0xf]
    %v9883 = vld [vmem:[%s9869 + $0x34] sm:$0xf]
    %v9884 = vld [vmem:[%s9869 + $0x38] sm:$0xf]
    %v9885 = vld [vmem:[%s9869 + $0x3c] sm:$0xf]
    %v9902 = vunpack.c.l.b16 %v9870
    %v9903 = vunpack.c.l.b16 %v9871
    %v9904 = vunpack.c.l.b16 %v9872
    %v9905 = vunpack.c.l.b16 %v9873
    %v9906 = vunpack.c.l.b16 %v9874
    %v9907 = vunpack.c.l.b16 %v9875
    %v9908 = vunpack.c.l.b16 %v9876
    %v9909 = vunpack.c.l.b16 %v9877
    %v9910 = vunpack.c.l.b16 %v9878
    %v9911 = vunpack.c.l.b16 %v9879
    %v9912 = vunpack.c.l.b16 %v9880
    %v9913 = vunpack.c.l.b16 %v9881
    %v9914 = vunpack.c.l.b16 %v9882
    %v9915 = vunpack.c.l.b16 %v9883
    %v9916 = vunpack.c.l.b16 %v9884
    %v9917 = vunpack.c.l.b16 %v9885
    %v9918 = vpack.c.b16 %v9903, %v9902
    %v9919 = vpack.c.b16 %v9905, %v9904
    %v9920 = vpack.c.b16 %v9907, %v9906
    %v9921 = vpack.c.b16 %v9909, %v9908
    %v9922 = vpack.c.b16 %v9911, %v9910
    %v9923 = vpack.c.b16 %v9913, %v9912
    %v9924 = vpack.c.b16 %v9915, %v9914
    %v9925 = vpack.c.b16 %v9917, %v9916
    %9934 = vmatprep.subr.bf16.mxu0 0
    %9935 = vmatpush1.bf16.msra.mxu0 %v9925
    %9936 = vmatprep.subr.bf16.mxu0 0
    %9937 = vmatpush1.bf16.msra.mxu0 %v9924
    %9938 = vmatprep.subr.bf16.mxu0 0
    %9939 = vmatpush1.bf16.msra.mxu0 %v9923
    %9940 = vmatprep.subr.bf16.mxu0 0
    %9941 = vmatpush1.bf16.msra.mxu0 %v9922
    %9942 = vmatprep.subr.bf16.mxu0 0
    %9943 = vmatpush1.bf16.msra.mxu0 %v9921
    %9944 = vmatprep.subr.bf16.mxu0 0
    %9945 = vmatpush1.bf16.msra.mxu0 %v9920
    %9946 = vmatprep.subr.bf16.mxu0 0
    %9947 = vmatpush1.bf16.msra.mxu0 %v9919
    %9948 = vmatprep.subr.bf16.mxu0 0
    %9949 = vmatpush1.bf16.msra.mxu0 %v9918
    %9950 = vmatprep.subr.bf16.mxu0 0
    %9951 = vmatpush2.bf16.msra.mxu0 0
    %9952 = vmatprep.subr.bf16.mxu0 0
    %9953 = vmatpush2.bf16.msra.mxu0 0
    %9954 = vmatprep.subr.bf16.mxu0 0
    %9955 = vmatpush2.bf16.msra.mxu0 0
    %9956 = vmatprep.subr.bf16.mxu0 0
    %9957 = vmatpush2.bf16.msra.mxu0 0
    %9958 = vmatprep.subr.bf16.mxu0 0
    %9959 = vmatpush2.bf16.msra.mxu0 0
    %9960 = vmatprep.subr.bf16.mxu0 0
    %9961 = vmatpush2.bf16.msra.mxu0 0
    %9962 = vmatprep.subr.bf16.mxu0 0
    %9963 = vmatpush2.bf16.msra.mxu0 0
    %9964 = vmatprep.subr.bf16.mxu0 0
    %9965 = vmatpush2.bf16.msra.mxu0 0
    %9966 = vmatprep.mubr.bf16.mxu0 0
    %9967 = vmatmul.mubr.bf16.gmra.mxu0 %v9868
    %v9968 = vpop.f32.mrf.mxu0
    %v9969 = vadd.f32 0.0, %v9968
    %v9970 = vpop.f32.mrf.mxu0
    %v9971 = vpop.f32.mrf.mxu0
    %v9972 = vpop.f32.mrf.mxu0
    %9973 = vdwg.mxu0
    %v9974 = vadd.f32 %v9866, %v9969
    %v9975 = vld [vmem:[#allocation4 + $0x24] sm:$0xff]
    %v9976 = vpack.c.bf16 %v9975, %v9975
    %s9977 = scalar_lea.vmem %s3, 1536
    %v9978 = vld [vmem:[%s9977] sm:$0xf]
    %v9979 = vld [vmem:[%s9977 + $0x4] sm:$0xf]
    %v9980 = vld [vmem:[%s9977 + $0x8] sm:$0xf]
    %v9981 = vld [vmem:[%s9977 + $0xc] sm:$0xf]
    %v9982 = vld [vmem:[%s9977 + $0x10] sm:$0xf]
    %v9983 = vld [vmem:[%s9977 + $0x14] sm:$0xf]
    %v9984 = vld [vmem:[%s9977 + $0x18] sm:$0xf]
    %v9985 = vld [vmem:[%s9977 + $0x1c] sm:$0xf]
    %v9986 = vld [vmem:[%s9977 + $0x20] sm:$0xf]
    %v9987 = vld [vmem:[%s9977 + $0x24] sm:$0xf]
    %v9988 = vld [vmem:[%s9977 + $0x28] sm:$0xf]
    %v9989 = vld [vmem:[%s9977 + $0x2c] sm:$0xf]
    %v9990 = vld [vmem:[%s9977 + $0x30] sm:$0xf]
    %v9991 = vld [vmem:[%s9977 + $0x34] sm:$0xf]
    %v9992 = vld [vmem:[%s9977 + $0x38] sm:$0xf]
    %v9993 = vld [vmem:[%s9977 + $0x3c] sm:$0xf]
    %v10010 = vunpack.c.l.b16 %v9978
    %v10011 = vunpack.c.l.b16 %v9979
    %v10012 = vunpack.c.l.b16 %v9980
    %v10013 = vunpack.c.l.b16 %v9981
    %v10014 = vunpack.c.l.b16 %v9982
    %v10015 = vunpack.c.l.b16 %v9983
    %v10016 = vunpack.c.l.b16 %v9984
    %v10017 = vunpack.c.l.b16 %v9985
    %v10018 = vunpack.c.l.b16 %v9986
    %v10019 = vunpack.c.l.b16 %v9987
    %v10020 = vunpack.c.l.b16 %v9988
    %v10021 = vunpack.c.l.b16 %v9989
    %v10022 = vunpack.c.l.b16 %v9990
    %v10023 = vunpack.c.l.b16 %v9991
    %v10024 = vunpack.c.l.b16 %v9992
    %v10025 = vunpack.c.l.b16 %v9993
    %v10026 = vpack.c.b16 %v10011, %v10010
    %v10027 = vpack.c.b16 %v10013, %v10012
    %v10028 = vpack.c.b16 %v10015, %v10014
    %v10029 = vpack.c.b16 %v10017, %v10016
    %v10030 = vpack.c.b16 %v10019, %v10018
    %v10031 = vpack.c.b16 %v10021, %v10020
    %v10032 = vpack.c.b16 %v10023, %v10022
    %v10033 = vpack.c.b16 %v10025, %v10024
    %10042 = vmatprep.subr.bf16.mxu0 0
    %10043 = vmatpush1.bf16.msra.mxu0 %v10033
    %10044 = vmatprep.subr.bf16.mxu0 0
    %10045 = vmatpush1.bf16.msra.mxu0 %v10032
    %10046 = vmatprep.subr.bf16.mxu0 0
    %10047 = vmatpush1.bf16.msra.mxu0 %v10031
    %10048 = vmatprep.subr.bf16.mxu0 0
    %10049 = vmatpush1.bf16.msra.mxu0 %v10030
    %10050 = vmatprep.subr.bf16.mxu0 0
    %10051 = vmatpush1.bf16.msra.mxu0 %v10029
    %10052 = vmatprep.subr.bf16.mxu0 0
    %10053 = vmatpush1.bf16.msra.mxu0 %v10028
    %10054 = vmatprep.subr.bf16.mxu0 0
    %10055 = vmatpush1.bf16.msra.mxu0 %v10027
    %10056 = vmatprep.subr.bf16.mxu0 0
    %10057 = vmatpush1.bf16.msra.mxu0 %v10026
    %10058 = vmatprep.subr.bf16.mxu0 0
    %10059 = vmatpush2.bf16.msra.mxu0 0
    %10060 = vmatprep.subr.bf16.mxu0 0
    %10061 = vmatpush2.bf16.msra.mxu0 0
    %10062 = vmatprep.subr.bf16.mxu0 0
    %10063 = vmatpush2.bf16.msra.mxu0 0
    %10064 = vmatprep.subr.bf16.mxu0 0
    %10065 = vmatpush2.bf16.msra.mxu0 0
    %10066 = vmatprep.subr.bf16.mxu0 0
    %10067 = vmatpush2.bf16.msra.mxu0 0
    %10068 = vmatprep.subr.bf16.mxu0 0
    %10069 = vmatpush2.bf16.msra.mxu0 0
    %10070 = vmatprep.subr.bf16.mxu0 0
    %10071 = vmatpush2.bf16.msra.mxu0 0
    %10072 = vmatprep.subr.bf16.mxu0 0
    %10073 = vmatpush2.bf16.msra.mxu0 0
    %10074 = vmatprep.mubr.bf16.mxu0 0
    %10075 = vmatmul.mubr.bf16.gmra.mxu0 %v9976
    %v10076 = vpop.f32.mrf.mxu0
    %v10077 = vadd.f32 0.0, %v10076
    %v10078 = vpop.f32.mrf.mxu0
    %v10079 = vpop.f32.mrf.mxu0
    %v10080 = vpop.f32.mrf.mxu0
    %10081 = vdwg.mxu0
    %v10082 = vadd.f32 %v9974, %v10077
    %v10083 = vlaneseq
    %v10084 = vshrl.u32 %v10083, 7
    %v10085 = vsub.s32 0, %v10084
    %v10086 = vrot.slane %v32, %v10085
    %v10087 = vadd.f32 %v10082, %v10086
    %v10088 = vtanh.pop %v10087
    %s10089 = smul.u32 %s36, 8
    %s10090 = scalar_lea.vmem [#allocation5], %s10089
    %10091 = vst [vmem:[%s10090] sm:$0xff] %v10088
  $region38: #{lenet_forward.1} parent=0 // loop_footer
    %s40 = sadd.s32 1, %s36
  $region39: #{lenet_forward.1} parent=0 // loop_footer_branch
    %35 = sbr.rel target = $region35
  $region40: #{lenet_forward.1} parent=0 // loop_exit
    _
  %v10092 = vld [vmem:[#allocation5] sm:$0xff]
  %v10093 = vld [vmem:[#allocation5 + $0x8] sm:$0xff]
  %v10094 = vld [vmem:[#allocation5 + $0x10] sm:$0xff]
  %v10095 = vld [vmem:[#allocation5 + $0x18] sm:$0xff]
  %v10096 = vld [vmem:[#allocation5 + $0x20] sm:$0xff]
  %v10097 = vld [vmem:[#allocation5 + $0x28] sm:$0xff]
  %v10098 = vld [vmem:[#allocation5 + $0x30] sm:$0xff]
  %v10099 = vld [vmem:[#allocation5 + $0x38] sm:$0xff]
  %v10100 = vpack.c.bf16 %v10093, %v10092
  %v10101 = vpack.c.bf16 %v10095, %v10094
  %v10102 = vpack.c.bf16 %v10097, %v10096
  %v10103 = vpack.c.bf16 %v10099, %v10098
  %v10104 = vld [vmem:[%s4] sm:$0xf]
  %v10105 = vld [vmem:[%s4 + $0x4] sm:$0xf]
  %v10106 = vld [vmem:[%s4 + $0x8] sm:$0xf]
  %v10107 = vld [vmem:[%s4 + $0xc] sm:$0xf]
  %v10108 = vld [vmem:[%s4 + $0x10] sm:$0xf]
  %v10109 = vld [vmem:[%s4 + $0x14] sm:$0xf]
  %v10110 = vld [vmem:[%s4 + $0x18] sm:$0xf]
  %v10111 = vld [vmem:[%s4 + $0x1c] sm:$0xf]
  %v10112 = vld [vmem:[%s4 + $0x20] sm:$0xf]
  %v10113 = vld [vmem:[%s4 + $0x24] sm:$0xf]
  %v10114 = vld [vmem:[%s4 + $0x28] sm:$0xf]
  %v10115 = vld [vmem:[%s4 + $0x2c] sm:$0xf]
  %v10116 = vld [vmem:[%s4 + $0x30] sm:$0xf]
  %v10117 = vld [vmem:[%s4 + $0x34] sm:$0xf]
  %v10118 = vld [vmem:[%s4 + $0x38] sm:$0xf]
  %v10119 = vld [vmem:[%s4 + $0x3c] sm:$0xf]
  %v10120 = vlaneseq
  %v10121 = vshrl.u32 %v10120, 7
  %v10122 = vsub.s32 0, %v10121
  %v10123 = vrot.slane %v33, %v10122
  %v10140 = vunpack.c.l.b16 %v10104
  %v10141 = vunpack.c.l.b16 %v10105
  %v10142 = vunpack.c.l.b16 %v10106
  %v10143 = vunpack.c.l.b16 %v10107
  %v10144 = vunpack.c.l.b16 %v10108
  %v10145 = vunpack.c.l.b16 %v10109
  %v10146 = vunpack.c.l.b16 %v10110
  %v10147 = vunpack.c.l.b16 %v10111
  %v10148 = vunpack.c.l.b16 %v10112
  %v10149 = vunpack.c.l.b16 %v10113
  %v10150 = vunpack.c.l.b16 %v10114
  %v10151 = vunpack.c.l.b16 %v10115
  %v10152 = vunpack.c.l.b16 %v10116
  %v10153 = vunpack.c.l.b16 %v10117
  %v10154 = vunpack.c.l.b16 %v10118
  %v10155 = vunpack.c.l.b16 %v10119
  %v10156 = vpack.c.b16 %v10141, %v10140
  %v10157 = vpack.c.b16 %v10143, %v10142
  %v10158 = vpack.c.b16 %v10145, %v10144
  %v10159 = vpack.c.b16 %v10147, %v10146
  %v10160 = vpack.c.b16 %v10149, %v10148
  %v10161 = vpack.c.b16 %v10151, %v10150
  %v10162 = vpack.c.b16 %v10153, %v10152
  %v10163 = vpack.c.b16 %v10155, %v10154
  %10172 = vmatprep.subr.bf16.mxu0 0
  %10173 = vmatpush1.bf16.msra.mxu0 %v10163
  %10174 = vmatprep.subr.bf16.mxu0 0
  %10175 = vmatpush1.bf16.msra.mxu0 %v10162
  %10176 = vmatprep.subr.bf16.mxu0 0
  %10177 = vmatpush1.bf16.msra.mxu0 %v10161
  %10178 = vmatprep.subr.bf16.mxu0 0
  %10179 = vmatpush1.bf16.msra.mxu0 %v10160
  %10180 = vmatprep.subr.bf16.mxu0 0
  %10181 = vmatpush1.bf16.msra.mxu0 %v10159
  %10182 = vmatprep.subr.bf16.mxu0 0
  %10183 = vmatpush1.bf16.msra.mxu0 %v10158
  %10184 = vmatprep.subr.bf16.mxu0 0
  %10185 = vmatpush1.bf16.msra.mxu0 %v10157
  %10186 = vmatprep.subr.bf16.mxu0 0
  %10187 = vmatpush1.bf16.msra.mxu0 %v10156
  %10188 = vmatprep.subr.bf16.mxu0 0
  %10189 = vmatpush2.bf16.msra.mxu0 0
  %10190 = vmatprep.subr.bf16.mxu0 0
  %10191 = vmatpush2.bf16.msra.mxu0 0
  %10192 = vmatprep.subr.bf16.mxu0 0
  %10193 = vmatpush2.bf16.msra.mxu0 0
  %10194 = vmatprep.subr.bf16.mxu0 0
  %10195 = vmatpush2.bf16.msra.mxu0 0
  %10196 = vmatprep.subr.bf16.mxu0 0
  %10197 = vmatpush2.bf16.msra.mxu0 0
  %10198 = vmatprep.subr.bf16.mxu0 0
  %10199 = vmatpush2.bf16.msra.mxu0 0
  %10200 = vmatprep.subr.bf16.mxu0 0
  %10201 = vmatpush2.bf16.msra.mxu0 0
  %10202 = vmatprep.subr.bf16.mxu0 0
  %10203 = vmatpush2.bf16.msra.mxu0 0
  %10204 = vmatprep.mubr.bf16.mxu0 0
  %10205 = vmatmul.mubr.bf16.gmra.mxu0 %v10100
  %v10206 = vpop.f32.mrf.mxu0
  %v10207 = vadd.f32 %v10123, %v10206
  %v10208 = vpop.f32.mrf.mxu0
  %v10209 = vpop.f32.mrf.mxu0
  %v10210 = vadd.f32 %v10123, %v10209
  %v10211 = vpop.f32.mrf.mxu0
  %10212 = vmatprep.mubr.bf16.mxu0 0
  %10213 = vmatmul.mubr.bf16.gmra.mxu0 %v10101
  %v10214 = vpop.f32.mrf.mxu0
  %v10215 = vadd.f32 %v10123, %v10214
  %v10216 = vpop.f32.mrf.mxu0
  %v10217 = vpop.f32.mrf.mxu0
  %v10218 = vadd.f32 %v10123, %v10217
  %v10219 = vpop.f32.mrf.mxu0
  %10220 = vmatprep.mubr.bf16.mxu0 0
  %10221 = vmatmul.mubr.bf16.gmra.mxu0 %v10102
  %v10222 = vpop.f32.mrf.mxu0
  %v10223 = vadd.f32 %v10123, %v10222
  %v10224 = vpop.f32.mrf.mxu0
  %v10225 = vpop.f32.mrf.mxu0
  %v10226 = vadd.f32 %v10123, %v10225
  %v10227 = vpop.f32.mrf.mxu0
  %10228 = vmatprep.mubr.bf16.mxu0 0
  %10229 = vmatmul.mubr.bf16.gmra.mxu0 %v10103
  %v10230 = vpop.f32.mrf.mxu0
  %v10231 = vadd.f32 %v10123, %v10230
  %v10232 = vpop.f32.mrf.mxu0
  %v10233 = vpop.f32.mrf.mxu0
  %v10234 = vadd.f32 %v10123, %v10233
  %v10235 = vpop.f32.mrf.mxu0
  %10236 = vdwg.mxu0
  %v10237 = vtanh.pop %v10207
  %v10238 = vtanh.pop %v10210
  %v10239 = vtanh.pop %v10215
  %v10240 = vtanh.pop %v10218
  %v10241 = vtanh.pop %v10223
  %v10242 = vtanh.pop %v10226
  %v10243 = vtanh.pop %v10231
  %v10244 = vtanh.pop %v10234
  %v10245 = vpack.c.bf16 %v10238, %v10237
  %v10246 = vpack.c.bf16 %v10240, %v10239
  %v10247 = vpack.c.bf16 %v10242, %v10241
  %v10248 = vpack.c.bf16 %v10244, %v10243
  %v10249 = vld [vmem:[%s5] sm:$0xf]
  %v10250 = vld [vmem:[%s5 + $0x4] sm:$0xf]
  %v10251 = vld [vmem:[%s5 + $0x8] sm:$0xf]
  %v10252 = vld [vmem:[%s5 + $0xc] sm:$0xf]
  %v10253 = vld [vmem:[%s5 + $0x10] sm:$0xf]
  %v10254 = vld [vmem:[%s5 + $0x14] sm:$0xf]
  %v10255 = vld [vmem:[%s5 + $0x18] sm:$0xf]
  %v10256 = vld [vmem:[%s5 + $0x1c] sm:$0xf]
  %v10257 = vld [vmem:[%s5 + $0x20] sm:$0xf]
  %v10258 = vld [vmem:[%s5 + $0x24] sm:$0xf]
  %v10259 = vld [vmem:[%s5 + $0x28] sm:$0xf]
  %v10260 = vld [vmem:[%s5 + $0x2c] sm:$0xf]
  %v10261 = vld [vmem:[%s5 + $0x30] sm:$0xf]
  %v10262 = vld [vmem:[%s5 + $0x34] sm:$0xf]
  %v10263 = vld [vmem:[%s5 + $0x38] sm:$0xf]
  %v10264 = vld [vmem:[%s5 + $0x3c] sm:$0xf]
  %v10265 = vlaneseq
  %v10266 = vshrl.u32 %v10265, 7
  %v10267 = vsub.s32 0, %v10266
  %v10268 = vrot.slane %v34, %v10267
  %v10285 = vunpack.c.l.b16 %v10249
  %v10286 = vunpack.c.l.b16 %v10250
  %v10287 = vunpack.c.l.b16 %v10251
  %v10288 = vunpack.c.l.b16 %v10252
  %v10289 = vunpack.c.l.b16 %v10253
  %v10290 = vunpack.c.l.b16 %v10254
  %v10291 = vunpack.c.l.b16 %v10255
  %v10292 = vunpack.c.l.b16 %v10256
  %v10293 = vunpack.c.l.b16 %v10257
  %v10294 = vunpack.c.l.b16 %v10258
  %v10295 = vunpack.c.l.b16 %v10259
  %v10296 = vunpack.c.l.b16 %v10260
  %v10297 = vunpack.c.l.b16 %v10261
  %v10298 = vunpack.c.l.b16 %v10262
  %v10299 = vunpack.c.l.b16 %v10263
  %v10300 = vunpack.c.l.b16 %v10264
  %v10301 = vpack.c.b16 %v10286, %v10285
  %v10302 = vpack.c.b16 %v10288, %v10287
  %v10303 = vpack.c.b16 %v10290, %v10289
  %v10304 = vpack.c.b16 %v10292, %v10291
  %v10305 = vpack.c.b16 %v10294, %v10293
  %v10306 = vpack.c.b16 %v10296, %v10295
  %v10307 = vpack.c.b16 %v10298, %v10297
  %v10308 = vpack.c.b16 %v10300, %v10299
  %10317 = vmatprep.subr.bf16.mxu0 0
  %10318 = vmatpush1.bf16.msra.mxu0 %v10308
  %10319 = vmatprep.subr.bf16.mxu0 0
  %10320 = vmatpush1.bf16.msra.mxu0 %v10307
  %10321 = vmatprep.subr.bf16.mxu0 0
  %10322 = vmatpush1.bf16.msra.mxu0 %v10306
  %10323 = vmatprep.subr.bf16.mxu0 0
  %10324 = vmatpush1.bf16.msra.mxu0 %v10305
  %10325 = vmatprep.subr.bf16.mxu0 0
  %10326 = vmatpush1.bf16.msra.mxu0 %v10304
  %10327 = vmatprep.subr.bf16.mxu0 0
  %10328 = vmatpush1.bf16.msra.mxu0 %v10303
  %10329 = vmatprep.subr.bf16.mxu0 0
  %10330 = vmatpush1.bf16.msra.mxu0 %v10302
  %10331 = vmatprep.subr.bf16.mxu0 0
  %10332 = vmatpush1.bf16.msra.mxu0 %v10301
  %10333 = vmatprep.subr.bf16.mxu0 0
  %10334 = vmatpush2.bf16.msra.mxu0 0
  %10335 = vmatprep.subr.bf16.mxu0 0
  %10336 = vmatpush2.bf16.msra.mxu0 0
  %10337 = vmatprep.subr.bf16.mxu0 0
  %10338 = vmatpush2.bf16.msra.mxu0 0
  %10339 = vmatprep.subr.bf16.mxu0 0
  %10340 = vmatpush2.bf16.msra.mxu0 0
  %10341 = vmatprep.subr.bf16.mxu0 0
  %10342 = vmatpush2.bf16.msra.mxu0 0
  %10343 = vmatprep.subr.bf16.mxu0 0
  %10344 = vmatpush2.bf16.msra.mxu0 0
  %10345 = vmatprep.subr.bf16.mxu0 0
  %10346 = vmatpush2.bf16.msra.mxu0 0
  %10347 = vmatprep.subr.bf16.mxu0 0
  %10348 = vmatpush2.bf16.msra.mxu0 0
  %10349 = vmatprep.mubr.bf16.mxu0 0
  %10350 = vmatmul.mubr.bf16.gmra.mxu0 %v10245
  %v10351 = vpop.f32.mrf.mxu0
  %v10352 = vadd.f32 %v10268, %v10351
  %v10353 = vpop.f32.mrf.mxu0
  %v10354 = vpop.f32.mrf.mxu0
  %v10355 = vadd.f32 %v10268, %v10354
  %v10356 = vpop.f32.mrf.mxu0
  %10357 = vmatprep.mubr.bf16.mxu0 0
  %10358 = vmatmul.mubr.bf16.gmra.mxu0 %v10246
  %v10359 = vpop.f32.mrf.mxu0
  %v10360 = vadd.f32 %v10268, %v10359
  %v10361 = vpop.f32.mrf.mxu0
  %v10362 = vpop.f32.mrf.mxu0
  %v10363 = vadd.f32 %v10268, %v10362
  %v10364 = vpop.f32.mrf.mxu0
  %10365 = vmatprep.mubr.bf16.mxu0 0
  %10366 = vmatmul.mubr.bf16.gmra.mxu0 %v10247
  %v10367 = vpop.f32.mrf.mxu0
  %v10368 = vadd.f32 %v10268, %v10367
  %v10369 = vpop.f32.mrf.mxu0
  %v10370 = vpop.f32.mrf.mxu0
  %v10371 = vadd.f32 %v10268, %v10370
  %v10372 = vpop.f32.mrf.mxu0
  %10373 = vmatprep.mubr.bf16.mxu0 0
  %10374 = vmatmul.mubr.bf16.gmra.mxu0 %v10248
  %v10375 = vpop.f32.mrf.mxu0
  %v10376 = vadd.f32 %v10268, %v10375
  %v10377 = vpop.f32.mrf.mxu0
  %v10378 = vpop.f32.mrf.mxu0
  %v10379 = vadd.f32 %v10268, %v10378
  %v10380 = vpop.f32.mrf.mxu0
  %10381 = vdwg.mxu0
  %10382 = vst [vmem:[%s8] sm:$0xff] %v10352
  %10383 = vst [vmem:[%s8 + $0x8] sm:$0xff] %v10355
  %10384 = vst [vmem:[%s8 + $0x10] sm:$0xff] %v10360
  %10385 = vst [vmem:[%s8 + $0x18] sm:$0xff] %v10363
  %10386 = vst [vmem:[%s8 + $0x20] sm:$0xff] %v10368
  %10387 = vst [vmem:[%s8 + $0x28] sm:$0xff] %v10371
  %10388 = vst [vmem:[%s8 + $0x30] sm:$0xff] %v10376
  %10389 = vst [vmem:[%s8 + $0x38] sm:$0xff] %v10379
  // Predicated region
  $region41: #{lenet_forward.1} parent=0 // pred_check
    _
  $region42: #{lenet_forward.1} parent=0 // pred_check_branch
    %10391 = sbr.rel (0) target = $region44
  $region43: #{lenet_forward.1} parent=0 // pred_region
    _
  $region44: #{lenet_forward.1} parent=0 // pred_fallthru
    _
  // Predicated region
  $region45: #{lenet_forward.1} parent=0 // pred_check
    _
  $region46: #{lenet_forward.1} parent=0 // pred_check_branch
    %10393 = sbr.rel (0) target = $region48
  $region47: #{lenet_forward.1} parent=0 // pred_region
    _
  $region48: #{lenet_forward.1} parent=0 // pred_fallthru
    _

</llo_original>
